<compile_context>
chip_gen: v7x
topology: tpu7x:2x2x1
jax: 0.10.0
libtpu: 0.0.40
codegen_flags: <defaults>
</compile_context>

<pallas_src>
import functools
import numpy as np
import jax
import jax.numpy as jnp
from jax.experimental import pallas as pl
from jax.experimental.pallas import tpu as pltpu  # noqa: F401  (TPU backend)

# ----------------------------- model constants ------------------------------
VOCAB = 1000
SEQ = 8
D1 = 32            # text encoder 1 hidden dim
D2 = 64            # text encoder 2 hidden dim
PROJ = 32          # text_encoder_2 projection_dim (pooled prompt embeds)
C_LAT = 4          # unet.config.in_channels
CM = 64            # UNet model width
TIME_FEAT = 16     # sinusoidal time-feature dim
VAE_SCALE_FACTOR = 0.13025
NUM_STEPS = 4

_SIGMA_MAX, _SIGMA_MIN = 14.6146, 0.0292
_SIGMAS = np.concatenate(
    [np.linspace(_SIGMA_MAX, _SIGMA_MIN, NUM_STEPS), [0.0]]).astype(np.float32)
_TIMESTEPS = np.linspace(999.0, 1.0, NUM_STEPS).astype(np.float32)
INIT_NOISE_SIGMA = float(np.sqrt(_SIGMA_MAX ** 2 + 1.0))


# ------------------------------ the fused kernel ------------------------------
def _monolith_kernel(emb1_ref, emb2_ref, lat_ref, tids_ref, temb_ref,
                     w11_ref, b11_ref,
                     w21_ref, b21_ref, w22_ref, b22_ref,
                     wp_ref, bp_ref,
                     w_t_ref, b_t_ref,
                     w_add_p_ref, w_add_t_ref, b_add_ref,
                     w_in_ref, b_in_ref,
                     wq_ref, wkv1_ref, wkv2_ref, wo_ref,
                     w_out_ref, b_out_ref,
                     w_vae_ref, b_vae_ref,
                     rgb_ref,
                     *, batch, seq, sq, sigmas, init_sigma, attn_scale):
    """Text encoders + pooled proj + full denoising loop + folded VAE, one pass."""
    f32 = jnp.float32

    def silu(y):
        return y * pl.reciprocal(1.0 + jnp.exp(-y), approx=True)

    # ---------------- text encoders (hidden_states[-2] of each) ----------------
    pe1 = jnp.tanh(jnp.dot(emb1_ref[...], w11_ref[...],
                           preferred_element_type=f32) + b11_ref[...])   # (B*S, D1)
    g1 = jnp.tanh(jnp.dot(emb2_ref[...], w21_ref[...],
                          preferred_element_type=f32) + b21_ref[...])    # (B*S, D2)
    g2 = jnp.tanh(jnp.dot(g1, w22_ref[...],
                          preferred_element_type=f32) + b22_ref[...])    # (B*S, D2)

    # pooled prompt embeds: last token of each sequence of g2, then projection.
    # (one-hot selection matmul -- MXU-friendly, no strided gathers)
    rows = jax.lax.broadcasted_iota(jnp.int32, (batch, batch * seq), 0)
    cols = jax.lax.broadcasted_iota(jnp.int32, (batch, batch * seq), 1)
    sel = (cols == rows * seq + (seq - 1)).astype(f32)                   # (B, B*S)
    last = jnp.dot(sel, g2, preferred_element_type=f32)                  # (B, D2)
    pooled = jnp.dot(last, wp_ref[...],
                     preferred_element_type=f32) + bp_ref[...]           # (B, PROJ)

    # ------------- UNet step-invariant projections (hoisted) -------------------
    # k/v from the (never materialized) concat(pe1, g1) via row-split, column-
    # fused [wk|wv] slabs -> one lane-dense 128-wide result per encoder.
    kv = (jnp.dot(pe1, wkv1_ref[...], preferred_element_type=f32)
          + jnp.dot(g1, wkv2_ref[...], preferred_element_type=f32))      # (B*S, 2*CM)
    cm = wq_ref.shape[1]
    k = kv[:, :cm]                                                       # (B*S, CM)
    v = kv[:, cm:]                                                       # (B*S, CM)

    # add-conditioning embedding: silu([pooled | time_ids] @ w_add + b_add)
    add_emb = silu(jnp.dot(pooled, w_add_p_ref[...], preferred_element_type=f32)
                   + jnp.dot(tids_ref[...], w_add_t_ref[...],
                             preferred_element_type=f32)
                   + b_add_ref[...])                                     # (B, CM)
    # time embedding for every scheduler step (batch independent)
    temb_emb = silu(jnp.dot(temb_ref[...], w_t_ref[...],
                            preferred_element_type=f32) + b_t_ref[...])  # (steps, CM)

    # broadcast add_emb to latent rows once (one-hot (B*Sq, B) matmul, no division)
    r2 = jax.lax.broadcasted_iota(jnp.int32, (batch * sq, batch), 0)
    c2 = jax.lax.broadcasted_iota(jnp.int32, (batch * sq, batch), 1)
    onehot = ((r2 >= c2 * sq) & (r2 < (c2 + 1) * sq)).astype(f32)        # (B*Sq, B)
    add_rows = jnp.dot(onehot, add_emb, preferred_element_type=f32)      # (B*Sq, CM)

    # block-diagonal attention mask: queries of item b attend only to its keys
    qr = jax.lax.broadcasted_iota(jnp.int32, (batch * sq, batch * seq), 0)
    kc = jax.lax.broadcasted_iota(jnp.int32, (batch * sq, batch * seq), 1)
    attn_mask = None
    for b in range(batch):
        blk = ((qr >= b * sq) & (qr < (b + 1) * sq)
               & (kc >= b * seq) & (kc < (b + 1) * seq))
        attn_mask = blk if attn_mask is None else (attn_mask | blk)

    # ----------------------------- denoising loop ------------------------------
    lat = lat_ref[...] * init_sigma                                      # (B*Sq, C)
    num_steps = len(sigmas) - 1
    for i in range(num_steps):
        sigma = sigmas[i]
        dt = sigmas[i + 1] - sigma
        c_in = 1.0 / float(np.sqrt(sigma * sigma + 1.0))                 # scale_model_input

        h = silu(jnp.dot(lat * c_in, w_in_ref[...],
                         preferred_element_type=f32) + b_in_ref[...])
        h = h + add_rows + temb_emb[i:i + 1, :]                          # (B*Sq, CM)

        # residual cross-attention (q @ k^T via dot_general, no transpose)
        q = jnp.dot(h, wq_ref[...], preferred_element_type=f32)          # (B*Sq, CM)
        s = jax.lax.dot_general(q, k, (((1,), (1,)), ((), ())),
                                preferred_element_type=f32) * attn_scale  # (B*Sq, B*S)
        s = jnp.where(attn_mask, s, -1e30)
        s = s - jnp.max(s, axis=-1, keepdims=True)
        p = jnp.exp(s)
        p = p * pl.reciprocal(jnp.sum(p, axis=-1, keepdims=True), approx=True)
        a = jnp.dot(p, v, preferred_element_type=f32)                    # (B*Sq, CM)
        h = h + jnp.dot(a, wo_ref[...], preferred_element_type=f32)

        eps = jnp.dot(h, w_out_ref[...],
                      preferred_element_type=f32) + b_out_ref[...]       # (B*Sq, C)
        lat = lat + dt * eps                                             # Euler step

    # -------- fused "VAE decode" (constants pre-folded into w_vae/b_vae) -------
    y = jnp.dot(lat, w_vae_ref[...], preferred_element_type=f32) + b_vae_ref[...]
    rgb_ref[...] = jnp.round(jnp.clip(y, 0.0, 255.0))


# ------------------------------ kernel wrapper --------------------------------
def _fused_pipeline(params, emb1, emb2, lat, time_ids, temb_all,
                    w_vae_f, b_vae_f, batch, seq, sq):
    p1, p2, up = params["te1"], params["te2"], params["unet"]
    (w11, b11) = p1["layers"][0]
    (w21, b21), (w22, b22) = p2["layers"]

    kernel = functools.partial(
        _monolith_kernel,
        batch=batch, seq=seq, sq=sq,
        sigmas=tuple(float(s) for s in _SIGMAS),
        init_sigma=float(INIT_NOISE_SIGMA),
        attn_scale=float(1.0 / np.sqrt(CM)),
    )

    # Single program, no grid: every operand is a whole-array VMEM block
    # (total working set << 1 MiB, far under any generation's VMEM).
    rgb = pl.pallas_call(
        kernel,
        out_shape=jax.ShapeDtypeStruct((batch * sq, 3), jnp.float32),
    )(emb1, emb2, lat, time_ids, temb_all,
      w11, b11, w21, b21, w22, b22, p2["w_proj"], p2["b_proj"],
      up["w_t"], up["b_t"],
      up["w_add_p"], up["w_add_t"], up["b_add"],
      up["w_in"], up["b_in"],
      up["wq"], up["wkv1"], up["wkv2"], up["wo"],
      up["w_out"], up["b_out"],
      w_vae_f, b_vae_f)
    return rgb


# ------------------------------ parameter init --------------------------------
def init_params(key):
    ks = list(jax.random.split(key, 24))

    def w(shape, scale=0.02):
        return jax.random.normal(ks.pop(), shape, jnp.float32) * scale

    def zeros(n):
        return jnp.zeros((1, n), jnp.float32)

    params = {
        "te1": {
            "embed": w((VOCAB, D1)),
            "layers": [(w((D1, D1)), zeros(D1)), (w((D1, D1)), zeros(D1))],
        },
        "te2": {
            "embed": w((VOCAB, D2)),
            "layers": [(w((D2, D2)), zeros(D2)), (w((D2, D2)), zeros(D2))],
            "w_proj": w((D2, PROJ)),
            "b_proj": zeros(PROJ),
        },
        "unet": {
            "w_t": w((TIME_FEAT, CM)), "b_t": zeros(CM),
            # add-embedding weight split by input rows: [pooled | time_ids]
            "w_add_p": w((PROJ, CM)), "w_add_t": w((6, CM)), "b_add": zeros(CM),
            "w_in": w((C_LAT, CM)), "b_in": zeros(CM),
            "wq": w((CM, CM)),
            # k/v weights: rows split per text encoder, columns fused [wk | wv]
            "wkv1": w((D1, 2 * CM)), "wkv2": w((D2, 2 * CM)),
            "wo": w((CM, CM)),
            "w_out": w((CM, C_LAT)), "b_out": zeros(C_LAT),
        },
        "vae": {"w": w((C_LAT, 3)), "b": zeros(3)},
    }
    return params


# ------------------------------ full forward ----------------------------------
def monolithic_sdxl_forward(params, prompt_ids_1, prompt_ids_2,
                            height, width, noise_key):
    h, w = int(height), int(width)
    bs, s = prompt_ids_1.shape
    hl, wl = h // 8, w // 8
    sq = hl * wl

    add_time_ids = jnp.tile(
        jnp.array([[h, w, 0, 0, h, w]], jnp.float32), (bs, 1))           # (bs, 6)

    # initial latents (NHWC), stacked to (bs*sq, C) rows for full MXU height
    initial_latents = jax.random.normal(
        noise_key, (bs, hl, wl, C_LAT), jnp.float32)
    lat = initial_latents.reshape(bs * sq, C_LAT)

    # embedding gathers (data-dependent gather stays in XLA glue)
    emb1 = jnp.take(params["te1"]["embed"], prompt_ids_1, axis=0).reshape(bs * s, D1)
    emb2 = jnp.take(params["te2"]["embed"], prompt_ids_2, axis=0).reshape(bs * s, D2)

    # sinusoidal time features for every scheduler timestep (host constants)
    half = TIME_FEAT // 2
    freqs = np.exp(-np.arange(half, dtype=np.float32) * (np.log(10000.0) / half))
    temb_all = jnp.asarray(np.stack(
        [np.concatenate([np.sin(t * freqs), np.cos(t * freqs)])
         for t in _TIMESTEPS]).astype(np.float32))                       # (steps, TF)

    # fold VAE scale factor and (x/2+0.5)*255 post-processing into the 1x1 conv
    w_vae_f = params["vae"]["w"] * (0.5 * 255.0 / VAE_SCALE_FACTOR)
    b_vae_f = (params["vae"]["b"] * 0.5 + 0.5) * 255.0

    # ONE fused kernel: text encoders + denoising loop + folded VAE conv
    rgb = _fused_pipeline(params, emb1, emb2, lat, add_time_ids, temb_all,
                          w_vae_f, b_vae_f, bs, s, sq)                   # (bs*sq, 3)

    # cast to uint8 BEFORE the x8 nearest upsample (the only large HBM tensor
    # is then written/read as uint8).  1x1 conv commutes with nearest upsample,
    # so conv-then-upsample equals the reference upsample-then-conv.
    rgb_small = rgb.reshape(bs, hl, wl, 3).astype(jnp.uint8)
    image = jnp.repeat(jnp.repeat(rgb_small, 8, axis=1), 8, axis=2)
    return image                                                          # NHWC uint8


# ----------------------------------- main --------------------------------------
if __name__ == "__main__":
    key = jax.random.PRNGKey(0)
    k1, k2, k_noise = jax.random.split(key, 3)

    bs = 2
    prompt_ids_1 = jax.random.randint(k1, (bs, SEQ), 0, VOCAB)
    prompt_ids_2 = jax.random.randint(k2, (bs, SEQ), 0, VOCAB)
    height = jnp.array(64, jnp.int32)
    width = jnp.array(64, jnp.int32)

    params = init_params(jax.random.PRNGKey(42))

    image = monolithic_sdxl_forward(params, prompt_ids_1, prompt_ids_2,
                                    height, width, noise_key=k_noise)
    image = jax.block_until_ready(image)

    assert image.shape == (bs, 64, 64, 3), image.shape
    assert image.dtype == jnp.uint8, image.dtype
    print("KERNEL_OK")
</pallas_src>

<mosaic_0001>
module attributes {stable_mosaic.version = 11 : i64} {
  func.func @_monolith_kernel(%arg0: memref<16x32xf32, #tpu.memory_space<vmem>>, %arg1: memref<16x64xf32, #tpu.memory_space<vmem>>, %arg2: memref<128x4xf32, #tpu.memory_space<vmem>>, %arg3: memref<2x6xf32, #tpu.memory_space<vmem>>, %arg4: memref<4x16xf32, #tpu.memory_space<vmem>>, %arg5: memref<32x32xf32, #tpu.memory_space<vmem>>, %arg6: memref<1x32xf32, #tpu.memory_space<vmem>>, %arg7: memref<64x64xf32, #tpu.memory_space<vmem>>, %arg8: memref<1x64xf32, #tpu.memory_space<vmem>>, %arg9: memref<64x64xf32, #tpu.memory_space<vmem>>, %arg10: memref<1x64xf32, #tpu.memory_space<vmem>>, %arg11: memref<64x32xf32, #tpu.memory_space<vmem>>, %arg12: memref<1x32xf32, #tpu.memory_space<vmem>>, %arg13: memref<16x64xf32, #tpu.memory_space<vmem>>, %arg14: memref<1x64xf32, #tpu.memory_space<vmem>>, %arg15: memref<32x64xf32, #tpu.memory_space<vmem>>, %arg16: memref<6x64xf32, #tpu.memory_space<vmem>>, %arg17: memref<1x64xf32, #tpu.memory_space<vmem>>, %arg18: memref<4x64xf32, #tpu.memory_space<vmem>>, %arg19: memref<1x64xf32, #tpu.memory_space<vmem>>, %arg20: memref<64x64xf32, #tpu.memory_space<vmem>>, %arg21: memref<32x128xf32, #tpu.memory_space<vmem>>, %arg22: memref<64x128xf32, #tpu.memory_space<vmem>>, %arg23: memref<64x64xf32, #tpu.memory_space<vmem>>, %arg24: memref<64x4xf32, #tpu.memory_space<vmem>>, %arg25: memref<1x4xf32, #tpu.memory_space<vmem>>, %arg26: memref<4x3xf32, #tpu.memory_space<vmem>>, %arg27: memref<1x3xf32, #tpu.memory_space<vmem>>, %arg28: memref<128x3xf32, #tpu.memory_space<vmem>>) attributes {dimension_semantics = [], scalar_prefetch = 0 : i64, scratch_operands = 0 : i64, tpu.core_type = #tpu.core_type<tc>} {
    %c0 = arith.constant 0 : index
    %c0_0 = arith.constant 0 : index
    %0 = vector.load %arg0[%c0, %c0_0] : memref<16x32xf32, #tpu.memory_space<vmem>>, vector<16x32xf32>
    %c0_1 = arith.constant 0 : index
    %c0_2 = arith.constant 0 : index
    %1 = vector.load %arg5[%c0_1, %c0_2] : memref<32x32xf32, #tpu.memory_space<vmem>>, vector<32x32xf32>
    %cst = arith.constant dense<0.000000e+00> : vector<16x32xf32>
    %2 = tpu.matmul %0, %1, %cst {dimension_numbers = #tpu.dot_dimension_numbers<[1], [0], [0], [1], [0, 0, 1, 1], [], []>} : vector<16x32xf32>, vector<32x32xf32>, vector<16x32xf32> -> vector<16x32xf32>
    %c0_3 = arith.constant 0 : index
    %c0_4 = arith.constant 0 : index
    %3 = vector.load %arg6[%c0_3, %c0_4] : memref<1x32xf32, #tpu.memory_space<vmem>>, vector<1x32xf32>
    %4 = vector.broadcast %3 : vector<1x32xf32> to vector<16x32xf32>
    %5 = arith.addf %2, %4 : vector<16x32xf32>
    %6 = math.tanh %5 : vector<16x32xf32>
    %c0_5 = arith.constant 0 : index
    %c0_6 = arith.constant 0 : index
    %7 = vector.load %arg1[%c0_5, %c0_6] : memref<16x64xf32, #tpu.memory_space<vmem>>, vector<16x64xf32>
    %c0_7 = arith.constant 0 : index
    %c0_8 = arith.constant 0 : index
    %8 = vector.load %arg7[%c0_7, %c0_8] : memref<64x64xf32, #tpu.memory_space<vmem>>, vector<64x64xf32>
    %cst_9 = arith.constant dense<0.000000e+00> : vector<16x64xf32>
    %9 = tpu.matmul %7, %8, %cst_9 {dimension_numbers = #tpu.dot_dimension_numbers<[1], [0], [0], [1], [0, 0, 1, 1], [], []>} : vector<16x64xf32>, vector<64x64xf32>, vector<16x64xf32> -> vector<16x64xf32>
    %c0_10 = arith.constant 0 : index
    %c0_11 = arith.constant 0 : index
    %10 = vector.load %arg8[%c0_10, %c0_11] : memref<1x64xf32, #tpu.memory_space<vmem>>, vector<1x64xf32>
    %11 = vector.broadcast %10 : vector<1x64xf32> to vector<16x64xf32>
    %12 = arith.addf %9, %11 : vector<16x64xf32>
    %13 = math.tanh %12 : vector<16x64xf32>
    %c0_12 = arith.constant 0 : index
    %c0_13 = arith.constant 0 : index
    %14 = vector.load %arg9[%c0_12, %c0_13] : memref<64x64xf32, #tpu.memory_space<vmem>>, vector<64x64xf32>
    %cst_14 = arith.constant dense<0.000000e+00> : vector<16x64xf32>
    %15 = tpu.matmul %13, %14, %cst_14 {dimension_numbers = #tpu.dot_dimension_numbers<[1], [0], [0], [1], [0, 0, 1, 1], [], []>} : vector<16x64xf32>, vector<64x64xf32>, vector<16x64xf32> -> vector<16x64xf32>
    %c0_15 = arith.constant 0 : index
    %c0_16 = arith.constant 0 : index
    %16 = vector.load %arg10[%c0_15, %c0_16] : memref<1x64xf32, #tpu.memory_space<vmem>>, vector<1x64xf32>
    %17 = vector.broadcast %16 : vector<1x64xf32> to vector<16x64xf32>
    %18 = arith.addf %15, %17 : vector<16x64xf32>
    %19 = math.tanh %18 : vector<16x64xf32>
    %20 = tpu.iota {dimensions = array<i32: 0>} : vector<2x16xi32>
    %21 = tpu.iota {dimensions = array<i32: 1>} : vector<2x16xi32>
    %c8_i32 = arith.constant 8 : i32
    %22 = vector.broadcast %c8_i32 : i32 to vector<2x16xi32>
    %23 = arith.muli %20, %22 : vector<2x16xi32>
    %c7_i32 = arith.constant 7 : i32
    %24 = vector.broadcast %c7_i32 : i32 to vector<2x16xi32>
    %25 = arith.addi %23, %24 : vector<2x16xi32>
    %26 = arith.cmpi eq, %21, %25 : vector<2x16xi32>
    %27 = arith.extui %26 : vector<2x16xi1> to vector<2x16xi32>
    %28 = arith.sitofp %27 : vector<2x16xi32> to vector<2x16xf32>
    %cst_17 = arith.constant dense<0.000000e+00> : vector<2x64xf32>
    %29 = tpu.matmul %28, %19, %cst_17 {dimension_numbers = #tpu.dot_dimension_numbers<[1], [0], [0], [1], [0, 0, 1, 1], [], []>} : vector<2x16xf32>, vector<16x64xf32>, vector<2x64xf32> -> vector<2x64xf32>
    %c0_18 = arith.constant 0 : index
    %c0_19 = arith.constant 0 : index
    %30 = vector.load %arg11[%c0_18, %c0_19] : memref<64x32xf32, #tpu.memory_space<vmem>>, vector<64x32xf32>
    %cst_20 = arith.constant dense<0.000000e+00> : vector<2x32xf32>
    %31 = tpu.matmul %29, %30, %cst_20 {dimension_numbers = #tpu.dot_dimension_numbers<[1], [0], [0], [1], [0, 0, 1, 1], [], []>} : vector<2x64xf32>, vector<64x32xf32>, vector<2x32xf32> -> vector<2x32xf32>
    %c0_21 = arith.constant 0 : index
    %c0_22 = arith.constant 0 : index
    %32 = vector.load %arg12[%c0_21, %c0_22] : memref<1x32xf32, #tpu.memory_space<vmem>>, vector<1x32xf32>
    %33 = vector.broadcast %32 : vector<1x32xf32> to vector<2x32xf32>
    %34 = arith.addf %31, %33 : vector<2x32xf32>
    %c0_23 = arith.constant 0 : index
    %c0_24 = arith.constant 0 : index
    %35 = vector.load %arg21[%c0_23, %c0_24] : memref<32x128xf32, #tpu.memory_space<vmem>>, vector<32x128xf32>
    %cst_25 = arith.constant dense<0.000000e+00> : vector<16x128xf32>
    %36 = tpu.matmul %6, %35, %cst_25 {dimension_numbers = #tpu.dot_dimension_numbers<[1], [0], [0], [1], [0, 0, 1, 1], [], []>} : vector<16x32xf32>, vector<32x128xf32>, vector<16x128xf32> -> vector<16x128xf32>
    %c0_26 = arith.constant 0 : index
    %c0_27 = arith.constant 0 : index
    %37 = vector.load %arg22[%c0_26, %c0_27] : memref<64x128xf32, #tpu.memory_space<vmem>>, vector<64x128xf32>
    %cst_28 = arith.constant dense<0.000000e+00> : vector<16x128xf32>
    %38 = tpu.matmul %13, %37, %cst_28 {dimension_numbers = #tpu.dot_dimension_numbers<[1], [0], [0], [1], [0, 0, 1, 1], [], []>} : vector<16x64xf32>, vector<64x128xf32>, vector<16x128xf32> -> vector<16x128xf32>
    %39 = arith.addf %36, %38 : vector<16x128xf32>
    %40 = vector.extract_strided_slice %39 {offsets = [0, 0], sizes = [16, 64], strides = [1, 1]} : vector<16x128xf32> to vector<16x64xf32>
    %41 = vector.extract_strided_slice %39 {offsets = [0, 64], sizes = [16, 64], strides = [1, 1]} : vector<16x128xf32> to vector<16x64xf32>
    %c0_29 = arith.constant 0 : index
    %c0_30 = arith.constant 0 : index
    %42 = vector.load %arg15[%c0_29, %c0_30] : memref<32x64xf32, #tpu.memory_space<vmem>>, vector<32x64xf32>
    %cst_31 = arith.constant dense<0.000000e+00> : vector<2x64xf32>
    %43 = tpu.matmul %34, %42, %cst_31 {dimension_numbers = #tpu.dot_dimension_numbers<[1], [0], [0], [1], [0, 0, 1, 1], [], []>} : vector<2x32xf32>, vector<32x64xf32>, vector<2x64xf32> -> vector<2x64xf32>
    %c0_32 = arith.constant 0 : index
    %c0_33 = arith.constant 0 : index
    %44 = vector.load %arg3[%c0_32, %c0_33] : memref<2x6xf32, #tpu.memory_space<vmem>>, vector<2x6xf32>
    %c0_34 = arith.constant 0 : index
    %c0_35 = arith.constant 0 : index
    %45 = vector.load %arg16[%c0_34, %c0_35] : memref<6x64xf32, #tpu.memory_space<vmem>>, vector<6x64xf32>
    %cst_36 = arith.constant dense<0.000000e+00> : vector<2x64xf32>
    %46 = tpu.matmul %44, %45, %cst_36 {dimension_numbers = #tpu.dot_dimension_numbers<[1], [0], [0], [1], [0, 0, 1, 1], [], []>} : vector<2x6xf32>, vector<6x64xf32>, vector<2x64xf32> -> vector<2x64xf32>
    %47 = arith.addf %43, %46 : vector<2x64xf32>
    %c0_37 = arith.constant 0 : index
    %c0_38 = arith.constant 0 : index
    %48 = vector.load %arg17[%c0_37, %c0_38] : memref<1x64xf32, #tpu.memory_space<vmem>>, vector<1x64xf32>
    %49 = vector.broadcast %48 : vector<1x64xf32> to vector<2x64xf32>
    %50 = arith.addf %47, %49 : vector<2x64xf32>
    %cst_39 = arith.constant 0.000000e+00 : f32
    %51 = vector.broadcast %cst_39 : f32 to vector<2x64xf32>
    %52 = arith.subf %51, %50 : vector<2x64xf32>
    %53 = math.exp %52 : vector<2x64xf32>
    %cst_40 = arith.constant 1.000000e+00 : f32
    %54 = vector.broadcast %cst_40 : f32 to vector<2x64xf32>
    %55 = arith.addf %54, %53 : vector<2x64xf32>
    %56 = tpu.reciprocal %55 {approx = true} : vector<2x64xf32> -> vector<2x64xf32>
    %57 = arith.mulf %50, %56 : vector<2x64xf32>
    %c0_41 = arith.constant 0 : index
    %c0_42 = arith.constant 0 : index
    %58 = vector.load %arg4[%c0_41, %c0_42] : memref<4x16xf32, #tpu.memory_space<vmem>>, vector<4x16xf32>
    %c0_43 = arith.constant 0 : index
    %c0_44 = arith.constant 0 : index
    %59 = vector.load %arg13[%c0_43, %c0_44] : memref<16x64xf32, #tpu.memory_space<vmem>>, vector<16x64xf32>
    %cst_45 = arith.constant dense<0.000000e+00> : vector<4x64xf32>
    %60 = tpu.matmul %58, %59, %cst_45 {dimension_numbers = #tpu.dot_dimension_numbers<[1], [0], [0], [1], [0, 0, 1, 1], [], []>} : vector<4x16xf32>, vector<16x64xf32>, vector<4x64xf32> -> vector<4x64xf32>
    %c0_46 = arith.constant 0 : index
    %c0_47 = arith.constant 0 : index
    %61 = vector.load %arg14[%c0_46, %c0_47] : memref<1x64xf32, #tpu.memory_space<vmem>>, vector<1x64xf32>
    %62 = vector.broadcast %61 : vector<1x64xf32> to vector<4x64xf32>
    %63 = arith.addf %60, %62 : vector<4x64xf32>
    %cst_48 = arith.constant 0.000000e+00 : f32
    %64 = vector.broadcast %cst_48 : f32 to vector<4x64xf32>
    %65 = arith.subf %64, %63 : vector<4x64xf32>
    %66 = math.exp %65 : vector<4x64xf32>
    %cst_49 = arith.constant 1.000000e+00 : f32
    %67 = vector.broadcast %cst_49 : f32 to vector<4x64xf32>
    %68 = arith.addf %67, %66 : vector<4x64xf32>
    %69 = tpu.reciprocal %68 {approx = true} : vector<4x64xf32> -> vector<4x64xf32>
    %70 = arith.mulf %63, %69 : vector<4x64xf32>
    %71 = tpu.iota {dimensions = array<i32: 0>} : vector<128x2xi32>
    %72 = tpu.iota {dimensions = array<i32: 1>} : vector<128x2xi32>
    %c64_i32 = arith.constant 64 : i32
    %73 = vector.broadcast %c64_i32 : i32 to vector<128x2xi32>
    %74 = arith.muli %72, %73 : vector<128x2xi32>
    %75 = arith.cmpi sge, %71, %74 : vector<128x2xi32>
    %c1_i32 = arith.constant 1 : i32
    %76 = vector.broadcast %c1_i32 : i32 to vector<128x2xi32>
    %77 = arith.addi %72, %76 : vector<128x2xi32>
    %c64_i32_50 = arith.constant 64 : i32
    %78 = vector.broadcast %c64_i32_50 : i32 to vector<128x2xi32>
    %79 = arith.muli %77, %78 : vector<128x2xi32>
    %80 = arith.cmpi slt, %71, %79 : vector<128x2xi32>
    %81 = arith.andi %75, %80 : vector<128x2xi1>
    %82 = arith.extui %81 : vector<128x2xi1> to vector<128x2xi32>
    %83 = arith.sitofp %82 : vector<128x2xi32> to vector<128x2xf32>
    %cst_51 = arith.constant dense<0.000000e+00> : vector<128x64xf32>
    %84 = tpu.matmul %83, %57, %cst_51 {dimension_numbers = #tpu.dot_dimension_numbers<[1], [0], [0], [1], [0, 0, 1, 1], [], []>} : vector<128x2xf32>, vector<2x64xf32>, vector<128x64xf32> -> vector<128x64xf32>
    %85 = tpu.iota {dimensions = array<i32: 0>} : vector<128x16xi32>
    %86 = tpu.iota {dimensions = array<i32: 1>} : vector<128x16xi32>
    %c0_i32 = arith.constant 0 : i32
    %87 = vector.broadcast %c0_i32 : i32 to vector<128x16xi32>
    %88 = arith.cmpi sge, %85, %87 : vector<128x16xi32>
    %c64_i32_52 = arith.constant 64 : i32
    %89 = vector.broadcast %c64_i32_52 : i32 to vector<128x16xi32>
    %90 = arith.cmpi slt, %85, %89 : vector<128x16xi32>
    %91 = arith.andi %88, %90 : vector<128x16xi1>
    %c0_i32_53 = arith.constant 0 : i32
    %92 = vector.broadcast %c0_i32_53 : i32 to vector<128x16xi32>
    %93 = arith.cmpi sge, %86, %92 : vector<128x16xi32>
    %94 = arith.andi %91, %93 : vector<128x16xi1>
    %c8_i32_54 = arith.constant 8 : i32
    %95 = vector.broadcast %c8_i32_54 : i32 to vector<128x16xi32>
    %96 = arith.cmpi slt, %86, %95 : vector<128x16xi32>
    %97 = arith.andi %94, %96 : vector<128x16xi1>
    %c64_i32_55 = arith.constant 64 : i32
    %98 = vector.broadcast %c64_i32_55 : i32 to vector<128x16xi32>
    %99 = arith.cmpi sge, %85, %98 : vector<128x16xi32>
    %c128_i32 = arith.constant 128 : i32
    %100 = vector.broadcast %c128_i32 : i32 to vector<128x16xi32>
    %101 = arith.cmpi slt, %85, %100 : vector<128x16xi32>
    %102 = arith.andi %99, %101 : vector<128x16xi1>
    %c8_i32_56 = arith.constant 8 : i32
    %103 = vector.broadcast %c8_i32_56 : i32 to vector<128x16xi32>
    %104 = arith.cmpi sge, %86, %103 : vector<128x16xi32>
    %105 = arith.andi %102, %104 : vector<128x16xi1>
    %c16_i32 = arith.constant 16 : i32
    %106 = vector.broadcast %c16_i32 : i32 to vector<128x16xi32>
    %107 = arith.cmpi slt, %86, %106 : vector<128x16xi32>
    %108 = arith.andi %105, %107 : vector<128x16xi1>
    %109 = arith.ori %97, %108 : vector<128x16xi1>
    %c0_57 = arith.constant 0 : index
    %c0_58 = arith.constant 0 : index
    %110 = vector.load %arg2[%c0_57, %c0_58] : memref<128x4xf32, #tpu.memory_space<vmem>>, vector<128x4xf32>
    %cst_59 = arith.constant 14.6487722 : f32
    %111 = vector.broadcast %cst_59 : f32 to vector<128x4xf32>
    %112 = arith.mulf %110, %111 : vector<128x4xf32>
    %cst_60 = arith.constant 6.826510e-02 : f32
    %113 = vector.broadcast %cst_60 : f32 to vector<128x4xf32>
    %114 = arith.mulf %112, %113 : vector<128x4xf32>
    %c0_61 = arith.constant 0 : index
    %c0_62 = arith.constant 0 : index
    %115 = vector.load %arg18[%c0_61, %c0_62] : memref<4x64xf32, #tpu.memory_space<vmem>>, vector<4x64xf32>
    %cst_63 = arith.constant dense<0.000000e+00> : vector<128x64xf32>
    %116 = tpu.matmul %114, %115, %cst_63 {dimension_numbers = #tpu.dot_dimension_numbers<[1], [0], [0], [1], [0, 0, 1, 1], [], []>} : vector<128x4xf32>, vector<4x64xf32>, vector<128x64xf32> -> vector<128x64xf32>
    %c0_64 = arith.constant 0 : index
    %c0_65 = arith.constant 0 : index
    %117 = vector.load %arg19[%c0_64, %c0_65] : memref<1x64xf32, #tpu.memory_space<vmem>>, vector<1x64xf32>
    %118 = vector.broadcast %117 : vector<1x64xf32> to vector<128x64xf32>
    %119 = arith.addf %116, %118 : vector<128x64xf32>
    %cst_66 = arith.constant 0.000000e+00 : f32
    %120 = vector.broadcast %cst_66 : f32 to vector<128x64xf32>
    %121 = arith.subf %120, %119 : vector<128x64xf32>
    %122 = math.exp %121 : vector<128x64xf32>
    %cst_67 = arith.constant 1.000000e+00 : f32
    %123 = vector.broadcast %cst_67 : f32 to vector<128x64xf32>
    %124 = arith.addf %123, %122 : vector<128x64xf32>
    %125 = tpu.reciprocal %124 {approx = true} : vector<128x64xf32> -> vector<128x64xf32>
    %126 = arith.mulf %119, %125 : vector<128x64xf32>
    %127 = arith.addf %126, %84 : vector<128x64xf32>
    %128 = vector.extract_strided_slice %70 {offsets = [0, 0], sizes = [1, 64], strides = [1, 1]} : vector<4x64xf32> to vector<1x64xf32>
    %129 = vector.broadcast %128 : vector<1x64xf32> to vector<128x64xf32>
    %130 = arith.addf %127, %129 : vector<128x64xf32>
    %c0_68 = arith.constant 0 : index
    %c0_69 = arith.constant 0 : index
    %131 = vector.load %arg20[%c0_68, %c0_69] : memref<64x64xf32, #tpu.memory_space<vmem>>, vector<64x64xf32>
    %cst_70 = arith.constant dense<0.000000e+00> : vector<128x64xf32>
    %132 = tpu.matmul %130, %131, %cst_70 {dimension_numbers = #tpu.dot_dimension_numbers<[1], [0], [0], [1], [0, 0, 1, 1], [], []>} : vector<128x64xf32>, vector<64x64xf32>, vector<128x64xf32> -> vector<128x64xf32>
    %cst_71 = arith.constant dense<0.000000e+00> : vector<128x16xf32>
    %133 = tpu.matmul %132, %40, %cst_71 {dimension_numbers = #tpu.dot_dimension_numbers<[1], [1], [0], [0], [0, 0, 1, 0], [], []>} : vector<128x64xf32>, vector<16x64xf32>, vector<128x16xf32> -> vector<128x16xf32>
    %cst_72 = arith.constant 1.250000e-01 : f32
    %134 = vector.broadcast %cst_72 : f32 to vector<128x16xf32>
    %135 = arith.mulf %133, %134 : vector<128x16xf32>
    %cst_73 = arith.constant -1.000000e+30 : f32
    %136 = vector.broadcast %cst_73 : f32 to vector<128x16xf32>
    %137 = arith.select %109, %135, %136 : vector<128x16xi1>, vector<128x16xf32>
    %cst_74 = arith.constant dense<0xFF800000> : vector<128xf32>
    %138 = vector.multi_reduction <maximumf>, %137, %cst_74 [1] : vector<128x16xf32> to vector<128xf32>
    %139 = vector.shape_cast %138 : vector<128xf32> to vector<128x1xf32>
    %140 = vector.broadcast %139 : vector<128x1xf32> to vector<128x16xf32>
    %141 = arith.subf %137, %140 : vector<128x16xf32>
    %142 = math.exp %141 : vector<128x16xf32>
    %cst_75 = arith.constant dense<0.000000e+00> : vector<128xf32>
    %143 = vector.multi_reduction <add>, %142, %cst_75 [1] : vector<128x16xf32> to vector<128xf32>
    %144 = vector.shape_cast %143 : vector<128xf32> to vector<128x1xf32>
    %145 = tpu.reciprocal %144 {approx = true} : vector<128x1xf32> -> vector<128x1xf32>
    %146 = vector.broadcast %145 : vector<128x1xf32> to vector<128x16xf32>
    %147 = arith.mulf %142, %146 : vector<128x16xf32>
    %cst_76 = arith.constant dense<0.000000e+00> : vector<128x64xf32>
    %148 = tpu.matmul %147, %41, %cst_76 {dimension_numbers = #tpu.dot_dimension_numbers<[1], [0], [0], [1], [0, 0, 1, 1], [], []>} : vector<128x16xf32>, vector<16x64xf32>, vector<128x64xf32> -> vector<128x64xf32>
    %c0_77 = arith.constant 0 : index
    %c0_78 = arith.constant 0 : index
    %149 = vector.load %arg23[%c0_77, %c0_78] : memref<64x64xf32, #tpu.memory_space<vmem>>, vector<64x64xf32>
    %cst_79 = arith.constant dense<0.000000e+00> : vector<128x64xf32>
    %150 = tpu.matmul %148, %149, %cst_79 {dimension_numbers = #tpu.dot_dimension_numbers<[1], [0], [0], [1], [0, 0, 1, 1], [], []>} : vector<128x64xf32>, vector<64x64xf32>, vector<128x64xf32> -> vector<128x64xf32>
    %151 = arith.addf %130, %150 : vector<128x64xf32>
    %c0_80 = arith.constant 0 : index
    %c0_81 = arith.constant 0 : index
    %152 = vector.load %arg24[%c0_80, %c0_81] : memref<64x4xf32, #tpu.memory_space<vmem>>, vector<64x4xf32>
    %cst_82 = arith.constant dense<0.000000e+00> : vector<128x4xf32>
    %153 = tpu.matmul %151, %152, %cst_82 {dimension_numbers = #tpu.dot_dimension_numbers<[1], [0], [0], [1], [0, 0, 1, 1], [], []>} : vector<128x64xf32>, vector<64x4xf32>, vector<128x4xf32> -> vector<128x4xf32>
    %c0_83 = arith.constant 0 : index
    %c0_84 = arith.constant 0 : index
    %154 = vector.load %arg25[%c0_83, %c0_84] : memref<1x4xf32, #tpu.memory_space<vmem>>, vector<1x4xf32>
    %155 = vector.broadcast %154 : vector<1x4xf32> to vector<128x4xf32>
    %156 = arith.addf %153, %155 : vector<128x4xf32>
    %cst_85 = arith.constant -4.861800e+00 : f32
    %157 = vector.broadcast %cst_85 : f32 to vector<128x4xf32>
    %158 = arith.mulf %157, %156 : vector<128x4xf32>
    %159 = arith.addf %112, %158 : vector<128x4xf32>
    %cst_86 = arith.constant 0.101999879 : f32
    %160 = vector.broadcast %cst_86 : f32 to vector<128x4xf32>
    %161 = arith.mulf %159, %160 : vector<128x4xf32>
    %c0_87 = arith.constant 0 : index
    %c0_88 = arith.constant 0 : index
    %162 = vector.load %arg18[%c0_87, %c0_88] : memref<4x64xf32, #tpu.memory_space<vmem>>, vector<4x64xf32>
    %cst_89 = arith.constant dense<0.000000e+00> : vector<128x64xf32>
    %163 = tpu.matmul %161, %162, %cst_89 {dimension_numbers = #tpu.dot_dimension_numbers<[1], [0], [0], [1], [0, 0, 1, 1], [], []>} : vector<128x4xf32>, vector<4x64xf32>, vector<128x64xf32> -> vector<128x64xf32>
    %c0_90 = arith.constant 0 : index
    %c0_91 = arith.constant 0 : index
    %164 = vector.load %arg19[%c0_90, %c0_91] : memref<1x64xf32, #tpu.memory_space<vmem>>, vector<1x64xf32>
    %165 = vector.broadcast %164 : vector<1x64xf32> to vector<128x64xf32>
    %166 = arith.addf %163, %165 : vector<128x64xf32>
    %cst_92 = arith.constant 0.000000e+00 : f32
    %167 = vector.broadcast %cst_92 : f32 to vector<128x64xf32>
    %168 = arith.subf %167, %166 : vector<128x64xf32>
    %169 = math.exp %168 : vector<128x64xf32>
    %cst_93 = arith.constant 1.000000e+00 : f32
    %170 = vector.broadcast %cst_93 : f32 to vector<128x64xf32>
    %171 = arith.addf %170, %169 : vector<128x64xf32>
    %172 = tpu.reciprocal %171 {approx = true} : vector<128x64xf32> -> vector<128x64xf32>
    %173 = arith.mulf %166, %172 : vector<128x64xf32>
    %174 = arith.addf %173, %84 : vector<128x64xf32>
    %175 = vector.extract_strided_slice %70 {offsets = [1, 0], sizes = [1, 64], strides = [1, 1]} : vector<4x64xf32> to vector<1x64xf32>
    %176 = vector.broadcast %175 : vector<1x64xf32> to vector<128x64xf32>
    %177 = arith.addf %174, %176 : vector<128x64xf32>
    %c0_94 = arith.constant 0 : index
    %c0_95 = arith.constant 0 : index
    %178 = vector.load %arg20[%c0_94, %c0_95] : memref<64x64xf32, #tpu.memory_space<vmem>>, vector<64x64xf32>
    %cst_96 = arith.constant dense<0.000000e+00> : vector<128x64xf32>
    %179 = tpu.matmul %177, %178, %cst_96 {dimension_numbers = #tpu.dot_dimension_numbers<[1], [0], [0], [1], [0, 0, 1, 1], [], []>} : vector<128x64xf32>, vector<64x64xf32>, vector<128x64xf32> -> vector<128x64xf32>
    %cst_97 = arith.constant dense<0.000000e+00> : vector<128x16xf32>
    %180 = tpu.matmul %179, %40, %cst_97 {dimension_numbers = #tpu.dot_dimension_numbers<[1], [1], [0], [0], [0, 0, 1, 0], [], []>} : vector<128x64xf32>, vector<16x64xf32>, vector<128x16xf32> -> vector<128x16xf32>
    %cst_98 = arith.constant 1.250000e-01 : f32
    %181 = vector.broadcast %cst_98 : f32 to vector<128x16xf32>
    %182 = arith.mulf %180, %181 : vector<128x16xf32>
    %cst_99 = arith.constant -1.000000e+30 : f32
    %183 = vector.broadcast %cst_99 : f32 to vector<128x16xf32>
    %184 = arith.select %109, %182, %183 : vector<128x16xi1>, vector<128x16xf32>
    %cst_100 = arith.constant dense<0xFF800000> : vector<128xf32>
    %185 = vector.multi_reduction <maximumf>, %184, %cst_100 [1] : vector<128x16xf32> to vector<128xf32>
    %186 = vector.shape_cast %185 : vector<128xf32> to vector<128x1xf32>
    %187 = vector.broadcast %186 : vector<128x1xf32> to vector<128x16xf32>
    %188 = arith.subf %184, %187 : vector<128x16xf32>
    %189 = math.exp %188 : vector<128x16xf32>
    %cst_101 = arith.constant dense<0.000000e+00> : vector<128xf32>
    %190 = vector.multi_reduction <add>, %189, %cst_101 [1] : vector<128x16xf32> to vector<128xf32>
    %191 = vector.shape_cast %190 : vector<128xf32> to vector<128x1xf32>
    %192 = tpu.reciprocal %191 {approx = true} : vector<128x1xf32> -> vector<128x1xf32>
    %193 = vector.broadcast %192 : vector<128x1xf32> to vector<128x16xf32>
    %194 = arith.mulf %189, %193 : vector<128x16xf32>
    %cst_102 = arith.constant dense<0.000000e+00> : vector<128x64xf32>
    %195 = tpu.matmul %194, %41, %cst_102 {dimension_numbers = #tpu.dot_dimension_numbers<[1], [0], [0], [1], [0, 0, 1, 1], [], []>} : vector<128x16xf32>, vector<16x64xf32>, vector<128x64xf32> -> vector<128x64xf32>
    %c0_103 = arith.constant 0 : index
    %c0_104 = arith.constant 0 : index
    %196 = vector.load %arg23[%c0_103, %c0_104] : memref<64x64xf32, #tpu.memory_space<vmem>>, vector<64x64xf32>
    %cst_105 = arith.constant dense<0.000000e+00> : vector<128x64xf32>
    %197 = tpu.matmul %195, %196, %cst_105 {dimension_numbers = #tpu.dot_dimension_numbers<[1], [0], [0], [1], [0, 0, 1, 1], [], []>} : vector<128x64xf32>, vector<64x64xf32>, vector<128x64xf32> -> vector<128x64xf32>
    %198 = arith.addf %177, %197 : vector<128x64xf32>
    %c0_106 = arith.constant 0 : index
    %c0_107 = arith.constant 0 : index
    %199 = vector.load %arg24[%c0_106, %c0_107] : memref<64x4xf32, #tpu.memory_space<vmem>>, vector<64x4xf32>
    %cst_108 = arith.constant dense<0.000000e+00> : vector<128x4xf32>
    %200 = tpu.matmul %198, %199, %cst_108 {dimension_numbers = #tpu.dot_dimension_numbers<[1], [0], [0], [1], [0, 0, 1, 1], [], []>} : vector<128x64xf32>, vector<64x4xf32>, vector<128x4xf32> -> vector<128x4xf32>
    %c0_109 = arith.constant 0 : index
    %c0_110 = arith.constant 0 : index
    %201 = vector.load %arg25[%c0_109, %c0_110] : memref<1x4xf32, #tpu.memory_space<vmem>>, vector<1x4xf32>
    %202 = vector.broadcast %201 : vector<1x4xf32> to vector<128x4xf32>
    %203 = arith.addf %200, %202 : vector<128x4xf32>
    %cst_111 = arith.constant -4.861800e+00 : f32
    %204 = vector.broadcast %cst_111 : f32 to vector<128x4xf32>
    %205 = arith.mulf %204, %203 : vector<128x4xf32>
    %206 = arith.addf %159, %205 : vector<128x4xf32>
    %cst_112 = arith.constant 0.200313225 : f32
    %207 = vector.broadcast %cst_112 : f32 to vector<128x4xf32>
    %208 = arith.mulf %206, %207 : vector<128x4xf32>
    %c0_113 = arith.constant 0 : index
    %c0_114 = arith.constant 0 : index
    %209 = vector.load %arg18[%c0_113, %c0_114] : memref<4x64xf32, #tpu.memory_space<vmem>>, vector<4x64xf32>
    %cst_115 = arith.constant dense<0.000000e+00> : vector<128x64xf32>
    %210 = tpu.matmul %208, %209, %cst_115 {dimension_numbers = #tpu.dot_dimension_numbers<[1], [0], [0], [1], [0, 0, 1, 1], [], []>} : vector<128x4xf32>, vector<4x64xf32>, vector<128x64xf32> -> vector<128x64xf32>
    %c0_116 = arith.constant 0 : index
    %c0_117 = arith.constant 0 : index
    %211 = vector.load %arg19[%c0_116, %c0_117] : memref<1x64xf32, #tpu.memory_space<vmem>>, vector<1x64xf32>
    %212 = vector.broadcast %211 : vector<1x64xf32> to vector<128x64xf32>
    %213 = arith.addf %210, %212 : vector<128x64xf32>
    %cst_118 = arith.constant 0.000000e+00 : f32
    %214 = vector.broadcast %cst_118 : f32 to vector<128x64xf32>
    %215 = arith.subf %214, %213 : vector<128x64xf32>
    %216 = math.exp %215 : vector<128x64xf32>
    %cst_119 = arith.constant 1.000000e+00 : f32
    %217 = vector.broadcast %cst_119 : f32 to vector<128x64xf32>
    %218 = arith.addf %217, %216 : vector<128x64xf32>
    %219 = tpu.reciprocal %218 {approx = true} : vector<128x64xf32> -> vector<128x64xf32>
    %220 = arith.mulf %213, %219 : vector<128x64xf32>
    %221 = arith.addf %220, %84 : vector<128x64xf32>
    %222 = vector.extract_strided_slice %70 {offsets = [2, 0], sizes = [1, 64], strides = [1, 1]} : vector<4x64xf32> to vector<1x64xf32>
    %223 = vector.broadcast %222 : vector<1x64xf32> to vector<128x64xf32>
    %224 = arith.addf %221, %223 : vector<128x64xf32>
    %c0_120 = arith.constant 0 : index
    %c0_121 = arith.constant 0 : index
    %225 = vector.load %arg20[%c0_120, %c0_121] : memref<64x64xf32, #tpu.memory_space<vmem>>, vector<64x64xf32>
    %cst_122 = arith.constant dense<0.000000e+00> : vector<128x64xf32>
    %226 = tpu.matmul %224, %225, %cst_122 {dimension_numbers = #tpu.dot_dimension_numbers<[1], [0], [0], [1], [0, 0, 1, 1], [], []>} : vector<128x64xf32>, vector<64x64xf32>, vector<128x64xf32> -> vector<128x64xf32>
    %cst_123 = arith.constant dense<0.000000e+00> : vector<128x16xf32>
    %227 = tpu.matmul %226, %40, %cst_123 {dimension_numbers = #tpu.dot_dimension_numbers<[1], [1], [0], [0], [0, 0, 1, 0], [], []>} : vector<128x64xf32>, vector<16x64xf32>, vector<128x16xf32> -> vector<128x16xf32>
    %cst_124 = arith.constant 1.250000e-01 : f32
    %228 = vector.broadcast %cst_124 : f32 to vector<128x16xf32>
    %229 = arith.mulf %227, %228 : vector<128x16xf32>
    %cst_125 = arith.constant -1.000000e+30 : f32
    %230 = vector.broadcast %cst_125 : f32 to vector<128x16xf32>
    %231 = arith.select %109, %229, %230 : vector<128x16xi1>, vector<128x16xf32>
    %cst_126 = arith.constant dense<0xFF800000> : vector<128xf32>
    %232 = vector.multi_reduction <maximumf>, %231, %cst_126 [1] : vector<128x16xf32> to vector<128xf32>
    %233 = vector.shape_cast %232 : vector<128xf32> to vector<128x1xf32>
    %234 = vector.broadcast %233 : vector<128x1xf32> to vector<128x16xf32>
    %235 = arith.subf %231, %234 : vector<128x16xf32>
    %236 = math.exp %235 : vector<128x16xf32>
    %cst_127 = arith.constant dense<0.000000e+00> : vector<128xf32>
    %237 = vector.multi_reduction <add>, %236, %cst_127 [1] : vector<128x16xf32> to vector<128xf32>
    %238 = vector.shape_cast %237 : vector<128xf32> to vector<128x1xf32>
    %239 = tpu.reciprocal %238 {approx = true} : vector<128x1xf32> -> vector<128x1xf32>
    %240 = vector.broadcast %239 : vector<128x1xf32> to vector<128x16xf32>
    %241 = arith.mulf %236, %240 : vector<128x16xf32>
    %cst_128 = arith.constant dense<0.000000e+00> : vector<128x64xf32>
    %242 = tpu.matmul %241, %41, %cst_128 {dimension_numbers = #tpu.dot_dimension_numbers<[1], [0], [0], [1], [0, 0, 1, 1], [], []>} : vector<128x16xf32>, vector<16x64xf32>, vector<128x64xf32> -> vector<128x64xf32>
    %c0_129 = arith.constant 0 : index
    %c0_130 = arith.constant 0 : index
    %243 = vector.load %arg23[%c0_129, %c0_130] : memref<64x64xf32, #tpu.memory_space<vmem>>, vector<64x64xf32>
    %cst_131 = arith.constant dense<0.000000e+00> : vector<128x64xf32>
    %244 = tpu.matmul %242, %243, %cst_131 {dimension_numbers = #tpu.dot_dimension_numbers<[1], [0], [0], [1], [0, 0, 1, 1], [], []>} : vector<128x64xf32>, vector<64x64xf32>, vector<128x64xf32> -> vector<128x64xf32>
    %245 = arith.addf %224, %244 : vector<128x64xf32>
    %c0_132 = arith.constant 0 : index
    %c0_133 = arith.constant 0 : index
    %246 = vector.load %arg24[%c0_132, %c0_133] : memref<64x4xf32, #tpu.memory_space<vmem>>, vector<64x4xf32>
    %cst_134 = arith.constant dense<0.000000e+00> : vector<128x4xf32>
    %247 = tpu.matmul %245, %246, %cst_134 {dimension_numbers = #tpu.dot_dimension_numbers<[1], [0], [0], [1], [0, 0, 1, 1], [], []>} : vector<128x64xf32>, vector<64x4xf32>, vector<128x4xf32> -> vector<128x4xf32>
    %c0_135 = arith.constant 0 : index
    %c0_136 = arith.constant 0 : index
    %248 = vector.load %arg25[%c0_135, %c0_136] : memref<1x4xf32, #tpu.memory_space<vmem>>, vector<1x4xf32>
    %249 = vector.broadcast %248 : vector<1x4xf32> to vector<128x4xf32>
    %250 = arith.addf %247, %249 : vector<128x4xf32>
    %cst_137 = arith.constant -4.86179972 : f32
    %251 = vector.broadcast %cst_137 : f32 to vector<128x4xf32>
    %252 = arith.mulf %251, %250 : vector<128x4xf32>
    %253 = arith.addf %206, %252 : vector<128x4xf32>
    %cst_138 = arith.constant 0.999573945 : f32
    %254 = vector.broadcast %cst_138 : f32 to vector<128x4xf32>
    %255 = arith.mulf %253, %254 : vector<128x4xf32>
    %c0_139 = arith.constant 0 : index
    %c0_140 = arith.constant 0 : index
    %256 = vector.load %arg18[%c0_139, %c0_140] : memref<4x64xf32, #tpu.memory_space<vmem>>, vector<4x64xf32>
    %cst_141 = arith.constant dense<0.000000e+00> : vector<128x64xf32>
    %257 = tpu.matmul %255, %256, %cst_141 {dimension_numbers = #tpu.dot_dimension_numbers<[1], [0], [0], [1], [0, 0, 1, 1], [], []>} : vector<128x4xf32>, vector<4x64xf32>, vector<128x64xf32> -> vector<128x64xf32>
    %c0_142 = arith.constant 0 : index
    %c0_143 = arith.constant 0 : index
    %258 = vector.load %arg19[%c0_142, %c0_143] : memref<1x64xf32, #tpu.memory_space<vmem>>, vector<1x64xf32>
    %259 = vector.broadcast %258 : vector<1x64xf32> to vector<128x64xf32>
    %260 = arith.addf %257, %259 : vector<128x64xf32>
    %cst_144 = arith.constant 0.000000e+00 : f32
    %261 = vector.broadcast %cst_144 : f32 to vector<128x64xf32>
    %262 = arith.subf %261, %260 : vector<128x64xf32>
    %263 = math.exp %262 : vector<128x64xf32>
    %cst_145 = arith.constant 1.000000e+00 : f32
    %264 = vector.broadcast %cst_145 : f32 to vector<128x64xf32>
    %265 = arith.addf %264, %263 : vector<128x64xf32>
    %266 = tpu.reciprocal %265 {approx = true} : vector<128x64xf32> -> vector<128x64xf32>
    %267 = arith.mulf %260, %266 : vector<128x64xf32>
    %268 = arith.addf %267, %84 : vector<128x64xf32>
    %269 = vector.extract_strided_slice %70 {offsets = [3, 0], sizes = [1, 64], strides = [1, 1]} : vector<4x64xf32> to vector<1x64xf32>
    %270 = vector.broadcast %269 : vector<1x64xf32> to vector<128x64xf32>
    %271 = arith.addf %268, %270 : vector<128x64xf32>
    %c0_146 = arith.constant 0 : index
    %c0_147 = arith.constant 0 : index
    %272 = vector.load %arg20[%c0_146, %c0_147] : memref<64x64xf32, #tpu.memory_space<vmem>>, vector<64x64xf32>
    %cst_148 = arith.constant dense<0.000000e+00> : vector<128x64xf32>
    %273 = tpu.matmul %271, %272, %cst_148 {dimension_numbers = #tpu.dot_dimension_numbers<[1], [0], [0], [1], [0, 0, 1, 1], [], []>} : vector<128x64xf32>, vector<64x64xf32>, vector<128x64xf32> -> vector<128x64xf32>
    %cst_149 = arith.constant dense<0.000000e+00> : vector<128x16xf32>
    %274 = tpu.matmul %273, %40, %cst_149 {dimension_numbers = #tpu.dot_dimension_numbers<[1], [1], [0], [0], [0, 0, 1, 0], [], []>} : vector<128x64xf32>, vector<16x64xf32>, vector<128x16xf32> -> vector<128x16xf32>
    %cst_150 = arith.constant 1.250000e-01 : f32
    %275 = vector.broadcast %cst_150 : f32 to vector<128x16xf32>
    %276 = arith.mulf %274, %275 : vector<128x16xf32>
    %cst_151 = arith.constant -1.000000e+30 : f32
    %277 = vector.broadcast %cst_151 : f32 to vector<128x16xf32>
    %278 = arith.select %109, %276, %277 : vector<128x16xi1>, vector<128x16xf32>
    %cst_152 = arith.constant dense<0xFF800000> : vector<128xf32>
    %279 = vector.multi_reduction <maximumf>, %278, %cst_152 [1] : vector<128x16xf32> to vector<128xf32>
    %280 = vector.shape_cast %279 : vector<128xf32> to vector<128x1xf32>
    %281 = vector.broadcast %280 : vector<128x1xf32> to vector<128x16xf32>
    %282 = arith.subf %278, %281 : vector<128x16xf32>
    %283 = math.exp %282 : vector<128x16xf32>
    %cst_153 = arith.constant dense<0.000000e+00> : vector<128xf32>
    %284 = vector.multi_reduction <add>, %283, %cst_153 [1] : vector<128x16xf32> to vector<128xf32>
    %285 = vector.shape_cast %284 : vector<128xf32> to vector<128x1xf32>
    %286 = tpu.reciprocal %285 {approx = true} : vector<128x1xf32> -> vector<128x1xf32>
    %287 = vector.broadcast %286 : vector<128x1xf32> to vector<128x16xf32>
    %288 = arith.mulf %283, %287 : vector<128x16xf32>
    %cst_154 = arith.constant dense<0.000000e+00> : vector<128x64xf32>
    %289 = tpu.matmul %288, %41, %cst_154 {dimension_numbers = #tpu.dot_dimension_numbers<[1], [0], [0], [1], [0, 0, 1, 1], [], []>} : vector<128x16xf32>, vector<16x64xf32>, vector<128x64xf32> -> vector<128x64xf32>
    %c0_155 = arith.constant 0 : index
    %c0_156 = arith.constant 0 : index
    %290 = vector.load %arg23[%c0_155, %c0_156] : memref<64x64xf32, #tpu.memory_space<vmem>>, vector<64x64xf32>
    %cst_157 = arith.constant dense<0.000000e+00> : vector<128x64xf32>
    %291 = tpu.matmul %289, %290, %cst_157 {dimension_numbers = #tpu.dot_dimension_numbers<[1], [0], [0], [1], [0, 0, 1, 1], [], []>} : vector<128x64xf32>, vector<64x64xf32>, vector<128x64xf32> -> vector<128x64xf32>
    %292 = arith.addf %271, %291 : vector<128x64xf32>
    %c0_158 = arith.constant 0 : index
    %c0_159 = arith.constant 0 : index
    %293 = vector.load %arg24[%c0_158, %c0_159] : memref<64x4xf32, #tpu.memory_space<vmem>>, vector<64x4xf32>
    %cst_160 = arith.constant dense<0.000000e+00> : vector<128x4xf32>
    %294 = tpu.matmul %292, %293, %cst_160 {dimension_numbers = #tpu.dot_dimension_numbers<[1], [0], [0], [1], [0, 0, 1, 1], [], []>} : vector<128x64xf32>, vector<64x4xf32>, vector<128x4xf32> -> vector<128x4xf32>
    %c0_161 = arith.constant 0 : index
    %c0_162 = arith.constant 0 : index
    %295 = vector.load %arg25[%c0_161, %c0_162] : memref<1x4xf32, #tpu.memory_space<vmem>>, vector<1x4xf32>
    %296 = vector.broadcast %295 : vector<1x4xf32> to vector<128x4xf32>
    %297 = arith.addf %294, %296 : vector<128x4xf32>
    %cst_163 = arith.constant -2.920000e-02 : f32
    %298 = vector.broadcast %cst_163 : f32 to vector<128x4xf32>
    %299 = arith.mulf %298, %297 : vector<128x4xf32>
    %300 = arith.addf %253, %299 : vector<128x4xf32>
    %c0_164 = arith.constant 0 : index
    %c0_165 = arith.constant 0 : index
    %301 = vector.load %arg26[%c0_164, %c0_165] : memref<4x3xf32, #tpu.memory_space<vmem>>, vector<4x3xf32>
    %cst_166 = arith.constant dense<0.000000e+00> : vector<128x3xf32>
    %302 = tpu.matmul %300, %301, %cst_166 {dimension_numbers = #tpu.dot_dimension_numbers<[1], [0], [0], [1], [0, 0, 1, 1], [], []>} : vector<128x4xf32>, vector<4x3xf32>, vector<128x3xf32> -> vector<128x3xf32>
    %c0_167 = arith.constant 0 : index
    %c0_168 = arith.constant 0 : index
    %303 = vector.load %arg27[%c0_167, %c0_168] : memref<1x3xf32, #tpu.memory_space<vmem>>, vector<1x3xf32>
    %304 = vector.broadcast %303 : vector<1x3xf32> to vector<128x3xf32>
    %305 = arith.addf %302, %304 : vector<128x3xf32>
    %cst_169 = arith.constant 0.000000e+00 : f32
    %cst_170 = arith.constant 2.550000e+02 : f32
    %306 = vector.broadcast %cst_169 : f32 to vector<128x3xf32>
    %307 = arith.maximumf %306, %305 : vector<128x3xf32>
    %308 = vector.broadcast %cst_170 : f32 to vector<128x3xf32>
    %309 = arith.minimumf %308, %307 : vector<128x3xf32>
    %310 = math.roundeven %309 : vector<128x3xf32>
    %c0_171 = arith.constant 0 : index
    %c0_172 = arith.constant 0 : index
    %311 = vector.load %arg28[%c0_171, %c0_172] : memref<128x3xf32, #tpu.memory_space<vmem>>, vector<128x3xf32>
    tpu.vector_store %arg28[%c0_171, %c0_172], %310 {strides = array<i32>} : memref<128x3xf32, #tpu.memory_space<vmem>>, vector<128x3xf32>,
    return
  }
}

</mosaic_0001>

<llo_original>
// kernel: tpu_custom_call.1
$region0: #{tpu_custom_call.1}
  #allocation0 [shape = 'u32[]', space=smem, size = 0x4, offset = 0x4, fixed_abs, tag = 'smem constant byte address 0x4 - core index']
  #allocation1 [shape = 'u32[144,128]{1,0:T(1,128)}', space=vmem, size = 0x12000, scoped, tag = 'internal scratch']
  %s0 = inlined_call_operand.hbm [shape: f32[16,32], index: 0, kind: input, shape index: {}]
  %s1 = inlined_call_operand.hbm [shape: f32[16,64], index: 1, kind: input, shape index: {}]
  %s2 = inlined_call_operand.vmem [shape: f32[128,4], index: 2, kind: input, shape index: {}]
  %s3 = inlined_call_operand.hbm [shape: f32[2,6], index: 3, kind: input, shape index: {}]
  %s4 = inlined_call_operand.hbm [shape: f32[4,16], index: 4, kind: input, shape index: {}]
  %s5 = inlined_call_operand.hbm [shape: f32[32,32], index: 5, kind: input, shape index: {}]
  %s6 = inlined_call_operand.hbm [shape: f32[1,32], index: 6, kind: input, shape index: {}]
  %s7 = inlined_call_operand.vmem [shape: f32[64,64], index: 7, kind: input, shape index: {}]
  %s8 = inlined_call_operand.hbm [shape: f32[1,64], index: 8, kind: input, shape index: {}]
  %s9 = inlined_call_operand.vmem [shape: f32[64,64], index: 9, kind: input, shape index: {}]
  %s10 = inlined_call_operand.hbm [shape: f32[1,64], index: 10, kind: input, shape index: {}]
  %s11 = inlined_call_operand.vmem [shape: f32[64,32], index: 11, kind: input, shape index: {}]
  %s12 = inlined_call_operand.hbm [shape: f32[1,32], index: 12, kind: input, shape index: {}]
  %s13 = inlined_call_operand.hbm [shape: f32[16,64], index: 13, kind: input, shape index: {}]
  %s14 = inlined_call_operand.hbm [shape: f32[1,64], index: 14, kind: input, shape index: {}]
  %s15 = inlined_call_operand.vmem [shape: f32[32,64], index: 15, kind: input, shape index: {}]
  %s16 = inlined_call_operand.hbm [shape: f32[6,64], index: 16, kind: input, shape index: {}]
  %s17 = inlined_call_operand.hbm [shape: f32[1,64], index: 17, kind: input, shape index: {}]
  %s18 = inlined_call_operand.vmem [shape: f32[4,64], index: 18, kind: input, shape index: {}]
  %s19 = inlined_call_operand.vmem [shape: f32[1,64], index: 19, kind: input, shape index: {}]
  %s20 = inlined_call_operand.vmem [shape: f32[64,64], index: 20, kind: input, shape index: {}]
  %s21 = inlined_call_operand.hbm [shape: f32[32,128], index: 21, kind: input, shape index: {}]
  %s22 = inlined_call_operand.vmem [shape: f32[64,128], index: 22, kind: input, shape index: {}]
  %s23 = inlined_call_operand.vmem [shape: f32[64,64], index: 23, kind: input, shape index: {}]
  %s24 = inlined_call_operand.vmem [shape: f32[64,4], index: 24, kind: input, shape index: {}]
  %s25 = inlined_call_operand.vmem [shape: f32[1,4], index: 25, kind: input, shape index: {}]
  %s26 = inlined_call_operand.vmem [shape: f32[4,3], index: 26, kind: input, shape index: {}]
  %s27 = inlined_call_operand.vmem [shape: f32[1,3], index: 27, kind: input, shape index: {}]
  %s28 = inlined_call_operand.vmem [shape: f32[128,3], index: 28, kind: output, shape index: {}]
  %s29 = sld [smem:[#allocation0]]
  $region178: #{tpu_custom_call.1} parent=0
    _
  %s31 = ssub.s32 1, %s29
  %s32 = scalar_select 0, %s31, %s29
  $region1: #{tpu_custom_call.1} parent=0
    #allocation2 [shape = 'u8[8192]{0}', space=vmem, size = 0x2000, scoped, tag = 'input window, operand 0, single buffered']
    #allocation3 [shape = 's32[1]{0}', space=sflag, size = 0x4, scoped, tag = 'scoped memory for tpu_custom_call.1']
    #allocation4 [shape = 'u8[8192]{0}', space=vmem, size = 0x2000, scoped, tag = 'input window, operand 1, single buffered']
    #allocation5 [shape = 's32[1]{0}', space=sflag, size = 0x4, scoped, tag = 'scoped memory for tpu_custom_call.1']
    #allocation6 [shape = 'u8[1024]{0}', space=vmem, size = 0x400, scoped, tag = 'input window, operand 3, single buffered']
    #allocation7 [shape = 'u8[2048]{0}', space=vmem, size = 0x800, scoped, tag = 'input window, operand 4, single buffered']
    #allocation8 [shape = 's32[1]{0}', space=sflag, size = 0x4, scoped, tag = 'scoped memory for tpu_custom_call.1']
    #allocation9 [shape = 'u8[16384]{0}', space=vmem, size = 0x4000, scoped, tag = 'input window, operand 5, single buffered']
    #allocation10 [shape = 'u8[512]{0}', space=vmem, size = 0x400, scoped, tag = 'input window, operand 6, single buffered']
    #allocation11 [shape = 's32[1]{0}', space=sflag, size = 0x4, scoped, tag = 'scoped memory for tpu_custom_call.1']
    #allocation12 [shape = 'u8[512]{0}', space=vmem, size = 0x400, scoped, tag = 'input window, operand 8, single buffered']
    #allocation13 [shape = 'u8[512]{0}', space=vmem, size = 0x400, scoped, tag = 'input window, operand 10, single buffered']
    #allocation14 [shape = 's32[1]{0}', space=sflag, size = 0x4, scoped, tag = 'scoped memory for tpu_custom_call.1']
    #allocation15 [shape = 'u8[512]{0}', space=vmem, size = 0x400, scoped, tag = 'input window, operand 12, single buffered']
    #allocation16 [shape = 'u8[8192]{0}', space=vmem, size = 0x2000, scoped, tag = 'input window, operand 13, single buffered']
    #allocation17 [shape = 's32[1]{0}', space=sflag, size = 0x4, scoped, tag = 'scoped memory for tpu_custom_call.1']
    #allocation18 [shape = 'u8[512]{0}', space=vmem, size = 0x400, scoped, tag = 'input window, operand 14, single buffered']
    #allocation19 [shape = 'u8[4096]{0}', space=vmem, size = 0x1000, scoped, tag = 'input window, operand 16, single buffered']
    #allocation20 [shape = 's32[1]{0}', space=sflag, size = 0x4, scoped, tag = 'scoped memory for tpu_custom_call.1']
    #allocation21 [shape = 'u8[512]{0}', space=vmem, size = 0x400, scoped, tag = 'input window, operand 17, single buffered']
    #allocation22 [shape = 'u8[16384]{0}', space=vmem, size = 0x4000, scoped, tag = 'input window, operand 21, single buffered']
    #allocation23 [shape = 's32[1]{0}', space=sflag, size = 0x4, scoped, tag = 'scoped memory for tpu_custom_call.1']
    %33 = vsyncpa [#allocation3], 0
    %34 = vsyncpa [#allocation5], 0
    %35 = vsyncpa [#allocation8], 0
    %36 = vsyncpa [#allocation11], 0
    %37 = vsyncpa [#allocation14], 0
    %38 = vsyncpa [#allocation17], 0
    %39 = vsyncpa [#allocation20], 0
    %40 = vsyncpa [#allocation23], 0
    // Predicated region
    $region2: #{tpu_custom_call.1} parent=1 // pred_check
      _
    $region3: #{tpu_custom_call.1} parent=1 // pred_check_branch
      %42 = sbr.rel (0) target = $region5
    $region4: #{tpu_custom_call.1} parent=1 // pred_region
      %s44 = ssub.s32 256, 256
      %45 = vsyncadd [#allocation3], %s44
      %s46 = sshll.u32 [#allocation2], 4
      %s47 = int_to_ptr.vmem [resolvable:$true] %s46
      %52 = dma.hbm_to_vmem [thread:$0]  %s0, 256, %s47, [#allocation3], 128, 128, 8
    $region5: #{tpu_custom_call.1} parent=1 // pred_fallthru
      _
    // Predicated region
    $region6: #{tpu_custom_call.1} parent=1 // pred_check
      _
    $region7: #{tpu_custom_call.1} parent=1 // pred_check_branch
      %54 = sbr.rel (0) target = $region9
    $region8: #{tpu_custom_call.1} parent=1 // pred_region
      %s56 = ssub.s32 256, 256
      %57 = vsyncadd [#allocation5], %s56
      %s58 = sshll.u32 [#allocation4], 4
      %s59 = int_to_ptr.vmem [resolvable:$true] %s58
      %64 = dma.hbm_to_vmem [thread:$0]  %s1, 256, %s59, [#allocation5], 128, 128, 8
    $region9: #{tpu_custom_call.1} parent=1 // pred_fallthru
      _
    // Predicated region
    $region10: #{tpu_custom_call.1} parent=1 // pred_check
      _
    $region11: #{tpu_custom_call.1} parent=1 // pred_check_branch
      %66 = sbr.rel (0) target = $region13
    $region12: #{tpu_custom_call.1} parent=1 // pred_region
      _
    $region13: #{tpu_custom_call.1} parent=1 // pred_fallthru
      _
    // Predicated region
    $region14: #{tpu_custom_call.1} parent=1 // pred_check
      _
    $region15: #{tpu_custom_call.1} parent=1 // pred_check_branch
      %68 = sbr.rel (0) target = $region17
    $region16: #{tpu_custom_call.1} parent=1 // pred_region
      %s70 = ssub.s32 32, 32
      %71 = vsyncadd [#allocation5], %s70
      %s73 = sshll.u32 [#allocation6], 4
      %s74 = int_to_ptr.vmem [resolvable:$true] %s73
      %76 = dma.hbm_to_vmem [thread:$0]  %s3, 32, %s74, [#allocation5]
    $region17: #{tpu_custom_call.1} parent=1 // pred_fallthru
      _
    // Predicated region
    $region18: #{tpu_custom_call.1} parent=1 // pred_check
      _
    $region19: #{tpu_custom_call.1} parent=1 // pred_check_branch
      %78 = sbr.rel (0) target = $region21
    $region20: #{tpu_custom_call.1} parent=1 // pred_region
      %s80 = ssub.s32 64, 64
      %81 = vsyncadd [#allocation8], %s80
      %s83 = sshll.u32 [#allocation7], 4
      %s84 = int_to_ptr.vmem [resolvable:$true] %s83
      %86 = dma.hbm_to_vmem [thread:$0]  %s4, 64, %s84, [#allocation8]
    $region21: #{tpu_custom_call.1} parent=1 // pred_fallthru
      _
    // Predicated region
    $region22: #{tpu_custom_call.1} parent=1 // pred_check
      _
    $region23: #{tpu_custom_call.1} parent=1 // pred_check_branch
      %88 = sbr.rel (0) target = $region25
    $region24: #{tpu_custom_call.1} parent=1 // pred_region
      %s90 = ssub.s32 512, 512
      %91 = vsyncadd [#allocation8], %s90
      %s92 = sshll.u32 [#allocation9], 4
      %s93 = int_to_ptr.vmem [resolvable:$true] %s92
      %98 = dma.hbm_to_vmem [thread:$0]  %s5, 512, %s93, [#allocation8], 128, 128, 8
    $region25: #{tpu_custom_call.1} parent=1 // pred_fallthru
      _
    // Predicated region
    $region26: #{tpu_custom_call.1} parent=1 // pred_check
      _
    $region27: #{tpu_custom_call.1} parent=1 // pred_check_branch
      %100 = sbr.rel (0) target = $region29
    $region28: #{tpu_custom_call.1} parent=1 // pred_region
      %s102 = ssub.s32 16, 16
      %103 = vsyncadd [#allocation11], %s102
      %s105 = sshll.u32 [#allocation10], 4
      %s106 = int_to_ptr.vmem [resolvable:$true] %s105
      %108 = dma.hbm_to_vmem [thread:$0]  %s6, 16, %s106, [#allocation11]
    $region29: #{tpu_custom_call.1} parent=1 // pred_fallthru
      _
    // Predicated region
    $region30: #{tpu_custom_call.1} parent=1 // pred_check
      _
    $region31: #{tpu_custom_call.1} parent=1 // pred_check_branch
      %110 = sbr.rel (0) target = $region33
    $region32: #{tpu_custom_call.1} parent=1 // pred_region
      _
    $region33: #{tpu_custom_call.1} parent=1 // pred_fallthru
      _
    // Predicated region
    $region34: #{tpu_custom_call.1} parent=1 // pred_check
      _
    $region35: #{tpu_custom_call.1} parent=1 // pred_check_branch
      %112 = sbr.rel (0) target = $region37
    $region36: #{tpu_custom_call.1} parent=1 // pred_region
      %s114 = ssub.s32 16, 16
      %115 = vsyncadd [#allocation11], %s114
      %s117 = sshll.u32 [#allocation12], 4
      %s118 = int_to_ptr.vmem [resolvable:$true] %s117
      %120 = dma.hbm_to_vmem [thread:$0]  %s8, 16, %s118, [#allocation11]
    $region37: #{tpu_custom_call.1} parent=1 // pred_fallthru
      _
    // Predicated region
    $region38: #{tpu_custom_call.1} parent=1 // pred_check
      _
    $region39: #{tpu_custom_call.1} parent=1 // pred_check_branch
      %122 = sbr.rel (0) target = $region41
    $region40: #{tpu_custom_call.1} parent=1 // pred_region
      _
    $region41: #{tpu_custom_call.1} parent=1 // pred_fallthru
      _
    // Predicated region
    $region42: #{tpu_custom_call.1} parent=1 // pred_check
      _
    $region43: #{tpu_custom_call.1} parent=1 // pred_check_branch
      %124 = sbr.rel (0) target = $region45
    $region44: #{tpu_custom_call.1} parent=1 // pred_region
      %s126 = ssub.s32 16, 16
      %127 = vsyncadd [#allocation14], %s126
      %s129 = sshll.u32 [#allocation13], 4
      %s130 = int_to_ptr.vmem [resolvable:$true] %s129
      %132 = dma.hbm_to_vmem [thread:$0]  %s10, 16, %s130, [#allocation14]
    $region45: #{tpu_custom_call.1} parent=1 // pred_fallthru
      _
    // Predicated region
    $region46: #{tpu_custom_call.1} parent=1 // pred_check
      _
    $region47: #{tpu_custom_call.1} parent=1 // pred_check_branch
      %134 = sbr.rel (0) target = $region49
    $region48: #{tpu_custom_call.1} parent=1 // pred_region
      _
    $region49: #{tpu_custom_call.1} parent=1 // pred_fallthru
      _
    // Predicated region
    $region50: #{tpu_custom_call.1} parent=1 // pred_check
      _
    $region51: #{tpu_custom_call.1} parent=1 // pred_check_branch
      %136 = sbr.rel (0) target = $region53
    $region52: #{tpu_custom_call.1} parent=1 // pred_region
      %s138 = ssub.s32 16, 16
      %139 = vsyncadd [#allocation14], %s138
      %s141 = sshll.u32 [#allocation15], 4
      %s142 = int_to_ptr.vmem [resolvable:$true] %s141
      %144 = dma.hbm_to_vmem [thread:$0]  %s12, 16, %s142, [#allocation14]
    $region53: #{tpu_custom_call.1} parent=1 // pred_fallthru
      _
    // Predicated region
    $region54: #{tpu_custom_call.1} parent=1 // pred_check
      _
    $region55: #{tpu_custom_call.1} parent=1 // pred_check_branch
      %146 = sbr.rel (0) target = $region57
    $region56: #{tpu_custom_call.1} parent=1 // pred_region
      %s148 = ssub.s32 256, 256
      %149 = vsyncadd [#allocation17], %s148
      %s150 = sshll.u32 [#allocation16], 4
      %s151 = int_to_ptr.vmem [resolvable:$true] %s150
      %156 = dma.hbm_to_vmem [thread:$0]  %s13, 256, %s151, [#allocation17], 128, 128, 8
    $region57: #{tpu_custom_call.1} parent=1 // pred_fallthru
      _
    // Predicated region
    $region58: #{tpu_custom_call.1} parent=1 // pred_check
      _
    $region59: #{tpu_custom_call.1} parent=1 // pred_check_branch
      %158 = sbr.rel (0) target = $region61
    $region60: #{tpu_custom_call.1} parent=1 // pred_region
      %s160 = ssub.s32 16, 16
      %161 = vsyncadd [#allocation17], %s160
      %s163 = sshll.u32 [#allocation18], 4
      %s164 = int_to_ptr.vmem [resolvable:$true] %s163
      %166 = dma.hbm_to_vmem [thread:$0]  %s14, 16, %s164, [#allocation17]
    $region61: #{tpu_custom_call.1} parent=1 // pred_fallthru
      _
    // Predicated region
    $region62: #{tpu_custom_call.1} parent=1 // pred_check
      _
    $region63: #{tpu_custom_call.1} parent=1 // pred_check_branch
      %168 = sbr.rel (0) target = $region65
    $region64: #{tpu_custom_call.1} parent=1 // pred_region
      _
    $region65: #{tpu_custom_call.1} parent=1 // pred_fallthru
      _
    // Predicated region
    $region66: #{tpu_custom_call.1} parent=1 // pred_check
      _
    $region67: #{tpu_custom_call.1} parent=1 // pred_check_branch
      %170 = sbr.rel (0) target = $region69
    $region68: #{tpu_custom_call.1} parent=1 // pred_region
      %s172 = ssub.s32 128, 128
      %173 = vsyncadd [#allocation20], %s172
      %s175 = sshll.u32 [#allocation19], 4
      %s176 = int_to_ptr.vmem [resolvable:$true] %s175
      %178 = dma.hbm_to_vmem [thread:$0]  %s16, 128, %s176, [#allocation20]
    $region69: #{tpu_custom_call.1} parent=1 // pred_fallthru
      _
    // Predicated region
    $region70: #{tpu_custom_call.1} parent=1 // pred_check
      _
    $region71: #{tpu_custom_call.1} parent=1 // pred_check_branch
      %180 = sbr.rel (0) target = $region73
    $region72: #{tpu_custom_call.1} parent=1 // pred_region
      %s182 = ssub.s32 16, 16
      %183 = vsyncadd [#allocation20], %s182
      %s185 = sshll.u32 [#allocation21], 4
      %s186 = int_to_ptr.vmem [resolvable:$true] %s185
      %188 = dma.hbm_to_vmem [thread:$0]  %s17, 16, %s186, [#allocation20]
    $region73: #{tpu_custom_call.1} parent=1 // pred_fallthru
      _
    // Predicated region
    $region74: #{tpu_custom_call.1} parent=1 // pred_check
      _
    $region75: #{tpu_custom_call.1} parent=1 // pred_check_branch
      %190 = sbr.rel (0) target = $region77
    $region76: #{tpu_custom_call.1} parent=1 // pred_region
      _
    $region77: #{tpu_custom_call.1} parent=1 // pred_fallthru
      _
    // Predicated region
    $region78: #{tpu_custom_call.1} parent=1 // pred_check
      _
    $region79: #{tpu_custom_call.1} parent=1 // pred_check_branch
      %192 = sbr.rel (0) target = $region81
    $region80: #{tpu_custom_call.1} parent=1 // pred_region
      _
    $region81: #{tpu_custom_call.1} parent=1 // pred_fallthru
      _
    // Predicated region
    $region82: #{tpu_custom_call.1} parent=1 // pred_check
      _
    $region83: #{tpu_custom_call.1} parent=1 // pred_check_branch
      %194 = sbr.rel (0) target = $region85
    $region84: #{tpu_custom_call.1} parent=1 // pred_region
      _
    $region85: #{tpu_custom_call.1} parent=1 // pred_fallthru
      _
    // Predicated region
    $region86: #{tpu_custom_call.1} parent=1 // pred_check
      _
    $region87: #{tpu_custom_call.1} parent=1 // pred_check_branch
      %196 = sbr.rel (0) target = $region89
    $region88: #{tpu_custom_call.1} parent=1 // pred_region
      %s198 = ssub.s32 512, 512
      %199 = vsyncadd [#allocation23], %s198
      %s200 = sshll.u32 [#allocation22], 4
      %s201 = int_to_ptr.vmem [resolvable:$true] %s200
      %206 = dma.hbm_to_vmem [thread:$0]  %s21, 512, %s201, [#allocation23], 128, 128, 8
    $region89: #{tpu_custom_call.1} parent=1 // pred_fallthru
      _
    // Predicated region
    $region90: #{tpu_custom_call.1} parent=1 // pred_check
      _
    $region91: #{tpu_custom_call.1} parent=1 // pred_check_branch
      %208 = sbr.rel (0) target = $region93
    $region92: #{tpu_custom_call.1} parent=1 // pred_region
      _
    $region93: #{tpu_custom_call.1} parent=1 // pred_fallthru
      _
    // Predicated region
    $region94: #{tpu_custom_call.1} parent=1 // pred_check
      _
    $region95: #{tpu_custom_call.1} parent=1 // pred_check_branch
      %210 = sbr.rel (0) target = $region97
    $region96: #{tpu_custom_call.1} parent=1 // pred_region
      _
    $region97: #{tpu_custom_call.1} parent=1 // pred_fallthru
      _
    // Predicated region
    $region98: #{tpu_custom_call.1} parent=1 // pred_check
      _
    $region99: #{tpu_custom_call.1} parent=1 // pred_check_branch
      %212 = sbr.rel (0) target = $region101
    $region100: #{tpu_custom_call.1} parent=1 // pred_region
      _
    $region101: #{tpu_custom_call.1} parent=1 // pred_fallthru
      _
    // Predicated region
    $region102: #{tpu_custom_call.1} parent=1 // pred_check
      _
    $region103: #{tpu_custom_call.1} parent=1 // pred_check_branch
      %214 = sbr.rel (0) target = $region105
    $region104: #{tpu_custom_call.1} parent=1 // pred_region
      _
    $region105: #{tpu_custom_call.1} parent=1 // pred_fallthru
      _
    // Predicated region
    $region106: #{tpu_custom_call.1} parent=1 // pred_check
      _
    $region107: #{tpu_custom_call.1} parent=1 // pred_check_branch
      %216 = sbr.rel (0) target = $region109
    $region108: #{tpu_custom_call.1} parent=1 // pred_region
      _
    $region109: #{tpu_custom_call.1} parent=1 // pred_fallthru
      _
    // Predicated region
    $region110: #{tpu_custom_call.1} parent=1 // pred_check
      _
    $region111: #{tpu_custom_call.1} parent=1 // pred_check_branch
      %218 = sbr.rel (0) target = $region113
    $region112: #{tpu_custom_call.1} parent=1 // pred_region
      _
    $region113: #{tpu_custom_call.1} parent=1 // pred_fallthru
      _
    // Predicated region
    $region114: #{tpu_custom_call.1} parent=1 // pred_check
      _
    $region115: #{tpu_custom_call.1} parent=1 // pred_check_branch
      %220 = sbr.rel (0) target = $region117
    $region116: #{tpu_custom_call.1} parent=1 // pred_region
      %221 = dma.done [#allocation3], 256
    $region117: #{tpu_custom_call.1} parent=1 // pred_fallthru
      _
    // Predicated region
    $region118: #{tpu_custom_call.1} parent=1 // pred_check
      _
    $region119: #{tpu_custom_call.1} parent=1 // pred_check_branch
      %223 = sbr.rel (0) target = $region121
    $region120: #{tpu_custom_call.1} parent=1 // pred_region
      %224 = dma.done [#allocation5], 256
    $region121: #{tpu_custom_call.1} parent=1 // pred_fallthru
      _
    // Predicated region
    $region122: #{tpu_custom_call.1} parent=1 // pred_check
      _
    $region123: #{tpu_custom_call.1} parent=1 // pred_check_branch
      %226 = sbr.rel (0) target = $region125
    $region124: #{tpu_custom_call.1} parent=1 // pred_region
      %227 = dma.done [#allocation5], 32
    $region125: #{tpu_custom_call.1} parent=1 // pred_fallthru
      _
    // Predicated region
    $region126: #{tpu_custom_call.1} parent=1 // pred_check
      _
    $region127: #{tpu_custom_call.1} parent=1 // pred_check_branch
      %229 = sbr.rel (0) target = $region129
    $region128: #{tpu_custom_call.1} parent=1 // pred_region
      %230 = dma.done [#allocation8], 64
    $region129: #{tpu_custom_call.1} parent=1 // pred_fallthru
      _
    // Predicated region
    $region130: #{tpu_custom_call.1} parent=1 // pred_check
      _
    $region131: #{tpu_custom_call.1} parent=1 // pred_check_branch
      %232 = sbr.rel (0) target = $region133
    $region132: #{tpu_custom_call.1} parent=1 // pred_region
      %233 = dma.done [#allocation8], 512
    $region133: #{tpu_custom_call.1} parent=1 // pred_fallthru
      _
    // Predicated region
    $region134: #{tpu_custom_call.1} parent=1 // pred_check
      _
    $region135: #{tpu_custom_call.1} parent=1 // pred_check_branch
      %235 = sbr.rel (0) target = $region137
    $region136: #{tpu_custom_call.1} parent=1 // pred_region
      %236 = dma.done [#allocation11], 16
    $region137: #{tpu_custom_call.1} parent=1 // pred_fallthru
      _
    // Predicated region
    $region138: #{tpu_custom_call.1} parent=1 // pred_check
      _
    $region139: #{tpu_custom_call.1} parent=1 // pred_check_branch
      %238 = sbr.rel (0) target = $region141
    $region140: #{tpu_custom_call.1} parent=1 // pred_region
      %239 = dma.done [#allocation11], 16
    $region141: #{tpu_custom_call.1} parent=1 // pred_fallthru
      _
    // Predicated region
    $region142: #{tpu_custom_call.1} parent=1 // pred_check
      _
    $region143: #{tpu_custom_call.1} parent=1 // pred_check_branch
      %241 = sbr.rel (0) target = $region145
    $region144: #{tpu_custom_call.1} parent=1 // pred_region
      %242 = dma.done [#allocation14], 16
    $region145: #{tpu_custom_call.1} parent=1 // pred_fallthru
      _
    // Predicated region
    $region146: #{tpu_custom_call.1} parent=1 // pred_check
      _
    $region147: #{tpu_custom_call.1} parent=1 // pred_check_branch
      %244 = sbr.rel (0) target = $region149
    $region148: #{tpu_custom_call.1} parent=1 // pred_region
      %245 = dma.done [#allocation14], 16
    $region149: #{tpu_custom_call.1} parent=1 // pred_fallthru
      _
    // Predicated region
    $region150: #{tpu_custom_call.1} parent=1 // pred_check
      _
    $region151: #{tpu_custom_call.1} parent=1 // pred_check_branch
      %247 = sbr.rel (0) target = $region153
    $region152: #{tpu_custom_call.1} parent=1 // pred_region
      %248 = dma.done [#allocation17], 256
    $region153: #{tpu_custom_call.1} parent=1 // pred_fallthru
      _
    // Predicated region
    $region154: #{tpu_custom_call.1} parent=1 // pred_check
      _
    $region155: #{tpu_custom_call.1} parent=1 // pred_check_branch
      %250 = sbr.rel (0) target = $region157
    $region156: #{tpu_custom_call.1} parent=1 // pred_region
      %251 = dma.done [#allocation17], 16
    $region157: #{tpu_custom_call.1} parent=1 // pred_fallthru
      _
    // Predicated region
    $region158: #{tpu_custom_call.1} parent=1 // pred_check
      _
    $region159: #{tpu_custom_call.1} parent=1 // pred_check_branch
      %253 = sbr.rel (0) target = $region161
    $region160: #{tpu_custom_call.1} parent=1 // pred_region
      %254 = dma.done [#allocation20], 128
    $region161: #{tpu_custom_call.1} parent=1 // pred_fallthru
      _
    // Predicated region
    $region162: #{tpu_custom_call.1} parent=1 // pred_check
      _
    $region163: #{tpu_custom_call.1} parent=1 // pred_check_branch
      %256 = sbr.rel (0) target = $region165
    $region164: #{tpu_custom_call.1} parent=1 // pred_region
      %257 = dma.done [#allocation20], 16
    $region165: #{tpu_custom_call.1} parent=1 // pred_fallthru
      _
    // Predicated region
    $region166: #{tpu_custom_call.1} parent=1 // pred_check
      _
    $region167: #{tpu_custom_call.1} parent=1 // pred_check_branch
      %259 = sbr.rel (0) target = $region169
    $region168: #{tpu_custom_call.1} parent=1 // pred_region
      %260 = dma.done [#allocation23], 512
    $region169: #{tpu_custom_call.1} parent=1 // pred_fallthru
      _
    %v261 = vld [vmem:[#allocation2] sm:$0xff]
    %v262 = vld [vmem:[#allocation2 + $0x8] sm:$0xff]
    %v263 = vld [vmem:[#allocation9] sm:$0xff]
    %v264 = vld [vmem:[#allocation9 + $0x8] sm:$0xff]
    %v265 = vld [vmem:[#allocation9 + $0x10] sm:$0xff]
    %v266 = vld [vmem:[#allocation9 + $0x18] sm:$0xff]
    %v267 = vld [vmem:[#allocation10] sm:$0x1]
    %v269 = vlaneseq
    %v270 = vshrl.u32 %v269, 7
    %v271 = vsub.s32 0, %v270
    %v272 = vrot.slane %v267, %v271
    %vm274 = vcmask 261120
    %v276 = vsel %vm274, %v261, 0
    %v279 = vsel %vm274, %v262, 0
    %281 = vmatprep.subr.mxu0 0.0
    %282 = vmatpush1.msra.mxu0 %v263
    %283 = vmatprep.subr.mxu0 0.0
    %284 = vmatpush1.msra.mxu0 %v264
    %285 = vmatprep.subr.mxu0 0.0
    %286 = vmatpush1.msra.mxu0 %v265
    %287 = vmatprep.subr.mxu0 0.0
    %288 = vmatpush1.msra.mxu0 %v266
    %289 = vmatprep.subr.mxu0 0.0
    %290 = vmatpush1.msra.mxu0 0.0
    %291 = vmatprep.subr.mxu0 0.0
    %292 = vmatpush1.msra.mxu0 0.0
    %293 = vmatprep.subr.mxu0 0.0
    %294 = vmatpush1.msra.mxu0 0.0
    %295 = vmatprep.subr.mxu0 0.0
    %296 = vmatpush1.msra.mxu0 0.0
    %297 = vmatprep.subr.mxu0 0.0
    %298 = vmatpush1.msra.mxu0 0.0
    %299 = vmatprep.subr.mxu0 0.0
    %300 = vmatpush1.msra.mxu0 0.0
    %301 = vmatprep.subr.mxu0 0.0
    %302 = vmatpush1.msra.mxu0 0.0
    %303 = vmatprep.subr.mxu0 0.0
    %304 = vmatpush1.msra.mxu0 0.0
    %305 = vmatprep.subr.mxu0 0.0
    %306 = vmatpush1.msra.mxu0 0.0
    %307 = vmatprep.subr.mxu0 0.0
    %308 = vmatpush1.msra.mxu0 0.0
    %309 = vmatprep.subr.mxu0 0.0
    %310 = vmatpush1.msra.mxu0 0.0
    %311 = vmatprep.subr.mxu0 0.0
    %312 = vmatpush1.msra.mxu0 0.0
    %313 = vmatprep.subr.mxu0 0.0
    %314 = vmatpush1.msra.mxu0 0.0
    %315 = vmatprep.subr.mxu0 0.0
    %316 = vmatpush1.msra.mxu0 0.0
    %317 = vmatprep.subr.mxu0 0.0
    %318 = vmatpush1.msra.mxu0 0.0
    %319 = vmatprep.subr.mxu0 0.0
    %320 = vmatpush1.msra.mxu0 0.0
    %321 = vmatprep.subr.mxu0 0.0
    %322 = vmatpush1.msra.mxu0 0.0
    %323 = vmatprep.subr.mxu0 0.0
    %324 = vmatpush1.msra.mxu0 0.0
    %325 = vmatprep.subr.mxu0 0.0
    %326 = vmatpush1.msra.mxu0 0.0
    %327 = vmatprep.subr.mxu0 0.0
    %328 = vmatpush1.msra.mxu0 0.0
    %329 = vmatprep.subr.mxu0 0.0
    %330 = vmatpush1.msra.mxu0 0.0
    %331 = vmatprep.subr.mxu0 0.0
    %332 = vmatpush1.msra.mxu0 0.0
    %333 = vmatprep.subr.mxu0 0.0
    %334 = vmatpush1.msra.mxu0 0.0
    %335 = vmatprep.subr.mxu0 0.0
    %336 = vmatpush1.msra.mxu0 0.0
    %337 = vmatprep.subr.mxu0 0.0
    %338 = vmatpush1.msra.mxu0 0.0
    %339 = vmatprep.subr.mxu0 0.0
    %340 = vmatpush1.msra.mxu0 0.0
    %341 = vmatprep.subr.mxu0 0.0
    %342 = vmatpush1.msra.mxu0 0.0
    %343 = vmatprep.subr.mxu0 0.0
    %344 = vmatpush1.msra.mxu0 0.0
    %345 = vmatprep.mubr.f32.mxu0 0.0
    %346 = vmatmul.mubr.f32.gmra.mrb[0].mxu0 %v276
    %v347 = vpop.f32.mrb[0].mxu0
    %v348 = vadd.f32 %v272, %v347
    %v349 = vpop.f32.mrb[0].mxu0
    %350 = vmatprep.mubr.f32.mxu0 0.0
    %351 = vmatmul.mubr.f32.gmra.mrb[0].mxu0 %v279
    %v352 = vpop.f32.mrb[0].mxu0
    %v353 = vadd.f32 %v272, %v352
    %v354 = vpop.f32.mrb[0].mxu0
    %355 = vdwg.mxu0
    %v356 = vtanh.pop %v348
    %v357 = vtanh.pop %v353
    %v358 = vld [vmem:[#allocation4] sm:$0xff]
    %v359 = vld [vmem:[#allocation4 + $0x8] sm:$0xff]
    %v360 = vld [vmem:[%s7] sm:$0xff]
    %v361 = vld [vmem:[%s7 + $0x8] sm:$0xff]
    %v362 = vld [vmem:[%s7 + $0x10] sm:$0xff]
    %v363 = vld [vmem:[%s7 + $0x18] sm:$0xff]
    %v364 = vld [vmem:[%s7 + $0x20] sm:$0xff]
    %v365 = vld [vmem:[%s7 + $0x28] sm:$0xff]
    %v366 = vld [vmem:[%s7 + $0x30] sm:$0xff]
    %v367 = vld [vmem:[%s7 + $0x38] sm:$0xff]
    %v368 = vld [vmem:[#allocation12] sm:$0x1]
    %v370 = vlaneseq
    %v371 = vshrl.u32 %v370, 7
    %v372 = vsub.s32 0, %v371
    %v373 = vrot.slane %v368, %v372
    %vm375 = vcmask 523264
    %v377 = vsel %vm375, %v358, 0
    %v380 = vsel %vm375, %v359, 0
    %382 = vmatprep.subr.mxu0 0.0
    %383 = vmatpush1.msra.mxu0 %v360
    %384 = vmatprep.subr.mxu0 0.0
    %385 = vmatpush1.msra.mxu0 %v361
    %386 = vmatprep.subr.mxu0 0.0
    %387 = vmatpush1.msra.mxu0 %v362
    %388 = vmatprep.subr.mxu0 0.0
    %389 = vmatpush1.msra.mxu0 %v363
    %390 = vmatprep.subr.mxu0 0.0
    %391 = vmatpush1.msra.mxu0 %v364
    %392 = vmatprep.subr.mxu0 0.0
    %393 = vmatpush1.msra.mxu0 %v365
    %394 = vmatprep.subr.mxu0 0.0
    %395 = vmatpush1.msra.mxu0 %v366
    %396 = vmatprep.subr.mxu0 0.0
    %397 = vmatpush1.msra.mxu0 %v367
    %398 = vmatprep.subr.mxu0 0.0
    %399 = vmatpush1.msra.mxu0 0.0
    %400 = vmatprep.subr.mxu0 0.0
    %401 = vmatpush1.msra.mxu0 0.0
    %402 = vmatprep.subr.mxu0 0.0
    %403 = vmatpush1.msra.mxu0 0.0
    %404 = vmatprep.subr.mxu0 0.0
    %405 = vmatpush1.msra.mxu0 0.0
    %406 = vmatprep.subr.mxu0 0.0
    %407 = vmatpush1.msra.mxu0 0.0
    %408 = vmatprep.subr.mxu0 0.0
    %409 = vmatpush1.msra.mxu0 0.0
    %410 = vmatprep.subr.mxu0 0.0
    %411 = vmatpush1.msra.mxu0 0.0
    %412 = vmatprep.subr.mxu0 0.0
    %413 = vmatpush1.msra.mxu0 0.0
    %414 = vmatprep.subr.mxu0 0.0
    %415 = vmatpush1.msra.mxu0 0.0
    %416 = vmatprep.subr.mxu0 0.0
    %417 = vmatpush1.msra.mxu0 0.0
    %418 = vmatprep.subr.mxu0 0.0
    %419 = vmatpush1.msra.mxu0 0.0
    %420 = vmatprep.subr.mxu0 0.0
    %421 = vmatpush1.msra.mxu0 0.0
    %422 = vmatprep.subr.mxu0 0.0
    %423 = vmatpush1.msra.mxu0 0.0
    %424 = vmatprep.subr.mxu0 0.0
    %425 = vmatpush1.msra.mxu0 0.0
    %426 = vmatprep.subr.mxu0 0.0
    %427 = vmatpush1.msra.mxu0 0.0
    %428 = vmatprep.subr.mxu0 0.0
    %429 = vmatpush1.msra.mxu0 0.0
    %430 = vmatprep.subr.mxu0 0.0
    %431 = vmatpush1.msra.mxu0 0.0
    %432 = vmatprep.subr.mxu0 0.0
    %433 = vmatpush1.msra.mxu0 0.0
    %434 = vmatprep.subr.mxu0 0.0
    %435 = vmatpush1.msra.mxu0 0.0
    %436 = vmatprep.subr.mxu0 0.0
    %437 = vmatpush1.msra.mxu0 0.0
    %438 = vmatprep.subr.mxu0 0.0
    %439 = vmatpush1.msra.mxu0 0.0
    %440 = vmatprep.subr.mxu0 0.0
    %441 = vmatpush1.msra.mxu0 0.0
    %442 = vmatprep.subr.mxu0 0.0
    %443 = vmatpush1.msra.mxu0 0.0
    %444 = vmatprep.subr.mxu0 0.0
    %445 = vmatpush1.msra.mxu0 0.0
    %446 = vmatprep.mubr.f32.mxu0 0.0
    %447 = vmatmul.mubr.f32.gmra.mrb[0].mxu0 %v377
    %v448 = vpop.f32.mrb[0].mxu0
    %v449 = vadd.f32 %v373, %v448
    %v450 = vpop.f32.mrb[0].mxu0
    %451 = vmatprep.mubr.f32.mxu0 0.0
    %452 = vmatmul.mubr.f32.gmra.mrb[0].mxu0 %v380
    %v453 = vpop.f32.mrb[0].mxu0
    %v454 = vadd.f32 %v373, %v453
    %v455 = vpop.f32.mrb[0].mxu0
    %456 = vdwg.mxu0
    %v457 = vtanh.pop %v449
    %v458 = vtanh.pop %v454
    %v459 = vld [vmem:[%s9] sm:$0xff]
    %v460 = vld [vmem:[%s9 + $0x8] sm:$0xff]
    %v461 = vld [vmem:[%s9 + $0x10] sm:$0xff]
    %v462 = vld [vmem:[%s9 + $0x18] sm:$0xff]
    %v463 = vld [vmem:[%s9 + $0x20] sm:$0xff]
    %v464 = vld [vmem:[%s9 + $0x28] sm:$0xff]
    %v465 = vld [vmem:[%s9 + $0x30] sm:$0xff]
    %v466 = vld [vmem:[%s9 + $0x38] sm:$0xff]
    %v467 = vld [vmem:[#allocation13] sm:$0x1]
    %v469 = vlaneseq
    %v470 = vshrl.u32 %v469, 7
    %v471 = vsub.s32 0, %v470
    %v472 = vrot.slane %v467, %v471
    %v475 = vsel %vm375, %v457, 0
    %v478 = vsel %vm375, %v458, 0
    %480 = vmatprep.subr.mxu0 0.0
    %481 = vmatpush1.msra.mxu0 %v459
    %482 = vmatprep.subr.mxu0 0.0
    %483 = vmatpush1.msra.mxu0 %v460
    %484 = vmatprep.subr.mxu0 0.0
    %485 = vmatpush1.msra.mxu0 %v461
    %486 = vmatprep.subr.mxu0 0.0
    %487 = vmatpush1.msra.mxu0 %v462
    %488 = vmatprep.subr.mxu0 0.0
    %489 = vmatpush1.msra.mxu0 %v463
    %490 = vmatprep.subr.mxu0 0.0
    %491 = vmatpush1.msra.mxu0 %v464
    %492 = vmatprep.subr.mxu0 0.0
    %493 = vmatpush1.msra.mxu0 %v465
    %494 = vmatprep.subr.mxu0 0.0
    %495 = vmatpush1.msra.mxu0 %v466
    %496 = vmatprep.subr.mxu0 0.0
    %497 = vmatpush1.msra.mxu0 0.0
    %498 = vmatprep.subr.mxu0 0.0
    %499 = vmatpush1.msra.mxu0 0.0
    %500 = vmatprep.subr.mxu0 0.0
    %501 = vmatpush1.msra.mxu0 0.0
    %502 = vmatprep.subr.mxu0 0.0
    %503 = vmatpush1.msra.mxu0 0.0
    %504 = vmatprep.subr.mxu0 0.0
    %505 = vmatpush1.msra.mxu0 0.0
    %506 = vmatprep.subr.mxu0 0.0
    %507 = vmatpush1.msra.mxu0 0.0
    %508 = vmatprep.subr.mxu0 0.0
    %509 = vmatpush1.msra.mxu0 0.0
    %510 = vmatprep.subr.mxu0 0.0
    %511 = vmatpush1.msra.mxu0 0.0
    %512 = vmatprep.subr.mxu0 0.0
    %513 = vmatpush1.msra.mxu0 0.0
    %514 = vmatprep.subr.mxu0 0.0
    %515 = vmatpush1.msra.mxu0 0.0
    %516 = vmatprep.subr.mxu0 0.0
    %517 = vmatpush1.msra.mxu0 0.0
    %518 = vmatprep.subr.mxu0 0.0
    %519 = vmatpush1.msra.mxu0 0.0
    %520 = vmatprep.subr.mxu0 0.0
    %521 = vmatpush1.msra.mxu0 0.0
    %522 = vmatprep.subr.mxu0 0.0
    %523 = vmatpush1.msra.mxu0 0.0
    %524 = vmatprep.subr.mxu0 0.0
    %525 = vmatpush1.msra.mxu0 0.0
    %526 = vmatprep.subr.mxu0 0.0
    %527 = vmatpush1.msra.mxu0 0.0
    %528 = vmatprep.subr.mxu0 0.0
    %529 = vmatpush1.msra.mxu0 0.0
    %530 = vmatprep.subr.mxu0 0.0
    %531 = vmatpush1.msra.mxu0 0.0
    %532 = vmatprep.subr.mxu0 0.0
    %533 = vmatpush1.msra.mxu0 0.0
    %534 = vmatprep.subr.mxu0 0.0
    %535 = vmatpush1.msra.mxu0 0.0
    %536 = vmatprep.subr.mxu0 0.0
    %537 = vmatpush1.msra.mxu0 0.0
    %538 = vmatprep.subr.mxu0 0.0
    %539 = vmatpush1.msra.mxu0 0.0
    %540 = vmatprep.subr.mxu0 0.0
    %541 = vmatpush1.msra.mxu0 0.0
    %542 = vmatprep.subr.mxu0 0.0
    %543 = vmatpush1.msra.mxu0 0.0
    %544 = vmatprep.mubr.f32.mxu0 0.0
    %545 = vmatmul.mubr.f32.gmra.mrb[0].mxu0 %v475
    %v546 = vpop.f32.mrb[0].mxu0
    %v547 = vadd.f32 %v472, %v546
    %v548 = vpop.f32.mrb[0].mxu0
    %549 = vmatprep.mubr.f32.mxu0 0.0
    %550 = vmatmul.mubr.f32.gmra.mrb[0].mxu0 %v478
    %v551 = vpop.f32.mrb[0].mxu0
    %v552 = vadd.f32 %v472, %v551
    %v553 = vpop.f32.mrb[0].mxu0
    %554 = vdwg.mxu0
    %v555 = vtanh.pop %v547
    %v556 = vtanh.pop %v552
    %v557 = vlaneseq
    %v558 = vshrl.u32 %v557, 7
    %v559 = vlaneseq
    %v560 = vand.u32 %v559, 127
    %v561 = vmul.u32 %v558, 8
    %v562 = vadd.s32 %v561, 7
    %vm563 = vcmp.eq.s32.totalorder %v560, %v562
    %v564 = vsel %vm563, 1, 0
    %v565 = vcvt.s32.f32 %v564
    %vm566 = vcmask 130048
    %v568 = vsel %vm566, %v565, 0
    %570 = vmatprep.subr.mxu0 0.0
    %571 = vmatpush1.msra.mxu0 %v555
    %572 = vmatprep.subr.mxu0 0.0
    %573 = vmatpush1.msra.mxu0 %v556
    %574 = vmatprep.subr.mxu0 0.0
    %575 = vmatpush1.msra.mxu0 0.0
    %576 = vmatprep.subr.mxu0 0.0
    %577 = vmatpush1.msra.mxu0 0.0
    %578 = vmatprep.subr.mxu0 0.0
    %579 = vmatpush1.msra.mxu0 0.0
    %580 = vmatprep.subr.mxu0 0.0
    %581 = vmatpush1.msra.mxu0 0.0
    %582 = vmatprep.subr.mxu0 0.0
    %583 = vmatpush1.msra.mxu0 0.0
    %584 = vmatprep.subr.mxu0 0.0
    %585 = vmatpush1.msra.mxu0 0.0
    %586 = vmatprep.subr.mxu0 0.0
    %587 = vmatpush1.msra.mxu0 0.0
    %588 = vmatprep.subr.mxu0 0.0
    %589 = vmatpush1.msra.mxu0 0.0
    %590 = vmatprep.subr.mxu0 0.0
    %591 = vmatpush1.msra.mxu0 0.0
    %592 = vmatprep.subr.mxu0 0.0
    %593 = vmatpush1.msra.mxu0 0.0
    %594 = vmatprep.subr.mxu0 0.0
    %595 = vmatpush1.msra.mxu0 0.0
    %596 = vmatprep.subr.mxu0 0.0
    %597 = vmatpush1.msra.mxu0 0.0
    %598 = vmatprep.subr.mxu0 0.0
    %599 = vmatpush1.msra.mxu0 0.0
    %600 = vmatprep.subr.mxu0 0.0
    %601 = vmatpush1.msra.mxu0 0.0
    %602 = vmatprep.subr.mxu0 0.0
    %603 = vmatpush1.msra.mxu0 0.0
    %604 = vmatprep.subr.mxu0 0.0
    %605 = vmatpush1.msra.mxu0 0.0
    %606 = vmatprep.subr.mxu0 0.0
    %607 = vmatpush1.msra.mxu0 0.0
    %608 = vmatprep.subr.mxu0 0.0
    %609 = vmatpush1.msra.mxu0 0.0
    %610 = vmatprep.subr.mxu0 0.0
    %611 = vmatpush1.msra.mxu0 0.0
    %612 = vmatprep.subr.mxu0 0.0
    %613 = vmatpush1.msra.mxu0 0.0
    %614 = vmatprep.subr.mxu0 0.0
    %615 = vmatpush1.msra.mxu0 0.0
    %616 = vmatprep.subr.mxu0 0.0
    %617 = vmatpush1.msra.mxu0 0.0
    %618 = vmatprep.subr.mxu0 0.0
    %619 = vmatpush1.msra.mxu0 0.0
    %620 = vmatprep.subr.mxu0 0.0
    %621 = vmatpush1.msra.mxu0 0.0
    %622 = vmatprep.subr.mxu0 0.0
    %623 = vmatpush1.msra.mxu0 0.0
    %624 = vmatprep.subr.mxu0 0.0
    %625 = vmatpush1.msra.mxu0 0.0
    %626 = vmatprep.subr.mxu0 0.0
    %627 = vmatpush1.msra.mxu0 0.0
    %628 = vmatprep.subr.mxu0 0.0
    %629 = vmatpush1.msra.mxu0 0.0
    %630 = vmatprep.subr.mxu0 0.0
    %631 = vmatpush1.msra.mxu0 0.0
    %632 = vmatprep.subr.mxu0 0.0
    %633 = vmatpush1.msra.mxu0 0.0
    %634 = vmatprep.mubr.f32.mxu0 0.0
    %635 = vmatmul.mubr.f32.gmra.mrb[0].mxu0 %v568
    %v636 = vpop.f32.mrb[0].mxu0
    %v637 = vadd.f32 0.0, %v636
    %v638 = vpop.f32.mrb[0].mxu0
    %639 = vdwg.mxu0
    %v640 = vld [vmem:[%s11] sm:$0xff]
    %v641 = vld [vmem:[%s11 + $0x8] sm:$0xff]
    %v642 = vld [vmem:[%s11 + $0x10] sm:$0xff]
    %v643 = vld [vmem:[%s11 + $0x18] sm:$0xff]
    %v644 = vld [vmem:[%s11 + $0x20] sm:$0xff]
    %v645 = vld [vmem:[%s11 + $0x28] sm:$0xff]
    %v646 = vld [vmem:[%s11 + $0x30] sm:$0xff]
    %v647 = vld [vmem:[%s11 + $0x38] sm:$0xff]
    %v648 = vld [vmem:[#allocation15] sm:$0x1]
    %v650 = vlaneseq
    %v651 = vshrl.u32 %v650, 7
    %v652 = vsub.s32 0, %v651
    %v653 = vrot.slane %v648, %v652
    %v656 = vsel %vm375, %v637, 0
    %658 = vmatprep.subr.mxu0 0.0
    %659 = vmatpush1.msra.mxu0 %v640
    %660 = vmatprep.subr.mxu0 0.0
    %661 = vmatpush1.msra.mxu0 %v641
    %662 = vmatprep.subr.mxu0 0.0
    %663 = vmatpush1.msra.mxu0 %v642
    %664 = vmatprep.subr.mxu0 0.0
    %665 = vmatpush1.msra.mxu0 %v643
    %666 = vmatprep.subr.mxu0 0.0
    %667 = vmatpush1.msra.mxu0 %v644
    %668 = vmatprep.subr.mxu0 0.0
    %669 = vmatpush1.msra.mxu0 %v645
    %670 = vmatprep.subr.mxu0 0.0
    %671 = vmatpush1.msra.mxu0 %v646
    %672 = vmatprep.subr.mxu0 0.0
    %673 = vmatpush1.msra.mxu0 %v647
    %674 = vmatprep.subr.mxu0 0.0
    %675 = vmatpush1.msra.mxu0 0.0
    %676 = vmatprep.subr.mxu0 0.0
    %677 = vmatpush1.msra.mxu0 0.0
    %678 = vmatprep.subr.mxu0 0.0
    %679 = vmatpush1.msra.mxu0 0.0
    %680 = vmatprep.subr.mxu0 0.0
    %681 = vmatpush1.msra.mxu0 0.0
    %682 = vmatprep.subr.mxu0 0.0
    %683 = vmatpush1.msra.mxu0 0.0
    %684 = vmatprep.subr.mxu0 0.0
    %685 = vmatpush1.msra.mxu0 0.0
    %686 = vmatprep.subr.mxu0 0.0
    %687 = vmatpush1.msra.mxu0 0.0
    %688 = vmatprep.subr.mxu0 0.0
    %689 = vmatpush1.msra.mxu0 0.0
    %690 = vmatprep.subr.mxu0 0.0
    %691 = vmatpush1.msra.mxu0 0.0
    %692 = vmatprep.subr.mxu0 0.0
    %693 = vmatpush1.msra.mxu0 0.0
    %694 = vmatprep.subr.mxu0 0.0
    %695 = vmatpush1.msra.mxu0 0.0
    %696 = vmatprep.subr.mxu0 0.0
    %697 = vmatpush1.msra.mxu0 0.0
    %698 = vmatprep.subr.mxu0 0.0
    %699 = vmatpush1.msra.mxu0 0.0
    %700 = vmatprep.subr.mxu0 0.0
    %701 = vmatpush1.msra.mxu0 0.0
    %702 = vmatprep.subr.mxu0 0.0
    %703 = vmatpush1.msra.mxu0 0.0
    %704 = vmatprep.subr.mxu0 0.0
    %705 = vmatpush1.msra.mxu0 0.0
    %706 = vmatprep.subr.mxu0 0.0
    %707 = vmatpush1.msra.mxu0 0.0
    %708 = vmatprep.subr.mxu0 0.0
    %709 = vmatpush1.msra.mxu0 0.0
    %710 = vmatprep.subr.mxu0 0.0
    %711 = vmatpush1.msra.mxu0 0.0
    %712 = vmatprep.subr.mxu0 0.0
    %713 = vmatpush1.msra.mxu0 0.0
    %714 = vmatprep.subr.mxu0 0.0
    %715 = vmatpush1.msra.mxu0 0.0
    %716 = vmatprep.subr.mxu0 0.0
    %717 = vmatpush1.msra.mxu0 0.0
    %718 = vmatprep.subr.mxu0 0.0
    %719 = vmatpush1.msra.mxu0 0.0
    %720 = vmatprep.subr.mxu0 0.0
    %721 = vmatpush1.msra.mxu0 0.0
    %722 = vmatprep.mubr.f32.mxu0 0.0
    %723 = vmatmul.mubr.f32.gmra.mrb[0].mxu0 %v656
    %v724 = vpop.f32.mrb[0].mxu0
    %v725 = vadd.f32 %v653, %v724
    %v726 = vpop.f32.mrb[0].mxu0
    %727 = vdwg.mxu0
    %v728 = vld [vmem:[#allocation22] sm:$0xff]
    %v729 = vld [vmem:[#allocation22 + $0x8] sm:$0xff]
    %v730 = vld [vmem:[#allocation22 + $0x10] sm:$0xff]
    %v731 = vld [vmem:[#allocation22 + $0x18] sm:$0xff]
    %v732 = vld [vmem:[%s22] sm:$0xff]
    %v733 = vld [vmem:[%s22 + $0x8] sm:$0xff]
    %v734 = vld [vmem:[%s22 + $0x10] sm:$0xff]
    %v735 = vld [vmem:[%s22 + $0x18] sm:$0xff]
    %v736 = vld [vmem:[%s22 + $0x20] sm:$0xff]
    %v737 = vld [vmem:[%s22 + $0x28] sm:$0xff]
    %v738 = vld [vmem:[%s22 + $0x30] sm:$0xff]
    %v739 = vld [vmem:[%s22 + $0x38] sm:$0xff]
    %740 = vmatprep.subr.mxu0 0.0
    %741 = vmatpush1.msra.mxu0 %v732
    %742 = vmatprep.subr.mxu0 0.0
    %743 = vmatpush1.msra.mxu0 %v733
    %744 = vmatprep.subr.mxu0 0.0
    %745 = vmatpush1.msra.mxu0 %v734
    %746 = vmatprep.subr.mxu0 0.0
    %747 = vmatpush1.msra.mxu0 %v735
    %748 = vmatprep.subr.mxu0 0.0
    %749 = vmatpush1.msra.mxu0 %v736
    %750 = vmatprep.subr.mxu0 0.0
    %751 = vmatpush1.msra.mxu0 %v737
    %752 = vmatprep.subr.mxu0 0.0
    %753 = vmatpush1.msra.mxu0 %v738
    %754 = vmatprep.subr.mxu0 0.0
    %755 = vmatpush1.msra.mxu0 %v739
    %756 = vmatprep.subr.mxu0 0.0
    %757 = vmatpush1.msra.mxu0 0.0
    %758 = vmatprep.subr.mxu0 0.0
    %759 = vmatpush1.msra.mxu0 0.0
    %760 = vmatprep.subr.mxu0 0.0
    %761 = vmatpush1.msra.mxu0 0.0
    %762 = vmatprep.subr.mxu0 0.0
    %763 = vmatpush1.msra.mxu0 0.0
    %764 = vmatprep.subr.mxu0 0.0
    %765 = vmatpush1.msra.mxu0 0.0
    %766 = vmatprep.subr.mxu0 0.0
    %767 = vmatpush1.msra.mxu0 0.0
    %768 = vmatprep.subr.mxu0 0.0
    %769 = vmatpush1.msra.mxu0 0.0
    %770 = vmatprep.subr.mxu0 0.0
    %771 = vmatpush1.msra.mxu0 0.0
    %772 = vmatprep.subr.mxu0 0.0
    %773 = vmatpush1.msra.mxu0 0.0
    %774 = vmatprep.subr.mxu0 0.0
    %775 = vmatpush1.msra.mxu0 0.0
    %776 = vmatprep.subr.mxu0 0.0
    %777 = vmatpush1.msra.mxu0 0.0
    %778 = vmatprep.subr.mxu0 0.0
    %779 = vmatpush1.msra.mxu0 0.0
    %780 = vmatprep.subr.mxu0 0.0
    %781 = vmatpush1.msra.mxu0 0.0
    %782 = vmatprep.subr.mxu0 0.0
    %783 = vmatpush1.msra.mxu0 0.0
    %784 = vmatprep.subr.mxu0 0.0
    %785 = vmatpush1.msra.mxu0 0.0
    %786 = vmatprep.subr.mxu0 0.0
    %787 = vmatpush1.msra.mxu0 0.0
    %788 = vmatprep.subr.mxu0 0.0
    %789 = vmatpush1.msra.mxu0 0.0
    %790 = vmatprep.subr.mxu0 0.0
    %791 = vmatpush1.msra.mxu0 0.0
    %792 = vmatprep.subr.mxu0 0.0
    %793 = vmatpush1.msra.mxu0 0.0
    %794 = vmatprep.subr.mxu0 0.0
    %795 = vmatpush1.msra.mxu0 0.0
    %796 = vmatprep.subr.mxu0 0.0
    %797 = vmatpush1.msra.mxu0 0.0
    %798 = vmatprep.subr.mxu0 0.0
    %799 = vmatpush1.msra.mxu0 0.0
    %800 = vmatprep.subr.mxu0 0.0
    %801 = vmatpush1.msra.mxu0 0.0
    %802 = vmatprep.subr.mxu0 0.0
    %803 = vmatpush1.msra.mxu0 0.0
    %804 = vmatprep.mubr.f32.mxu0 0.0
    %805 = vmatmul.mubr.f32.gmra.mrb[0].mxu0 %v475
    %v806 = vpop.f32.mrb[0].mxu0
    %v807 = vadd.f32 0.0, %v806
    %v808 = vpop.f32.mrb[0].mxu0
    %809 = vmatprep.mubr.f32.mxu0 0.0
    %810 = vmatmul.mubr.f32.gmra.mrb[0].mxu0 %v478
    %v811 = vpop.f32.mrb[0].mxu0
    %v812 = vadd.f32 0.0, %v811
    %v813 = vpop.f32.mrb[0].mxu0
    %814 = vdwg.mxu0
    %v816 = vsel %vm274, %v356, 0
    %v819 = vsel %vm274, %v357, 0
    %821 = vmatprep.subr.mxu0 0.0
    %822 = vmatpush1.msra.mxu0 %v728
    %823 = vmatprep.subr.mxu0 0.0
    %824 = vmatpush1.msra.mxu0 %v729
    %825 = vmatprep.subr.mxu0 0.0
    %826 = vmatpush1.msra.mxu0 %v730
    %827 = vmatprep.subr.mxu0 0.0
    %828 = vmatpush1.msra.mxu0 %v731
    %829 = vmatprep.subr.mxu0 0.0
    %830 = vmatpush1.msra.mxu0 0.0
    %831 = vmatprep.subr.mxu0 0.0
    %832 = vmatpush1.msra.mxu0 0.0
    %833 = vmatprep.subr.mxu0 0.0
    %834 = vmatpush1.msra.mxu0 0.0
    %835 = vmatprep.subr.mxu0 0.0
    %836 = vmatpush1.msra.mxu0 0.0
    %837 = vmatprep.subr.mxu0 0.0
    %838 = vmatpush1.msra.mxu0 0.0
    %839 = vmatprep.subr.mxu0 0.0
    %840 = vmatpush1.msra.mxu0 0.0
    %841 = vmatprep.subr.mxu0 0.0
    %842 = vmatpush1.msra.mxu0 0.0
    %843 = vmatprep.subr.mxu0 0.0
    %844 = vmatpush1.msra.mxu0 0.0
    %845 = vmatprep.subr.mxu0 0.0
    %846 = vmatpush1.msra.mxu0 0.0
    %847 = vmatprep.subr.mxu0 0.0
    %848 = vmatpush1.msra.mxu0 0.0
    %849 = vmatprep.subr.mxu0 0.0
    %850 = vmatpush1.msra.mxu0 0.0
    %851 = vmatprep.subr.mxu0 0.0
    %852 = vmatpush1.msra.mxu0 0.0
    %853 = vmatprep.subr.mxu0 0.0
    %854 = vmatpush1.msra.mxu0 0.0
    %855 = vmatprep.subr.mxu0 0.0
    %856 = vmatpush1.msra.mxu0 0.0
    %857 = vmatprep.subr.mxu0 0.0
    %858 = vmatpush1.msra.mxu0 0.0
    %859 = vmatprep.subr.mxu0 0.0
    %860 = vmatpush1.msra.mxu0 0.0
    %861 = vmatprep.subr.mxu0 0.0
    %862 = vmatpush1.msra.mxu0 0.0
    %863 = vmatprep.subr.mxu0 0.0
    %864 = vmatpush1.msra.mxu0 0.0
    %865 = vmatprep.subr.mxu0 0.0
    %866 = vmatpush1.msra.mxu0 0.0
    %867 = vmatprep.subr.mxu0 0.0
    %868 = vmatpush1.msra.mxu0 0.0
    %869 = vmatprep.subr.mxu0 0.0
    %870 = vmatpush1.msra.mxu0 0.0
    %871 = vmatprep.subr.mxu0 0.0
    %872 = vmatpush1.msra.mxu0 0.0
    %873 = vmatprep.subr.mxu0 0.0
    %874 = vmatpush1.msra.mxu0 0.0
    %875 = vmatprep.subr.mxu0 0.0
    %876 = vmatpush1.msra.mxu0 0.0
    %877 = vmatprep.subr.mxu0 0.0
    %878 = vmatpush1.msra.mxu0 0.0
    %879 = vmatprep.subr.mxu0 0.0
    %880 = vmatpush1.msra.mxu0 0.0
    %881 = vmatprep.subr.mxu0 0.0
    %882 = vmatpush1.msra.mxu0 0.0
    %883 = vmatprep.subr.mxu0 0.0
    %884 = vmatpush1.msra.mxu0 0.0
    %885 = vmatprep.mubr.f32.mxu0 0.0
    %886 = vmatmul.mubr.f32.gmra.mrb[0].mxu0 %v816
    %v887 = vpop.f32.mrb[0].mxu0
    %v888 = vadd.f32 %v807, %v887
    %v889 = vpop.f32.mrb[0].mxu0
    %890 = vmatprep.mubr.f32.mxu0 0.0
    %891 = vmatmul.mubr.f32.gmra.mrb[0].mxu0 %v819
    %v892 = vpop.f32.mrb[0].mxu0
    %v893 = vadd.f32 %v812, %v892
    %v894 = vpop.f32.mrb[0].mxu0
    %895 = vdwg.mxu0
    %v896 = vld [vmem:[%s15] sm:$0xff]
    %v897 = vld [vmem:[%s15 + $0x8] sm:$0xff]
    %v898 = vld [vmem:[%s15 + $0x10] sm:$0xff]
    %v899 = vld [vmem:[%s15 + $0x18] sm:$0xff]
    %v900 = vld [vmem:[#allocation6] sm:$0x3]
    %v901 = vld [vmem:[#allocation19] sm:$0x3f]
    %vm902 = vcmask 48128
    %v904 = vsel %vm902, %v900, 0
    %vm906 = vcmask 1045504
    %v908 = vsel %vm906, %v901, 0
    %910 = vmatprep.subr.mxu0 0.0
    %911 = vmatpush1.msra.mxu0 %v908
    %912 = vmatprep.subr.mxu0 0.0
    %913 = vmatpush1.msra.mxu0 0.0
    %914 = vmatprep.subr.mxu0 0.0
    %915 = vmatpush1.msra.mxu0 0.0
    %916 = vmatprep.subr.mxu0 0.0
    %917 = vmatpush1.msra.mxu0 0.0
    %918 = vmatprep.subr.mxu0 0.0
    %919 = vmatpush1.msra.mxu0 0.0
    %920 = vmatprep.subr.mxu0 0.0
    %921 = vmatpush1.msra.mxu0 0.0
    %922 = vmatprep.subr.mxu0 0.0
    %923 = vmatpush1.msra.mxu0 0.0
    %924 = vmatprep.subr.mxu0 0.0
    %925 = vmatpush1.msra.mxu0 0.0
    %926 = vmatprep.subr.mxu0 0.0
    %927 = vmatpush1.msra.mxu0 0.0
    %928 = vmatprep.subr.mxu0 0.0
    %929 = vmatpush1.msra.mxu0 0.0
    %930 = vmatprep.subr.mxu0 0.0
    %931 = vmatpush1.msra.mxu0 0.0
    %932 = vmatprep.subr.mxu0 0.0
    %933 = vmatpush1.msra.mxu0 0.0
    %934 = vmatprep.subr.mxu0 0.0
    %935 = vmatpush1.msra.mxu0 0.0
    %936 = vmatprep.subr.mxu0 0.0
    %937 = vmatpush1.msra.mxu0 0.0
    %938 = vmatprep.subr.mxu0 0.0
    %939 = vmatpush1.msra.mxu0 0.0
    %940 = vmatprep.subr.mxu0 0.0
    %941 = vmatpush1.msra.mxu0 0.0
    %942 = vmatprep.subr.mxu0 0.0
    %943 = vmatpush1.msra.mxu0 0.0
    %944 = vmatprep.subr.mxu0 0.0
    %945 = vmatpush1.msra.mxu0 0.0
    %946 = vmatprep.subr.mxu0 0.0
    %947 = vmatpush1.msra.mxu0 0.0
    %948 = vmatprep.subr.mxu0 0.0
    %949 = vmatpush1.msra.mxu0 0.0
    %950 = vmatprep.subr.mxu0 0.0
    %951 = vmatpush1.msra.mxu0 0.0
    %952 = vmatprep.subr.mxu0 0.0
    %953 = vmatpush1.msra.mxu0 0.0
    %954 = vmatprep.subr.mxu0 0.0
    %955 = vmatpush1.msra.mxu0 0.0
    %956 = vmatprep.subr.mxu0 0.0
    %957 = vmatpush1.msra.mxu0 0.0
    %958 = vmatprep.subr.mxu0 0.0
    %959 = vmatpush1.msra.mxu0 0.0
    %960 = vmatprep.subr.mxu0 0.0
    %961 = vmatpush1.msra.mxu0 0.0
    %962 = vmatprep.subr.mxu0 0.0
    %963 = vmatpush1.msra.mxu0 0.0
    %964 = vmatprep.subr.mxu0 0.0
    %965 = vmatpush1.msra.mxu0 0.0
    %966 = vmatprep.subr.mxu0 0.0
    %967 = vmatpush1.msra.mxu0 0.0
    %968 = vmatprep.subr.mxu0 0.0
    %969 = vmatpush1.msra.mxu0 0.0
    %970 = vmatprep.subr.mxu0 0.0
    %971 = vmatpush1.msra.mxu0 0.0
    %972 = vmatprep.subr.mxu0 0.0
    %973 = vmatpush1.msra.mxu0 0.0
    %974 = vmatprep.mubr.f32.mxu0 0.0
    %975 = vmatmul.mubr.f32.gmra.mrb[0].mxu0 %v904
    %v976 = vpop.f32.mrb[0].mxu0
    %v977 = vadd.f32 0.0, %v976
    %v978 = vpop.f32.mrb[0].mxu0
    %979 = vdwg.mxu0
    %v981 = vsel %vm274, %v725, 0
    %983 = vmatprep.subr.mxu0 0.0
    %984 = vmatpush1.msra.mxu0 %v896
    %985 = vmatprep.subr.mxu0 0.0
    %986 = vmatpush1.msra.mxu0 %v897
    %987 = vmatprep.subr.mxu0 0.0
    %988 = vmatpush1.msra.mxu0 %v898
    %989 = vmatprep.subr.mxu0 0.0
    %990 = vmatpush1.msra.mxu0 %v899
    %991 = vmatprep.subr.mxu0 0.0
    %992 = vmatpush1.msra.mxu0 0.0
    %993 = vmatprep.subr.mxu0 0.0
    %994 = vmatpush1.msra.mxu0 0.0
    %995 = vmatprep.subr.mxu0 0.0
    %996 = vmatpush1.msra.mxu0 0.0
    %997 = vmatprep.subr.mxu0 0.0
    %998 = vmatpush1.msra.mxu0 0.0
    %999 = vmatprep.subr.mxu0 0.0
    %1000 = vmatpush1.msra.mxu0 0.0
    %1001 = vmatprep.subr.mxu0 0.0
    %1002 = vmatpush1.msra.mxu0 0.0
    %1003 = vmatprep.subr.mxu0 0.0
    %1004 = vmatpush1.msra.mxu0 0.0
    %1005 = vmatprep.subr.mxu0 0.0
    %1006 = vmatpush1.msra.mxu0 0.0
    %1007 = vmatprep.subr.mxu0 0.0
    %1008 = vmatpush1.msra.mxu0 0.0
    %1009 = vmatprep.subr.mxu0 0.0
    %1010 = vmatpush1.msra.mxu0 0.0
    %1011 = vmatprep.subr.mxu0 0.0
    %1012 = vmatpush1.msra.mxu0 0.0
    %1013 = vmatprep.subr.mxu0 0.0
    %1014 = vmatpush1.msra.mxu0 0.0
    %1015 = vmatprep.subr.mxu0 0.0
    %1016 = vmatpush1.msra.mxu0 0.0
    %1017 = vmatprep.subr.mxu0 0.0
    %1018 = vmatpush1.msra.mxu0 0.0
    %1019 = vmatprep.subr.mxu0 0.0
    %1020 = vmatpush1.msra.mxu0 0.0
    %1021 = vmatprep.subr.mxu0 0.0
    %1022 = vmatpush1.msra.mxu0 0.0
    %1023 = vmatprep.subr.mxu0 0.0
    %1024 = vmatpush1.msra.mxu0 0.0
    %1025 = vmatprep.subr.mxu0 0.0
    %1026 = vmatpush1.msra.mxu0 0.0
    %1027 = vmatprep.subr.mxu0 0.0
    %1028 = vmatpush1.msra.mxu0 0.0
    %1029 = vmatprep.subr.mxu0 0.0
    %1030 = vmatpush1.msra.mxu0 0.0
    %1031 = vmatprep.subr.mxu0 0.0
    %1032 = vmatpush1.msra.mxu0 0.0
    %1033 = vmatprep.subr.mxu0 0.0
    %1034 = vmatpush1.msra.mxu0 0.0
    %1035 = vmatprep.subr.mxu0 0.0
    %1036 = vmatpush1.msra.mxu0 0.0
    %1037 = vmatprep.subr.mxu0 0.0
    %1038 = vmatpush1.msra.mxu0 0.0
    %1039 = vmatprep.subr.mxu0 0.0
    %1040 = vmatpush1.msra.mxu0 0.0
    %1041 = vmatprep.subr.mxu0 0.0
    %1042 = vmatpush1.msra.mxu0 0.0
    %1043 = vmatprep.subr.mxu0 0.0
    %1044 = vmatpush1.msra.mxu0 0.0
    %1045 = vmatprep.subr.mxu0 0.0
    %1046 = vmatpush1.msra.mxu0 0.0
    %1047 = vmatprep.mubr.f32.mxu0 0.0
    %1048 = vmatmul.mubr.f32.gmra.mrb[0].mxu0 %v981
    %v1049 = vpop.f32.mrb[0].mxu0
    %v1050 = vadd.f32 %v977, %v1049
    %v1051 = vpop.f32.mrb[0].mxu0
    %1052 = vdwg.mxu0
    %v1053 = vld [vmem:[#allocation21] sm:$0x1]
    %v1055 = vlaneseq
    %v1056 = vshrl.u32 %v1055, 7
    %v1057 = vsub.s32 0, %v1056
    %v1058 = vrot.slane %v1053, %v1057
    %v1060 = vadd.f32 %v1050, %v1058
    %v1061 = vsub.f32 0.0, %v1060
    %v1062 = vmul.f32 %v1061, 1.442695
    %v1063 = vpow.pop %v1062
    %v1064 = vadd.f32 %v1063, 1.0
    %v1065 = vrcp.pop %v1064
    %v1066 = vmul.f32 %v1060, %v1065
    %v1067 = vld [vmem:[#allocation7] sm:$0xf]
    %v1068 = vld [vmem:[#allocation16] sm:$0xff]
    %v1069 = vld [vmem:[#allocation16 + $0x8] sm:$0xff]
    %v1070 = vld [vmem:[#allocation18] sm:$0x1]
    %v1072 = vlaneseq
    %v1073 = vshrl.u32 %v1072, 7
    %v1074 = vsub.s32 0, %v1073
    %v1075 = vrot.slane %v1070, %v1074
    %v1078 = vsel %vm566, %v1067, 0
    %1080 = vmatprep.subr.mxu0 0.0
    %1081 = vmatpush1.msra.mxu0 %v1068
    %1082 = vmatprep.subr.mxu0 0.0
    %1083 = vmatpush1.msra.mxu0 %v1069
    %1084 = vmatprep.subr.mxu0 0.0
    %1085 = vmatpush1.msra.mxu0 0.0
    %1086 = vmatprep.subr.mxu0 0.0
    %1087 = vmatpush1.msra.mxu0 0.0
    %1088 = vmatprep.subr.mxu0 0.0
    %1089 = vmatpush1.msra.mxu0 0.0
    %1090 = vmatprep.subr.mxu0 0.0
    %1091 = vmatpush1.msra.mxu0 0.0
    %1092 = vmatprep.subr.mxu0 0.0
    %1093 = vmatpush1.msra.mxu0 0.0
    %1094 = vmatprep.subr.mxu0 0.0
    %1095 = vmatpush1.msra.mxu0 0.0
    %1096 = vmatprep.subr.mxu0 0.0
    %1097 = vmatpush1.msra.mxu0 0.0
    %1098 = vmatprep.subr.mxu0 0.0
    %1099 = vmatpush1.msra.mxu0 0.0
    %1100 = vmatprep.subr.mxu0 0.0
    %1101 = vmatpush1.msra.mxu0 0.0
    %1102 = vmatprep.subr.mxu0 0.0
    %1103 = vmatpush1.msra.mxu0 0.0
    %1104 = vmatprep.subr.mxu0 0.0
    %1105 = vmatpush1.msra.mxu0 0.0
    %1106 = vmatprep.subr.mxu0 0.0
    %1107 = vmatpush1.msra.mxu0 0.0
    %1108 = vmatprep.subr.mxu0 0.0
    %1109 = vmatpush1.msra.mxu0 0.0
    %1110 = vmatprep.subr.mxu0 0.0
    %1111 = vmatpush1.msra.mxu0 0.0
    %1112 = vmatprep.subr.mxu0 0.0
    %1113 = vmatpush1.msra.mxu0 0.0
    %1114 = vmatprep.subr.mxu0 0.0
    %1115 = vmatpush1.msra.mxu0 0.0
    %1116 = vmatprep.subr.mxu0 0.0
    %1117 = vmatpush1.msra.mxu0 0.0
    %1118 = vmatprep.subr.mxu0 0.0
    %1119 = vmatpush1.msra.mxu0 0.0
    %1120 = vmatprep.subr.mxu0 0.0
    %1121 = vmatpush1.msra.mxu0 0.0
    %1122 = vmatprep.subr.mxu0 0.0
    %1123 = vmatpush1.msra.mxu0 0.0
    %1124 = vmatprep.subr.mxu0 0.0
    %1125 = vmatpush1.msra.mxu0 0.0
    %1126 = vmatprep.subr.mxu0 0.0
    %1127 = vmatpush1.msra.mxu0 0.0
    %1128 = vmatprep.subr.mxu0 0.0
    %1129 = vmatpush1.msra.mxu0 0.0
    %1130 = vmatprep.subr.mxu0 0.0
    %1131 = vmatpush1.msra.mxu0 0.0
    %1132 = vmatprep.subr.mxu0 0.0
    %1133 = vmatpush1.msra.mxu0 0.0
    %1134 = vmatprep.subr.mxu0 0.0
    %1135 = vmatpush1.msra.mxu0 0.0
    %1136 = vmatprep.subr.mxu0 0.0
    %1137 = vmatpush1.msra.mxu0 0.0
    %1138 = vmatprep.subr.mxu0 0.0
    %1139 = vmatpush1.msra.mxu0 0.0
    %1140 = vmatprep.subr.mxu0 0.0
    %1141 = vmatpush1.msra.mxu0 0.0
    %1142 = vmatprep.subr.mxu0 0.0
    %1143 = vmatpush1.msra.mxu0 0.0
    %1144 = vmatprep.mubr.f32.mxu0 0.0
    %1145 = vmatmul.mubr.f32.gmra.mrb[0].mxu0 %v1078
    %v1146 = vpop.f32.mrb[0].mxu0
    %v1147 = vadd.f32 %v1075, %v1146
    %v1148 = vpop.f32.mrb[0].mxu0
    %1149 = vdwg.mxu0
    %v1150 = vsub.f32 0.0, %v1147
    %v1151 = vmul.f32 %v1150, 1.442695
    %v1152 = vpow.pop %v1151
    %v1153 = vadd.f32 %v1152, 1.0
    %v1154 = vrcp.pop %v1153
    %v1155 = vmul.f32 %v1147, %v1154
    %v1156 = vadd.s32 %v558, 8
    %v1157 = vadd.s32 %v558, 16
    %v1158 = vadd.s32 %v558, 24
    %v1159 = vadd.s32 %v558, 32
    %v1160 = vadd.s32 %v558, 40
    %v1161 = vadd.s32 %v558, 48
    %v1162 = vadd.s32 %v558, 56
    %v1163 = vadd.s32 %v558, 64
    %v1164 = vadd.s32 %v558, 72
    %v1165 = vadd.s32 %v558, 80
    %v1166 = vadd.s32 %v558, 88
    %v1167 = vadd.s32 %v558, 96
    %v1168 = vadd.s32 %v558, 104
    %v1169 = vadd.s32 %v558, 112
    %v1170 = vadd.s32 %v558, 120
    %v1171 = vmul.u32 %v560, 64
    %vm1172 = vcmp.ge.s32.totalorder %v558, %v1171
    %vm1173 = vcmp.ge.s32.totalorder %v1156, %v1171
    %vm1174 = vcmp.ge.s32.totalorder %v1157, %v1171
    %vm1175 = vcmp.ge.s32.totalorder %v1158, %v1171
    %vm1176 = vcmp.ge.s32.totalorder %v1159, %v1171
    %vm1177 = vcmp.ge.s32.totalorder %v1160, %v1171
    %vm1178 = vcmp.ge.s32.totalorder %v1161, %v1171
    %vm1179 = vcmp.ge.s32.totalorder %v1162, %v1171
    %vm1180 = vcmp.ge.s32.totalorder %v1163, %v1171
    %vm1181 = vcmp.ge.s32.totalorder %v1164, %v1171
    %vm1182 = vcmp.ge.s32.totalorder %v1165, %v1171
    %vm1183 = vcmp.ge.s32.totalorder %v1166, %v1171
    %vm1184 = vcmp.ge.s32.totalorder %v1167, %v1171
    %vm1185 = vcmp.ge.s32.totalorder %v1168, %v1171
    %vm1186 = vcmp.ge.s32.totalorder %v1169, %v1171
    %vm1187 = vcmp.ge.s32.totalorder %v1170, %v1171
    %v1188 = vadd.s32 %v560, 1
    %v1189 = vmul.u32 %v1188, 64
    %vm1190 = vcmp.lt.s32.totalorder %v558, %v1189
    %vm1191 = vcmp.lt.s32.totalorder %v1156, %v1189
    %vm1192 = vcmp.lt.s32.totalorder %v1157, %v1189
    %vm1193 = vcmp.lt.s32.totalorder %v1158, %v1189
    %vm1194 = vcmp.lt.s32.totalorder %v1159, %v1189
    %vm1195 = vcmp.lt.s32.totalorder %v1160, %v1189
    %vm1196 = vcmp.lt.s32.totalorder %v1161, %v1189
    %vm1197 = vcmp.lt.s32.totalorder %v1162, %v1189
    %vm1198 = vcmp.lt.s32.totalorder %v1163, %v1189
    %vm1199 = vcmp.lt.s32.totalorder %v1164, %v1189
    %vm1200 = vcmp.lt.s32.totalorder %v1165, %v1189
    %vm1201 = vcmp.lt.s32.totalorder %v1166, %v1189
    %vm1202 = vcmp.lt.s32.totalorder %v1167, %v1189
    %vm1203 = vcmp.lt.s32.totalorder %v1168, %v1189
    %vm1204 = vcmp.lt.s32.totalorder %v1169, %v1189
    %vm1205 = vcmp.lt.s32.totalorder %v1170, %v1189
    %vm1206 = vmand %vm1172, %vm1190
    %vm1207 = vmand %vm1173, %vm1191
    %vm1208 = vmand %vm1174, %vm1192
    %vm1209 = vmand %vm1175, %vm1193
    %vm1210 = vmand %vm1176, %vm1194
    %vm1211 = vmand %vm1177, %vm1195
    %vm1212 = vmand %vm1178, %vm1196
    %vm1213 = vmand %vm1179, %vm1197
    %vm1214 = vmand %vm1180, %vm1198
    %vm1215 = vmand %vm1181, %vm1199
    %vm1216 = vmand %vm1182, %vm1200
    %vm1217 = vmand %vm1183, %vm1201
    %vm1218 = vmand %vm1184, %vm1202
    %vm1219 = vmand %vm1185, %vm1203
    %vm1220 = vmand %vm1186, %vm1204
    %vm1221 = vmand %vm1187, %vm1205
    %v1222 = vsel %vm1206, 1, 0
    %v1223 = vsel %vm1207, 1, 0
    %v1224 = vsel %vm1208, 1, 0
    %v1225 = vsel %vm1209, 1, 0
    %v1226 = vsel %vm1210, 1, 0
    %v1227 = vsel %vm1211, 1, 0
    %v1228 = vsel %vm1212, 1, 0
    %v1229 = vsel %vm1213, 1, 0
    %v1230 = vsel %vm1214, 1, 0
    %v1231 = vsel %vm1215, 1, 0
    %v1232 = vsel %vm1216, 1, 0
    %v1233 = vsel %vm1217, 1, 0
    %v1234 = vsel %vm1218, 1, 0
    %v1235 = vsel %vm1219, 1, 0
    %v1236 = vsel %vm1220, 1, 0
    %v1237 = vsel %vm1221, 1, 0
    %v1238 = vcvt.s32.f32 %v1222
    %v1239 = vcvt.s32.f32 %v1223
    %v1240 = vcvt.s32.f32 %v1224
    %v1241 = vcvt.s32.f32 %v1225
    %v1242 = vcvt.s32.f32 %v1226
    %v1243 = vcvt.s32.f32 %v1227
    %v1244 = vcvt.s32.f32 %v1228
    %v1245 = vcvt.s32.f32 %v1229
    %v1246 = vcvt.s32.f32 %v1230
    %v1247 = vcvt.s32.f32 %v1231
    %v1248 = vcvt.s32.f32 %v1232
    %v1249 = vcvt.s32.f32 %v1233
    %v1250 = vcvt.s32.f32 %v1234
    %v1251 = vcvt.s32.f32 %v1235
    %v1252 = vcvt.s32.f32 %v1236
    %v1253 = vcvt.s32.f32 %v1237
    %vm1254 = vcmask 15360
    %v1256 = vsel %vm1254, %v1238, 0
    %v1259 = vsel %vm1254, %v1239, 0
    %v1262 = vsel %vm1254, %v1240, 0
    %v1265 = vsel %vm1254, %v1241, 0
    %v1268 = vsel %vm1254, %v1242, 0
    %v1271 = vsel %vm1254, %v1243, 0
    %v1274 = vsel %vm1254, %v1244, 0
    %v1277 = vsel %vm1254, %v1245, 0
    %v1280 = vsel %vm1254, %v1246, 0
    %v1283 = vsel %vm1254, %v1247, 0
    %v1286 = vsel %vm1254, %v1248, 0
    %v1289 = vsel %vm1254, %v1249, 0
    %v1292 = vsel %vm1254, %v1250, 0
    %v1295 = vsel %vm1254, %v1251, 0
    %v1298 = vsel %vm1254, %v1252, 0
    %v1301 = vsel %vm1254, %v1253, 0
    %vm1303 = vcmask 1041408
    %v1305 = vsel %vm1303, %v1066, 0
    %1307 = vmatprep.subr.mxu0 0.0
    %1308 = vmatpush1.msra.mxu0 %v1305
    %1309 = vmatprep.subr.mxu0 0.0
    %1310 = vmatpush1.msra.mxu0 0.0
    %1311 = vmatprep.subr.mxu0 0.0
    %1312 = vmatpush1.msra.mxu0 0.0
    %1313 = vmatprep.subr.mxu0 0.0
    %1314 = vmatpush1.msra.mxu0 0.0
    %1315 = vmatprep.subr.mxu0 0.0
    %1316 = vmatpush1.msra.mxu0 0.0
    %1317 = vmatprep.subr.mxu0 0.0
    %1318 = vmatpush1.msra.mxu0 0.0
    %1319 = vmatprep.subr.mxu0 0.0
    %1320 = vmatpush1.msra.mxu0 0.0
    %1321 = vmatprep.subr.mxu0 0.0
    %1322 = vmatpush1.msra.mxu0 0.0
    %1323 = vmatprep.subr.mxu0 0.0
    %1324 = vmatpush1.msra.mxu0 0.0
    %1325 = vmatprep.subr.mxu0 0.0
    %1326 = vmatpush1.msra.mxu0 0.0
    %1327 = vmatprep.subr.mxu0 0.0
    %1328 = vmatpush1.msra.mxu0 0.0
    %1329 = vmatprep.subr.mxu0 0.0
    %1330 = vmatpush1.msra.mxu0 0.0
    %1331 = vmatprep.subr.mxu0 0.0
    %1332 = vmatpush1.msra.mxu0 0.0
    %1333 = vmatprep.subr.mxu0 0.0
    %1334 = vmatpush1.msra.mxu0 0.0
    %1335 = vmatprep.subr.mxu0 0.0
    %1336 = vmatpush1.msra.mxu0 0.0
    %1337 = vmatprep.subr.mxu0 0.0
    %1338 = vmatpush1.msra.mxu0 0.0
    %1339 = vmatprep.subr.mxu0 0.0
    %1340 = vmatpush1.msra.mxu0 0.0
    %1341 = vmatprep.subr.mxu0 0.0
    %1342 = vmatpush1.msra.mxu0 0.0
    %1343 = vmatprep.subr.mxu0 0.0
    %1344 = vmatpush1.msra.mxu0 0.0
    %1345 = vmatprep.subr.mxu0 0.0
    %1346 = vmatpush1.msra.mxu0 0.0
    %1347 = vmatprep.subr.mxu0 0.0
    %1348 = vmatpush1.msra.mxu0 0.0
    %1349 = vmatprep.subr.mxu0 0.0
    %1350 = vmatpush1.msra.mxu0 0.0
    %1351 = vmatprep.subr.mxu0 0.0
    %1352 = vmatpush1.msra.mxu0 0.0
    %1353 = vmatprep.subr.mxu0 0.0
    %1354 = vmatpush1.msra.mxu0 0.0
    %1355 = vmatprep.subr.mxu0 0.0
    %1356 = vmatpush1.msra.mxu0 0.0
    %1357 = vmatprep.subr.mxu0 0.0
    %1358 = vmatpush1.msra.mxu0 0.0
    %1359 = vmatprep.subr.mxu0 0.0
    %1360 = vmatpush1.msra.mxu0 0.0
    %1361 = vmatprep.subr.mxu0 0.0
    %1362 = vmatpush1.msra.mxu0 0.0
    %1363 = vmatprep.subr.mxu0 0.0
    %1364 = vmatpush1.msra.mxu0 0.0
    %1365 = vmatprep.subr.mxu0 0.0
    %1366 = vmatpush1.msra.mxu0 0.0
    %1367 = vmatprep.subr.mxu0 0.0
    %1368 = vmatpush1.msra.mxu0 0.0
    %1369 = vmatprep.subr.mxu0 0.0
    %1370 = vmatpush1.msra.mxu0 0.0
    %1371 = vmatprep.mubr.f32.mxu0 0.0
    %1372 = vmatmul.mubr.f32.gmra.mrb[0].mxu0 %v1256
    %v1373 = vpop.f32.mrb[0].mxu0
    %v1374 = vadd.f32 0.0, %v1373
    %v1375 = vpop.f32.mrb[0].mxu0
    %1376 = vmatprep.mubr.f32.mxu0 0.0
    %1377 = vmatmul.mubr.f32.gmra.mrb[0].mxu0 %v1259
    %v1378 = vpop.f32.mrb[0].mxu0
    %v1379 = vadd.f32 0.0, %v1378
    %v1380 = vpop.f32.mrb[0].mxu0
    %1381 = vmatprep.mubr.f32.mxu0 0.0
    %1382 = vmatmul.mubr.f32.gmra.mrb[0].mxu0 %v1262
    %v1383 = vpop.f32.mrb[0].mxu0
    %v1384 = vadd.f32 0.0, %v1383
    %v1385 = vpop.f32.mrb[0].mxu0
    %1386 = vmatprep.mubr.f32.mxu0 0.0
    %1387 = vmatmul.mubr.f32.gmra.mrb[0].mxu0 %v1265
    %v1388 = vpop.f32.mrb[0].mxu0
    %v1389 = vadd.f32 0.0, %v1388
    %v1390 = vpop.f32.mrb[0].mxu0
    %1391 = vmatprep.mubr.f32.mxu0 0.0
    %1392 = vmatmul.mubr.f32.gmra.mrb[0].mxu0 %v1268
    %v1393 = vpop.f32.mrb[0].mxu0
    %v1394 = vadd.f32 0.0, %v1393
    %v1395 = vpop.f32.mrb[0].mxu0
    %1396 = vmatprep.mubr.f32.mxu0 0.0
    %1397 = vmatmul.mubr.f32.gmra.mrb[0].mxu0 %v1271
    %v1398 = vpop.f32.mrb[0].mxu0
    %v1399 = vadd.f32 0.0, %v1398
    %v1400 = vpop.f32.mrb[0].mxu0
    %1401 = vmatprep.mubr.f32.mxu0 0.0
    %1402 = vmatmul.mubr.f32.gmra.mrb[0].mxu0 %v1274
    %v1403 = vpop.f32.mrb[0].mxu0
    %v1404 = vadd.f32 0.0, %v1403
    %v1405 = vpop.f32.mrb[0].mxu0
    %1406 = vmatprep.mubr.f32.mxu0 0.0
    %1407 = vmatmul.mubr.f32.gmra.mrb[0].mxu0 %v1277
    %v1408 = vpop.f32.mrb[0].mxu0
    %v1409 = vadd.f32 0.0, %v1408
    %v1410 = vpop.f32.mrb[0].mxu0
    %1411 = vmatprep.mubr.f32.mxu0 0.0
    %1412 = vmatmul.mubr.f32.gmra.mrb[0].mxu0 %v1280
    %v1413 = vpop.f32.mrb[0].mxu0
    %v1414 = vadd.f32 0.0, %v1413
    %v1415 = vpop.f32.mrb[0].mxu0
    %1416 = vmatprep.mubr.f32.mxu0 0.0
    %1417 = vmatmul.mubr.f32.gmra.mrb[0].mxu0 %v1283
    %v1418 = vpop.f32.mrb[0].mxu0
    %v1419 = vadd.f32 0.0, %v1418
    %v1420 = vpop.f32.mrb[0].mxu0
    %1421 = vmatprep.mubr.f32.mxu0 0.0
    %1422 = vmatmul.mubr.f32.gmra.mrb[0].mxu0 %v1286
    %v1423 = vpop.f32.mrb[0].mxu0
    %v1424 = vadd.f32 0.0, %v1423
    %v1425 = vpop.f32.mrb[0].mxu0
    %1426 = vmatprep.mubr.f32.mxu0 0.0
    %1427 = vmatmul.mubr.f32.gmra.mrb[0].mxu0 %v1289
    %v1428 = vpop.f32.mrb[0].mxu0
    %v1429 = vadd.f32 0.0, %v1428
    %v1430 = vpop.f32.mrb[0].mxu0
    %1431 = vmatprep.mubr.f32.mxu0 0.0
    %1432 = vmatmul.mubr.f32.gmra.mrb[0].mxu0 %v1292
    %v1433 = vpop.f32.mrb[0].mxu0
    %v1434 = vadd.f32 0.0, %v1433
    %v1435 = vpop.f32.mrb[0].mxu0
    %1436 = vmatprep.mubr.f32.mxu0 0.0
    %1437 = vmatmul.mubr.f32.gmra.mrb[0].mxu0 %v1295
    %v1438 = vpop.f32.mrb[0].mxu0
    %v1439 = vadd.f32 0.0, %v1438
    %v1440 = vpop.f32.mrb[0].mxu0
    %1441 = vmatprep.mubr.f32.mxu0 0.0
    %1442 = vmatmul.mubr.f32.gmra.mrb[0].mxu0 %v1298
    %v1443 = vpop.f32.mrb[0].mxu0
    %v1444 = vadd.f32 0.0, %v1443
    %v1445 = vpop.f32.mrb[0].mxu0
    %1446 = vmatprep.mubr.f32.mxu0 0.0
    %1447 = vmatmul.mubr.f32.gmra.mrb[0].mxu0 %v1301
    %v1448 = vpop.f32.mrb[0].mxu0
    %v1449 = vadd.f32 0.0, %v1448
    %v1450 = vpop.f32.mrb[0].mxu0
    %1451 = vdwg.mxu0
    %vm1452 = vcmp.ge.s32.totalorder %v558, 0
    %vm1453 = vcmp.ge.s32.totalorder %v1156, 0
    %vm1454 = vcmp.ge.s32.totalorder %v1157, 0
    %vm1455 = vcmp.ge.s32.totalorder %v1158, 0
    %vm1456 = vcmp.ge.s32.totalorder %v1159, 0
    %vm1457 = vcmp.ge.s32.totalorder %v1160, 0
    %vm1458 = vcmp.ge.s32.totalorder %v1161, 0
    %vm1459 = vcmp.ge.s32.totalorder %v1162, 0
    %vm1460 = vcmp.ge.s32.totalorder %v1163, 0
    %vm1461 = vcmp.ge.s32.totalorder %v1164, 0
    %vm1462 = vcmp.ge.s32.totalorder %v1165, 0
    %vm1463 = vcmp.ge.s32.totalorder %v1166, 0
    %vm1464 = vcmp.ge.s32.totalorder %v1167, 0
    %vm1465 = vcmp.ge.s32.totalorder %v1168, 0
    %vm1466 = vcmp.ge.s32.totalorder %v1169, 0
    %vm1467 = vcmp.ge.s32.totalorder %v1170, 0
    %vm1468 = vcmp.lt.s32.totalorder %v558, 64
    %vm1469 = vcmp.lt.s32.totalorder %v1156, 64
    %vm1470 = vcmp.lt.s32.totalorder %v1157, 64
    %vm1471 = vcmp.lt.s32.totalorder %v1158, 64
    %vm1472 = vcmp.lt.s32.totalorder %v1159, 64
    %vm1473 = vcmp.lt.s32.totalorder %v1160, 64
    %vm1474 = vcmp.lt.s32.totalorder %v1161, 64
    %vm1475 = vcmp.lt.s32.totalorder %v1162, 64
    %vm1476 = vcmp.lt.s32.totalorder %v1163, 64
    %vm1477 = vcmp.lt.s32.totalorder %v1164, 64
    %vm1478 = vcmp.lt.s32.totalorder %v1165, 64
    %vm1479 = vcmp.lt.s32.totalorder %v1166, 64
    %vm1480 = vcmp.lt.s32.totalorder %v1167, 64
    %vm1481 = vcmp.lt.s32.totalorder %v1168, 64
    %vm1482 = vcmp.lt.s32.totalorder %v1169, 64
    %vm1483 = vcmp.lt.s32.totalorder %v1170, 64
    %vm1484 = vmand %vm1452, %vm1468
    %vm1485 = vmand %vm1453, %vm1469
    %vm1486 = vmand %vm1454, %vm1470
    %vm1487 = vmand %vm1455, %vm1471
    %vm1488 = vmand %vm1456, %vm1472
    %vm1489 = vmand %vm1457, %vm1473
    %vm1490 = vmand %vm1458, %vm1474
    %vm1491 = vmand %vm1459, %vm1475
    %vm1492 = vmand %vm1460, %vm1476
    %vm1493 = vmand %vm1461, %vm1477
    %vm1494 = vmand %vm1462, %vm1478
    %vm1495 = vmand %vm1463, %vm1479
    %vm1496 = vmand %vm1464, %vm1480
    %vm1497 = vmand %vm1465, %vm1481
    %vm1498 = vmand %vm1466, %vm1482
    %vm1499 = vmand %vm1467, %vm1483
    %vm1500 = vcmp.ge.s32.totalorder %v560, 0
    %vm1501 = vmand %vm1484, %vm1500
    %vm1502 = vmand %vm1485, %vm1500
    %vm1503 = vmand %vm1486, %vm1500
    %vm1504 = vmand %vm1487, %vm1500
    %vm1505 = vmand %vm1488, %vm1500
    %vm1506 = vmand %vm1489, %vm1500
    %vm1507 = vmand %vm1490, %vm1500
    %vm1508 = vmand %vm1491, %vm1500
    %vm1509 = vmand %vm1492, %vm1500
    %vm1510 = vmand %vm1493, %vm1500
    %vm1511 = vmand %vm1494, %vm1500
    %vm1512 = vmand %vm1495, %vm1500
    %vm1513 = vmand %vm1496, %vm1500
    %vm1514 = vmand %vm1497, %vm1500
    %vm1515 = vmand %vm1498, %vm1500
    %vm1516 = vmand %vm1499, %vm1500
    %vm1517 = vcmp.lt.s32.totalorder %v560, 8
    %vm1518 = vmand %vm1501, %vm1517
    %vm1519 = vmand %vm1502, %vm1517
    %vm1520 = vmand %vm1503, %vm1517
    %vm1521 = vmand %vm1504, %vm1517
    %vm1522 = vmand %vm1505, %vm1517
    %vm1523 = vmand %vm1506, %vm1517
    %vm1524 = vmand %vm1507, %vm1517
    %vm1525 = vmand %vm1508, %vm1517
    %vm1526 = vmand %vm1509, %vm1517
    %vm1527 = vmand %vm1510, %vm1517
    %vm1528 = vmand %vm1511, %vm1517
    %vm1529 = vmand %vm1512, %vm1517
    %vm1530 = vmand %vm1513, %vm1517
    %vm1531 = vmand %vm1514, %vm1517
    %vm1532 = vmand %vm1515, %vm1517
    %vm1533 = vmand %vm1516, %vm1517
    %vm1534 = vcmp.ge.s32.totalorder %v558, 64
    %vm1535 = vcmp.ge.s32.totalorder %v1156, 64
    %vm1536 = vcmp.ge.s32.totalorder %v1157, 64
    %vm1537 = vcmp.ge.s32.totalorder %v1158, 64
    %vm1538 = vcmp.ge.s32.totalorder %v1159, 64
    %vm1539 = vcmp.ge.s32.totalorder %v1160, 64
    %vm1540 = vcmp.ge.s32.totalorder %v1161, 64
    %vm1541 = vcmp.ge.s32.totalorder %v1162, 64
    %vm1542 = vcmp.ge.s32.totalorder %v1163, 64
    %vm1543 = vcmp.ge.s32.totalorder %v1164, 64
    %vm1544 = vcmp.ge.s32.totalorder %v1165, 64
    %vm1545 = vcmp.ge.s32.totalorder %v1166, 64
    %vm1546 = vcmp.ge.s32.totalorder %v1167, 64
    %vm1547 = vcmp.ge.s32.totalorder %v1168, 64
    %vm1548 = vcmp.ge.s32.totalorder %v1169, 64
    %vm1549 = vcmp.ge.s32.totalorder %v1170, 64
    %vm1550 = vcmp.lt.s32.totalorder %v558, 128
    %vm1551 = vcmp.lt.s32.totalorder %v1156, 128
    %vm1552 = vcmp.lt.s32.totalorder %v1157, 128
    %vm1553 = vcmp.lt.s32.totalorder %v1158, 128
    %vm1554 = vcmp.lt.s32.totalorder %v1159, 128
    %vm1555 = vcmp.lt.s32.totalorder %v1160, 128
    %vm1556 = vcmp.lt.s32.totalorder %v1161, 128
    %vm1557 = vcmp.lt.s32.totalorder %v1162, 128
    %vm1558 = vcmp.lt.s32.totalorder %v1163, 128
    %vm1559 = vcmp.lt.s32.totalorder %v1164, 128
    %vm1560 = vcmp.lt.s32.totalorder %v1165, 128
    %vm1561 = vcmp.lt.s32.totalorder %v1166, 128
    %vm1562 = vcmp.lt.s32.totalorder %v1167, 128
    %vm1563 = vcmp.lt.s32.totalorder %v1168, 128
    %vm1564 = vcmp.lt.s32.totalorder %v1169, 128
    %vm1565 = vcmp.lt.s32.totalorder %v1170, 128
    %vm1566 = vmand %vm1534, %vm1550
    %vm1567 = vmand %vm1535, %vm1551
    %vm1568 = vmand %vm1536, %vm1552
    %vm1569 = vmand %vm1537, %vm1553
    %vm1570 = vmand %vm1538, %vm1554
    %vm1571 = vmand %vm1539, %vm1555
    %vm1572 = vmand %vm1540, %vm1556
    %vm1573 = vmand %vm1541, %vm1557
    %vm1574 = vmand %vm1542, %vm1558
    %vm1575 = vmand %vm1543, %vm1559
    %vm1576 = vmand %vm1544, %vm1560
    %vm1577 = vmand %vm1545, %vm1561
    %vm1578 = vmand %vm1546, %vm1562
    %vm1579 = vmand %vm1547, %vm1563
    %vm1580 = vmand %vm1548, %vm1564
    %vm1581 = vmand %vm1549, %vm1565
    %vm1582 = vcmp.ge.s32.totalorder %v560, 8
    %vm1583 = vmand %vm1566, %vm1582
    %vm1584 = vmand %vm1567, %vm1582
    %vm1585 = vmand %vm1568, %vm1582
    %vm1586 = vmand %vm1569, %vm1582
    %vm1587 = vmand %vm1570, %vm1582
    %vm1588 = vmand %vm1571, %vm1582
    %vm1589 = vmand %vm1572, %vm1582
    %vm1590 = vmand %vm1573, %vm1582
    %vm1591 = vmand %vm1574, %vm1582
    %vm1592 = vmand %vm1575, %vm1582
    %vm1593 = vmand %vm1576, %vm1582
    %vm1594 = vmand %vm1577, %vm1582
    %vm1595 = vmand %vm1578, %vm1582
    %vm1596 = vmand %vm1579, %vm1582
    %vm1597 = vmand %vm1580, %vm1582
    %vm1598 = vmand %vm1581, %vm1582
    %vm1599 = vcmp.lt.s32.totalorder %v560, 16
    %vm1600 = vmand %vm1583, %vm1599
    %vm1601 = vmand %vm1584, %vm1599
    %vm1602 = vmand %vm1585, %vm1599
    %vm1603 = vmand %vm1586, %vm1599
    %vm1604 = vmand %vm1587, %vm1599
    %vm1605 = vmand %vm1588, %vm1599
    %vm1606 = vmand %vm1589, %vm1599
    %vm1607 = vmand %vm1590, %vm1599
    %vm1608 = vmand %vm1591, %vm1599
    %vm1609 = vmand %vm1592, %vm1599
    %vm1610 = vmand %vm1593, %vm1599
    %vm1611 = vmand %vm1594, %vm1599
    %vm1612 = vmand %vm1595, %vm1599
    %vm1613 = vmand %vm1596, %vm1599
    %vm1614 = vmand %vm1597, %vm1599
    %vm1615 = vmand %vm1598, %vm1599
    %vm1616 = vmor %vm1518, %vm1600
    %vm1617 = vmor %vm1519, %vm1601
    %vm1618 = vmor %vm1520, %vm1602
    %vm1619 = vmor %vm1521, %vm1603
    %vm1620 = vmor %vm1522, %vm1604
    %vm1621 = vmor %vm1523, %vm1605
    %vm1622 = vmor %vm1524, %vm1606
    %vm1623 = vmor %vm1525, %vm1607
    %vm1624 = vmor %vm1526, %vm1608
    %vm1625 = vmor %vm1527, %vm1609
    %vm1626 = vmor %vm1528, %vm1610
    %vm1627 = vmor %vm1529, %vm1611
    %vm1628 = vmor %vm1530, %vm1612
    %vm1629 = vmor %vm1531, %vm1613
    %vm1630 = vmor %vm1532, %vm1614
    %vm1631 = vmor %vm1533, %vm1615
    %v1632 = vld [vmem:[%s2] sm:$0xff]
    %v1633 = vld [vmem:[%s2 + $0x8] sm:$0xff]
    %v1634 = vld [vmem:[%s2 + $0x10] sm:$0xff]
    %v1635 = vld [vmem:[%s2 + $0x18] sm:$0xff]
    %v1636 = vld [vmem:[%s2 + $0x20] sm:$0xff]
    %v1637 = vld [vmem:[%s2 + $0x28] sm:$0xff]
    %v1638 = vld [vmem:[%s2 + $0x30] sm:$0xff]
    %v1639 = vld [vmem:[%s2 + $0x38] sm:$0xff]
    %v1640 = vld [vmem:[%s2 + $0x40] sm:$0xff]
    %v1641 = vld [vmem:[%s2 + $0x48] sm:$0xff]
    %v1642 = vld [vmem:[%s2 + $0x50] sm:$0xff]
    %v1643 = vld [vmem:[%s2 + $0x58] sm:$0xff]
    %v1644 = vld [vmem:[%s2 + $0x60] sm:$0xff]
    %v1645 = vld [vmem:[%s2 + $0x68] sm:$0xff]
    %v1646 = vld [vmem:[%s2 + $0x70] sm:$0xff]
    %v1647 = vld [vmem:[%s2 + $0x78] sm:$0xff]
    %v1648 = vmul.f32 %v1632, 14.648772
    %v1649 = vmul.f32 %v1633, 14.648772
    %v1650 = vmul.f32 %v1634, 14.648772
    %v1651 = vmul.f32 %v1635, 14.648772
    %v1652 = vmul.f32 %v1636, 14.648772
    %v1653 = vmul.f32 %v1637, 14.648772
    %v1654 = vmul.f32 %v1638, 14.648772
    %v1655 = vmul.f32 %v1639, 14.648772
    %v1656 = vmul.f32 %v1640, 14.648772
    %v1657 = vmul.f32 %v1641, 14.648772
    %v1658 = vmul.f32 %v1642, 14.648772
    %v1659 = vmul.f32 %v1643, 14.648772
    %v1660 = vmul.f32 %v1644, 14.648772
    %v1661 = vmul.f32 %v1645, 14.648772
    %v1662 = vmul.f32 %v1646, 14.648772
    %v1663 = vmul.f32 %v1647, 14.648772
    %v1664 = vmul.f32 %v1648, 0.0682651
    %v1665 = vmul.f32 %v1649, 0.0682651
    %v1666 = vmul.f32 %v1650, 0.0682651
    %v1667 = vmul.f32 %v1651, 0.0682651
    %v1668 = vmul.f32 %v1652, 0.0682651
    %v1669 = vmul.f32 %v1653, 0.0682651
    %v1670 = vmul.f32 %v1654, 0.0682651
    %v1671 = vmul.f32 %v1655, 0.0682651
    %v1672 = vmul.f32 %v1656, 0.0682651
    %v1673 = vmul.f32 %v1657, 0.0682651
    %v1674 = vmul.f32 %v1658, 0.0682651
    %v1675 = vmul.f32 %v1659, 0.0682651
    %v1676 = vmul.f32 %v1660, 0.0682651
    %v1677 = vmul.f32 %v1661, 0.0682651
    %v1678 = vmul.f32 %v1662, 0.0682651
    %v1679 = vmul.f32 %v1663, 0.0682651
    %v1680 = vld [vmem:[%s18] sm:$0xf]
    %v1681 = vld [vmem:[%s19] sm:$0x1]
    %v1683 = vlaneseq
    %v1684 = vshrl.u32 %v1683, 7
    %v1685 = vsub.s32 0, %v1684
    %v1686 = vrot.slane %v1681, %v1685
    %vm1688 = vcmask 31744
    %v1690 = vsel %vm1688, %v1664, 0
    %v1693 = vsel %vm1688, %v1665, 0
    %v1696 = vsel %vm1688, %v1666, 0
    %v1699 = vsel %vm1688, %v1667, 0
    %v1702 = vsel %vm1688, %v1668, 0
    %v1705 = vsel %vm1688, %v1669, 0
    %v1708 = vsel %vm1688, %v1670, 0
    %v1711 = vsel %vm1688, %v1671, 0
    %v1714 = vsel %vm1688, %v1672, 0
    %v1717 = vsel %vm1688, %v1673, 0
    %v1720 = vsel %vm1688, %v1674, 0
    %v1723 = vsel %vm1688, %v1675, 0
    %v1726 = vsel %vm1688, %v1676, 0
    %v1729 = vsel %vm1688, %v1677, 0
    %v1732 = vsel %vm1688, %v1678, 0
    %v1735 = vsel %vm1688, %v1679, 0
    %vm1737 = vcmask 1043456
    %v1739 = vsel %vm1737, %v1680, 0
    %1741 = vmatprep.subr.mxu0 0.0
    %1742 = vmatpush1.msra.mxu0 %v1739
    %1743 = vmatprep.subr.mxu0 0.0
    %1744 = vmatpush1.msra.mxu0 0.0
    %1745 = vmatprep.subr.mxu0 0.0
    %1746 = vmatpush1.msra.mxu0 0.0
    %1747 = vmatprep.subr.mxu0 0.0
    %1748 = vmatpush1.msra.mxu0 0.0
    %1749 = vmatprep.subr.mxu0 0.0
    %1750 = vmatpush1.msra.mxu0 0.0
    %1751 = vmatprep.subr.mxu0 0.0
    %1752 = vmatpush1.msra.mxu0 0.0
    %1753 = vmatprep.subr.mxu0 0.0
    %1754 = vmatpush1.msra.mxu0 0.0
    %1755 = vmatprep.subr.mxu0 0.0
    %1756 = vmatpush1.msra.mxu0 0.0
    %1757 = vmatprep.subr.mxu0 0.0
    %1758 = vmatpush1.msra.mxu0 0.0
    %1759 = vmatprep.subr.mxu0 0.0
    %1760 = vmatpush1.msra.mxu0 0.0
    %1761 = vmatprep.subr.mxu0 0.0
    %1762 = vmatpush1.msra.mxu0 0.0
    %1763 = vmatprep.subr.mxu0 0.0
    %1764 = vmatpush1.msra.mxu0 0.0
    %1765 = vmatprep.subr.mxu0 0.0
    %1766 = vmatpush1.msra.mxu0 0.0
    %1767 = vmatprep.subr.mxu0 0.0
    %1768 = vmatpush1.msra.mxu0 0.0
    %1769 = vmatprep.subr.mxu0 0.0
    %1770 = vmatpush1.msra.mxu0 0.0
    %1771 = vmatprep.subr.mxu0 0.0
    %1772 = vmatpush1.msra.mxu0 0.0
    %1773 = vmatprep.subr.mxu0 0.0
    %1774 = vmatpush1.msra.mxu0 0.0
    %1775 = vmatprep.subr.mxu0 0.0
    %1776 = vmatpush1.msra.mxu0 0.0
    %1777 = vmatprep.subr.mxu0 0.0
    %1778 = vmatpush1.msra.mxu0 0.0
    %1779 = vmatprep.subr.mxu0 0.0
    %1780 = vmatpush1.msra.mxu0 0.0
    %1781 = vmatprep.subr.mxu0 0.0
    %1782 = vmatpush1.msra.mxu0 0.0
    %1783 = vmatprep.subr.mxu0 0.0
    %1784 = vmatpush1.msra.mxu0 0.0
    %1785 = vmatprep.subr.mxu0 0.0
    %1786 = vmatpush1.msra.mxu0 0.0
    %1787 = vmatprep.subr.mxu0 0.0
    %1788 = vmatpush1.msra.mxu0 0.0
    %1789 = vmatprep.subr.mxu0 0.0
    %1790 = vmatpush1.msra.mxu0 0.0
    %1791 = vmatprep.subr.mxu0 0.0
    %1792 = vmatpush1.msra.mxu0 0.0
    %1793 = vmatprep.subr.mxu0 0.0
    %1794 = vmatpush1.msra.mxu0 0.0
    %1795 = vmatprep.subr.mxu0 0.0
    %1796 = vmatpush1.msra.mxu0 0.0
    %1797 = vmatprep.subr.mxu0 0.0
    %1798 = vmatpush1.msra.mxu0 0.0
    %1799 = vmatprep.subr.mxu0 0.0
    %1800 = vmatpush1.msra.mxu0 0.0
    %1801 = vmatprep.subr.mxu0 0.0
    %1802 = vmatpush1.msra.mxu0 0.0
    %1803 = vmatprep.subr.mxu0 0.0
    %1804 = vmatpush1.msra.mxu0 0.0
    %1805 = vmatprep.mubr.f32.mxu0 0.0
    %1806 = vmatmul.mubr.f32.gmra.mrb[0].mxu0 %v1690
    %v1807 = vpop.f32.mrb[0].mxu0
    %v1808 = vadd.f32 %v1686, %v1807
    %v1809 = vpop.f32.mrb[0].mxu0
    %1810 = vmatprep.mubr.f32.mxu0 0.0
    %1811 = vmatmul.mubr.f32.gmra.mrb[0].mxu0 %v1693
    %v1812 = vpop.f32.mrb[0].mxu0
    %v1813 = vadd.f32 %v1686, %v1812
    %v1814 = vpop.f32.mrb[0].mxu0
    %1815 = vmatprep.mubr.f32.mxu0 0.0
    %1816 = vmatmul.mubr.f32.gmra.mrb[0].mxu0 %v1696
    %v1817 = vpop.f32.mrb[0].mxu0
    %v1818 = vadd.f32 %v1686, %v1817
    %v1819 = vpop.f32.mrb[0].mxu0
    %1820 = vmatprep.mubr.f32.mxu0 0.0
    %1821 = vmatmul.mubr.f32.gmra.mrb[0].mxu0 %v1699
    %v1822 = vpop.f32.mrb[0].mxu0
    %v1823 = vadd.f32 %v1686, %v1822
    %v1824 = vpop.f32.mrb[0].mxu0
    %1825 = vmatprep.mubr.f32.mxu0 0.0
    %1826 = vmatmul.mubr.f32.gmra.mrb[0].mxu0 %v1702
    %v1827 = vpop.f32.mrb[0].mxu0
    %v1828 = vadd.f32 %v1686, %v1827
    %v1829 = vpop.f32.mrb[0].mxu0
    %1830 = vmatprep.mubr.f32.mxu0 0.0
    %1831 = vmatmul.mubr.f32.gmra.mrb[0].mxu0 %v1705
    %v1832 = vpop.f32.mrb[0].mxu0
    %v1833 = vadd.f32 %v1686, %v1832
    %v1834 = vpop.f32.mrb[0].mxu0
    %1835 = vmatprep.mubr.f32.mxu0 0.0
    %1836 = vmatmul.mubr.f32.gmra.mrb[0].mxu0 %v1708
    %v1837 = vpop.f32.mrb[0].mxu0
    %v1838 = vadd.f32 %v1686, %v1837
    %v1839 = vpop.f32.mrb[0].mxu0
    %1840 = vmatprep.mubr.f32.mxu0 0.0
    %1841 = vmatmul.mubr.f32.gmra.mrb[0].mxu0 %v1711
    %v1842 = vpop.f32.mrb[0].mxu0
    %v1843 = vadd.f32 %v1686, %v1842
    %v1844 = vpop.f32.mrb[0].mxu0
    %1845 = vmatprep.mubr.f32.mxu0 0.0
    %1846 = vmatmul.mubr.f32.gmra.mrb[0].mxu0 %v1714
    %v1847 = vpop.f32.mrb[0].mxu0
    %v1848 = vadd.f32 %v1686, %v1847
    %v1849 = vpop.f32.mrb[0].mxu0
    %1850 = vmatprep.mubr.f32.mxu0 0.0
    %1851 = vmatmul.mubr.f32.gmra.mrb[0].mxu0 %v1717
    %v1852 = vpop.f32.mrb[0].mxu0
    %v1853 = vadd.f32 %v1686, %v1852
    %v1854 = vpop.f32.mrb[0].mxu0
    %1855 = vmatprep.mubr.f32.mxu0 0.0
    %1856 = vmatmul.mubr.f32.gmra.mrb[0].mxu0 %v1720
    %v1857 = vpop.f32.mrb[0].mxu0
    %v1858 = vadd.f32 %v1686, %v1857
    %v1859 = vpop.f32.mrb[0].mxu0
    %1860 = vmatprep.mubr.f32.mxu0 0.0
    %1861 = vmatmul.mubr.f32.gmra.mrb[0].mxu0 %v1723
    %v1862 = vpop.f32.mrb[0].mxu0
    %v1863 = vadd.f32 %v1686, %v1862
    %v1864 = vpop.f32.mrb[0].mxu0
    %1865 = vmatprep.mubr.f32.mxu0 0.0
    %1866 = vmatmul.mubr.f32.gmra.mrb[0].mxu0 %v1726
    %v1867 = vpop.f32.mrb[0].mxu0
    %v1868 = vadd.f32 %v1686, %v1867
    %v1869 = vpop.f32.mrb[0].mxu0
    %1870 = vmatprep.mubr.f32.mxu0 0.0
    %1871 = vmatmul.mubr.f32.gmra.mrb[0].mxu0 %v1729
    %v1872 = vpop.f32.mrb[0].mxu0
    %v1873 = vadd.f32 %v1686, %v1872
    %v1874 = vpop.f32.mrb[0].mxu0
    %1875 = vmatprep.mubr.f32.mxu0 0.0
    %1876 = vmatmul.mubr.f32.gmra.mrb[0].mxu0 %v1732
    %v1877 = vpop.f32.mrb[0].mxu0
    %v1878 = vadd.f32 %v1686, %v1877
    %v1879 = vpop.f32.mrb[0].mxu0
    %1880 = vmatprep.mubr.f32.mxu0 0.0
    %1881 = vmatmul.mubr.f32.gmra.mrb[0].mxu0 %v1735
    %v1882 = vpop.f32.mrb[0].mxu0
    %v1883 = vadd.f32 %v1686, %v1882
    %v1884 = vpop.f32.mrb[0].mxu0
    %1885 = vdwg.mxu0
    %v1886 = vsub.f32 0.0, %v1808
    %v1887 = vsub.f32 0.0, %v1813
    %v1888 = vsub.f32 0.0, %v1818
    %v1889 = vsub.f32 0.0, %v1823
    %v1890 = vsub.f32 0.0, %v1828
    %v1891 = vsub.f32 0.0, %v1833
    %v1892 = vsub.f32 0.0, %v1838
    %v1893 = vsub.f32 0.0, %v1843
    %v1894 = vsub.f32 0.0, %v1848
    %v1895 = vsub.f32 0.0, %v1853
    %v1896 = vsub.f32 0.0, %v1858
    %v1897 = vsub.f32 0.0, %v1863
    %v1898 = vsub.f32 0.0, %v1868
    %v1899 = vsub.f32 0.0, %v1873
    %v1900 = vsub.f32 0.0, %v1878
    %v1901 = vsub.f32 0.0, %v1883
    %v1902 = vmul.f32 %v1886, 1.442695
    %v1903 = vpow.pop %v1902
    %v1904 = vmul.f32 %v1887, 1.442695
    %v1905 = vpow.pop %v1904
    %v1906 = vmul.f32 %v1888, 1.442695
    %v1907 = vpow.pop %v1906
    %v1908 = vmul.f32 %v1889, 1.442695
    %v1909 = vpow.pop %v1908
    %v1910 = vmul.f32 %v1890, 1.442695
    %v1911 = vpow.pop %v1910
    %v1912 = vmul.f32 %v1891, 1.442695
    %v1913 = vpow.pop %v1912
    %v1914 = vmul.f32 %v1892, 1.442695
    %v1915 = vpow.pop %v1914
    %v1916 = vmul.f32 %v1893, 1.442695
    %v1917 = vpow.pop %v1916
    %v1918 = vmul.f32 %v1894, 1.442695
    %v1919 = vpow.pop %v1918
    %v1920 = vmul.f32 %v1895, 1.442695
    %v1921 = vpow.pop %v1920
    %v1922 = vmul.f32 %v1896, 1.442695
    %v1923 = vpow.pop %v1922
    %v1924 = vmul.f32 %v1897, 1.442695
    %v1925 = vpow.pop %v1924
    %v1926 = vmul.f32 %v1898, 1.442695
    %v1927 = vpow.pop %v1926
    %v1928 = vmul.f32 %v1899, 1.442695
    %v1929 = vpow.pop %v1928
    %v1930 = vmul.f32 %v1900, 1.442695
    %v1931 = vpow.pop %v1930
    %v1932 = vmul.f32 %v1901, 1.442695
    %v1933 = vpow.pop %v1932
    %v1934 = vadd.f32 %v1903, 1.0
    %v1935 = vadd.f32 %v1905, 1.0
    %v1936 = vadd.f32 %v1907, 1.0
    %v1937 = vadd.f32 %v1909, 1.0
    %v1938 = vadd.f32 %v1911, 1.0
    %v1939 = vadd.f32 %v1913, 1.0
    %v1940 = vadd.f32 %v1915, 1.0
    %v1941 = vadd.f32 %v1917, 1.0
    %v1942 = vadd.f32 %v1919, 1.0
    %v1943 = vadd.f32 %v1921, 1.0
    %v1944 = vadd.f32 %v1923, 1.0
    %v1945 = vadd.f32 %v1925, 1.0
    %v1946 = vadd.f32 %v1927, 1.0
    %v1947 = vadd.f32 %v1929, 1.0
    %v1948 = vadd.f32 %v1931, 1.0
    %v1949 = vadd.f32 %v1933, 1.0
    %v1950 = vrcp.pop %v1934
    %v1951 = vrcp.pop %v1935
    %v1952 = vrcp.pop %v1936
    %v1953 = vrcp.pop %v1937
    %v1954 = vrcp.pop %v1938
    %v1955 = vrcp.pop %v1939
    %v1956 = vrcp.pop %v1940
    %v1957 = vrcp.pop %v1941
    %v1958 = vrcp.pop %v1942
    %v1959 = vrcp.pop %v1943
    %v1960 = vrcp.pop %v1944
    %v1961 = vrcp.pop %v1945
    %v1962 = vrcp.pop %v1946
    %v1963 = vrcp.pop %v1947
    %v1964 = vrcp.pop %v1948
    %v1965 = vrcp.pop %v1949
    %v1966 = vmul.f32 %v1808, %v1950
    %v1967 = vmul.f32 %v1813, %v1951
    %v1968 = vmul.f32 %v1818, %v1952
    %v1969 = vmul.f32 %v1823, %v1953
    %v1970 = vmul.f32 %v1828, %v1954
    %v1971 = vmul.f32 %v1833, %v1955
    %v1972 = vmul.f32 %v1838, %v1956
    %v1973 = vmul.f32 %v1843, %v1957
    %v1974 = vmul.f32 %v1848, %v1958
    %v1975 = vmul.f32 %v1853, %v1959
    %v1976 = vmul.f32 %v1858, %v1960
    %v1977 = vmul.f32 %v1863, %v1961
    %v1978 = vmul.f32 %v1868, %v1962
    %v1979 = vmul.f32 %v1873, %v1963
    %v1980 = vmul.f32 %v1878, %v1964
    %v1981 = vmul.f32 %v1883, %v1965
    %v1982 = vadd.f32 %v1966, %v1374
    %v1983 = vadd.f32 %v1967, %v1379
    %v1984 = vadd.f32 %v1968, %v1384
    %v1985 = vadd.f32 %v1969, %v1389
    %v1986 = vadd.f32 %v1970, %v1394
    %v1987 = vadd.f32 %v1971, %v1399
    %v1988 = vadd.f32 %v1972, %v1404
    %v1989 = vadd.f32 %v1973, %v1409
    %v1990 = vadd.f32 %v1974, %v1414
    %v1991 = vadd.f32 %v1975, %v1419
    %v1992 = vadd.f32 %v1976, %v1424
    %v1993 = vadd.f32 %v1977, %v1429
    %v1994 = vadd.f32 %v1978, %v1434
    %v1995 = vadd.f32 %v1979, %v1439
    %v1996 = vadd.f32 %v1980, %v1444
    %v1997 = vadd.f32 %v1981, %v1449
    %v1998 = vlaneseq
    %v1999 = vshrl.u32 %v1998, 7
    %v2000 = vsub.s32 0, %v1999
    %v2001 = vrot.slane %v1155, %v2000
    %v2002 = vadd.f32 %v1982, %v2001
    %v2003 = vadd.f32 %v1983, %v2001
    %v2004 = vadd.f32 %v1984, %v2001
    %v2005 = vadd.f32 %v1985, %v2001
    %v2006 = vadd.f32 %v1986, %v2001
    %v2007 = vadd.f32 %v1987, %v2001
    %v2008 = vadd.f32 %v1988, %v2001
    %v2009 = vadd.f32 %v1989, %v2001
    %v2010 = vadd.f32 %v1990, %v2001
    %v2011 = vadd.f32 %v1991, %v2001
    %v2012 = vadd.f32 %v1992, %v2001
    %v2013 = vadd.f32 %v1993, %v2001
    %v2014 = vadd.f32 %v1994, %v2001
    %v2015 = vadd.f32 %v1995, %v2001
    %v2016 = vadd.f32 %v1996, %v2001
    %v2017 = vadd.f32 %v1997, %v2001
    %v2018 = vld [vmem:[%s20] sm:$0xff]
    %v2019 = vld [vmem:[%s20 + $0x8] sm:$0xff]
    %v2020 = vld [vmem:[%s20 + $0x10] sm:$0xff]
    %v2021 = vld [vmem:[%s20 + $0x18] sm:$0xff]
    %v2022 = vld [vmem:[%s20 + $0x20] sm:$0xff]
    %v2023 = vld [vmem:[%s20 + $0x28] sm:$0xff]
    %v2024 = vld [vmem:[%s20 + $0x30] sm:$0xff]
    %v2025 = vld [vmem:[%s20 + $0x38] sm:$0xff]
    %v2027 = vsel %vm375, %v2002, 0
    %v2030 = vsel %vm375, %v2003, 0
    %v2033 = vsel %vm375, %v2004, 0
    %v2036 = vsel %vm375, %v2005, 0
    %v2039 = vsel %vm375, %v2006, 0
    %v2042 = vsel %vm375, %v2007, 0
    %v2045 = vsel %vm375, %v2008, 0
    %v2048 = vsel %vm375, %v2009, 0
    %v2051 = vsel %vm375, %v2010, 0
    %v2054 = vsel %vm375, %v2011, 0
    %v2057 = vsel %vm375, %v2012, 0
    %v2060 = vsel %vm375, %v2013, 0
    %v2063 = vsel %vm375, %v2014, 0
    %v2066 = vsel %vm375, %v2015, 0
    %v2069 = vsel %vm375, %v2016, 0
    %v2072 = vsel %vm375, %v2017, 0
    %2074 = vmatprep.subr.mxu0 0.0
    %2075 = vmatpush1.msra.mxu0 %v2018
    %2076 = vmatprep.subr.mxu0 0.0
    %2077 = vmatpush1.msra.mxu0 %v2019
    %2078 = vmatprep.subr.mxu0 0.0
    %2079 = vmatpush1.msra.mxu0 %v2020
    %2080 = vmatprep.subr.mxu0 0.0
    %2081 = vmatpush1.msra.mxu0 %v2021
    %2082 = vmatprep.subr.mxu0 0.0
    %2083 = vmatpush1.msra.mxu0 %v2022
    %2084 = vmatprep.subr.mxu0 0.0
    %2085 = vmatpush1.msra.mxu0 %v2023
    %2086 = vmatprep.subr.mxu0 0.0
    %2087 = vmatpush1.msra.mxu0 %v2024
    %2088 = vmatprep.subr.mxu0 0.0
    %2089 = vmatpush1.msra.mxu0 %v2025
    %2090 = vmatprep.subr.mxu0 0.0
    %2091 = vmatpush1.msra.mxu0 0.0
    %2092 = vmatprep.subr.mxu0 0.0
    %2093 = vmatpush1.msra.mxu0 0.0
    %2094 = vmatprep.subr.mxu0 0.0
    %2095 = vmatpush1.msra.mxu0 0.0
    %2096 = vmatprep.subr.mxu0 0.0
    %2097 = vmatpush1.msra.mxu0 0.0
    %2098 = vmatprep.subr.mxu0 0.0
    %2099 = vmatpush1.msra.mxu0 0.0
    %2100 = vmatprep.subr.mxu0 0.0
    %2101 = vmatpush1.msra.mxu0 0.0
    %2102 = vmatprep.subr.mxu0 0.0
    %2103 = vmatpush1.msra.mxu0 0.0
    %2104 = vmatprep.subr.mxu0 0.0
    %2105 = vmatpush1.msra.mxu0 0.0
    %2106 = vmatprep.subr.mxu0 0.0
    %2107 = vmatpush1.msra.mxu0 0.0
    %2108 = vmatprep.subr.mxu0 0.0
    %2109 = vmatpush1.msra.mxu0 0.0
    %2110 = vmatprep.subr.mxu0 0.0
    %2111 = vmatpush1.msra.mxu0 0.0
    %2112 = vmatprep.subr.mxu0 0.0
    %2113 = vmatpush1.msra.mxu0 0.0
    %2114 = vmatprep.subr.mxu0 0.0
    %2115 = vmatpush1.msra.mxu0 0.0
    %2116 = vmatprep.subr.mxu0 0.0
    %2117 = vmatpush1.msra.mxu0 0.0
    %2118 = vmatprep.subr.mxu0 0.0
    %2119 = vmatpush1.msra.mxu0 0.0
    %2120 = vmatprep.subr.mxu0 0.0
    %2121 = vmatpush1.msra.mxu0 0.0
    %2122 = vmatprep.subr.mxu0 0.0
    %2123 = vmatpush1.msra.mxu0 0.0
    %2124 = vmatprep.subr.mxu0 0.0
    %2125 = vmatpush1.msra.mxu0 0.0
    %2126 = vmatprep.subr.mxu0 0.0
    %2127 = vmatpush1.msra.mxu0 0.0
    %2128 = vmatprep.subr.mxu0 0.0
    %2129 = vmatpush1.msra.mxu0 0.0
    %2130 = vmatprep.subr.mxu0 0.0
    %2131 = vmatpush1.msra.mxu0 0.0
    %2132 = vmatprep.subr.mxu0 0.0
    %2133 = vmatpush1.msra.mxu0 0.0
    %2134 = vmatprep.subr.mxu0 0.0
    %2135 = vmatpush1.msra.mxu0 0.0
    %2136 = vmatprep.subr.mxu0 0.0
    %2137 = vmatpush1.msra.mxu0 0.0
    %2138 = vmatprep.mubr.f32.mxu0 0.0
    %2139 = vmatmul.mubr.f32.gmra.mrb[0].mxu0 %v2027
    %v2140 = vpop.f32.mrb[0].mxu0
    %v2141 = vadd.f32 0.0, %v2140
    %v2142 = vpop.f32.mrb[0].mxu0
    %2143 = vmatprep.mubr.f32.mxu0 0.0
    %2144 = vmatmul.mubr.f32.gmra.mrb[0].mxu0 %v2030
    %v2145 = vpop.f32.mrb[0].mxu0
    %v2146 = vadd.f32 0.0, %v2145
    %v2147 = vpop.f32.mrb[0].mxu0
    %2148 = vmatprep.mubr.f32.mxu0 0.0
    %2149 = vmatmul.mubr.f32.gmra.mrb[0].mxu0 %v2033
    %v2150 = vpop.f32.mrb[0].mxu0
    %v2151 = vadd.f32 0.0, %v2150
    %v2152 = vpop.f32.mrb[0].mxu0
    %2153 = vmatprep.mubr.f32.mxu0 0.0
    %2154 = vmatmul.mubr.f32.gmra.mrb[0].mxu0 %v2036
    %v2155 = vpop.f32.mrb[0].mxu0
    %v2156 = vadd.f32 0.0, %v2155
    %v2157 = vpop.f32.mrb[0].mxu0
    %2158 = vmatprep.mubr.f32.mxu0 0.0
    %2159 = vmatmul.mubr.f32.gmra.mrb[0].mxu0 %v2039
    %v2160 = vpop.f32.mrb[0].mxu0
    %v2161 = vadd.f32 0.0, %v2160
    %v2162 = vpop.f32.mrb[0].mxu0
    %2163 = vmatprep.mubr.f32.mxu0 0.0
    %2164 = vmatmul.mubr.f32.gmra.mrb[0].mxu0 %v2042
    %v2165 = vpop.f32.mrb[0].mxu0
    %v2166 = vadd.f32 0.0, %v2165
    %v2167 = vpop.f32.mrb[0].mxu0
    %2168 = vmatprep.mubr.f32.mxu0 0.0
    %2169 = vmatmul.mubr.f32.gmra.mrb[0].mxu0 %v2045
    %v2170 = vpop.f32.mrb[0].mxu0
    %v2171 = vadd.f32 0.0, %v2170
    %v2172 = vpop.f32.mrb[0].mxu0
    %2173 = vmatprep.mubr.f32.mxu0 0.0
    %2174 = vmatmul.mubr.f32.gmra.mrb[0].mxu0 %v2048
    %v2175 = vpop.f32.mrb[0].mxu0
    %v2176 = vadd.f32 0.0, %v2175
    %v2177 = vpop.f32.mrb[0].mxu0
    %2178 = vmatprep.mubr.f32.mxu0 0.0
    %2179 = vmatmul.mubr.f32.gmra.mrb[0].mxu0 %v2051
    %v2180 = vpop.f32.mrb[0].mxu0
    %v2181 = vadd.f32 0.0, %v2180
    %v2182 = vpop.f32.mrb[0].mxu0
    %2183 = vmatprep.mubr.f32.mxu0 0.0
    %2184 = vmatmul.mubr.f32.gmra.mrb[0].mxu0 %v2054
    %v2185 = vpop.f32.mrb[0].mxu0
    %v2186 = vadd.f32 0.0, %v2185
    %v2187 = vpop.f32.mrb[0].mxu0
    %2188 = vmatprep.mubr.f32.mxu0 0.0
    %2189 = vmatmul.mubr.f32.gmra.mrb[0].mxu0 %v2057
    %v2190 = vpop.f32.mrb[0].mxu0
    %v2191 = vadd.f32 0.0, %v2190
    %v2192 = vpop.f32.mrb[0].mxu0
    %2193 = vmatprep.mubr.f32.mxu0 0.0
    %2194 = vmatmul.mubr.f32.gmra.mrb[0].mxu0 %v2060
    %v2195 = vpop.f32.mrb[0].mxu0
    %v2196 = vadd.f32 0.0, %v2195
    %v2197 = vpop.f32.mrb[0].mxu0
    %2198 = vmatprep.mubr.f32.mxu0 0.0
    %2199 = vmatmul.mubr.f32.gmra.mrb[0].mxu0 %v2063
    %v2200 = vpop.f32.mrb[0].mxu0
    %v2201 = vadd.f32 0.0, %v2200
    %v2202 = vpop.f32.mrb[0].mxu0
    %2203 = vmatprep.mubr.f32.mxu0 0.0
    %2204 = vmatmul.mubr.f32.gmra.mrb[0].mxu0 %v2066
    %v2205 = vpop.f32.mrb[0].mxu0
    %v2206 = vadd.f32 0.0, %v2205
    %v2207 = vpop.f32.mrb[0].mxu0
    %2208 = vmatprep.mubr.f32.mxu0 0.0
    %2209 = vmatmul.mubr.f32.gmra.mrb[0].mxu0 %v2069
    %v2210 = vpop.f32.mrb[0].mxu0
    %v2211 = vadd.f32 0.0, %v2210
    %v2212 = vpop.f32.mrb[0].mxu0
    %2213 = vmatprep.mubr.f32.mxu0 0.0
    %2214 = vmatmul.mubr.f32.gmra.mrb[0].mxu0 %v2072
    %v2215 = vpop.f32.mrb[0].mxu0
    %v2216 = vadd.f32 0.0, %v2215
    %v2217 = vpop.f32.mrb[0].mxu0
    %2218 = vdwg.mxu0
    %v2220 = vsel %vm375, %v2141, 0
    %v2223 = vsel %vm375, %v2146, 0
    %v2226 = vsel %vm375, %v2151, 0
    %v2229 = vsel %vm375, %v2156, 0
    %v2232 = vsel %vm375, %v2161, 0
    %v2235 = vsel %vm375, %v2166, 0
    %v2238 = vsel %vm375, %v2171, 0
    %v2241 = vsel %vm375, %v2176, 0
    %v2244 = vsel %vm375, %v2181, 0
    %v2247 = vsel %vm375, %v2186, 0
    %v2250 = vsel %vm375, %v2191, 0
    %v2253 = vsel %vm375, %v2196, 0
    %v2256 = vsel %vm375, %v2201, 0
    %v2259 = vsel %vm375, %v2206, 0
    %v2262 = vsel %vm375, %v2211, 0
    %v2265 = vsel %vm375, %v2216, 0
    %v2268 = vsel %vm375, %v888, 0
    %v2271 = vsel %vm375, %v893, 0
    %2273 = vmatprep.subr.mxu0 0.0
    %2274 = vmatpush1.xpose.msra.mxu0 %v2268
    %2275 = vmatprep.subr.mxu0 0.0
    %2276 = vmatpush1.xpose.msra.mxu0 %v2271
    %2277 = vmatprep.subr.mxu0 0.0
    %2278 = vmatpush1.xpose.msra.mxu0 0.0
    %2279 = vmatprep.subr.mxu0 0.0
    %2280 = vmatpush1.xpose.msra.mxu0 0.0
    %2281 = vmatprep.subr.mxu0 0.0
    %2282 = vmatpush1.xpose.msra.mxu0 0.0
    %2283 = vmatprep.subr.mxu0 0.0
    %2284 = vmatpush1.xpose.msra.mxu0 0.0
    %2285 = vmatprep.subr.mxu0 0.0
    %2286 = vmatpush1.xpose.msra.mxu0 0.0
    %2287 = vmatprep.subr.mxu0 0.0
    %2288 = vmatpush1.xpose.msra.mxu0 0.0
    %2289 = vmatprep.subr.mxu0 0.0
    %2290 = vmatpush1.xpose.msra.mxu0 0.0
    %2291 = vmatprep.subr.mxu0 0.0
    %2292 = vmatpush1.xpose.msra.mxu0 0.0
    %2293 = vmatprep.subr.mxu0 0.0
    %2294 = vmatpush1.xpose.msra.mxu0 0.0
    %2295 = vmatprep.subr.mxu0 0.0
    %2296 = vmatpush1.xpose.msra.mxu0 0.0
    %2297 = vmatprep.subr.mxu0 0.0
    %2298 = vmatpush1.xpose.msra.mxu0 0.0
    %2299 = vmatprep.subr.mxu0 0.0
    %2300 = vmatpush1.xpose.msra.mxu0 0.0
    %2301 = vmatprep.subr.mxu0 0.0
    %2302 = vmatpush1.xpose.msra.mxu0 0.0
    %2303 = vmatprep.subr.mxu0 0.0
    %2304 = vmatpush1.xpose.msra.mxu0 0.0
    %2305 = vmatprep.subr.mxu0 0.0
    %2306 = vmatpush1.xpose.msra.mxu0 0.0
    %2307 = vmatprep.subr.mxu0 0.0
    %2308 = vmatpush1.xpose.msra.mxu0 0.0
    %2309 = vmatprep.subr.mxu0 0.0
    %2310 = vmatpush1.xpose.msra.mxu0 0.0
    %2311 = vmatprep.subr.mxu0 0.0
    %2312 = vmatpush1.xpose.msra.mxu0 0.0
    %2313 = vmatprep.subr.mxu0 0.0
    %2314 = vmatpush1.xpose.msra.mxu0 0.0
    %2315 = vmatprep.subr.mxu0 0.0
    %2316 = vmatpush1.xpose.msra.mxu0 0.0
    %2317 = vmatprep.subr.mxu0 0.0
    %2318 = vmatpush1.xpose.msra.mxu0 0.0
    %2319 = vmatprep.subr.mxu0 0.0
    %2320 = vmatpush1.xpose.msra.mxu0 0.0
    %2321 = vmatprep.subr.mxu0 0.0
    %2322 = vmatpush1.xpose.msra.mxu0 0.0
    %2323 = vmatprep.subr.mxu0 0.0
    %2324 = vmatpush1.xpose.msra.mxu0 0.0
    %2325 = vmatprep.subr.mxu0 0.0
    %2326 = vmatpush1.xpose.msra.mxu0 0.0
    %2327 = vmatprep.subr.mxu0 0.0
    %2328 = vmatpush1.xpose.msra.mxu0 0.0
    %2329 = vmatprep.subr.mxu0 0.0
    %2330 = vmatpush1.xpose.msra.mxu0 0.0
    %2331 = vmatprep.subr.mxu0 0.0
    %2332 = vmatpush1.xpose.msra.mxu0 0.0
    %2333 = vmatprep.subr.mxu0 0.0
    %2334 = vmatpush1.xpose.msra.mxu0 0.0
    %2335 = vmatprep.subr.mxu0 0.0
    %2336 = vmatpush1.xpose.msra.mxu0 0.0
    %2337 = vmatprep.mubr.f32.mxu0 0.0
    %2338 = vmatmul.mubr.f32.gmra.mrb[0].mxu0 %v2220
    %v2339 = vpop.f32.mrb[0].mxu0
    %v2340 = vadd.f32 0.0, %v2339
    %v2341 = vpop.f32.mrb[0].mxu0
    %2342 = vmatprep.mubr.f32.mxu0 0.0
    %2343 = vmatmul.mubr.f32.gmra.mrb[0].mxu0 %v2223
    %v2344 = vpop.f32.mrb[0].mxu0
    %v2345 = vadd.f32 0.0, %v2344
    %v2346 = vpop.f32.mrb[0].mxu0
    %2347 = vmatprep.mubr.f32.mxu0 0.0
    %2348 = vmatmul.mubr.f32.gmra.mrb[0].mxu0 %v2226
    %v2349 = vpop.f32.mrb[0].mxu0
    %v2350 = vadd.f32 0.0, %v2349
    %v2351 = vpop.f32.mrb[0].mxu0
    %2352 = vmatprep.mubr.f32.mxu0 0.0
    %2353 = vmatmul.mubr.f32.gmra.mrb[0].mxu0 %v2229
    %v2354 = vpop.f32.mrb[0].mxu0
    %v2355 = vadd.f32 0.0, %v2354
    %v2356 = vpop.f32.mrb[0].mxu0
    %2357 = vmatprep.mubr.f32.mxu0 0.0
    %2358 = vmatmul.mubr.f32.gmra.mrb[0].mxu0 %v2232
    %v2359 = vpop.f32.mrb[0].mxu0
    %v2360 = vadd.f32 0.0, %v2359
    %v2361 = vpop.f32.mrb[0].mxu0
    %2362 = vmatprep.mubr.f32.mxu0 0.0
    %2363 = vmatmul.mubr.f32.gmra.mrb[0].mxu0 %v2235
    %v2364 = vpop.f32.mrb[0].mxu0
    %v2365 = vadd.f32 0.0, %v2364
    %v2366 = vpop.f32.mrb[0].mxu0
    %2367 = vmatprep.mubr.f32.mxu0 0.0
    %2368 = vmatmul.mubr.f32.gmra.mrb[0].mxu0 %v2238
    %v2369 = vpop.f32.mrb[0].mxu0
    %v2370 = vadd.f32 0.0, %v2369
    %v2371 = vpop.f32.mrb[0].mxu0
    %2372 = vmatprep.mubr.f32.mxu0 0.0
    %2373 = vmatmul.mubr.f32.gmra.mrb[0].mxu0 %v2241
    %v2374 = vpop.f32.mrb[0].mxu0
    %v2375 = vadd.f32 0.0, %v2374
    %v2376 = vpop.f32.mrb[0].mxu0
    %2377 = vmatprep.mubr.f32.mxu0 0.0
    %2378 = vmatmul.mubr.f32.gmra.mrb[0].mxu0 %v2244
    %v2379 = vpop.f32.mrb[0].mxu0
    %v2380 = vadd.f32 0.0, %v2379
    %v2381 = vpop.f32.mrb[0].mxu0
    %2382 = vmatprep.mubr.f32.mxu0 0.0
    %2383 = vmatmul.mubr.f32.gmra.mrb[0].mxu0 %v2247
    %v2384 = vpop.f32.mrb[0].mxu0
    %v2385 = vadd.f32 0.0, %v2384
    %v2386 = vpop.f32.mrb[0].mxu0
    %2387 = vmatprep.mubr.f32.mxu0 0.0
    %2388 = vmatmul.mubr.f32.gmra.mrb[0].mxu0 %v2250
    %v2389 = vpop.f32.mrb[0].mxu0
    %v2390 = vadd.f32 0.0, %v2389
    %v2391 = vpop.f32.mrb[0].mxu0
    %2392 = vmatprep.mubr.f32.mxu0 0.0
    %2393 = vmatmul.mubr.f32.gmra.mrb[0].mxu0 %v2253
    %v2394 = vpop.f32.mrb[0].mxu0
    %v2395 = vadd.f32 0.0, %v2394
    %v2396 = vpop.f32.mrb[0].mxu0
    %2397 = vmatprep.mubr.f32.mxu0 0.0
    %2398 = vmatmul.mubr.f32.gmra.mrb[0].mxu0 %v2256
    %v2399 = vpop.f32.mrb[0].mxu0
    %v2400 = vadd.f32 0.0, %v2399
    %v2401 = vpop.f32.mrb[0].mxu0
    %2402 = vmatprep.mubr.f32.mxu0 0.0
    %2403 = vmatmul.mubr.f32.gmra.mrb[0].mxu0 %v2259
    %v2404 = vpop.f32.mrb[0].mxu0
    %v2405 = vadd.f32 0.0, %v2404
    %v2406 = vpop.f32.mrb[0].mxu0
    %2407 = vmatprep.mubr.f32.mxu0 0.0
    %2408 = vmatmul.mubr.f32.gmra.mrb[0].mxu0 %v2262
    %v2409 = vpop.f32.mrb[0].mxu0
    %v2410 = vadd.f32 0.0, %v2409
    %v2411 = vpop.f32.mrb[0].mxu0
    %2412 = vmatprep.mubr.f32.mxu0 0.0
    %2413 = vmatmul.mubr.f32.gmra.mrb[0].mxu0 %v2265
    %v2414 = vpop.f32.mrb[0].mxu0
    %v2415 = vadd.f32 0.0, %v2414
    %v2416 = vpop.f32.mrb[0].mxu0
    %2417 = vdwg.mxu0
    %v2418 = vmul.f32 %v2340, 0.125
    %v2419 = vmul.f32 %v2345, 0.125
    %v2420 = vmul.f32 %v2350, 0.125
    %v2421 = vmul.f32 %v2355, 0.125
    %v2422 = vmul.f32 %v2360, 0.125
    %v2423 = vmul.f32 %v2365, 0.125
    %v2424 = vmul.f32 %v2370, 0.125
    %v2425 = vmul.f32 %v2375, 0.125
    %v2426 = vmul.f32 %v2380, 0.125
    %v2427 = vmul.f32 %v2385, 0.125
    %v2428 = vmul.f32 %v2390, 0.125
    %v2429 = vmul.f32 %v2395, 0.125
    %v2430 = vmul.f32 %v2400, 0.125
    %v2431 = vmul.f32 %v2405, 0.125
    %v2432 = vmul.f32 %v2410, 0.125
    %v2433 = vmul.f32 %v2415, 0.125
    %v2434 = vsel %vm1616, %v2418, -1e+30
    %v2435 = vsel %vm1617, %v2419, -1e+30
    %v2436 = vsel %vm1618, %v2420, -1e+30
    %v2437 = vsel %vm1619, %v2421, -1e+30
    %v2438 = vsel %vm1620, %v2422, -1e+30
    %v2439 = vsel %vm1621, %v2423, -1e+30
    %v2440 = vsel %vm1622, %v2424, -1e+30
    %v2441 = vsel %vm1623, %v2425, -1e+30
    %v2442 = vsel %vm1624, %v2426, -1e+30
    %v2443 = vsel %vm1625, %v2427, -1e+30
    %v2444 = vsel %vm1626, %v2428, -1e+30
    %v2445 = vsel %vm1627, %v2429, -1e+30
    %v2446 = vsel %vm1628, %v2430, -1e+30
    %v2447 = vsel %vm1629, %v2431, -1e+30
    %v2448 = vsel %vm1630, %v2432, -1e+30
    %v2449 = vsel %vm1631, %v2433, -1e+30
    %v2450 = vsel %vm566, %v2434, -inf
    %2451 = vmax.xlane.f32.xlu0 %v2450
    %v2452 = vpop.xlane.xlu0 %2451
    %v2453 = vsel %vm566, %v2435, -inf
    %2454 = vmax.xlane.f32.xlu0 %v2453
    %v2455 = vpop.xlane.xlu0 %2454
    %v2456 = vsel %vm566, %v2436, -inf
    %2457 = vmax.xlane.f32.xlu0 %v2456
    %v2458 = vpop.xlane.xlu0 %2457
    %v2459 = vsel %vm566, %v2437, -inf
    %2460 = vmax.xlane.f32.xlu0 %v2459
    %v2461 = vpop.xlane.xlu0 %2460
    %v2462 = vsel %vm566, %v2438, -inf
    %2463 = vmax.xlane.f32.xlu0 %v2462
    %v2464 = vpop.xlane.xlu0 %2463
    %v2465 = vsel %vm566, %v2439, -inf
    %2466 = vmax.xlane.f32.xlu0 %v2465
    %v2467 = vpop.xlane.xlu0 %2466
    %v2468 = vsel %vm566, %v2440, -inf
    %2469 = vmax.xlane.f32.xlu0 %v2468
    %v2470 = vpop.xlane.xlu0 %2469
    %v2471 = vsel %vm566, %v2441, -inf
    %2472 = vmax.xlane.f32.xlu0 %v2471
    %v2473 = vpop.xlane.xlu0 %2472
    %v2474 = vsel %vm566, %v2442, -inf
    %2475 = vmax.xlane.f32.xlu0 %v2474
    %v2476 = vpop.xlane.xlu0 %2475
    %v2477 = vsel %vm566, %v2443, -inf
    %2478 = vmax.xlane.f32.xlu0 %v2477
    %v2479 = vpop.xlane.xlu0 %2478
    %v2480 = vsel %vm566, %v2444, -inf
    %2481 = vmax.xlane.f32.xlu0 %v2480
    %v2482 = vpop.xlane.xlu0 %2481
    %v2483 = vsel %vm566, %v2445, -inf
    %2484 = vmax.xlane.f32.xlu0 %v2483
    %v2485 = vpop.xlane.xlu0 %2484
    %v2486 = vsel %vm566, %v2446, -inf
    %2487 = vmax.xlane.f32.xlu0 %v2486
    %v2488 = vpop.xlane.xlu0 %2487
    %v2489 = vsel %vm566, %v2447, -inf
    %2490 = vmax.xlane.f32.xlu0 %v2489
    %v2491 = vpop.xlane.xlu0 %2490
    %v2492 = vsel %vm566, %v2448, -inf
    %2493 = vmax.xlane.f32.xlu0 %v2492
    %v2494 = vpop.xlane.xlu0 %2493
    %v2495 = vsel %vm566, %v2449, -inf
    %2496 = vmax.xlane.f32.xlu0 %v2495
    %v2497 = vpop.xlane.xlu0 %2496
    %v2498 = vsub.f32 %v2434, %v2452
    %v2499 = vsub.f32 %v2435, %v2455
    %v2500 = vsub.f32 %v2436, %v2458
    %v2501 = vsub.f32 %v2437, %v2461
    %v2502 = vsub.f32 %v2438, %v2464
    %v2503 = vsub.f32 %v2439, %v2467
    %v2504 = vsub.f32 %v2440, %v2470
    %v2505 = vsub.f32 %v2441, %v2473
    %v2506 = vsub.f32 %v2442, %v2476
    %v2507 = vsub.f32 %v2443, %v2479
    %v2508 = vsub.f32 %v2444, %v2482
    %v2509 = vsub.f32 %v2445, %v2485
    %v2510 = vsub.f32 %v2446, %v2488
    %v2511 = vsub.f32 %v2447, %v2491
    %v2512 = vsub.f32 %v2448, %v2494
    %v2513 = vsub.f32 %v2449, %v2497
    %v2514 = vmul.f32 %v2498, 1.442695
    %v2515 = vpow.pop %v2514
    %v2516 = vmul.f32 %v2499, 1.442695
    %v2517 = vpow.pop %v2516
    %v2518 = vmul.f32 %v2500, 1.442695
    %v2519 = vpow.pop %v2518
    %v2520 = vmul.f32 %v2501, 1.442695
    %v2521 = vpow.pop %v2520
    %v2522 = vmul.f32 %v2502, 1.442695
    %v2523 = vpow.pop %v2522
    %v2524 = vmul.f32 %v2503, 1.442695
    %v2525 = vpow.pop %v2524
    %v2526 = vmul.f32 %v2504, 1.442695
    %v2527 = vpow.pop %v2526
    %v2528 = vmul.f32 %v2505, 1.442695
    %v2529 = vpow.pop %v2528
    %v2530 = vmul.f32 %v2506, 1.442695
    %v2531 = vpow.pop %v2530
    %v2532 = vmul.f32 %v2507, 1.442695
    %v2533 = vpow.pop %v2532
    %v2534 = vmul.f32 %v2508, 1.442695
    %v2535 = vpow.pop %v2534
    %v2536 = vmul.f32 %v2509, 1.442695
    %v2537 = vpow.pop %v2536
    %v2538 = vmul.f32 %v2510, 1.442695
    %v2539 = vpow.pop %v2538
    %v2540 = vmul.f32 %v2511, 1.442695
    %v2541 = vpow.pop %v2540
    %v2542 = vmul.f32 %v2512, 1.442695
    %v2543 = vpow.pop %v2542
    %v2544 = vmul.f32 %v2513, 1.442695
    %v2545 = vpow.pop %v2544
    %v2546 = vsel %vm566, %v2515, 0.0
    %2547 = vadd.xlane.f32.xlu0 %v2546
    %v2548 = vpop.xlane.xlu0 %2547
    %v2549 = vsel %vm566, %v2517, 0.0
    %2550 = vadd.xlane.f32.xlu0 %v2549
    %v2551 = vpop.xlane.xlu0 %2550
    %v2552 = vsel %vm566, %v2519, 0.0
    %2553 = vadd.xlane.f32.xlu0 %v2552
    %v2554 = vpop.xlane.xlu0 %2553
    %v2555 = vsel %vm566, %v2521, 0.0
    %2556 = vadd.xlane.f32.xlu0 %v2555
    %v2557 = vpop.xlane.xlu0 %2556
    %v2558 = vsel %vm566, %v2523, 0.0
    %2559 = vadd.xlane.f32.xlu0 %v2558
    %v2560 = vpop.xlane.xlu0 %2559
    %v2561 = vsel %vm566, %v2525, 0.0
    %2562 = vadd.xlane.f32.xlu0 %v2561
    %v2563 = vpop.xlane.xlu0 %2562
    %v2564 = vsel %vm566, %v2527, 0.0
    %2565 = vadd.xlane.f32.xlu0 %v2564
    %v2566 = vpop.xlane.xlu0 %2565
    %v2567 = vsel %vm566, %v2529, 0.0
    %2568 = vadd.xlane.f32.xlu0 %v2567
    %v2569 = vpop.xlane.xlu0 %2568
    %v2570 = vsel %vm566, %v2531, 0.0
    %2571 = vadd.xlane.f32.xlu0 %v2570
    %v2572 = vpop.xlane.xlu0 %2571
    %v2573 = vsel %vm566, %v2533, 0.0
    %2574 = vadd.xlane.f32.xlu0 %v2573
    %v2575 = vpop.xlane.xlu0 %2574
    %v2576 = vsel %vm566, %v2535, 0.0
    %2577 = vadd.xlane.f32.xlu0 %v2576
    %v2578 = vpop.xlane.xlu0 %2577
    %v2579 = vsel %vm566, %v2537, 0.0
    %2580 = vadd.xlane.f32.xlu0 %v2579
    %v2581 = vpop.xlane.xlu0 %2580
    %v2582 = vsel %vm566, %v2539, 0.0
    %2583 = vadd.xlane.f32.xlu0 %v2582
    %v2584 = vpop.xlane.xlu0 %2583
    %v2585 = vsel %vm566, %v2541, 0.0
    %2586 = vadd.xlane.f32.xlu0 %v2585
    %v2587 = vpop.xlane.xlu0 %2586
    %v2588 = vsel %vm566, %v2543, 0.0
    %2589 = vadd.xlane.f32.xlu0 %v2588
    %v2590 = vpop.xlane.xlu0 %2589
    %v2591 = vsel %vm566, %v2545, 0.0
    %2592 = vadd.xlane.f32.xlu0 %v2591
    %v2593 = vpop.xlane.xlu0 %2592
    %v2594 = vrcp.pop %v2548
    %v2595 = vrcp.pop %v2551
    %v2596 = vrcp.pop %v2554
    %v2597 = vrcp.pop %v2557
    %v2598 = vrcp.pop %v2560
    %v2599 = vrcp.pop %v2563
    %v2600 = vrcp.pop %v2566
    %v2601 = vrcp.pop %v2569
    %v2602 = vrcp.pop %v2572
    %v2603 = vrcp.pop %v2575
    %v2604 = vrcp.pop %v2578
    %v2605 = vrcp.pop %v2581
    %v2606 = vrcp.pop %v2584
    %v2607 = vrcp.pop %v2587
    %v2608 = vrcp.pop %v2590
    %v2609 = vrcp.pop %v2593
    %v2610 = vmul.f32 %v2515, %v2594
    %v2611 = vmul.f32 %v2517, %v2595
    %v2612 = vmul.f32 %v2519, %v2596
    %v2613 = vmul.f32 %v2521, %v2597
    %v2614 = vmul.f32 %v2523, %v2598
    %v2615 = vmul.f32 %v2525, %v2599
    %v2616 = vmul.f32 %v2527, %v2600
    %v2617 = vmul.f32 %v2529, %v2601
    %v2618 = vmul.f32 %v2531, %v2602
    %v2619 = vmul.f32 %v2533, %v2603
    %v2620 = vmul.f32 %v2535, %v2604
    %v2621 = vmul.f32 %v2537, %v2605
    %v2622 = vmul.f32 %v2539, %v2606
    %v2623 = vmul.f32 %v2541, %v2607
    %v2624 = vmul.f32 %v2543, %v2608
    %v2625 = vmul.f32 %v2545, %v2609
    %2626 = vrot.lane.b32.xlu0 %v888, 64
    %v2627 = vpop.permute.xlu0 %2626
    %2628 = vrot.lane.b32.xlu0 %v893, 64
    %v2629 = vpop.permute.xlu0 %2628
    %v2633 = vsel %vm566, %v2610, 0
    %v2636 = vsel %vm566, %v2611, 0
    %v2639 = vsel %vm566, %v2612, 0
    %v2642 = vsel %vm566, %v2613, 0
    %v2645 = vsel %vm566, %v2614, 0
    %v2648 = vsel %vm566, %v2615, 0
    %v2651 = vsel %vm566, %v2616, 0
    %v2654 = vsel %vm566, %v2617, 0
    %v2657 = vsel %vm566, %v2618, 0
    %v2660 = vsel %vm566, %v2619, 0
    %v2663 = vsel %vm566, %v2620, 0
    %v2666 = vsel %vm566, %v2621, 0
    %v2669 = vsel %vm566, %v2622, 0
    %v2672 = vsel %vm566, %v2623, 0
    %v2675 = vsel %vm566, %v2624, 0
    %v2678 = vsel %vm566, %v2625, 0
    %2680 = vmatprep.subr.mxu0 0.0
    %2681 = vmatpush1.msra.mxu0 %v2627
    %2682 = vmatprep.subr.mxu0 0.0
    %2683 = vmatpush1.msra.mxu0 %v2629
    %2684 = vmatprep.subr.mxu0 0.0
    %2685 = vmatpush1.msra.mxu0 0.0
    %2686 = vmatprep.subr.mxu0 0.0
    %2687 = vmatpush1.msra.mxu0 0.0
    %2688 = vmatprep.subr.mxu0 0.0
    %2689 = vmatpush1.msra.mxu0 0.0
    %2690 = vmatprep.subr.mxu0 0.0
    %2691 = vmatpush1.msra.mxu0 0.0
    %2692 = vmatprep.subr.mxu0 0.0
    %2693 = vmatpush1.msra.mxu0 0.0
    %2694 = vmatprep.subr.mxu0 0.0
    %2695 = vmatpush1.msra.mxu0 0.0
    %2696 = vmatprep.subr.mxu0 0.0
    %2697 = vmatpush1.msra.mxu0 0.0
    %2698 = vmatprep.subr.mxu0 0.0
    %2699 = vmatpush1.msra.mxu0 0.0
    %2700 = vmatprep.subr.mxu0 0.0
    %2701 = vmatpush1.msra.mxu0 0.0
    %2702 = vmatprep.subr.mxu0 0.0
    %2703 = vmatpush1.msra.mxu0 0.0
    %2704 = vmatprep.subr.mxu0 0.0
    %2705 = vmatpush1.msra.mxu0 0.0
    %2706 = vmatprep.subr.mxu0 0.0
    %2707 = vmatpush1.msra.mxu0 0.0
    %2708 = vmatprep.subr.mxu0 0.0
    %2709 = vmatpush1.msra.mxu0 0.0
    %2710 = vmatprep.subr.mxu0 0.0
    %2711 = vmatpush1.msra.mxu0 0.0
    %2712 = vmatprep.subr.mxu0 0.0
    %2713 = vmatpush1.msra.mxu0 0.0
    %2714 = vmatprep.subr.mxu0 0.0
    %2715 = vmatpush1.msra.mxu0 0.0
    %2716 = vmatprep.subr.mxu0 0.0
    %2717 = vmatpush1.msra.mxu0 0.0
    %2718 = vmatprep.subr.mxu0 0.0
    %2719 = vmatpush1.msra.mxu0 0.0
    %2720 = vmatprep.subr.mxu0 0.0
    %2721 = vmatpush1.msra.mxu0 0.0
    %2722 = vmatprep.subr.mxu0 0.0
    %2723 = vmatpush1.msra.mxu0 0.0
    %2724 = vmatprep.subr.mxu0 0.0
    %2725 = vmatpush1.msra.mxu0 0.0
    %2726 = vmatprep.subr.mxu0 0.0
    %2727 = vmatpush1.msra.mxu0 0.0
    %2728 = vmatprep.subr.mxu0 0.0
    %2729 = vmatpush1.msra.mxu0 0.0
    %2730 = vmatprep.subr.mxu0 0.0
    %2731 = vmatpush1.msra.mxu0 0.0
    %2732 = vmatprep.subr.mxu0 0.0
    %2733 = vmatpush1.msra.mxu0 0.0
    %2734 = vmatprep.subr.mxu0 0.0
    %2735 = vmatpush1.msra.mxu0 0.0
    %2736 = vmatprep.subr.mxu0 0.0
    %2737 = vmatpush1.msra.mxu0 0.0
    %2738 = vmatprep.subr.mxu0 0.0
    %2739 = vmatpush1.msra.mxu0 0.0
    %2740 = vmatprep.subr.mxu0 0.0
    %2741 = vmatpush1.msra.mxu0 0.0
    %2742 = vmatprep.subr.mxu0 0.0
    %2743 = vmatpush1.msra.mxu0 0.0
    %2744 = vmatprep.mubr.f32.mxu0 0.0
    %2745 = vmatmul.mubr.f32.gmra.mrb[0].mxu0 %v2633
    %v2746 = vpop.f32.mrb[0].mxu0
    %v2747 = vadd.f32 0.0, %v2746
    %v2748 = vpop.f32.mrb[0].mxu0
    %2749 = vmatprep.mubr.f32.mxu0 0.0
    %2750 = vmatmul.mubr.f32.gmra.mrb[0].mxu0 %v2636
    %v2751 = vpop.f32.mrb[0].mxu0
    %v2752 = vadd.f32 0.0, %v2751
    %v2753 = vpop.f32.mrb[0].mxu0
    %2754 = vmatprep.mubr.f32.mxu0 0.0
    %2755 = vmatmul.mubr.f32.gmra.mrb[0].mxu0 %v2639
    %v2756 = vpop.f32.mrb[0].mxu0
    %v2757 = vadd.f32 0.0, %v2756
    %v2758 = vpop.f32.mrb[0].mxu0
    %2759 = vmatprep.mubr.f32.mxu0 0.0
    %2760 = vmatmul.mubr.f32.gmra.mrb[0].mxu0 %v2642
    %v2761 = vpop.f32.mrb[0].mxu0
    %v2762 = vadd.f32 0.0, %v2761
    %v2763 = vpop.f32.mrb[0].mxu0
    %2764 = vmatprep.mubr.f32.mxu0 0.0
    %2765 = vmatmul.mubr.f32.gmra.mrb[0].mxu0 %v2645
    %v2766 = vpop.f32.mrb[0].mxu0
    %v2767 = vadd.f32 0.0, %v2766
    %v2768 = vpop.f32.mrb[0].mxu0
    %2769 = vmatprep.mubr.f32.mxu0 0.0
    %2770 = vmatmul.mubr.f32.gmra.mrb[0].mxu0 %v2648
    %v2771 = vpop.f32.mrb[0].mxu0
    %v2772 = vadd.f32 0.0, %v2771
    %v2773 = vpop.f32.mrb[0].mxu0
    %2774 = vmatprep.mubr.f32.mxu0 0.0
    %2775 = vmatmul.mubr.f32.gmra.mrb[0].mxu0 %v2651
    %v2776 = vpop.f32.mrb[0].mxu0
    %v2777 = vadd.f32 0.0, %v2776
    %v2778 = vpop.f32.mrb[0].mxu0
    %2779 = vmatprep.mubr.f32.mxu0 0.0
    %2780 = vmatmul.mubr.f32.gmra.mrb[0].mxu0 %v2654
    %v2781 = vpop.f32.mrb[0].mxu0
    %v2782 = vadd.f32 0.0, %v2781
    %v2783 = vpop.f32.mrb[0].mxu0
    %2784 = vmatprep.mubr.f32.mxu0 0.0
    %2785 = vmatmul.mubr.f32.gmra.mrb[0].mxu0 %v2657
    %v2786 = vpop.f32.mrb[0].mxu0
    %v2787 = vadd.f32 0.0, %v2786
    %v2788 = vpop.f32.mrb[0].mxu0
    %2789 = vmatprep.mubr.f32.mxu0 0.0
    %2790 = vmatmul.mubr.f32.gmra.mrb[0].mxu0 %v2660
    %v2791 = vpop.f32.mrb[0].mxu0
    %v2792 = vadd.f32 0.0, %v2791
    %v2793 = vpop.f32.mrb[0].mxu0
    %2794 = vmatprep.mubr.f32.mxu0 0.0
    %2795 = vmatmul.mubr.f32.gmra.mrb[0].mxu0 %v2663
    %v2796 = vpop.f32.mrb[0].mxu0
    %v2797 = vadd.f32 0.0, %v2796
    %v2798 = vpop.f32.mrb[0].mxu0
    %2799 = vmatprep.mubr.f32.mxu0 0.0
    %2800 = vmatmul.mubr.f32.gmra.mrb[0].mxu0 %v2666
    %v2801 = vpop.f32.mrb[0].mxu0
    %v2802 = vadd.f32 0.0, %v2801
    %v2803 = vpop.f32.mrb[0].mxu0
    %2804 = vmatprep.mubr.f32.mxu0 0.0
    %2805 = vmatmul.mubr.f32.gmra.mrb[0].mxu0 %v2669
    %v2806 = vpop.f32.mrb[0].mxu0
    %v2807 = vadd.f32 0.0, %v2806
    %v2808 = vpop.f32.mrb[0].mxu0
    %2809 = vmatprep.mubr.f32.mxu0 0.0
    %2810 = vmatmul.mubr.f32.gmra.mrb[0].mxu0 %v2672
    %v2811 = vpop.f32.mrb[0].mxu0
    %v2812 = vadd.f32 0.0, %v2811
    %v2813 = vpop.f32.mrb[0].mxu0
    %2814 = vmatprep.mubr.f32.mxu0 0.0
    %2815 = vmatmul.mubr.f32.gmra.mrb[0].mxu0 %v2675
    %v2816 = vpop.f32.mrb[0].mxu0
    %v2817 = vadd.f32 0.0, %v2816
    %v2818 = vpop.f32.mrb[0].mxu0
    %2819 = vmatprep.mubr.f32.mxu0 0.0
    %2820 = vmatmul.mubr.f32.gmra.mrb[0].mxu0 %v2678
    %v2821 = vpop.f32.mrb[0].mxu0
    %v2822 = vadd.f32 0.0, %v2821
    %v2823 = vpop.f32.mrb[0].mxu0
    %2824 = vdwg.mxu0
    %v2825 = vld [vmem:[%s23] sm:$0xff]
    %v2826 = vld [vmem:[%s23 + $0x8] sm:$0xff]
    %v2827 = vld [vmem:[%s23 + $0x10] sm:$0xff]
    %v2828 = vld [vmem:[%s23 + $0x18] sm:$0xff]
    %v2829 = vld [vmem:[%s23 + $0x20] sm:$0xff]
    %v2830 = vld [vmem:[%s23 + $0x28] sm:$0xff]
    %v2831 = vld [vmem:[%s23 + $0x30] sm:$0xff]
    %v2832 = vld [vmem:[%s23 + $0x38] sm:$0xff]
    %v2834 = vsel %vm375, %v2747, 0
    %v2837 = vsel %vm375, %v2752, 0
    %v2840 = vsel %vm375, %v2757, 0
    %v2843 = vsel %vm375, %v2762, 0
    %v2846 = vsel %vm375, %v2767, 0
    %v2849 = vsel %vm375, %v2772, 0
    %v2852 = vsel %vm375, %v2777, 0
    %v2855 = vsel %vm375, %v2782, 0
    %v2858 = vsel %vm375, %v2787, 0
    %v2861 = vsel %vm375, %v2792, 0
    %v2864 = vsel %vm375, %v2797, 0
    %v2867 = vsel %vm375, %v2802, 0
    %v2870 = vsel %vm375, %v2807, 0
    %v2873 = vsel %vm375, %v2812, 0
    %v2876 = vsel %vm375, %v2817, 0
    %v2879 = vsel %vm375, %v2822, 0
    %2881 = vmatprep.subr.mxu0 0.0
    %2882 = vmatpush1.msra.mxu0 %v2825
    %2883 = vmatprep.subr.mxu0 0.0
    %2884 = vmatpush1.msra.mxu0 %v2826
    %2885 = vmatprep.subr.mxu0 0.0
    %2886 = vmatpush1.msra.mxu0 %v2827
    %2887 = vmatprep.subr.mxu0 0.0
    %2888 = vmatpush1.msra.mxu0 %v2828
    %2889 = vmatprep.subr.mxu0 0.0
    %2890 = vmatpush1.msra.mxu0 %v2829
    %2891 = vmatprep.subr.mxu0 0.0
    %2892 = vmatpush1.msra.mxu0 %v2830
    %2893 = vmatprep.subr.mxu0 0.0
    %2894 = vmatpush1.msra.mxu0 %v2831
    %2895 = vmatprep.subr.mxu0 0.0
    %2896 = vmatpush1.msra.mxu0 %v2832
    %2897 = vmatprep.subr.mxu0 0.0
    %2898 = vmatpush1.msra.mxu0 0.0
    %2899 = vmatprep.subr.mxu0 0.0
    %2900 = vmatpush1.msra.mxu0 0.0
    %2901 = vmatprep.subr.mxu0 0.0
    %2902 = vmatpush1.msra.mxu0 0.0
    %2903 = vmatprep.subr.mxu0 0.0
    %2904 = vmatpush1.msra.mxu0 0.0
    %2905 = vmatprep.subr.mxu0 0.0
    %2906 = vmatpush1.msra.mxu0 0.0
    %2907 = vmatprep.subr.mxu0 0.0
    %2908 = vmatpush1.msra.mxu0 0.0
    %2909 = vmatprep.subr.mxu0 0.0
    %2910 = vmatpush1.msra.mxu0 0.0
    %2911 = vmatprep.subr.mxu0 0.0
    %2912 = vmatpush1.msra.mxu0 0.0
    %2913 = vmatprep.subr.mxu0 0.0
    %2914 = vmatpush1.msra.mxu0 0.0
    %2915 = vmatprep.subr.mxu0 0.0
    %2916 = vmatpush1.msra.mxu0 0.0
    %2917 = vmatprep.subr.mxu0 0.0
    %2918 = vmatpush1.msra.mxu0 0.0
    %2919 = vmatprep.subr.mxu0 0.0
    %2920 = vmatpush1.msra.mxu0 0.0
    %2921 = vmatprep.subr.mxu0 0.0
    %2922 = vmatpush1.msra.mxu0 0.0
    %2923 = vmatprep.subr.mxu0 0.0
    %2924 = vmatpush1.msra.mxu0 0.0
    %2925 = vmatprep.subr.mxu0 0.0
    %2926 = vmatpush1.msra.mxu0 0.0
    %2927 = vmatprep.subr.mxu0 0.0
    %2928 = vmatpush1.msra.mxu0 0.0
    %2929 = vmatprep.subr.mxu0 0.0
    %2930 = vmatpush1.msra.mxu0 0.0
    %2931 = vmatprep.subr.mxu0 0.0
    %2932 = vmatpush1.msra.mxu0 0.0
    %2933 = vmatprep.subr.mxu0 0.0
    %2934 = vmatpush1.msra.mxu0 0.0
    %2935 = vmatprep.subr.mxu0 0.0
    %2936 = vmatpush1.msra.mxu0 0.0
    %2937 = vmatprep.subr.mxu0 0.0
    %2938 = vmatpush1.msra.mxu0 0.0
    %2939 = vmatprep.subr.mxu0 0.0
    %2940 = vmatpush1.msra.mxu0 0.0
    %2941 = vmatprep.subr.mxu0 0.0
    %2942 = vmatpush1.msra.mxu0 0.0
    %2943 = vmatprep.subr.mxu0 0.0
    %2944 = vmatpush1.msra.mxu0 0.0
    %2945 = vmatprep.mubr.f32.mxu0 0.0
    %2946 = vmatmul.mubr.f32.gmra.mrb[0].mxu0 %v2834
    %v2947 = vpop.f32.mrb[0].mxu0
    %v2948 = vadd.f32 0.0, %v2947
    %v2949 = vpop.f32.mrb[0].mxu0
    %2950 = vmatprep.mubr.f32.mxu0 0.0
    %2951 = vmatmul.mubr.f32.gmra.mrb[0].mxu0 %v2837
    %v2952 = vpop.f32.mrb[0].mxu0
    %v2953 = vadd.f32 0.0, %v2952
    %v2954 = vpop.f32.mrb[0].mxu0
    %2955 = vmatprep.mubr.f32.mxu0 0.0
    %2956 = vmatmul.mubr.f32.gmra.mrb[0].mxu0 %v2840
    %v2957 = vpop.f32.mrb[0].mxu0
    %v2958 = vadd.f32 0.0, %v2957
    %v2959 = vpop.f32.mrb[0].mxu0
    %2960 = vmatprep.mubr.f32.mxu0 0.0
    %2961 = vmatmul.mubr.f32.gmra.mrb[0].mxu0 %v2843
    %v2962 = vpop.f32.mrb[0].mxu0
    %v2963 = vadd.f32 0.0, %v2962
    %v2964 = vpop.f32.mrb[0].mxu0
    %2965 = vmatprep.mubr.f32.mxu0 0.0
    %2966 = vmatmul.mubr.f32.gmra.mrb[0].mxu0 %v2846
    %v2967 = vpop.f32.mrb[0].mxu0
    %v2968 = vadd.f32 0.0, %v2967
    %v2969 = vpop.f32.mrb[0].mxu0
    %2970 = vmatprep.mubr.f32.mxu0 0.0
    %2971 = vmatmul.mubr.f32.gmra.mrb[0].mxu0 %v2849
    %v2972 = vpop.f32.mrb[0].mxu0
    %v2973 = vadd.f32 0.0, %v2972
    %v2974 = vpop.f32.mrb[0].mxu0
    %2975 = vmatprep.mubr.f32.mxu0 0.0
    %2976 = vmatmul.mubr.f32.gmra.mrb[0].mxu0 %v2852
    %v2977 = vpop.f32.mrb[0].mxu0
    %v2978 = vadd.f32 0.0, %v2977
    %v2979 = vpop.f32.mrb[0].mxu0
    %2980 = vmatprep.mubr.f32.mxu0 0.0
    %2981 = vmatmul.mubr.f32.gmra.mrb[0].mxu0 %v2855
    %v2982 = vpop.f32.mrb[0].mxu0
    %v2983 = vadd.f32 0.0, %v2982
    %v2984 = vpop.f32.mrb[0].mxu0
    %2985 = vmatprep.mubr.f32.mxu0 0.0
    %2986 = vmatmul.mubr.f32.gmra.mrb[0].mxu0 %v2858
    %v2987 = vpop.f32.mrb[0].mxu0
    %v2988 = vadd.f32 0.0, %v2987
    %v2989 = vpop.f32.mrb[0].mxu0
    %2990 = vmatprep.mubr.f32.mxu0 0.0
    %2991 = vmatmul.mubr.f32.gmra.mrb[0].mxu0 %v2861
    %v2992 = vpop.f32.mrb[0].mxu0
    %v2993 = vadd.f32 0.0, %v2992
    %v2994 = vpop.f32.mrb[0].mxu0
    %2995 = vmatprep.mubr.f32.mxu0 0.0
    %2996 = vmatmul.mubr.f32.gmra.mrb[0].mxu0 %v2864
    %v2997 = vpop.f32.mrb[0].mxu0
    %v2998 = vadd.f32 0.0, %v2997
    %v2999 = vpop.f32.mrb[0].mxu0
    %3000 = vmatprep.mubr.f32.mxu0 0.0
    %3001 = vmatmul.mubr.f32.gmra.mrb[0].mxu0 %v2867
    %v3002 = vpop.f32.mrb[0].mxu0
    %v3003 = vadd.f32 0.0, %v3002
    %v3004 = vpop.f32.mrb[0].mxu0
    %3005 = vmatprep.mubr.f32.mxu0 0.0
    %3006 = vmatmul.mubr.f32.gmra.mrb[0].mxu0 %v2870
    %v3007 = vpop.f32.mrb[0].mxu0
    %v3008 = vadd.f32 0.0, %v3007
    %v3009 = vpop.f32.mrb[0].mxu0
    %3010 = vmatprep.mubr.f32.mxu0 0.0
    %3011 = vmatmul.mubr.f32.gmra.mrb[0].mxu0 %v2873
    %v3012 = vpop.f32.mrb[0].mxu0
    %v3013 = vadd.f32 0.0, %v3012
    %v3014 = vpop.f32.mrb[0].mxu0
    %3015 = vmatprep.mubr.f32.mxu0 0.0
    %3016 = vmatmul.mubr.f32.gmra.mrb[0].mxu0 %v2876
    %v3017 = vpop.f32.mrb[0].mxu0
    %v3018 = vadd.f32 0.0, %v3017
    %v3019 = vpop.f32.mrb[0].mxu0
    %3020 = vmatprep.mubr.f32.mxu0 0.0
    %3021 = vmatmul.mubr.f32.gmra.mrb[0].mxu0 %v2879
    %v3022 = vpop.f32.mrb[0].mxu0
    %v3023 = vadd.f32 0.0, %v3022
    %v3024 = vpop.f32.mrb[0].mxu0
    %3025 = vdwg.mxu0
    %v3026 = vadd.f32 %v2002, %v2948
    %v3027 = vadd.f32 %v2003, %v2953
    %v3028 = vadd.f32 %v2004, %v2958
    %v3029 = vadd.f32 %v2005, %v2963
    %v3030 = vadd.f32 %v2006, %v2968
    %v3031 = vadd.f32 %v2007, %v2973
    %v3032 = vadd.f32 %v2008, %v2978
    %v3033 = vadd.f32 %v2009, %v2983
    %v3034 = vadd.f32 %v2010, %v2988
    %v3035 = vadd.f32 %v2011, %v2993
    %v3036 = vadd.f32 %v2012, %v2998
    %v3037 = vadd.f32 %v2013, %v3003
    %v3038 = vadd.f32 %v2014, %v3008
    %v3039 = vadd.f32 %v2015, %v3013
    %v3040 = vadd.f32 %v2016, %v3018
    %v3041 = vadd.f32 %v2017, %v3023
    %v3042 = vld [vmem:[%s24] sm:$0xff]
    %v3043 = vld [vmem:[%s24 + $0x8] sm:$0xff]
    %v3044 = vld [vmem:[%s24 + $0x10] sm:$0xff]
    %v3045 = vld [vmem:[%s24 + $0x18] sm:$0xff]
    %v3046 = vld [vmem:[%s24 + $0x20] sm:$0xff]
    %v3047 = vld [vmem:[%s24 + $0x28] sm:$0xff]
    %v3048 = vld [vmem:[%s24 + $0x30] sm:$0xff]
    %v3049 = vld [vmem:[%s24 + $0x38] sm:$0xff]
    %v3050 = vld [vmem:[%s25] sm:$0x1]
    %v3052 = vlaneseq
    %v3053 = vshrl.u32 %v3052, 7
    %v3054 = vsub.s32 0, %v3053
    %v3055 = vrot.slane %v3050, %v3054
    %v3058 = vsel %vm375, %v3026, 0
    %v3061 = vsel %vm375, %v3027, 0
    %v3064 = vsel %vm375, %v3028, 0
    %v3067 = vsel %vm375, %v3029, 0
    %v3070 = vsel %vm375, %v3030, 0
    %v3073 = vsel %vm375, %v3031, 0
    %v3076 = vsel %vm375, %v3032, 0
    %v3079 = vsel %vm375, %v3033, 0
    %v3082 = vsel %vm375, %v3034, 0
    %v3085 = vsel %vm375, %v3035, 0
    %v3088 = vsel %vm375, %v3036, 0
    %v3091 = vsel %vm375, %v3037, 0
    %v3094 = vsel %vm375, %v3038, 0
    %v3097 = vsel %vm375, %v3039, 0
    %v3100 = vsel %vm375, %v3040, 0
    %v3103 = vsel %vm375, %v3041, 0
    %3105 = vmatprep.subr.mxu0 0.0
    %3106 = vmatpush1.msra.mxu0 %v3042
    %3107 = vmatprep.subr.mxu0 0.0
    %3108 = vmatpush1.msra.mxu0 %v3043
    %3109 = vmatprep.subr.mxu0 0.0
    %3110 = vmatpush1.msra.mxu0 %v3044
    %3111 = vmatprep.subr.mxu0 0.0
    %3112 = vmatpush1.msra.mxu0 %v3045
    %3113 = vmatprep.subr.mxu0 0.0
    %3114 = vmatpush1.msra.mxu0 %v3046
    %3115 = vmatprep.subr.mxu0 0.0
    %3116 = vmatpush1.msra.mxu0 %v3047
    %3117 = vmatprep.subr.mxu0 0.0
    %3118 = vmatpush1.msra.mxu0 %v3048
    %3119 = vmatprep.subr.mxu0 0.0
    %3120 = vmatpush1.msra.mxu0 %v3049
    %3121 = vmatprep.subr.mxu0 0.0
    %3122 = vmatpush1.msra.mxu0 0.0
    %3123 = vmatprep.subr.mxu0 0.0
    %3124 = vmatpush1.msra.mxu0 0.0
    %3125 = vmatprep.subr.mxu0 0.0
    %3126 = vmatpush1.msra.mxu0 0.0
    %3127 = vmatprep.subr.mxu0 0.0
    %3128 = vmatpush1.msra.mxu0 0.0
    %3129 = vmatprep.subr.mxu0 0.0
    %3130 = vmatpush1.msra.mxu0 0.0
    %3131 = vmatprep.subr.mxu0 0.0
    %3132 = vmatpush1.msra.mxu0 0.0
    %3133 = vmatprep.subr.mxu0 0.0
    %3134 = vmatpush1.msra.mxu0 0.0
    %3135 = vmatprep.subr.mxu0 0.0
    %3136 = vmatpush1.msra.mxu0 0.0
    %3137 = vmatprep.subr.mxu0 0.0
    %3138 = vmatpush1.msra.mxu0 0.0
    %3139 = vmatprep.subr.mxu0 0.0
    %3140 = vmatpush1.msra.mxu0 0.0
    %3141 = vmatprep.subr.mxu0 0.0
    %3142 = vmatpush1.msra.mxu0 0.0
    %3143 = vmatprep.subr.mxu0 0.0
    %3144 = vmatpush1.msra.mxu0 0.0
    %3145 = vmatprep.subr.mxu0 0.0
    %3146 = vmatpush1.msra.mxu0 0.0
    %3147 = vmatprep.subr.mxu0 0.0
    %3148 = vmatpush1.msra.mxu0 0.0
    %3149 = vmatprep.subr.mxu0 0.0
    %3150 = vmatpush1.msra.mxu0 0.0
    %3151 = vmatprep.subr.mxu0 0.0
    %3152 = vmatpush1.msra.mxu0 0.0
    %3153 = vmatprep.subr.mxu0 0.0
    %3154 = vmatpush1.msra.mxu0 0.0
    %3155 = vmatprep.subr.mxu0 0.0
    %3156 = vmatpush1.msra.mxu0 0.0
    %3157 = vmatprep.subr.mxu0 0.0
    %3158 = vmatpush1.msra.mxu0 0.0
    %3159 = vmatprep.subr.mxu0 0.0
    %3160 = vmatpush1.msra.mxu0 0.0
    %3161 = vmatprep.subr.mxu0 0.0
    %3162 = vmatpush1.msra.mxu0 0.0
    %3163 = vmatprep.subr.mxu0 0.0
    %3164 = vmatpush1.msra.mxu0 0.0
    %3165 = vmatprep.subr.mxu0 0.0
    %3166 = vmatpush1.msra.mxu0 0.0
    %3167 = vmatprep.subr.mxu0 0.0
    %3168 = vmatpush1.msra.mxu0 0.0
    %3169 = vmatprep.mubr.f32.mxu0 0.0
    %3170 = vmatmul.mubr.f32.gmra.mrb[0].mxu0 %v3058
    %v3171 = vpop.f32.mrb[0].mxu0
    %v3172 = vadd.f32 %v3055, %v3171
    %v3173 = vpop.f32.mrb[0].mxu0
    %3174 = vmatprep.mubr.f32.mxu0 0.0
    %3175 = vmatmul.mubr.f32.gmra.mrb[0].mxu0 %v3061
    %v3176 = vpop.f32.mrb[0].mxu0
    %v3177 = vadd.f32 %v3055, %v3176
    %v3178 = vpop.f32.mrb[0].mxu0
    %3179 = vmatprep.mubr.f32.mxu0 0.0
    %3180 = vmatmul.mubr.f32.gmra.mrb[0].mxu0 %v3064
    %v3181 = vpop.f32.mrb[0].mxu0
    %v3182 = vadd.f32 %v3055, %v3181
    %v3183 = vpop.f32.mrb[0].mxu0
    %3184 = vmatprep.mubr.f32.mxu0 0.0
    %3185 = vmatmul.mubr.f32.gmra.mrb[0].mxu0 %v3067
    %v3186 = vpop.f32.mrb[0].mxu0
    %v3187 = vadd.f32 %v3055, %v3186
    %v3188 = vpop.f32.mrb[0].mxu0
    %3189 = vmatprep.mubr.f32.mxu0 0.0
    %3190 = vmatmul.mubr.f32.gmra.mrb[0].mxu0 %v3070
    %v3191 = vpop.f32.mrb[0].mxu0
    %v3192 = vadd.f32 %v3055, %v3191
    %v3193 = vpop.f32.mrb[0].mxu0
    %3194 = vmatprep.mubr.f32.mxu0 0.0
    %3195 = vmatmul.mubr.f32.gmra.mrb[0].mxu0 %v3073
    %v3196 = vpop.f32.mrb[0].mxu0
    %v3197 = vadd.f32 %v3055, %v3196
    %v3198 = vpop.f32.mrb[0].mxu0
    %3199 = vmatprep.mubr.f32.mxu0 0.0
    %3200 = vmatmul.mubr.f32.gmra.mrb[0].mxu0 %v3076
    %v3201 = vpop.f32.mrb[0].mxu0
    %v3202 = vadd.f32 %v3055, %v3201
    %v3203 = vpop.f32.mrb[0].mxu0
    %3204 = vmatprep.mubr.f32.mxu0 0.0
    %3205 = vmatmul.mubr.f32.gmra.mrb[0].mxu0 %v3079
    %v3206 = vpop.f32.mrb[0].mxu0
    %v3207 = vadd.f32 %v3055, %v3206
    %v3208 = vpop.f32.mrb[0].mxu0
    %3209 = vmatprep.mubr.f32.mxu0 0.0
    %3210 = vmatmul.mubr.f32.gmra.mrb[0].mxu0 %v3082
    %v3211 = vpop.f32.mrb[0].mxu0
    %v3212 = vadd.f32 %v3055, %v3211
    %v3213 = vpop.f32.mrb[0].mxu0
    %3214 = vmatprep.mubr.f32.mxu0 0.0
    %3215 = vmatmul.mubr.f32.gmra.mrb[0].mxu0 %v3085
    %v3216 = vpop.f32.mrb[0].mxu0
    %v3217 = vadd.f32 %v3055, %v3216
    %v3218 = vpop.f32.mrb[0].mxu0
    %3219 = vmatprep.mubr.f32.mxu0 0.0
    %3220 = vmatmul.mubr.f32.gmra.mrb[0].mxu0 %v3088
    %v3221 = vpop.f32.mrb[0].mxu0
    %v3222 = vadd.f32 %v3055, %v3221
    %v3223 = vpop.f32.mrb[0].mxu0
    %3224 = vmatprep.mubr.f32.mxu0 0.0
    %3225 = vmatmul.mubr.f32.gmra.mrb[0].mxu0 %v3091
    %v3226 = vpop.f32.mrb[0].mxu0
    %v3227 = vadd.f32 %v3055, %v3226
    %v3228 = vpop.f32.mrb[0].mxu0
    %3229 = vmatprep.mubr.f32.mxu0 0.0
    %3230 = vmatmul.mubr.f32.gmra.mrb[0].mxu0 %v3094
    %v3231 = vpop.f32.mrb[0].mxu0
    %v3232 = vadd.f32 %v3055, %v3231
    %v3233 = vpop.f32.mrb[0].mxu0
    %3234 = vmatprep.mubr.f32.mxu0 0.0
    %3235 = vmatmul.mubr.f32.gmra.mrb[0].mxu0 %v3097
    %v3236 = vpop.f32.mrb[0].mxu0
    %v3237 = vadd.f32 %v3055, %v3236
    %v3238 = vpop.f32.mrb[0].mxu0
    %3239 = vmatprep.mubr.f32.mxu0 0.0
    %3240 = vmatmul.mubr.f32.gmra.mrb[0].mxu0 %v3100
    %v3241 = vpop.f32.mrb[0].mxu0
    %v3242 = vadd.f32 %v3055, %v3241
    %v3243 = vpop.f32.mrb[0].mxu0
    %3244 = vmatprep.mubr.f32.mxu0 0.0
    %3245 = vmatmul.mubr.f32.gmra.mrb[0].mxu0 %v3103
    %v3246 = vpop.f32.mrb[0].mxu0
    %v3247 = vadd.f32 %v3055, %v3246
    %v3248 = vpop.f32.mrb[0].mxu0
    %3249 = vdwg.mxu0
    %v3250 = vmul.f32 %v3172, -4.8618
    %v3251 = vmul.f32 %v3177, -4.8618
    %v3252 = vmul.f32 %v3182, -4.8618
    %v3253 = vmul.f32 %v3187, -4.8618
    %v3254 = vmul.f32 %v3192, -4.8618
    %v3255 = vmul.f32 %v3197, -4.8618
    %v3256 = vmul.f32 %v3202, -4.8618
    %v3257 = vmul.f32 %v3207, -4.8618
    %v3258 = vmul.f32 %v3212, -4.8618
    %v3259 = vmul.f32 %v3217, -4.8618
    %v3260 = vmul.f32 %v3222, -4.8618
    %v3261 = vmul.f32 %v3227, -4.8618
    %v3262 = vmul.f32 %v3232, -4.8618
    %v3263 = vmul.f32 %v3237, -4.8618
    %v3264 = vmul.f32 %v3242, -4.8618
    %v3265 = vmul.f32 %v3247, -4.8618
    %v3266 = vadd.f32 %v1648, %v3250
    %v3267 = vadd.f32 %v1649, %v3251
    %v3268 = vadd.f32 %v1650, %v3252
    %v3269 = vadd.f32 %v1651, %v3253
    %v3270 = vadd.f32 %v1652, %v3254
    %v3271 = vadd.f32 %v1653, %v3255
    %v3272 = vadd.f32 %v1654, %v3256
    %v3273 = vadd.f32 %v1655, %v3257
    %v3274 = vadd.f32 %v1656, %v3258
    %v3275 = vadd.f32 %v1657, %v3259
    %v3276 = vadd.f32 %v1658, %v3260
    %v3277 = vadd.f32 %v1659, %v3261
    %v3278 = vadd.f32 %v1660, %v3262
    %v3279 = vadd.f32 %v1661, %v3263
    %v3280 = vadd.f32 %v1662, %v3264
    %v3281 = vadd.f32 %v1663, %v3265
    %v3282 = vmul.f32 %v3266, 0.10199988
    %v3283 = vmul.f32 %v3267, 0.10199988
    %v3284 = vmul.f32 %v3268, 0.10199988
    %v3285 = vmul.f32 %v3269, 0.10199988
    %v3286 = vmul.f32 %v3270, 0.10199988
    %v3287 = vmul.f32 %v3271, 0.10199988
    %v3288 = vmul.f32 %v3272, 0.10199988
    %v3289 = vmul.f32 %v3273, 0.10199988
    %v3290 = vmul.f32 %v3274, 0.10199988
    %v3291 = vmul.f32 %v3275, 0.10199988
    %v3292 = vmul.f32 %v3276, 0.10199988
    %v3293 = vmul.f32 %v3277, 0.10199988
    %v3294 = vmul.f32 %v3278, 0.10199988
    %v3295 = vmul.f32 %v3279, 0.10199988
    %v3296 = vmul.f32 %v3280, 0.10199988
    %v3297 = vmul.f32 %v3281, 0.10199988
    %v3299 = vsel %vm1688, %v3282, 0
    %v3302 = vsel %vm1688, %v3283, 0
    %v3305 = vsel %vm1688, %v3284, 0
    %v3308 = vsel %vm1688, %v3285, 0
    %v3311 = vsel %vm1688, %v3286, 0
    %v3314 = vsel %vm1688, %v3287, 0
    %v3317 = vsel %vm1688, %v3288, 0
    %v3320 = vsel %vm1688, %v3289, 0
    %v3323 = vsel %vm1688, %v3290, 0
    %v3326 = vsel %vm1688, %v3291, 0
    %v3329 = vsel %vm1688, %v3292, 0
    %v3332 = vsel %vm1688, %v3293, 0
    %v3335 = vsel %vm1688, %v3294, 0
    %v3338 = vsel %vm1688, %v3295, 0
    %v3341 = vsel %vm1688, %v3296, 0
    %v3344 = vsel %vm1688, %v3297, 0
    %3346 = vmatprep.subr.mxu0 0.0
    %3347 = vmatpush1.msra.mxu0 %v1739
    %3348 = vmatprep.subr.mxu0 0.0
    %3349 = vmatpush1.msra.mxu0 0.0
    %3350 = vmatprep.subr.mxu0 0.0
    %3351 = vmatpush1.msra.mxu0 0.0
    %3352 = vmatprep.subr.mxu0 0.0
    %3353 = vmatpush1.msra.mxu0 0.0
    %3354 = vmatprep.subr.mxu0 0.0
    %3355 = vmatpush1.msra.mxu0 0.0
    %3356 = vmatprep.subr.mxu0 0.0
    %3357 = vmatpush1.msra.mxu0 0.0
    %3358 = vmatprep.subr.mxu0 0.0
    %3359 = vmatpush1.msra.mxu0 0.0
    %3360 = vmatprep.subr.mxu0 0.0
    %3361 = vmatpush1.msra.mxu0 0.0
    %3362 = vmatprep.subr.mxu0 0.0
    %3363 = vmatpush1.msra.mxu0 0.0
    %3364 = vmatprep.subr.mxu0 0.0
    %3365 = vmatpush1.msra.mxu0 0.0
    %3366 = vmatprep.subr.mxu0 0.0
    %3367 = vmatpush1.msra.mxu0 0.0
    %3368 = vmatprep.subr.mxu0 0.0
    %3369 = vmatpush1.msra.mxu0 0.0
    %3370 = vmatprep.subr.mxu0 0.0
    %3371 = vmatpush1.msra.mxu0 0.0
    %3372 = vmatprep.subr.mxu0 0.0
    %3373 = vmatpush1.msra.mxu0 0.0
    %3374 = vmatprep.subr.mxu0 0.0
    %3375 = vmatpush1.msra.mxu0 0.0
    %3376 = vmatprep.subr.mxu0 0.0
    %3377 = vmatpush1.msra.mxu0 0.0
    %3378 = vmatprep.subr.mxu0 0.0
    %3379 = vmatpush1.msra.mxu0 0.0
    %3380 = vmatprep.subr.mxu0 0.0
    %3381 = vmatpush1.msra.mxu0 0.0
    %3382 = vmatprep.subr.mxu0 0.0
    %3383 = vmatpush1.msra.mxu0 0.0
    %3384 = vmatprep.subr.mxu0 0.0
    %3385 = vmatpush1.msra.mxu0 0.0
    %3386 = vmatprep.subr.mxu0 0.0
    %3387 = vmatpush1.msra.mxu0 0.0
    %3388 = vmatprep.subr.mxu0 0.0
    %3389 = vmatpush1.msra.mxu0 0.0
    %3390 = vmatprep.subr.mxu0 0.0
    %3391 = vmatpush1.msra.mxu0 0.0
    %3392 = vmatprep.subr.mxu0 0.0
    %3393 = vmatpush1.msra.mxu0 0.0
    %3394 = vmatprep.subr.mxu0 0.0
    %3395 = vmatpush1.msra.mxu0 0.0
    %3396 = vmatprep.subr.mxu0 0.0
    %3397 = vmatpush1.msra.mxu0 0.0
    %3398 = vmatprep.subr.mxu0 0.0
    %3399 = vmatpush1.msra.mxu0 0.0
    %3400 = vmatprep.subr.mxu0 0.0
    %3401 = vmatpush1.msra.mxu0 0.0
    %3402 = vmatprep.subr.mxu0 0.0
    %3403 = vmatpush1.msra.mxu0 0.0
    %3404 = vmatprep.subr.mxu0 0.0
    %3405 = vmatpush1.msra.mxu0 0.0
    %3406 = vmatprep.subr.mxu0 0.0
    %3407 = vmatpush1.msra.mxu0 0.0
    %3408 = vmatprep.subr.mxu0 0.0
    %3409 = vmatpush1.msra.mxu0 0.0
    %3410 = vmatprep.mubr.f32.mxu0 0.0
    %3411 = vmatmul.mubr.f32.gmra.mrb[0].mxu0 %v3299
    %v3412 = vpop.f32.mrb[0].mxu0
    %v3413 = vadd.f32 %v1686, %v3412
    %v3414 = vpop.f32.mrb[0].mxu0
    %3415 = vmatprep.mubr.f32.mxu0 0.0
    %3416 = vmatmul.mubr.f32.gmra.mrb[0].mxu0 %v3302
    %v3417 = vpop.f32.mrb[0].mxu0
    %v3418 = vadd.f32 %v1686, %v3417
    %v3419 = vpop.f32.mrb[0].mxu0
    %3420 = vmatprep.mubr.f32.mxu0 0.0
    %3421 = vmatmul.mubr.f32.gmra.mrb[0].mxu0 %v3305
    %v3422 = vpop.f32.mrb[0].mxu0
    %v3423 = vadd.f32 %v1686, %v3422
    %v3424 = vpop.f32.mrb[0].mxu0
    %3425 = vmatprep.mubr.f32.mxu0 0.0
    %3426 = vmatmul.mubr.f32.gmra.mrb[0].mxu0 %v3308
    %v3427 = vpop.f32.mrb[0].mxu0
    %v3428 = vadd.f32 %v1686, %v3427
    %v3429 = vpop.f32.mrb[0].mxu0
    %3430 = vmatprep.mubr.f32.mxu0 0.0
    %3431 = vmatmul.mubr.f32.gmra.mrb[0].mxu0 %v3311
    %v3432 = vpop.f32.mrb[0].mxu0
    %v3433 = vadd.f32 %v1686, %v3432
    %v3434 = vpop.f32.mrb[0].mxu0
    %3435 = vmatprep.mubr.f32.mxu0 0.0
    %3436 = vmatmul.mubr.f32.gmra.mrb[0].mxu0 %v3314
    %v3437 = vpop.f32.mrb[0].mxu0
    %v3438 = vadd.f32 %v1686, %v3437
    %v3439 = vpop.f32.mrb[0].mxu0
    %3440 = vmatprep.mubr.f32.mxu0 0.0
    %3441 = vmatmul.mubr.f32.gmra.mrb[0].mxu0 %v3317
    %v3442 = vpop.f32.mrb[0].mxu0
    %v3443 = vadd.f32 %v1686, %v3442
    %v3444 = vpop.f32.mrb[0].mxu0
    %3445 = vmatprep.mubr.f32.mxu0 0.0
    %3446 = vmatmul.mubr.f32.gmra.mrb[0].mxu0 %v3320
    %v3447 = vpop.f32.mrb[0].mxu0
    %v3448 = vadd.f32 %v1686, %v3447
    %v3449 = vpop.f32.mrb[0].mxu0
    %3450 = vmatprep.mubr.f32.mxu0 0.0
    %3451 = vmatmul.mubr.f32.gmra.mrb[0].mxu0 %v3323
    %v3452 = vpop.f32.mrb[0].mxu0
    %v3453 = vadd.f32 %v1686, %v3452
    %v3454 = vpop.f32.mrb[0].mxu0
    %3455 = vmatprep.mubr.f32.mxu0 0.0
    %3456 = vmatmul.mubr.f32.gmra.mrb[0].mxu0 %v3326
    %v3457 = vpop.f32.mrb[0].mxu0
    %v3458 = vadd.f32 %v1686, %v3457
    %v3459 = vpop.f32.mrb[0].mxu0
    %3460 = vmatprep.mubr.f32.mxu0 0.0
    %3461 = vmatmul.mubr.f32.gmra.mrb[0].mxu0 %v3329
    %v3462 = vpop.f32.mrb[0].mxu0
    %v3463 = vadd.f32 %v1686, %v3462
    %v3464 = vpop.f32.mrb[0].mxu0
    %3465 = vmatprep.mubr.f32.mxu0 0.0
    %3466 = vmatmul.mubr.f32.gmra.mrb[0].mxu0 %v3332
    %v3467 = vpop.f32.mrb[0].mxu0
    %v3468 = vadd.f32 %v1686, %v3467
    %v3469 = vpop.f32.mrb[0].mxu0
    %3470 = vmatprep.mubr.f32.mxu0 0.0
    %3471 = vmatmul.mubr.f32.gmra.mrb[0].mxu0 %v3335
    %v3472 = vpop.f32.mrb[0].mxu0
    %v3473 = vadd.f32 %v1686, %v3472
    %v3474 = vpop.f32.mrb[0].mxu0
    %3475 = vmatprep.mubr.f32.mxu0 0.0
    %3476 = vmatmul.mubr.f32.gmra.mrb[0].mxu0 %v3338
    %v3477 = vpop.f32.mrb[0].mxu0
    %v3478 = vadd.f32 %v1686, %v3477
    %v3479 = vpop.f32.mrb[0].mxu0
    %3480 = vmatprep.mubr.f32.mxu0 0.0
    %3481 = vmatmul.mubr.f32.gmra.mrb[0].mxu0 %v3341
    %v3482 = vpop.f32.mrb[0].mxu0
    %v3483 = vadd.f32 %v1686, %v3482
    %v3484 = vpop.f32.mrb[0].mxu0
    %3485 = vmatprep.mubr.f32.mxu0 0.0
    %3486 = vmatmul.mubr.f32.gmra.mrb[0].mxu0 %v3344
    %v3487 = vpop.f32.mrb[0].mxu0
    %v3488 = vadd.f32 %v1686, %v3487
    %v3489 = vpop.f32.mrb[0].mxu0
    %3490 = vdwg.mxu0
    %v3491 = vsub.f32 0.0, %v3413
    %v3492 = vsub.f32 0.0, %v3418
    %v3493 = vsub.f32 0.0, %v3423
    %v3494 = vsub.f32 0.0, %v3428
    %v3495 = vsub.f32 0.0, %v3433
    %v3496 = vsub.f32 0.0, %v3438
    %v3497 = vsub.f32 0.0, %v3443
    %v3498 = vsub.f32 0.0, %v3448
    %v3499 = vsub.f32 0.0, %v3453
    %v3500 = vsub.f32 0.0, %v3458
    %v3501 = vsub.f32 0.0, %v3463
    %v3502 = vsub.f32 0.0, %v3468
    %v3503 = vsub.f32 0.0, %v3473
    %v3504 = vsub.f32 0.0, %v3478
    %v3505 = vsub.f32 0.0, %v3483
    %v3506 = vsub.f32 0.0, %v3488
    %v3507 = vmul.f32 %v3491, 1.442695
    %v3508 = vpow.pop %v3507
    %v3509 = vmul.f32 %v3492, 1.442695
    %v3510 = vpow.pop %v3509
    %v3511 = vmul.f32 %v3493, 1.442695
    %v3512 = vpow.pop %v3511
    %v3513 = vmul.f32 %v3494, 1.442695
    %v3514 = vpow.pop %v3513
    %v3515 = vmul.f32 %v3495, 1.442695
    %v3516 = vpow.pop %v3515
    %v3517 = vmul.f32 %v3496, 1.442695
    %v3518 = vpow.pop %v3517
    %v3519 = vmul.f32 %v3497, 1.442695
    %v3520 = vpow.pop %v3519
    %v3521 = vmul.f32 %v3498, 1.442695
    %v3522 = vpow.pop %v3521
    %v3523 = vmul.f32 %v3499, 1.442695
    %v3524 = vpow.pop %v3523
    %v3525 = vmul.f32 %v3500, 1.442695
    %v3526 = vpow.pop %v3525
    %v3527 = vmul.f32 %v3501, 1.442695
    %v3528 = vpow.pop %v3527
    %v3529 = vmul.f32 %v3502, 1.442695
    %v3530 = vpow.pop %v3529
    %v3531 = vmul.f32 %v3503, 1.442695
    %v3532 = vpow.pop %v3531
    %v3533 = vmul.f32 %v3504, 1.442695
    %v3534 = vpow.pop %v3533
    %v3535 = vmul.f32 %v3505, 1.442695
    %v3536 = vpow.pop %v3535
    %v3537 = vmul.f32 %v3506, 1.442695
    %v3538 = vpow.pop %v3537
    %v3539 = vadd.f32 %v3508, 1.0
    %v3540 = vadd.f32 %v3510, 1.0
    %v3541 = vadd.f32 %v3512, 1.0
    %v3542 = vadd.f32 %v3514, 1.0
    %v3543 = vadd.f32 %v3516, 1.0
    %v3544 = vadd.f32 %v3518, 1.0
    %v3545 = vadd.f32 %v3520, 1.0
    %v3546 = vadd.f32 %v3522, 1.0
    %v3547 = vadd.f32 %v3524, 1.0
    %v3548 = vadd.f32 %v3526, 1.0
    %v3549 = vadd.f32 %v3528, 1.0
    %v3550 = vadd.f32 %v3530, 1.0
    %v3551 = vadd.f32 %v3532, 1.0
    %v3552 = vadd.f32 %v3534, 1.0
    %v3553 = vadd.f32 %v3536, 1.0
    %v3554 = vadd.f32 %v3538, 1.0
    %v3555 = vrcp.pop %v3539
    %v3556 = vrcp.pop %v3540
    %v3557 = vrcp.pop %v3541
    %v3558 = vrcp.pop %v3542
    %v3559 = vrcp.pop %v3543
    %v3560 = vrcp.pop %v3544
    %v3561 = vrcp.pop %v3545
    %v3562 = vrcp.pop %v3546
    %v3563 = vrcp.pop %v3547
    %v3564 = vrcp.pop %v3548
    %v3565 = vrcp.pop %v3549
    %v3566 = vrcp.pop %v3550
    %v3567 = vrcp.pop %v3551
    %v3568 = vrcp.pop %v3552
    %v3569 = vrcp.pop %v3553
    %v3570 = vrcp.pop %v3554
    %v3571 = vmul.f32 %v3413, %v3555
    %v3572 = vmul.f32 %v3418, %v3556
    %v3573 = vmul.f32 %v3423, %v3557
    %v3574 = vmul.f32 %v3428, %v3558
    %v3575 = vmul.f32 %v3433, %v3559
    %v3576 = vmul.f32 %v3438, %v3560
    %v3577 = vmul.f32 %v3443, %v3561
    %v3578 = vmul.f32 %v3448, %v3562
    %v3579 = vmul.f32 %v3453, %v3563
    %v3580 = vmul.f32 %v3458, %v3564
    %v3581 = vmul.f32 %v3463, %v3565
    %v3582 = vmul.f32 %v3468, %v3566
    %v3583 = vmul.f32 %v3473, %v3567
    %v3584 = vmul.f32 %v3478, %v3568
    %v3585 = vmul.f32 %v3483, %v3569
    %v3586 = vmul.f32 %v3488, %v3570
    %v3587 = vadd.f32 %v3571, %v1374
    %v3588 = vadd.f32 %v3572, %v1379
    %v3589 = vadd.f32 %v3573, %v1384
    %v3590 = vadd.f32 %v3574, %v1389
    %v3591 = vadd.f32 %v3575, %v1394
    %v3592 = vadd.f32 %v3576, %v1399
    %v3593 = vadd.f32 %v3577, %v1404
    %v3594 = vadd.f32 %v3578, %v1409
    %v3595 = vadd.f32 %v3579, %v1414
    %v3596 = vadd.f32 %v3580, %v1419
    %v3597 = vadd.f32 %v3581, %v1424
    %v3598 = vadd.f32 %v3582, %v1429
    %v3599 = vadd.f32 %v3583, %v1434
    %v3600 = vadd.f32 %v3584, %v1439
    %v3601 = vadd.f32 %v3585, %v1444
    %v3602 = vadd.f32 %v3586, %v1449
    %v3603 = vlaneseq
    %v3604 = vshrl.u32 %v3603, 7
    %v3605 = vsub.s32 1, %v3604
    %v3606 = vrot.slane %v1155, %v3605
    %v3607 = vadd.f32 %v3587, %v3606
    %v3608 = vadd.f32 %v3588, %v3606
    %v3609 = vadd.f32 %v3589, %v3606
    %v3610 = vadd.f32 %v3590, %v3606
    %v3611 = vadd.f32 %v3591, %v3606
    %v3612 = vadd.f32 %v3592, %v3606
    %v3613 = vadd.f32 %v3593, %v3606
    %v3614 = vadd.f32 %v3594, %v3606
    %v3615 = vadd.f32 %v3595, %v3606
    %v3616 = vadd.f32 %v3596, %v3606
    %v3617 = vadd.f32 %v3597, %v3606
    %v3618 = vadd.f32 %v3598, %v3606
    %v3619 = vadd.f32 %v3599, %v3606
    %v3620 = vadd.f32 %v3600, %v3606
    %v3621 = vadd.f32 %v3601, %v3606
    %v3622 = vadd.f32 %v3602, %v3606
    %v3624 = vsel %vm375, %v3607, 0
    %v3627 = vsel %vm375, %v3608, 0
    %v3630 = vsel %vm375, %v3609, 0
    %v3633 = vsel %vm375, %v3610, 0
    %v3636 = vsel %vm375, %v3611, 0
    %v3639 = vsel %vm375, %v3612, 0
    %v3642 = vsel %vm375, %v3613, 0
    %v3645 = vsel %vm375, %v3614, 0
    %v3648 = vsel %vm375, %v3615, 0
    %v3651 = vsel %vm375, %v3616, 0
    %v3654 = vsel %vm375, %v3617, 0
    %v3657 = vsel %vm375, %v3618, 0
    %v3660 = vsel %vm375, %v3619, 0
    %v3663 = vsel %vm375, %v3620, 0
    %v3666 = vsel %vm375, %v3621, 0
    %v3669 = vsel %vm375, %v3622, 0
    %3671 = vmatprep.subr.mxu0 0.0
    %3672 = vmatpush1.msra.mxu0 %v2018
    %3673 = vmatprep.subr.mxu0 0.0
    %3674 = vmatpush1.msra.mxu0 %v2019
    %3675 = vmatprep.subr.mxu0 0.0
    %3676 = vmatpush1.msra.mxu0 %v2020
    %3677 = vmatprep.subr.mxu0 0.0
    %3678 = vmatpush1.msra.mxu0 %v2021
    %3679 = vmatprep.subr.mxu0 0.0
    %3680 = vmatpush1.msra.mxu0 %v2022
    %3681 = vmatprep.subr.mxu0 0.0
    %3682 = vmatpush1.msra.mxu0 %v2023
    %3683 = vmatprep.subr.mxu0 0.0
    %3684 = vmatpush1.msra.mxu0 %v2024
    %3685 = vmatprep.subr.mxu0 0.0
    %3686 = vmatpush1.msra.mxu0 %v2025
    %3687 = vmatprep.subr.mxu0 0.0
    %3688 = vmatpush1.msra.mxu0 0.0
    %3689 = vmatprep.subr.mxu0 0.0
    %3690 = vmatpush1.msra.mxu0 0.0
    %3691 = vmatprep.subr.mxu0 0.0
    %3692 = vmatpush1.msra.mxu0 0.0
    %3693 = vmatprep.subr.mxu0 0.0
    %3694 = vmatpush1.msra.mxu0 0.0
    %3695 = vmatprep.subr.mxu0 0.0
    %3696 = vmatpush1.msra.mxu0 0.0
    %3697 = vmatprep.subr.mxu0 0.0
    %3698 = vmatpush1.msra.mxu0 0.0
    %3699 = vmatprep.subr.mxu0 0.0
    %3700 = vmatpush1.msra.mxu0 0.0
    %3701 = vmatprep.subr.mxu0 0.0
    %3702 = vmatpush1.msra.mxu0 0.0
    %3703 = vmatprep.subr.mxu0 0.0
    %3704 = vmatpush1.msra.mxu0 0.0
    %3705 = vmatprep.subr.mxu0 0.0
    %3706 = vmatpush1.msra.mxu0 0.0
    %3707 = vmatprep.subr.mxu0 0.0
    %3708 = vmatpush1.msra.mxu0 0.0
    %3709 = vmatprep.subr.mxu0 0.0
    %3710 = vmatpush1.msra.mxu0 0.0
    %3711 = vmatprep.subr.mxu0 0.0
    %3712 = vmatpush1.msra.mxu0 0.0
    %3713 = vmatprep.subr.mxu0 0.0
    %3714 = vmatpush1.msra.mxu0 0.0
    %3715 = vmatprep.subr.mxu0 0.0
    %3716 = vmatpush1.msra.mxu0 0.0
    %3717 = vmatprep.subr.mxu0 0.0
    %3718 = vmatpush1.msra.mxu0 0.0
    %3719 = vmatprep.subr.mxu0 0.0
    %3720 = vmatpush1.msra.mxu0 0.0
    %3721 = vmatprep.subr.mxu0 0.0
    %3722 = vmatpush1.msra.mxu0 0.0
    %3723 = vmatprep.subr.mxu0 0.0
    %3724 = vmatpush1.msra.mxu0 0.0
    %3725 = vmatprep.subr.mxu0 0.0
    %3726 = vmatpush1.msra.mxu0 0.0
    %3727 = vmatprep.subr.mxu0 0.0
    %3728 = vmatpush1.msra.mxu0 0.0
    %3729 = vmatprep.subr.mxu0 0.0
    %3730 = vmatpush1.msra.mxu0 0.0
    %3731 = vmatprep.subr.mxu0 0.0
    %3732 = vmatpush1.msra.mxu0 0.0
    %3733 = vmatprep.subr.mxu0 0.0
    %3734 = vmatpush1.msra.mxu0 0.0
    %3735 = vmatprep.mubr.f32.mxu0 0.0
    %3736 = vmatmul.mubr.f32.gmra.mrb[0].mxu0 %v3624
    %v3737 = vpop.f32.mrb[0].mxu0
    %v3738 = vadd.f32 0.0, %v3737
    %v3739 = vpop.f32.mrb[0].mxu0
    %3740 = vmatprep.mubr.f32.mxu0 0.0
    %3741 = vmatmul.mubr.f32.gmra.mrb[0].mxu0 %v3627
    %v3742 = vpop.f32.mrb[0].mxu0
    %v3743 = vadd.f32 0.0, %v3742
    %v3744 = vpop.f32.mrb[0].mxu0
    %3745 = vmatprep.mubr.f32.mxu0 0.0
    %3746 = vmatmul.mubr.f32.gmra.mrb[0].mxu0 %v3630
    %v3747 = vpop.f32.mrb[0].mxu0
    %v3748 = vadd.f32 0.0, %v3747
    %v3749 = vpop.f32.mrb[0].mxu0
    %3750 = vmatprep.mubr.f32.mxu0 0.0
    %3751 = vmatmul.mubr.f32.gmra.mrb[0].mxu0 %v3633
    %v3752 = vpop.f32.mrb[0].mxu0
    %v3753 = vadd.f32 0.0, %v3752
    %v3754 = vpop.f32.mrb[0].mxu0
    %3755 = vmatprep.mubr.f32.mxu0 0.0
    %3756 = vmatmul.mubr.f32.gmra.mrb[0].mxu0 %v3636
    %v3757 = vpop.f32.mrb[0].mxu0
    %v3758 = vadd.f32 0.0, %v3757
    %v3759 = vpop.f32.mrb[0].mxu0
    %3760 = vmatprep.mubr.f32.mxu0 0.0
    %3761 = vmatmul.mubr.f32.gmra.mrb[0].mxu0 %v3639
    %v3762 = vpop.f32.mrb[0].mxu0
    %v3763 = vadd.f32 0.0, %v3762
    %v3764 = vpop.f32.mrb[0].mxu0
    %3765 = vmatprep.mubr.f32.mxu0 0.0
    %3766 = vmatmul.mubr.f32.gmra.mrb[0].mxu0 %v3642
    %v3767 = vpop.f32.mrb[0].mxu0
    %v3768 = vadd.f32 0.0, %v3767
    %v3769 = vpop.f32.mrb[0].mxu0
    %3770 = vmatprep.mubr.f32.mxu0 0.0
    %3771 = vmatmul.mubr.f32.gmra.mrb[0].mxu0 %v3645
    %v3772 = vpop.f32.mrb[0].mxu0
    %v3773 = vadd.f32 0.0, %v3772
    %v3774 = vpop.f32.mrb[0].mxu0
    %3775 = vmatprep.mubr.f32.mxu0 0.0
    %3776 = vmatmul.mubr.f32.gmra.mrb[0].mxu0 %v3648
    %v3777 = vpop.f32.mrb[0].mxu0
    %v3778 = vadd.f32 0.0, %v3777
    %v3779 = vpop.f32.mrb[0].mxu0
    %3780 = vmatprep.mubr.f32.mxu0 0.0
    %3781 = vmatmul.mubr.f32.gmra.mrb[0].mxu0 %v3651
    %v3782 = vpop.f32.mrb[0].mxu0
    %v3783 = vadd.f32 0.0, %v3782
    %v3784 = vpop.f32.mrb[0].mxu0
    %3785 = vmatprep.mubr.f32.mxu0 0.0
    %3786 = vmatmul.mubr.f32.gmra.mrb[0].mxu0 %v3654
    %v3787 = vpop.f32.mrb[0].mxu0
    %v3788 = vadd.f32 0.0, %v3787
    %v3789 = vpop.f32.mrb[0].mxu0
    %3790 = vmatprep.mubr.f32.mxu0 0.0
    %3791 = vmatmul.mubr.f32.gmra.mrb[0].mxu0 %v3657
    %v3792 = vpop.f32.mrb[0].mxu0
    %v3793 = vadd.f32 0.0, %v3792
    %v3794 = vpop.f32.mrb[0].mxu0
    %3795 = vmatprep.mubr.f32.mxu0 0.0
    %3796 = vmatmul.mubr.f32.gmra.mrb[0].mxu0 %v3660
    %v3797 = vpop.f32.mrb[0].mxu0
    %v3798 = vadd.f32 0.0, %v3797
    %v3799 = vpop.f32.mrb[0].mxu0
    %3800 = vmatprep.mubr.f32.mxu0 0.0
    %3801 = vmatmul.mubr.f32.gmra.mrb[0].mxu0 %v3663
    %v3802 = vpop.f32.mrb[0].mxu0
    %v3803 = vadd.f32 0.0, %v3802
    %v3804 = vpop.f32.mrb[0].mxu0
    %3805 = vmatprep.mubr.f32.mxu0 0.0
    %3806 = vmatmul.mubr.f32.gmra.mrb[0].mxu0 %v3666
    %v3807 = vpop.f32.mrb[0].mxu0
    %v3808 = vadd.f32 0.0, %v3807
    %v3809 = vpop.f32.mrb[0].mxu0
    %3810 = vmatprep.mubr.f32.mxu0 0.0
    %3811 = vmatmul.mubr.f32.gmra.mrb[0].mxu0 %v3669
    %v3812 = vpop.f32.mrb[0].mxu0
    %v3813 = vadd.f32 0.0, %v3812
    %v3814 = vpop.f32.mrb[0].mxu0
    %3815 = vdwg.mxu0
    %v3817 = vsel %vm375, %v3738, 0
    %v3820 = vsel %vm375, %v3743, 0
    %v3823 = vsel %vm375, %v3748, 0
    %v3826 = vsel %vm375, %v3753, 0
    %v3829 = vsel %vm375, %v3758, 0
    %v3832 = vsel %vm375, %v3763, 0
    %v3835 = vsel %vm375, %v3768, 0
    %v3838 = vsel %vm375, %v3773, 0
    %v3841 = vsel %vm375, %v3778, 0
    %v3844 = vsel %vm375, %v3783, 0
    %v3847 = vsel %vm375, %v3788, 0
    %v3850 = vsel %vm375, %v3793, 0
    %v3853 = vsel %vm375, %v3798, 0
    %v3856 = vsel %vm375, %v3803, 0
    %v3859 = vsel %vm375, %v3808, 0
    %v3862 = vsel %vm375, %v3813, 0
    %3864 = vmatprep.subr.mxu0 0.0
    %3865 = vmatpush1.xpose.msra.mxu0 %v2268
    %3866 = vmatprep.subr.mxu0 0.0
    %3867 = vmatpush1.xpose.msra.mxu0 %v2271
    %3868 = vmatprep.subr.mxu0 0.0
    %3869 = vmatpush1.xpose.msra.mxu0 0.0
    %3870 = vmatprep.subr.mxu0 0.0
    %3871 = vmatpush1.xpose.msra.mxu0 0.0
    %3872 = vmatprep.subr.mxu0 0.0
    %3873 = vmatpush1.xpose.msra.mxu0 0.0
    %3874 = vmatprep.subr.mxu0 0.0
    %3875 = vmatpush1.xpose.msra.mxu0 0.0
    %3876 = vmatprep.subr.mxu0 0.0
    %3877 = vmatpush1.xpose.msra.mxu0 0.0
    %3878 = vmatprep.subr.mxu0 0.0
    %3879 = vmatpush1.xpose.msra.mxu0 0.0
    %3880 = vmatprep.subr.mxu0 0.0
    %3881 = vmatpush1.xpose.msra.mxu0 0.0
    %3882 = vmatprep.subr.mxu0 0.0
    %3883 = vmatpush1.xpose.msra.mxu0 0.0
    %3884 = vmatprep.subr.mxu0 0.0
    %3885 = vmatpush1.xpose.msra.mxu0 0.0
    %3886 = vmatprep.subr.mxu0 0.0
    %3887 = vmatpush1.xpose.msra.mxu0 0.0
    %3888 = vmatprep.subr.mxu0 0.0
    %3889 = vmatpush1.xpose.msra.mxu0 0.0
    %3890 = vmatprep.subr.mxu0 0.0
    %3891 = vmatpush1.xpose.msra.mxu0 0.0
    %3892 = vmatprep.subr.mxu0 0.0
    %3893 = vmatpush1.xpose.msra.mxu0 0.0
    %3894 = vmatprep.subr.mxu0 0.0
    %3895 = vmatpush1.xpose.msra.mxu0 0.0
    %3896 = vmatprep.subr.mxu0 0.0
    %3897 = vmatpush1.xpose.msra.mxu0 0.0
    %3898 = vmatprep.subr.mxu0 0.0
    %3899 = vmatpush1.xpose.msra.mxu0 0.0
    %3900 = vmatprep.subr.mxu0 0.0
    %3901 = vmatpush1.xpose.msra.mxu0 0.0
    %3902 = vmatprep.subr.mxu0 0.0
    %3903 = vmatpush1.xpose.msra.mxu0 0.0
    %3904 = vmatprep.subr.mxu0 0.0
    %3905 = vmatpush1.xpose.msra.mxu0 0.0
    %3906 = vmatprep.subr.mxu0 0.0
    %3907 = vmatpush1.xpose.msra.mxu0 0.0
    %3908 = vmatprep.subr.mxu0 0.0
    %3909 = vmatpush1.xpose.msra.mxu0 0.0
    %3910 = vmatprep.subr.mxu0 0.0
    %3911 = vmatpush1.xpose.msra.mxu0 0.0
    %3912 = vmatprep.subr.mxu0 0.0
    %3913 = vmatpush1.xpose.msra.mxu0 0.0
    %3914 = vmatprep.subr.mxu0 0.0
    %3915 = vmatpush1.xpose.msra.mxu0 0.0
    %3916 = vmatprep.subr.mxu0 0.0
    %3917 = vmatpush1.xpose.msra.mxu0 0.0
    %3918 = vmatprep.subr.mxu0 0.0
    %3919 = vmatpush1.xpose.msra.mxu0 0.0
    %3920 = vmatprep.subr.mxu0 0.0
    %3921 = vmatpush1.xpose.msra.mxu0 0.0
    %3922 = vmatprep.subr.mxu0 0.0
    %3923 = vmatpush1.xpose.msra.mxu0 0.0
    %3924 = vmatprep.subr.mxu0 0.0
    %3925 = vmatpush1.xpose.msra.mxu0 0.0
    %3926 = vmatprep.subr.mxu0 0.0
    %3927 = vmatpush1.xpose.msra.mxu0 0.0
    %3928 = vmatprep.mubr.f32.mxu0 0.0
    %3929 = vmatmul.mubr.f32.gmra.mrb[0].mxu0 %v3817
    %v3930 = vpop.f32.mrb[0].mxu0
    %v3931 = vadd.f32 0.0, %v3930
    %v3932 = vpop.f32.mrb[0].mxu0
    %3933 = vmatprep.mubr.f32.mxu0 0.0
    %3934 = vmatmul.mubr.f32.gmra.mrb[0].mxu0 %v3820
    %v3935 = vpop.f32.mrb[0].mxu0
    %v3936 = vadd.f32 0.0, %v3935
    %v3937 = vpop.f32.mrb[0].mxu0
    %3938 = vmatprep.mubr.f32.mxu0 0.0
    %3939 = vmatmul.mubr.f32.gmra.mrb[0].mxu0 %v3823
    %v3940 = vpop.f32.mrb[0].mxu0
    %v3941 = vadd.f32 0.0, %v3940
    %v3942 = vpop.f32.mrb[0].mxu0
    %3943 = vmatprep.mubr.f32.mxu0 0.0
    %3944 = vmatmul.mubr.f32.gmra.mrb[0].mxu0 %v3826
    %v3945 = vpop.f32.mrb[0].mxu0
    %v3946 = vadd.f32 0.0, %v3945
    %v3947 = vpop.f32.mrb[0].mxu0
    %3948 = vmatprep.mubr.f32.mxu0 0.0
    %3949 = vmatmul.mubr.f32.gmra.mrb[0].mxu0 %v3829
    %v3950 = vpop.f32.mrb[0].mxu0
    %v3951 = vadd.f32 0.0, %v3950
    %v3952 = vpop.f32.mrb[0].mxu0
    %3953 = vmatprep.mubr.f32.mxu0 0.0
    %3954 = vmatmul.mubr.f32.gmra.mrb[0].mxu0 %v3832
    %v3955 = vpop.f32.mrb[0].mxu0
    %v3956 = vadd.f32 0.0, %v3955
    %v3957 = vpop.f32.mrb[0].mxu0
    %3958 = vmatprep.mubr.f32.mxu0 0.0
    %3959 = vmatmul.mubr.f32.gmra.mrb[0].mxu0 %v3835
    %v3960 = vpop.f32.mrb[0].mxu0
    %v3961 = vadd.f32 0.0, %v3960
    %v3962 = vpop.f32.mrb[0].mxu0
    %3963 = vmatprep.mubr.f32.mxu0 0.0
    %3964 = vmatmul.mubr.f32.gmra.mrb[0].mxu0 %v3838
    %v3965 = vpop.f32.mrb[0].mxu0
    %v3966 = vadd.f32 0.0, %v3965
    %v3967 = vpop.f32.mrb[0].mxu0
    %3968 = vmatprep.mubr.f32.mxu0 0.0
    %3969 = vmatmul.mubr.f32.gmra.mrb[0].mxu0 %v3841
    %v3970 = vpop.f32.mrb[0].mxu0
    %v3971 = vadd.f32 0.0, %v3970
    %v3972 = vpop.f32.mrb[0].mxu0
    %3973 = vmatprep.mubr.f32.mxu0 0.0
    %3974 = vmatmul.mubr.f32.gmra.mrb[0].mxu0 %v3844
    %v3975 = vpop.f32.mrb[0].mxu0
    %v3976 = vadd.f32 0.0, %v3975
    %v3977 = vpop.f32.mrb[0].mxu0
    %3978 = vmatprep.mubr.f32.mxu0 0.0
    %3979 = vmatmul.mubr.f32.gmra.mrb[0].mxu0 %v3847
    %v3980 = vpop.f32.mrb[0].mxu0
    %v3981 = vadd.f32 0.0, %v3980
    %v3982 = vpop.f32.mrb[0].mxu0
    %3983 = vmatprep.mubr.f32.mxu0 0.0
    %3984 = vmatmul.mubr.f32.gmra.mrb[0].mxu0 %v3850
    %v3985 = vpop.f32.mrb[0].mxu0
    %v3986 = vadd.f32 0.0, %v3985
    %v3987 = vpop.f32.mrb[0].mxu0
    %3988 = vmatprep.mubr.f32.mxu0 0.0
    %3989 = vmatmul.mubr.f32.gmra.mrb[0].mxu0 %v3853
    %v3990 = vpop.f32.mrb[0].mxu0
    %v3991 = vadd.f32 0.0, %v3990
    %v3992 = vpop.f32.mrb[0].mxu0
    %3993 = vmatprep.mubr.f32.mxu0 0.0
    %3994 = vmatmul.mubr.f32.gmra.mrb[0].mxu0 %v3856
    %v3995 = vpop.f32.mrb[0].mxu0
    %v3996 = vadd.f32 0.0, %v3995
    %v3997 = vpop.f32.mrb[0].mxu0
    %3998 = vmatprep.mubr.f32.mxu0 0.0
    %3999 = vmatmul.mubr.f32.gmra.mrb[0].mxu0 %v3859
    %v4000 = vpop.f32.mrb[0].mxu0
    %v4001 = vadd.f32 0.0, %v4000
    %v4002 = vpop.f32.mrb[0].mxu0
    %4003 = vmatprep.mubr.f32.mxu0 0.0
    %4004 = vmatmul.mubr.f32.gmra.mrb[0].mxu0 %v3862
    %v4005 = vpop.f32.mrb[0].mxu0
    %v4006 = vadd.f32 0.0, %v4005
    %v4007 = vpop.f32.mrb[0].mxu0
    %4008 = vdwg.mxu0
    %v4009 = vmul.f32 %v3931, 0.125
    %v4010 = vmul.f32 %v3936, 0.125
    %v4011 = vmul.f32 %v3941, 0.125
    %v4012 = vmul.f32 %v3946, 0.125
    %v4013 = vmul.f32 %v3951, 0.125
    %v4014 = vmul.f32 %v3956, 0.125
    %v4015 = vmul.f32 %v3961, 0.125
    %v4016 = vmul.f32 %v3966, 0.125
    %v4017 = vmul.f32 %v3971, 0.125
    %v4018 = vmul.f32 %v3976, 0.125
    %v4019 = vmul.f32 %v3981, 0.125
    %v4020 = vmul.f32 %v3986, 0.125
    %v4021 = vmul.f32 %v3991, 0.125
    %v4022 = vmul.f32 %v3996, 0.125
    %v4023 = vmul.f32 %v4001, 0.125
    %v4024 = vmul.f32 %v4006, 0.125
    %v4025 = vsel %vm1616, %v4009, -1e+30
    %v4026 = vsel %vm1617, %v4010, -1e+30
    %v4027 = vsel %vm1618, %v4011, -1e+30
    %v4028 = vsel %vm1619, %v4012, -1e+30
    %v4029 = vsel %vm1620, %v4013, -1e+30
    %v4030 = vsel %vm1621, %v4014, -1e+30
    %v4031 = vsel %vm1622, %v4015, -1e+30
    %v4032 = vsel %vm1623, %v4016, -1e+30
    %v4033 = vsel %vm1624, %v4017, -1e+30
    %v4034 = vsel %vm1625, %v4018, -1e+30
    %v4035 = vsel %vm1626, %v4019, -1e+30
    %v4036 = vsel %vm1627, %v4020, -1e+30
    %v4037 = vsel %vm1628, %v4021, -1e+30
    %v4038 = vsel %vm1629, %v4022, -1e+30
    %v4039 = vsel %vm1630, %v4023, -1e+30
    %v4040 = vsel %vm1631, %v4024, -1e+30
    %v4041 = vsel %vm566, %v4025, -inf
    %4042 = vmax.xlane.f32.xlu0 %v4041
    %v4043 = vpop.xlane.xlu0 %4042
    %v4044 = vsel %vm566, %v4026, -inf
    %4045 = vmax.xlane.f32.xlu0 %v4044
    %v4046 = vpop.xlane.xlu0 %4045
    %v4047 = vsel %vm566, %v4027, -inf
    %4048 = vmax.xlane.f32.xlu0 %v4047
    %v4049 = vpop.xlane.xlu0 %4048
    %v4050 = vsel %vm566, %v4028, -inf
    %4051 = vmax.xlane.f32.xlu0 %v4050
    %v4052 = vpop.xlane.xlu0 %4051
    %v4053 = vsel %vm566, %v4029, -inf
    %4054 = vmax.xlane.f32.xlu0 %v4053
    %v4055 = vpop.xlane.xlu0 %4054
    %v4056 = vsel %vm566, %v4030, -inf
    %4057 = vmax.xlane.f32.xlu0 %v4056
    %v4058 = vpop.xlane.xlu0 %4057
    %v4059 = vsel %vm566, %v4031, -inf
    %4060 = vmax.xlane.f32.xlu0 %v4059
    %v4061 = vpop.xlane.xlu0 %4060
    %v4062 = vsel %vm566, %v4032, -inf
    %4063 = vmax.xlane.f32.xlu0 %v4062
    %v4064 = vpop.xlane.xlu0 %4063
    %v4065 = vsel %vm566, %v4033, -inf
    %4066 = vmax.xlane.f32.xlu0 %v4065
    %v4067 = vpop.xlane.xlu0 %4066
    %v4068 = vsel %vm566, %v4034, -inf
    %4069 = vmax.xlane.f32.xlu0 %v4068
    %v4070 = vpop.xlane.xlu0 %4069
    %v4071 = vsel %vm566, %v4035, -inf
    %4072 = vmax.xlane.f32.xlu0 %v4071
    %v4073 = vpop.xlane.xlu0 %4072
    %v4074 = vsel %vm566, %v4036, -inf
    %4075 = vmax.xlane.f32.xlu0 %v4074
    %v4076 = vpop.xlane.xlu0 %4075
    %v4077 = vsel %vm566, %v4037, -inf
    %4078 = vmax.xlane.f32.xlu0 %v4077
    %v4079 = vpop.xlane.xlu0 %4078
    %v4080 = vsel %vm566, %v4038, -inf
    %4081 = vmax.xlane.f32.xlu0 %v4080
    %v4082 = vpop.xlane.xlu0 %4081
    %v4083 = vsel %vm566, %v4039, -inf
    %4084 = vmax.xlane.f32.xlu0 %v4083
    %v4085 = vpop.xlane.xlu0 %4084
    %v4086 = vsel %vm566, %v4040, -inf
    %4087 = vmax.xlane.f32.xlu0 %v4086
    %v4088 = vpop.xlane.xlu0 %4087
    %v4089 = vsub.f32 %v4025, %v4043
    %v4090 = vsub.f32 %v4026, %v4046
    %v4091 = vsub.f32 %v4027, %v4049
    %v4092 = vsub.f32 %v4028, %v4052
    %v4093 = vsub.f32 %v4029, %v4055
    %v4094 = vsub.f32 %v4030, %v4058
    %v4095 = vsub.f32 %v4031, %v4061
    %v4096 = vsub.f32 %v4032, %v4064
    %v4097 = vsub.f32 %v4033, %v4067
    %v4098 = vsub.f32 %v4034, %v4070
    %v4099 = vsub.f32 %v4035, %v4073
    %v4100 = vsub.f32 %v4036, %v4076
    %v4101 = vsub.f32 %v4037, %v4079
    %v4102 = vsub.f32 %v4038, %v4082
    %v4103 = vsub.f32 %v4039, %v4085
    %v4104 = vsub.f32 %v4040, %v4088
    %v4105 = vmul.f32 %v4089, 1.442695
    %v4106 = vpow.pop %v4105
    %v4107 = vmul.f32 %v4090, 1.442695
    %v4108 = vpow.pop %v4107
    %v4109 = vmul.f32 %v4091, 1.442695
    %v4110 = vpow.pop %v4109
    %v4111 = vmul.f32 %v4092, 1.442695
    %v4112 = vpow.pop %v4111
    %v4113 = vmul.f32 %v4093, 1.442695
    %v4114 = vpow.pop %v4113
    %v4115 = vmul.f32 %v4094, 1.442695
    %v4116 = vpow.pop %v4115
    %v4117 = vmul.f32 %v4095, 1.442695
    %v4118 = vpow.pop %v4117
    %v4119 = vmul.f32 %v4096, 1.442695
    %v4120 = vpow.pop %v4119
    %v4121 = vmul.f32 %v4097, 1.442695
    %v4122 = vpow.pop %v4121
    %v4123 = vmul.f32 %v4098, 1.442695
    %v4124 = vpow.pop %v4123
    %v4125 = vmul.f32 %v4099, 1.442695
    %v4126 = vpow.pop %v4125
    %v4127 = vmul.f32 %v4100, 1.442695
    %v4128 = vpow.pop %v4127
    %v4129 = vmul.f32 %v4101, 1.442695
    %v4130 = vpow.pop %v4129
    %v4131 = vmul.f32 %v4102, 1.442695
    %v4132 = vpow.pop %v4131
    %v4133 = vmul.f32 %v4103, 1.442695
    %v4134 = vpow.pop %v4133
    %v4135 = vmul.f32 %v4104, 1.442695
    %v4136 = vpow.pop %v4135
    %v4137 = vsel %vm566, %v4106, 0.0
    %4138 = vadd.xlane.f32.xlu0 %v4137
    %v4139 = vpop.xlane.xlu0 %4138
    %v4140 = vsel %vm566, %v4108, 0.0
    %4141 = vadd.xlane.f32.xlu0 %v4140
    %v4142 = vpop.xlane.xlu0 %4141
    %v4143 = vsel %vm566, %v4110, 0.0
    %4144 = vadd.xlane.f32.xlu0 %v4143
    %v4145 = vpop.xlane.xlu0 %4144
    %v4146 = vsel %vm566, %v4112, 0.0
    %4147 = vadd.xlane.f32.xlu0 %v4146
    %v4148 = vpop.xlane.xlu0 %4147
    %v4149 = vsel %vm566, %v4114, 0.0
    %4150 = vadd.xlane.f32.xlu0 %v4149
    %v4151 = vpop.xlane.xlu0 %4150
    %v4152 = vsel %vm566, %v4116, 0.0
    %4153 = vadd.xlane.f32.xlu0 %v4152
    %v4154 = vpop.xlane.xlu0 %4153
    %v4155 = vsel %vm566, %v4118, 0.0
    %4156 = vadd.xlane.f32.xlu0 %v4155
    %v4157 = vpop.xlane.xlu0 %4156
    %v4158 = vsel %vm566, %v4120, 0.0
    %4159 = vadd.xlane.f32.xlu0 %v4158
    %v4160 = vpop.xlane.xlu0 %4159
    %v4161 = vsel %vm566, %v4122, 0.0
    %4162 = vadd.xlane.f32.xlu0 %v4161
    %v4163 = vpop.xlane.xlu0 %4162
    %v4164 = vsel %vm566, %v4124, 0.0
    %4165 = vadd.xlane.f32.xlu0 %v4164
    %v4166 = vpop.xlane.xlu0 %4165
    %v4167 = vsel %vm566, %v4126, 0.0
    %4168 = vadd.xlane.f32.xlu0 %v4167
    %v4169 = vpop.xlane.xlu0 %4168
    %v4170 = vsel %vm566, %v4128, 0.0
    %4171 = vadd.xlane.f32.xlu0 %v4170
    %v4172 = vpop.xlane.xlu0 %4171
    %v4173 = vsel %vm566, %v4130, 0.0
    %4174 = vadd.xlane.f32.xlu0 %v4173
    %v4175 = vpop.xlane.xlu0 %4174
    %v4176 = vsel %vm566, %v4132, 0.0
    %4177 = vadd.xlane.f32.xlu0 %v4176
    %v4178 = vpop.xlane.xlu0 %4177
    %v4179 = vsel %vm566, %v4134, 0.0
    %4180 = vadd.xlane.f32.xlu0 %v4179
    %v4181 = vpop.xlane.xlu0 %4180
    %v4182 = vsel %vm566, %v4136, 0.0
    %4183 = vadd.xlane.f32.xlu0 %v4182
    %v4184 = vpop.xlane.xlu0 %4183
    %v4185 = vrcp.pop %v4139
    %v4186 = vrcp.pop %v4142
    %v4187 = vrcp.pop %v4145
    %v4188 = vrcp.pop %v4148
    %v4189 = vrcp.pop %v4151
    %v4190 = vrcp.pop %v4154
    %v4191 = vrcp.pop %v4157
    %v4192 = vrcp.pop %v4160
    %v4193 = vrcp.pop %v4163
    %v4194 = vrcp.pop %v4166
    %v4195 = vrcp.pop %v4169
    %v4196 = vrcp.pop %v4172
    %v4197 = vrcp.pop %v4175
    %v4198 = vrcp.pop %v4178
    %v4199 = vrcp.pop %v4181
    %v4200 = vrcp.pop %v4184
    %v4201 = vmul.f32 %v4106, %v4185
    %v4202 = vmul.f32 %v4108, %v4186
    %v4203 = vmul.f32 %v4110, %v4187
    %v4204 = vmul.f32 %v4112, %v4188
    %v4205 = vmul.f32 %v4114, %v4189
    %v4206 = vmul.f32 %v4116, %v4190
    %v4207 = vmul.f32 %v4118, %v4191
    %v4208 = vmul.f32 %v4120, %v4192
    %v4209 = vmul.f32 %v4122, %v4193
    %v4210 = vmul.f32 %v4124, %v4194
    %v4211 = vmul.f32 %v4126, %v4195
    %v4212 = vmul.f32 %v4128, %v4196
    %v4213 = vmul.f32 %v4130, %v4197
    %v4214 = vmul.f32 %v4132, %v4198
    %v4215 = vmul.f32 %v4134, %v4199
    %v4216 = vmul.f32 %v4136, %v4200
    %v4218 = vsel %vm566, %v4201, 0
    %v4221 = vsel %vm566, %v4202, 0
    %v4224 = vsel %vm566, %v4203, 0
    %v4227 = vsel %vm566, %v4204, 0
    %v4230 = vsel %vm566, %v4205, 0
    %v4233 = vsel %vm566, %v4206, 0
    %v4236 = vsel %vm566, %v4207, 0
    %v4239 = vsel %vm566, %v4208, 0
    %v4242 = vsel %vm566, %v4209, 0
    %v4245 = vsel %vm566, %v4210, 0
    %v4248 = vsel %vm566, %v4211, 0
    %v4251 = vsel %vm566, %v4212, 0
    %v4254 = vsel %vm566, %v4213, 0
    %v4257 = vsel %vm566, %v4214, 0
    %v4260 = vsel %vm566, %v4215, 0
    %v4263 = vsel %vm566, %v4216, 0
    %4265 = vmatprep.subr.mxu0 0.0
    %4266 = vmatpush1.msra.mxu0 %v2627
    %4267 = vmatprep.subr.mxu0 0.0
    %4268 = vmatpush1.msra.mxu0 %v2629
    %4269 = vmatprep.subr.mxu0 0.0
    %4270 = vmatpush1.msra.mxu0 0.0
    %4271 = vmatprep.subr.mxu0 0.0
    %4272 = vmatpush1.msra.mxu0 0.0
    %4273 = vmatprep.subr.mxu0 0.0
    %4274 = vmatpush1.msra.mxu0 0.0
    %4275 = vmatprep.subr.mxu0 0.0
    %4276 = vmatpush1.msra.mxu0 0.0
    %4277 = vmatprep.subr.mxu0 0.0
    %4278 = vmatpush1.msra.mxu0 0.0
    %4279 = vmatprep.subr.mxu0 0.0
    %4280 = vmatpush1.msra.mxu0 0.0
    %4281 = vmatprep.subr.mxu0 0.0
    %4282 = vmatpush1.msra.mxu0 0.0
    %4283 = vmatprep.subr.mxu0 0.0
    %4284 = vmatpush1.msra.mxu0 0.0
    %4285 = vmatprep.subr.mxu0 0.0
    %4286 = vmatpush1.msra.mxu0 0.0
    %4287 = vmatprep.subr.mxu0 0.0
    %4288 = vmatpush1.msra.mxu0 0.0
    %4289 = vmatprep.subr.mxu0 0.0
    %4290 = vmatpush1.msra.mxu0 0.0
    %4291 = vmatprep.subr.mxu0 0.0
    %4292 = vmatpush1.msra.mxu0 0.0
    %4293 = vmatprep.subr.mxu0 0.0
    %4294 = vmatpush1.msra.mxu0 0.0
    %4295 = vmatprep.subr.mxu0 0.0
    %4296 = vmatpush1.msra.mxu0 0.0
    %4297 = vmatprep.subr.mxu0 0.0
    %4298 = vmatpush1.msra.mxu0 0.0
    %4299 = vmatprep.subr.mxu0 0.0
    %4300 = vmatpush1.msra.mxu0 0.0
    %4301 = vmatprep.subr.mxu0 0.0
    %4302 = vmatpush1.msra.mxu0 0.0
    %4303 = vmatprep.subr.mxu0 0.0
    %4304 = vmatpush1.msra.mxu0 0.0
    %4305 = vmatprep.subr.mxu0 0.0
    %4306 = vmatpush1.msra.mxu0 0.0
    %4307 = vmatprep.subr.mxu0 0.0
    %4308 = vmatpush1.msra.mxu0 0.0
    %4309 = vmatprep.subr.mxu0 0.0
    %4310 = vmatpush1.msra.mxu0 0.0
    %4311 = vmatprep.subr.mxu0 0.0
    %4312 = vmatpush1.msra.mxu0 0.0
    %4313 = vmatprep.subr.mxu0 0.0
    %4314 = vmatpush1.msra.mxu0 0.0
    %4315 = vmatprep.subr.mxu0 0.0
    %4316 = vmatpush1.msra.mxu0 0.0
    %4317 = vmatprep.subr.mxu0 0.0
    %4318 = vmatpush1.msra.mxu0 0.0
    %4319 = vmatprep.subr.mxu0 0.0
    %4320 = vmatpush1.msra.mxu0 0.0
    %4321 = vmatprep.subr.mxu0 0.0
    %4322 = vmatpush1.msra.mxu0 0.0
    %4323 = vmatprep.subr.mxu0 0.0
    %4324 = vmatpush1.msra.mxu0 0.0
    %4325 = vmatprep.subr.mxu0 0.0
    %4326 = vmatpush1.msra.mxu0 0.0
    %4327 = vmatprep.subr.mxu0 0.0
    %4328 = vmatpush1.msra.mxu0 0.0
    %4329 = vmatprep.mubr.f32.mxu0 0.0
    %4330 = vmatmul.mubr.f32.gmra.mrb[0].mxu0 %v4218
    %v4331 = vpop.f32.mrb[0].mxu0
    %v4332 = vadd.f32 0.0, %v4331
    %v4333 = vpop.f32.mrb[0].mxu0
    %4334 = vmatprep.mubr.f32.mxu0 0.0
    %4335 = vmatmul.mubr.f32.gmra.mrb[0].mxu0 %v4221
    %v4336 = vpop.f32.mrb[0].mxu0
    %v4337 = vadd.f32 0.0, %v4336
    %v4338 = vpop.f32.mrb[0].mxu0
    %4339 = vmatprep.mubr.f32.mxu0 0.0
    %4340 = vmatmul.mubr.f32.gmra.mrb[0].mxu0 %v4224
    %v4341 = vpop.f32.mrb[0].mxu0
    %v4342 = vadd.f32 0.0, %v4341
    %v4343 = vpop.f32.mrb[0].mxu0
    %4344 = vmatprep.mubr.f32.mxu0 0.0
    %4345 = vmatmul.mubr.f32.gmra.mrb[0].mxu0 %v4227
    %v4346 = vpop.f32.mrb[0].mxu0
    %v4347 = vadd.f32 0.0, %v4346
    %v4348 = vpop.f32.mrb[0].mxu0
    %4349 = vmatprep.mubr.f32.mxu0 0.0
    %4350 = vmatmul.mubr.f32.gmra.mrb[0].mxu0 %v4230
    %v4351 = vpop.f32.mrb[0].mxu0
    %v4352 = vadd.f32 0.0, %v4351
    %v4353 = vpop.f32.mrb[0].mxu0
    %4354 = vmatprep.mubr.f32.mxu0 0.0
    %4355 = vmatmul.mubr.f32.gmra.mrb[0].mxu0 %v4233
    %v4356 = vpop.f32.mrb[0].mxu0
    %v4357 = vadd.f32 0.0, %v4356
    %v4358 = vpop.f32.mrb[0].mxu0
    %4359 = vmatprep.mubr.f32.mxu0 0.0
    %4360 = vmatmul.mubr.f32.gmra.mrb[0].mxu0 %v4236
    %v4361 = vpop.f32.mrb[0].mxu0
    %v4362 = vadd.f32 0.0, %v4361
    %v4363 = vpop.f32.mrb[0].mxu0
    %4364 = vmatprep.mubr.f32.mxu0 0.0
    %4365 = vmatmul.mubr.f32.gmra.mrb[0].mxu0 %v4239
    %v4366 = vpop.f32.mrb[0].mxu0
    %v4367 = vadd.f32 0.0, %v4366
    %v4368 = vpop.f32.mrb[0].mxu0
    %4369 = vmatprep.mubr.f32.mxu0 0.0
    %4370 = vmatmul.mubr.f32.gmra.mrb[0].mxu0 %v4242
    %v4371 = vpop.f32.mrb[0].mxu0
    %v4372 = vadd.f32 0.0, %v4371
    %v4373 = vpop.f32.mrb[0].mxu0
    %4374 = vmatprep.mubr.f32.mxu0 0.0
    %4375 = vmatmul.mubr.f32.gmra.mrb[0].mxu0 %v4245
    %v4376 = vpop.f32.mrb[0].mxu0
    %v4377 = vadd.f32 0.0, %v4376
    %v4378 = vpop.f32.mrb[0].mxu0
    %4379 = vmatprep.mubr.f32.mxu0 0.0
    %4380 = vmatmul.mubr.f32.gmra.mrb[0].mxu0 %v4248
    %v4381 = vpop.f32.mrb[0].mxu0
    %v4382 = vadd.f32 0.0, %v4381
    %v4383 = vpop.f32.mrb[0].mxu0
    %4384 = vmatprep.mubr.f32.mxu0 0.0
    %4385 = vmatmul.mubr.f32.gmra.mrb[0].mxu0 %v4251
    %v4386 = vpop.f32.mrb[0].mxu0
    %v4387 = vadd.f32 0.0, %v4386
    %v4388 = vpop.f32.mrb[0].mxu0
    %4389 = vmatprep.mubr.f32.mxu0 0.0
    %4390 = vmatmul.mubr.f32.gmra.mrb[0].mxu0 %v4254
    %v4391 = vpop.f32.mrb[0].mxu0
    %v4392 = vadd.f32 0.0, %v4391
    %v4393 = vpop.f32.mrb[0].mxu0
    %4394 = vmatprep.mubr.f32.mxu0 0.0
    %4395 = vmatmul.mubr.f32.gmra.mrb[0].mxu0 %v4257
    %v4396 = vpop.f32.mrb[0].mxu0
    %v4397 = vadd.f32 0.0, %v4396
    %v4398 = vpop.f32.mrb[0].mxu0
    %4399 = vmatprep.mubr.f32.mxu0 0.0
    %4400 = vmatmul.mubr.f32.gmra.mrb[0].mxu0 %v4260
    %v4401 = vpop.f32.mrb[0].mxu0
    %v4402 = vadd.f32 0.0, %v4401
    %v4403 = vpop.f32.mrb[0].mxu0
    %4404 = vmatprep.mubr.f32.mxu0 0.0
    %4405 = vmatmul.mubr.f32.gmra.mrb[0].mxu0 %v4263
    %v4406 = vpop.f32.mrb[0].mxu0
    %v4407 = vadd.f32 0.0, %v4406
    %v4408 = vpop.f32.mrb[0].mxu0
    %4409 = vdwg.mxu0
    %v4411 = vsel %vm375, %v4332, 0
    %v4414 = vsel %vm375, %v4337, 0
    %v4417 = vsel %vm375, %v4342, 0
    %v4420 = vsel %vm375, %v4347, 0
    %v4423 = vsel %vm375, %v4352, 0
    %v4426 = vsel %vm375, %v4357, 0
    %v4429 = vsel %vm375, %v4362, 0
    %v4432 = vsel %vm375, %v4367, 0
    %v4435 = vsel %vm375, %v4372, 0
    %v4438 = vsel %vm375, %v4377, 0
    %v4441 = vsel %vm375, %v4382, 0
    %v4444 = vsel %vm375, %v4387, 0
    %v4447 = vsel %vm375, %v4392, 0
    %v4450 = vsel %vm375, %v4397, 0
    %v4453 = vsel %vm375, %v4402, 0
    %v4456 = vsel %vm375, %v4407, 0
    %4458 = vmatprep.subr.mxu0 0.0
    %4459 = vmatpush1.msra.mxu0 %v2825
    %4460 = vmatprep.subr.mxu0 0.0
    %4461 = vmatpush1.msra.mxu0 %v2826
    %4462 = vmatprep.subr.mxu0 0.0
    %4463 = vmatpush1.msra.mxu0 %v2827
    %4464 = vmatprep.subr.mxu0 0.0
    %4465 = vmatpush1.msra.mxu0 %v2828
    %4466 = vmatprep.subr.mxu0 0.0
    %4467 = vmatpush1.msra.mxu0 %v2829
    %4468 = vmatprep.subr.mxu0 0.0
    %4469 = vmatpush1.msra.mxu0 %v2830
    %4470 = vmatprep.subr.mxu0 0.0
    %4471 = vmatpush1.msra.mxu0 %v2831
    %4472 = vmatprep.subr.mxu0 0.0
    %4473 = vmatpush1.msra.mxu0 %v2832
    %4474 = vmatprep.subr.mxu0 0.0
    %4475 = vmatpush1.msra.mxu0 0.0
    %4476 = vmatprep.subr.mxu0 0.0
    %4477 = vmatpush1.msra.mxu0 0.0
    %4478 = vmatprep.subr.mxu0 0.0
    %4479 = vmatpush1.msra.mxu0 0.0
    %4480 = vmatprep.subr.mxu0 0.0
    %4481 = vmatpush1.msra.mxu0 0.0
    %4482 = vmatprep.subr.mxu0 0.0
    %4483 = vmatpush1.msra.mxu0 0.0
    %4484 = vmatprep.subr.mxu0 0.0
    %4485 = vmatpush1.msra.mxu0 0.0
    %4486 = vmatprep.subr.mxu0 0.0
    %4487 = vmatpush1.msra.mxu0 0.0
    %4488 = vmatprep.subr.mxu0 0.0
    %4489 = vmatpush1.msra.mxu0 0.0
    %4490 = vmatprep.subr.mxu0 0.0
    %4491 = vmatpush1.msra.mxu0 0.0
    %4492 = vmatprep.subr.mxu0 0.0
    %4493 = vmatpush1.msra.mxu0 0.0
    %4494 = vmatprep.subr.mxu0 0.0
    %4495 = vmatpush1.msra.mxu0 0.0
    %4496 = vmatprep.subr.mxu0 0.0
    %4497 = vmatpush1.msra.mxu0 0.0
    %4498 = vmatprep.subr.mxu0 0.0
    %4499 = vmatpush1.msra.mxu0 0.0
    %4500 = vmatprep.subr.mxu0 0.0
    %4501 = vmatpush1.msra.mxu0 0.0
    %4502 = vmatprep.subr.mxu0 0.0
    %4503 = vmatpush1.msra.mxu0 0.0
    %4504 = vmatprep.subr.mxu0 0.0
    %4505 = vmatpush1.msra.mxu0 0.0
    %4506 = vmatprep.subr.mxu0 0.0
    %4507 = vmatpush1.msra.mxu0 0.0
    %4508 = vmatprep.subr.mxu0 0.0
    %4509 = vmatpush1.msra.mxu0 0.0
    %4510 = vmatprep.subr.mxu0 0.0
    %4511 = vmatpush1.msra.mxu0 0.0
    %4512 = vmatprep.subr.mxu0 0.0
    %4513 = vmatpush1.msra.mxu0 0.0
    %4514 = vmatprep.subr.mxu0 0.0
    %4515 = vmatpush1.msra.mxu0 0.0
    %4516 = vmatprep.subr.mxu0 0.0
    %4517 = vmatpush1.msra.mxu0 0.0
    %4518 = vmatprep.subr.mxu0 0.0
    %4519 = vmatpush1.msra.mxu0 0.0
    %4520 = vmatprep.subr.mxu0 0.0
    %4521 = vmatpush1.msra.mxu0 0.0
    %4522 = vmatprep.mubr.f32.mxu0 0.0
    %4523 = vmatmul.mubr.f32.gmra.mrb[0].mxu0 %v4411
    %v4524 = vpop.f32.mrb[0].mxu0
    %v4525 = vadd.f32 0.0, %v4524
    %v4526 = vpop.f32.mrb[0].mxu0
    %4527 = vmatprep.mubr.f32.mxu0 0.0
    %4528 = vmatmul.mubr.f32.gmra.mrb[0].mxu0 %v4414
    %v4529 = vpop.f32.mrb[0].mxu0
    %v4530 = vadd.f32 0.0, %v4529
    %v4531 = vpop.f32.mrb[0].mxu0
    %4532 = vmatprep.mubr.f32.mxu0 0.0
    %4533 = vmatmul.mubr.f32.gmra.mrb[0].mxu0 %v4417
    %v4534 = vpop.f32.mrb[0].mxu0
    %v4535 = vadd.f32 0.0, %v4534
    %v4536 = vpop.f32.mrb[0].mxu0
    %4537 = vmatprep.mubr.f32.mxu0 0.0
    %4538 = vmatmul.mubr.f32.gmra.mrb[0].mxu0 %v4420
    %v4539 = vpop.f32.mrb[0].mxu0
    %v4540 = vadd.f32 0.0, %v4539
    %v4541 = vpop.f32.mrb[0].mxu0
    %4542 = vmatprep.mubr.f32.mxu0 0.0
    %4543 = vmatmul.mubr.f32.gmra.mrb[0].mxu0 %v4423
    %v4544 = vpop.f32.mrb[0].mxu0
    %v4545 = vadd.f32 0.0, %v4544
    %v4546 = vpop.f32.mrb[0].mxu0
    %4547 = vmatprep.mubr.f32.mxu0 0.0
    %4548 = vmatmul.mubr.f32.gmra.mrb[0].mxu0 %v4426
    %v4549 = vpop.f32.mrb[0].mxu0
    %v4550 = vadd.f32 0.0, %v4549
    %v4551 = vpop.f32.mrb[0].mxu0
    %4552 = vmatprep.mubr.f32.mxu0 0.0
    %4553 = vmatmul.mubr.f32.gmra.mrb[0].mxu0 %v4429
    %v4554 = vpop.f32.mrb[0].mxu0
    %v4555 = vadd.f32 0.0, %v4554
    %v4556 = vpop.f32.mrb[0].mxu0
    %4557 = vmatprep.mubr.f32.mxu0 0.0
    %4558 = vmatmul.mubr.f32.gmra.mrb[0].mxu0 %v4432
    %v4559 = vpop.f32.mrb[0].mxu0
    %v4560 = vadd.f32 0.0, %v4559
    %v4561 = vpop.f32.mrb[0].mxu0
    %4562 = vmatprep.mubr.f32.mxu0 0.0
    %4563 = vmatmul.mubr.f32.gmra.mrb[0].mxu0 %v4435
    %v4564 = vpop.f32.mrb[0].mxu0
    %v4565 = vadd.f32 0.0, %v4564
    %v4566 = vpop.f32.mrb[0].mxu0
    %4567 = vmatprep.mubr.f32.mxu0 0.0
    %4568 = vmatmul.mubr.f32.gmra.mrb[0].mxu0 %v4438
    %v4569 = vpop.f32.mrb[0].mxu0
    %v4570 = vadd.f32 0.0, %v4569
    %v4571 = vpop.f32.mrb[0].mxu0
    %4572 = vmatprep.mubr.f32.mxu0 0.0
    %4573 = vmatmul.mubr.f32.gmra.mrb[0].mxu0 %v4441
    %v4574 = vpop.f32.mrb[0].mxu0
    %v4575 = vadd.f32 0.0, %v4574
    %v4576 = vpop.f32.mrb[0].mxu0
    %4577 = vmatprep.mubr.f32.mxu0 0.0
    %4578 = vmatmul.mubr.f32.gmra.mrb[0].mxu0 %v4444
    %v4579 = vpop.f32.mrb[0].mxu0
    %v4580 = vadd.f32 0.0, %v4579
    %v4581 = vpop.f32.mrb[0].mxu0
    %4582 = vmatprep.mubr.f32.mxu0 0.0
    %4583 = vmatmul.mubr.f32.gmra.mrb[0].mxu0 %v4447
    %v4584 = vpop.f32.mrb[0].mxu0
    %v4585 = vadd.f32 0.0, %v4584
    %v4586 = vpop.f32.mrb[0].mxu0
    %4587 = vmatprep.mubr.f32.mxu0 0.0
    %4588 = vmatmul.mubr.f32.gmra.mrb[0].mxu0 %v4450
    %v4589 = vpop.f32.mrb[0].mxu0
    %v4590 = vadd.f32 0.0, %v4589
    %v4591 = vpop.f32.mrb[0].mxu0
    %4592 = vmatprep.mubr.f32.mxu0 0.0
    %4593 = vmatmul.mubr.f32.gmra.mrb[0].mxu0 %v4453
    %v4594 = vpop.f32.mrb[0].mxu0
    %v4595 = vadd.f32 0.0, %v4594
    %v4596 = vpop.f32.mrb[0].mxu0
    %4597 = vmatprep.mubr.f32.mxu0 0.0
    %4598 = vmatmul.mubr.f32.gmra.mrb[0].mxu0 %v4456
    %v4599 = vpop.f32.mrb[0].mxu0
    %v4600 = vadd.f32 0.0, %v4599
    %v4601 = vpop.f32.mrb[0].mxu0
    %4602 = vdwg.mxu0
    %v4603 = vadd.f32 %v3607, %v4525
    %v4604 = vadd.f32 %v3608, %v4530
    %v4605 = vadd.f32 %v3609, %v4535
    %v4606 = vadd.f32 %v3610, %v4540
    %v4607 = vadd.f32 %v3611, %v4545
    %v4608 = vadd.f32 %v3612, %v4550
    %v4609 = vadd.f32 %v3613, %v4555
    %v4610 = vadd.f32 %v3614, %v4560
    %v4611 = vadd.f32 %v3615, %v4565
    %v4612 = vadd.f32 %v3616, %v4570
    %v4613 = vadd.f32 %v3617, %v4575
    %v4614 = vadd.f32 %v3618, %v4580
    %v4615 = vadd.f32 %v3619, %v4585
    %v4616 = vadd.f32 %v3620, %v4590
    %v4617 = vadd.f32 %v3621, %v4595
    %v4618 = vadd.f32 %v3622, %v4600
    %v4620 = vsel %vm375, %v4603, 0
    %v4623 = vsel %vm375, %v4604, 0
    %v4626 = vsel %vm375, %v4605, 0
    %v4629 = vsel %vm375, %v4606, 0
    %v4632 = vsel %vm375, %v4607, 0
    %v4635 = vsel %vm375, %v4608, 0
    %v4638 = vsel %vm375, %v4609, 0
    %v4641 = vsel %vm375, %v4610, 0
    %v4644 = vsel %vm375, %v4611, 0
    %v4647 = vsel %vm375, %v4612, 0
    %v4650 = vsel %vm375, %v4613, 0
    %v4653 = vsel %vm375, %v4614, 0
    %v4656 = vsel %vm375, %v4615, 0
    %v4659 = vsel %vm375, %v4616, 0
    %v4662 = vsel %vm375, %v4617, 0
    %v4665 = vsel %vm375, %v4618, 0
    %4667 = vmatprep.subr.mxu0 0.0
    %4668 = vmatpush1.msra.mxu0 %v3042
    %4669 = vmatprep.subr.mxu0 0.0
    %4670 = vmatpush1.msra.mxu0 %v3043
    %4671 = vmatprep.subr.mxu0 0.0
    %4672 = vmatpush1.msra.mxu0 %v3044
    %4673 = vmatprep.subr.mxu0 0.0
    %4674 = vmatpush1.msra.mxu0 %v3045
    %4675 = vmatprep.subr.mxu0 0.0
    %4676 = vmatpush1.msra.mxu0 %v3046
    %4677 = vmatprep.subr.mxu0 0.0
    %4678 = vmatpush1.msra.mxu0 %v3047
    %4679 = vmatprep.subr.mxu0 0.0
    %4680 = vmatpush1.msra.mxu0 %v3048
    %4681 = vmatprep.subr.mxu0 0.0
    %4682 = vmatpush1.msra.mxu0 %v3049
    %4683 = vmatprep.subr.mxu0 0.0
    %4684 = vmatpush1.msra.mxu0 0.0
    %4685 = vmatprep.subr.mxu0 0.0
    %4686 = vmatpush1.msra.mxu0 0.0
    %4687 = vmatprep.subr.mxu0 0.0
    %4688 = vmatpush1.msra.mxu0 0.0
    %4689 = vmatprep.subr.mxu0 0.0
    %4690 = vmatpush1.msra.mxu0 0.0
    %4691 = vmatprep.subr.mxu0 0.0
    %4692 = vmatpush1.msra.mxu0 0.0
    %4693 = vmatprep.subr.mxu0 0.0
    %4694 = vmatpush1.msra.mxu0 0.0
    %4695 = vmatprep.subr.mxu0 0.0
    %4696 = vmatpush1.msra.mxu0 0.0
    %4697 = vmatprep.subr.mxu0 0.0
    %4698 = vmatpush1.msra.mxu0 0.0
    %4699 = vmatprep.subr.mxu0 0.0
    %4700 = vmatpush1.msra.mxu0 0.0
    %4701 = vmatprep.subr.mxu0 0.0
    %4702 = vmatpush1.msra.mxu0 0.0
    %4703 = vmatprep.subr.mxu0 0.0
    %4704 = vmatpush1.msra.mxu0 0.0
    %4705 = vmatprep.subr.mxu0 0.0
    %4706 = vmatpush1.msra.mxu0 0.0
    %4707 = vmatprep.subr.mxu0 0.0
    %4708 = vmatpush1.msra.mxu0 0.0
    %4709 = vmatprep.subr.mxu0 0.0
    %4710 = vmatpush1.msra.mxu0 0.0
    %4711 = vmatprep.subr.mxu0 0.0
    %4712 = vmatpush1.msra.mxu0 0.0
    %4713 = vmatprep.subr.mxu0 0.0
    %4714 = vmatpush1.msra.mxu0 0.0
    %4715 = vmatprep.subr.mxu0 0.0
    %4716 = vmatpush1.msra.mxu0 0.0
    %4717 = vmatprep.subr.mxu0 0.0
    %4718 = vmatpush1.msra.mxu0 0.0
    %4719 = vmatprep.subr.mxu0 0.0
    %4720 = vmatpush1.msra.mxu0 0.0
    %4721 = vmatprep.subr.mxu0 0.0
    %4722 = vmatpush1.msra.mxu0 0.0
    %4723 = vmatprep.subr.mxu0 0.0
    %4724 = vmatpush1.msra.mxu0 0.0
    %4725 = vmatprep.subr.mxu0 0.0
    %4726 = vmatpush1.msra.mxu0 0.0
    %4727 = vmatprep.subr.mxu0 0.0
    %4728 = vmatpush1.msra.mxu0 0.0
    %4729 = vmatprep.subr.mxu0 0.0
    %4730 = vmatpush1.msra.mxu0 0.0
    %4731 = vmatprep.mubr.f32.mxu0 0.0
    %4732 = vmatmul.mubr.f32.gmra.mrb[0].mxu0 %v4620
    %v4733 = vpop.f32.mrb[0].mxu0
    %v4734 = vadd.f32 %v3055, %v4733
    %v4735 = vpop.f32.mrb[0].mxu0
    %4736 = vmatprep.mubr.f32.mxu0 0.0
    %4737 = vmatmul.mubr.f32.gmra.mrb[0].mxu0 %v4623
    %v4738 = vpop.f32.mrb[0].mxu0
    %v4739 = vadd.f32 %v3055, %v4738
    %v4740 = vpop.f32.mrb[0].mxu0
    %4741 = vmatprep.mubr.f32.mxu0 0.0
    %4742 = vmatmul.mubr.f32.gmra.mrb[0].mxu0 %v4626
    %v4743 = vpop.f32.mrb[0].mxu0
    %v4744 = vadd.f32 %v3055, %v4743
    %v4745 = vpop.f32.mrb[0].mxu0
    %4746 = vmatprep.mubr.f32.mxu0 0.0
    %4747 = vmatmul.mubr.f32.gmra.mrb[0].mxu0 %v4629
    %v4748 = vpop.f32.mrb[0].mxu0
    %v4749 = vadd.f32 %v3055, %v4748
    %v4750 = vpop.f32.mrb[0].mxu0
    %4751 = vmatprep.mubr.f32.mxu0 0.0
    %4752 = vmatmul.mubr.f32.gmra.mrb[0].mxu0 %v4632
    %v4753 = vpop.f32.mrb[0].mxu0
    %v4754 = vadd.f32 %v3055, %v4753
    %v4755 = vpop.f32.mrb[0].mxu0
    %4756 = vmatprep.mubr.f32.mxu0 0.0
    %4757 = vmatmul.mubr.f32.gmra.mrb[0].mxu0 %v4635
    %v4758 = vpop.f32.mrb[0].mxu0
    %v4759 = vadd.f32 %v3055, %v4758
    %v4760 = vpop.f32.mrb[0].mxu0
    %4761 = vmatprep.mubr.f32.mxu0 0.0
    %4762 = vmatmul.mubr.f32.gmra.mrb[0].mxu0 %v4638
    %v4763 = vpop.f32.mrb[0].mxu0
    %v4764 = vadd.f32 %v3055, %v4763
    %v4765 = vpop.f32.mrb[0].mxu0
    %4766 = vmatprep.mubr.f32.mxu0 0.0
    %4767 = vmatmul.mubr.f32.gmra.mrb[0].mxu0 %v4641
    %v4768 = vpop.f32.mrb[0].mxu0
    %v4769 = vadd.f32 %v3055, %v4768
    %v4770 = vpop.f32.mrb[0].mxu0
    %4771 = vmatprep.mubr.f32.mxu0 0.0
    %4772 = vmatmul.mubr.f32.gmra.mrb[0].mxu0 %v4644
    %v4773 = vpop.f32.mrb[0].mxu0
    %v4774 = vadd.f32 %v3055, %v4773
    %v4775 = vpop.f32.mrb[0].mxu0
    %4776 = vmatprep.mubr.f32.mxu0 0.0
    %4777 = vmatmul.mubr.f32.gmra.mrb[0].mxu0 %v4647
    %v4778 = vpop.f32.mrb[0].mxu0
    %v4779 = vadd.f32 %v3055, %v4778
    %v4780 = vpop.f32.mrb[0].mxu0
    %4781 = vmatprep.mubr.f32.mxu0 0.0
    %4782 = vmatmul.mubr.f32.gmra.mrb[0].mxu0 %v4650
    %v4783 = vpop.f32.mrb[0].mxu0
    %v4784 = vadd.f32 %v3055, %v4783
    %v4785 = vpop.f32.mrb[0].mxu0
    %4786 = vmatprep.mubr.f32.mxu0 0.0
    %4787 = vmatmul.mubr.f32.gmra.mrb[0].mxu0 %v4653
    %v4788 = vpop.f32.mrb[0].mxu0
    %v4789 = vadd.f32 %v3055, %v4788
    %v4790 = vpop.f32.mrb[0].mxu0
    %4791 = vmatprep.mubr.f32.mxu0 0.0
    %4792 = vmatmul.mubr.f32.gmra.mrb[0].mxu0 %v4656
    %v4793 = vpop.f32.mrb[0].mxu0
    %v4794 = vadd.f32 %v3055, %v4793
    %v4795 = vpop.f32.mrb[0].mxu0
    %4796 = vmatprep.mubr.f32.mxu0 0.0
    %4797 = vmatmul.mubr.f32.gmra.mrb[0].mxu0 %v4659
    %v4798 = vpop.f32.mrb[0].mxu0
    %v4799 = vadd.f32 %v3055, %v4798
    %v4800 = vpop.f32.mrb[0].mxu0
    %4801 = vmatprep.mubr.f32.mxu0 0.0
    %4802 = vmatmul.mubr.f32.gmra.mrb[0].mxu0 %v4662
    %v4803 = vpop.f32.mrb[0].mxu0
    %v4804 = vadd.f32 %v3055, %v4803
    %v4805 = vpop.f32.mrb[0].mxu0
    %4806 = vmatprep.mubr.f32.mxu0 0.0
    %4807 = vmatmul.mubr.f32.gmra.mrb[0].mxu0 %v4665
    %v4808 = vpop.f32.mrb[0].mxu0
    %v4809 = vadd.f32 %v3055, %v4808
    %v4810 = vpop.f32.mrb[0].mxu0
    %4811 = vdwg.mxu0
    %v4812 = vmul.f32 %v4734, -4.8618
    %v4813 = vmul.f32 %v4739, -4.8618
    %v4814 = vmul.f32 %v4744, -4.8618
    %v4815 = vmul.f32 %v4749, -4.8618
    %v4816 = vmul.f32 %v4754, -4.8618
    %v4817 = vmul.f32 %v4759, -4.8618
    %v4818 = vmul.f32 %v4764, -4.8618
    %v4819 = vmul.f32 %v4769, -4.8618
    %v4820 = vmul.f32 %v4774, -4.8618
    %v4821 = vmul.f32 %v4779, -4.8618
    %v4822 = vmul.f32 %v4784, -4.8618
    %v4823 = vmul.f32 %v4789, -4.8618
    %v4824 = vmul.f32 %v4794, -4.8618
    %v4825 = vmul.f32 %v4799, -4.8618
    %v4826 = vmul.f32 %v4804, -4.8618
    %v4827 = vmul.f32 %v4809, -4.8618
    %v4828 = vadd.f32 %v3266, %v4812
    %v4829 = vadd.f32 %v3267, %v4813
    %v4830 = vadd.f32 %v3268, %v4814
    %v4831 = vadd.f32 %v3269, %v4815
    %v4832 = vadd.f32 %v3270, %v4816
    %v4833 = vadd.f32 %v3271, %v4817
    %v4834 = vadd.f32 %v3272, %v4818
    %v4835 = vadd.f32 %v3273, %v4819
    %v4836 = vadd.f32 %v3274, %v4820
    %v4837 = vadd.f32 %v3275, %v4821
    %v4838 = vadd.f32 %v3276, %v4822
    %v4839 = vadd.f32 %v3277, %v4823
    %v4840 = vadd.f32 %v3278, %v4824
    %v4841 = vadd.f32 %v3279, %v4825
    %v4842 = vadd.f32 %v3280, %v4826
    %v4843 = vadd.f32 %v3281, %v4827
    %v4844 = vmul.f32 %v4828, 0.20031323
    %v4845 = vmul.f32 %v4829, 0.20031323
    %v4846 = vmul.f32 %v4830, 0.20031323
    %v4847 = vmul.f32 %v4831, 0.20031323
    %v4848 = vmul.f32 %v4832, 0.20031323
    %v4849 = vmul.f32 %v4833, 0.20031323
    %v4850 = vmul.f32 %v4834, 0.20031323
    %v4851 = vmul.f32 %v4835, 0.20031323
    %v4852 = vmul.f32 %v4836, 0.20031323
    %v4853 = vmul.f32 %v4837, 0.20031323
    %v4854 = vmul.f32 %v4838, 0.20031323
    %v4855 = vmul.f32 %v4839, 0.20031323
    %v4856 = vmul.f32 %v4840, 0.20031323
    %v4857 = vmul.f32 %v4841, 0.20031323
    %v4858 = vmul.f32 %v4842, 0.20031323
    %v4859 = vmul.f32 %v4843, 0.20031323
    %v4861 = vsel %vm1688, %v4844, 0
    %v4864 = vsel %vm1688, %v4845, 0
    %v4867 = vsel %vm1688, %v4846, 0
    %v4870 = vsel %vm1688, %v4847, 0
    %v4873 = vsel %vm1688, %v4848, 0
    %v4876 = vsel %vm1688, %v4849, 0
    %v4879 = vsel %vm1688, %v4850, 0
    %v4882 = vsel %vm1688, %v4851, 0
    %v4885 = vsel %vm1688, %v4852, 0
    %v4888 = vsel %vm1688, %v4853, 0
    %v4891 = vsel %vm1688, %v4854, 0
    %v4894 = vsel %vm1688, %v4855, 0
    %v4897 = vsel %vm1688, %v4856, 0
    %v4900 = vsel %vm1688, %v4857, 0
    %v4903 = vsel %vm1688, %v4858, 0
    %v4906 = vsel %vm1688, %v4859, 0
    %4908 = vmatprep.subr.mxu0 0.0
    %4909 = vmatpush1.msra.mxu0 %v1739
    %4910 = vmatprep.subr.mxu0 0.0
    %4911 = vmatpush1.msra.mxu0 0.0
    %4912 = vmatprep.subr.mxu0 0.0
    %4913 = vmatpush1.msra.mxu0 0.0
    %4914 = vmatprep.subr.mxu0 0.0
    %4915 = vmatpush1.msra.mxu0 0.0
    %4916 = vmatprep.subr.mxu0 0.0
    %4917 = vmatpush1.msra.mxu0 0.0
    %4918 = vmatprep.subr.mxu0 0.0
    %4919 = vmatpush1.msra.mxu0 0.0
    %4920 = vmatprep.subr.mxu0 0.0
    %4921 = vmatpush1.msra.mxu0 0.0
    %4922 = vmatprep.subr.mxu0 0.0
    %4923 = vmatpush1.msra.mxu0 0.0
    %4924 = vmatprep.subr.mxu0 0.0
    %4925 = vmatpush1.msra.mxu0 0.0
    %4926 = vmatprep.subr.mxu0 0.0
    %4927 = vmatpush1.msra.mxu0 0.0
    %4928 = vmatprep.subr.mxu0 0.0
    %4929 = vmatpush1.msra.mxu0 0.0
    %4930 = vmatprep.subr.mxu0 0.0
    %4931 = vmatpush1.msra.mxu0 0.0
    %4932 = vmatprep.subr.mxu0 0.0
    %4933 = vmatpush1.msra.mxu0 0.0
    %4934 = vmatprep.subr.mxu0 0.0
    %4935 = vmatpush1.msra.mxu0 0.0
    %4936 = vmatprep.subr.mxu0 0.0
    %4937 = vmatpush1.msra.mxu0 0.0
    %4938 = vmatprep.subr.mxu0 0.0
    %4939 = vmatpush1.msra.mxu0 0.0
    %4940 = vmatprep.subr.mxu0 0.0
    %4941 = vmatpush1.msra.mxu0 0.0
    %4942 = vmatprep.subr.mxu0 0.0
    %4943 = vmatpush1.msra.mxu0 0.0
    %4944 = vmatprep.subr.mxu0 0.0
    %4945 = vmatpush1.msra.mxu0 0.0
    %4946 = vmatprep.subr.mxu0 0.0
    %4947 = vmatpush1.msra.mxu0 0.0
    %4948 = vmatprep.subr.mxu0 0.0
    %4949 = vmatpush1.msra.mxu0 0.0
    %4950 = vmatprep.subr.mxu0 0.0
    %4951 = vmatpush1.msra.mxu0 0.0
    %4952 = vmatprep.subr.mxu0 0.0
    %4953 = vmatpush1.msra.mxu0 0.0
    %4954 = vmatprep.subr.mxu0 0.0
    %4955 = vmatpush1.msra.mxu0 0.0
    %4956 = vmatprep.subr.mxu0 0.0
    %4957 = vmatpush1.msra.mxu0 0.0
    %4958 = vmatprep.subr.mxu0 0.0
    %4959 = vmatpush1.msra.mxu0 0.0
    %4960 = vmatprep.subr.mxu0 0.0
    %4961 = vmatpush1.msra.mxu0 0.0
    %4962 = vmatprep.subr.mxu0 0.0
    %4963 = vmatpush1.msra.mxu0 0.0
    %4964 = vmatprep.subr.mxu0 0.0
    %4965 = vmatpush1.msra.mxu0 0.0
    %4966 = vmatprep.subr.mxu0 0.0
    %4967 = vmatpush1.msra.mxu0 0.0
    %4968 = vmatprep.subr.mxu0 0.0
    %4969 = vmatpush1.msra.mxu0 0.0
    %4970 = vmatprep.subr.mxu0 0.0
    %4971 = vmatpush1.msra.mxu0 0.0
    %4972 = vmatprep.mubr.f32.mxu0 0.0
    %4973 = vmatmul.mubr.f32.gmra.mrb[0].mxu0 %v4861
    %v4974 = vpop.f32.mrb[0].mxu0
    %v4975 = vadd.f32 %v1686, %v4974
    %v4976 = vpop.f32.mrb[0].mxu0
    %4977 = vmatprep.mubr.f32.mxu0 0.0
    %4978 = vmatmul.mubr.f32.gmra.mrb[0].mxu0 %v4864
    %v4979 = vpop.f32.mrb[0].mxu0
    %v4980 = vadd.f32 %v1686, %v4979
    %v4981 = vpop.f32.mrb[0].mxu0
    %4982 = vmatprep.mubr.f32.mxu0 0.0
    %4983 = vmatmul.mubr.f32.gmra.mrb[0].mxu0 %v4867
    %v4984 = vpop.f32.mrb[0].mxu0
    %v4985 = vadd.f32 %v1686, %v4984
    %v4986 = vpop.f32.mrb[0].mxu0
    %4987 = vmatprep.mubr.f32.mxu0 0.0
    %4988 = vmatmul.mubr.f32.gmra.mrb[0].mxu0 %v4870
    %v4989 = vpop.f32.mrb[0].mxu0
    %v4990 = vadd.f32 %v1686, %v4989
    %v4991 = vpop.f32.mrb[0].mxu0
    %4992 = vmatprep.mubr.f32.mxu0 0.0
    %4993 = vmatmul.mubr.f32.gmra.mrb[0].mxu0 %v4873
    %v4994 = vpop.f32.mrb[0].mxu0
    %v4995 = vadd.f32 %v1686, %v4994
    %v4996 = vpop.f32.mrb[0].mxu0
    %4997 = vmatprep.mubr.f32.mxu0 0.0
    %4998 = vmatmul.mubr.f32.gmra.mrb[0].mxu0 %v4876
    %v4999 = vpop.f32.mrb[0].mxu0
    %v5000 = vadd.f32 %v1686, %v4999
    %v5001 = vpop.f32.mrb[0].mxu0
    %5002 = vmatprep.mubr.f32.mxu0 0.0
    %5003 = vmatmul.mubr.f32.gmra.mrb[0].mxu0 %v4879
    %v5004 = vpop.f32.mrb[0].mxu0
    %v5005 = vadd.f32 %v1686, %v5004
    %v5006 = vpop.f32.mrb[0].mxu0
    %5007 = vmatprep.mubr.f32.mxu0 0.0
    %5008 = vmatmul.mubr.f32.gmra.mrb[0].mxu0 %v4882
    %v5009 = vpop.f32.mrb[0].mxu0
    %v5010 = vadd.f32 %v1686, %v5009
    %v5011 = vpop.f32.mrb[0].mxu0
    %5012 = vmatprep.mubr.f32.mxu0 0.0
    %5013 = vmatmul.mubr.f32.gmra.mrb[0].mxu0 %v4885
    %v5014 = vpop.f32.mrb[0].mxu0
    %v5015 = vadd.f32 %v1686, %v5014
    %v5016 = vpop.f32.mrb[0].mxu0
    %5017 = vmatprep.mubr.f32.mxu0 0.0
    %5018 = vmatmul.mubr.f32.gmra.mrb[0].mxu0 %v4888
    %v5019 = vpop.f32.mrb[0].mxu0
    %v5020 = vadd.f32 %v1686, %v5019
    %v5021 = vpop.f32.mrb[0].mxu0
    %5022 = vmatprep.mubr.f32.mxu0 0.0
    %5023 = vmatmul.mubr.f32.gmra.mrb[0].mxu0 %v4891
    %v5024 = vpop.f32.mrb[0].mxu0
    %v5025 = vadd.f32 %v1686, %v5024
    %v5026 = vpop.f32.mrb[0].mxu0
    %5027 = vmatprep.mubr.f32.mxu0 0.0
    %5028 = vmatmul.mubr.f32.gmra.mrb[0].mxu0 %v4894
    %v5029 = vpop.f32.mrb[0].mxu0
    %v5030 = vadd.f32 %v1686, %v5029
    %v5031 = vpop.f32.mrb[0].mxu0
    %5032 = vmatprep.mubr.f32.mxu0 0.0
    %5033 = vmatmul.mubr.f32.gmra.mrb[0].mxu0 %v4897
    %v5034 = vpop.f32.mrb[0].mxu0
    %v5035 = vadd.f32 %v1686, %v5034
    %v5036 = vpop.f32.mrb[0].mxu0
    %5037 = vmatprep.mubr.f32.mxu0 0.0
    %5038 = vmatmul.mubr.f32.gmra.mrb[0].mxu0 %v4900
    %v5039 = vpop.f32.mrb[0].mxu0
    %v5040 = vadd.f32 %v1686, %v5039
    %v5041 = vpop.f32.mrb[0].mxu0
    %5042 = vmatprep.mubr.f32.mxu0 0.0
    %5043 = vmatmul.mubr.f32.gmra.mrb[0].mxu0 %v4903
    %v5044 = vpop.f32.mrb[0].mxu0
    %v5045 = vadd.f32 %v1686, %v5044
    %v5046 = vpop.f32.mrb[0].mxu0
    %5047 = vmatprep.mubr.f32.mxu0 0.0
    %5048 = vmatmul.mubr.f32.gmra.mrb[0].mxu0 %v4906
    %v5049 = vpop.f32.mrb[0].mxu0
    %v5050 = vadd.f32 %v1686, %v5049
    %v5051 = vpop.f32.mrb[0].mxu0
    %5052 = vdwg.mxu0
    %v5053 = vsub.f32 0.0, %v4975
    %v5054 = vsub.f32 0.0, %v4980
    %v5055 = vsub.f32 0.0, %v4985
    %v5056 = vsub.f32 0.0, %v4990
    %v5057 = vsub.f32 0.0, %v4995
    %v5058 = vsub.f32 0.0, %v5000
    %v5059 = vsub.f32 0.0, %v5005
    %v5060 = vsub.f32 0.0, %v5010
    %v5061 = vsub.f32 0.0, %v5015
    %v5062 = vsub.f32 0.0, %v5020
    %v5063 = vsub.f32 0.0, %v5025
    %v5064 = vsub.f32 0.0, %v5030
    %v5065 = vsub.f32 0.0, %v5035
    %v5066 = vsub.f32 0.0, %v5040
    %v5067 = vsub.f32 0.0, %v5045
    %v5068 = vsub.f32 0.0, %v5050
    %v5069 = vmul.f32 %v5053, 1.442695
    %v5070 = vpow.pop %v5069
    %v5071 = vmul.f32 %v5054, 1.442695
    %v5072 = vpow.pop %v5071
    %v5073 = vmul.f32 %v5055, 1.442695
    %v5074 = vpow.pop %v5073
    %v5075 = vmul.f32 %v5056, 1.442695
    %v5076 = vpow.pop %v5075
    %v5077 = vmul.f32 %v5057, 1.442695
    %v5078 = vpow.pop %v5077
    %v5079 = vmul.f32 %v5058, 1.442695
    %v5080 = vpow.pop %v5079
    %v5081 = vmul.f32 %v5059, 1.442695
    %v5082 = vpow.pop %v5081
    %v5083 = vmul.f32 %v5060, 1.442695
    %v5084 = vpow.pop %v5083
    %v5085 = vmul.f32 %v5061, 1.442695
    %v5086 = vpow.pop %v5085
    %v5087 = vmul.f32 %v5062, 1.442695
    %v5088 = vpow.pop %v5087
    %v5089 = vmul.f32 %v5063, 1.442695
    %v5090 = vpow.pop %v5089
    %v5091 = vmul.f32 %v5064, 1.442695
    %v5092 = vpow.pop %v5091
    %v5093 = vmul.f32 %v5065, 1.442695
    %v5094 = vpow.pop %v5093
    %v5095 = vmul.f32 %v5066, 1.442695
    %v5096 = vpow.pop %v5095
    %v5097 = vmul.f32 %v5067, 1.442695
    %v5098 = vpow.pop %v5097
    %v5099 = vmul.f32 %v5068, 1.442695
    %v5100 = vpow.pop %v5099
    %v5101 = vadd.f32 %v5070, 1.0
    %v5102 = vadd.f32 %v5072, 1.0
    %v5103 = vadd.f32 %v5074, 1.0
    %v5104 = vadd.f32 %v5076, 1.0
    %v5105 = vadd.f32 %v5078, 1.0
    %v5106 = vadd.f32 %v5080, 1.0
    %v5107 = vadd.f32 %v5082, 1.0
    %v5108 = vadd.f32 %v5084, 1.0
    %v5109 = vadd.f32 %v5086, 1.0
    %v5110 = vadd.f32 %v5088, 1.0
    %v5111 = vadd.f32 %v5090, 1.0
    %v5112 = vadd.f32 %v5092, 1.0
    %v5113 = vadd.f32 %v5094, 1.0
    %v5114 = vadd.f32 %v5096, 1.0
    %v5115 = vadd.f32 %v5098, 1.0
    %v5116 = vadd.f32 %v5100, 1.0
    %v5117 = vrcp.pop %v5101
    %v5118 = vrcp.pop %v5102
    %v5119 = vrcp.pop %v5103
    %v5120 = vrcp.pop %v5104
    %v5121 = vrcp.pop %v5105
    %v5122 = vrcp.pop %v5106
    %v5123 = vrcp.pop %v5107
    %v5124 = vrcp.pop %v5108
    %v5125 = vrcp.pop %v5109
    %v5126 = vrcp.pop %v5110
    %v5127 = vrcp.pop %v5111
    %v5128 = vrcp.pop %v5112
    %v5129 = vrcp.pop %v5113
    %v5130 = vrcp.pop %v5114
    %v5131 = vrcp.pop %v5115
    %v5132 = vrcp.pop %v5116
    %v5133 = vmul.f32 %v4975, %v5117
    %v5134 = vmul.f32 %v4980, %v5118
    %v5135 = vmul.f32 %v4985, %v5119
    %v5136 = vmul.f32 %v4990, %v5120
    %v5137 = vmul.f32 %v4995, %v5121
    %v5138 = vmul.f32 %v5000, %v5122
    %v5139 = vmul.f32 %v5005, %v5123
    %v5140 = vmul.f32 %v5010, %v5124
    %v5141 = vmul.f32 %v5015, %v5125
    %v5142 = vmul.f32 %v5020, %v5126
    %v5143 = vmul.f32 %v5025, %v5127
    %v5144 = vmul.f32 %v5030, %v5128
    %v5145 = vmul.f32 %v5035, %v5129
    %v5146 = vmul.f32 %v5040, %v5130
    %v5147 = vmul.f32 %v5045, %v5131
    %v5148 = vmul.f32 %v5050, %v5132
    %v5149 = vadd.f32 %v5133, %v1374
    %v5150 = vadd.f32 %v5134, %v1379
    %v5151 = vadd.f32 %v5135, %v1384
    %v5152 = vadd.f32 %v5136, %v1389
    %v5153 = vadd.f32 %v5137, %v1394
    %v5154 = vadd.f32 %v5138, %v1399
    %v5155 = vadd.f32 %v5139, %v1404
    %v5156 = vadd.f32 %v5140, %v1409
    %v5157 = vadd.f32 %v5141, %v1414
    %v5158 = vadd.f32 %v5142, %v1419
    %v5159 = vadd.f32 %v5143, %v1424
    %v5160 = vadd.f32 %v5144, %v1429
    %v5161 = vadd.f32 %v5145, %v1434
    %v5162 = vadd.f32 %v5146, %v1439
    %v5163 = vadd.f32 %v5147, %v1444
    %v5164 = vadd.f32 %v5148, %v1449
    %v5165 = vlaneseq
    %v5166 = vshrl.u32 %v5165, 7
    %v5167 = vsub.s32 2, %v5166
    %v5168 = vrot.slane %v1155, %v5167
    %v5169 = vadd.f32 %v5149, %v5168
    %v5170 = vadd.f32 %v5150, %v5168
    %v5171 = vadd.f32 %v5151, %v5168
    %v5172 = vadd.f32 %v5152, %v5168
    %v5173 = vadd.f32 %v5153, %v5168
    %v5174 = vadd.f32 %v5154, %v5168
    %v5175 = vadd.f32 %v5155, %v5168
    %v5176 = vadd.f32 %v5156, %v5168
    %v5177 = vadd.f32 %v5157, %v5168
    %v5178 = vadd.f32 %v5158, %v5168
    %v5179 = vadd.f32 %v5159, %v5168
    %v5180 = vadd.f32 %v5160, %v5168
    %v5181 = vadd.f32 %v5161, %v5168
    %v5182 = vadd.f32 %v5162, %v5168
    %v5183 = vadd.f32 %v5163, %v5168
    %v5184 = vadd.f32 %v5164, %v5168
    %v5186 = vsel %vm375, %v5169, 0
    %v5189 = vsel %vm375, %v5170, 0
    %v5192 = vsel %vm375, %v5171, 0
    %v5195 = vsel %vm375, %v5172, 0
    %v5198 = vsel %vm375, %v5173, 0
    %v5201 = vsel %vm375, %v5174, 0
    %v5204 = vsel %vm375, %v5175, 0
    %v5207 = vsel %vm375, %v5176, 0
    %v5210 = vsel %vm375, %v5177, 0
    %v5213 = vsel %vm375, %v5178, 0
    %v5216 = vsel %vm375, %v5179, 0
    %v5219 = vsel %vm375, %v5180, 0
    %v5222 = vsel %vm375, %v5181, 0
    %v5225 = vsel %vm375, %v5182, 0
    %v5228 = vsel %vm375, %v5183, 0
    %v5231 = vsel %vm375, %v5184, 0
    %5233 = vmatprep.subr.mxu0 0.0
    %5234 = vmatpush1.msra.mxu0 %v2018
    %5235 = vmatprep.subr.mxu0 0.0
    %5236 = vmatpush1.msra.mxu0 %v2019
    %5237 = vmatprep.subr.mxu0 0.0
    %5238 = vmatpush1.msra.mxu0 %v2020
    %5239 = vmatprep.subr.mxu0 0.0
    %5240 = vmatpush1.msra.mxu0 %v2021
    %5241 = vmatprep.subr.mxu0 0.0
    %5242 = vmatpush1.msra.mxu0 %v2022
    %5243 = vmatprep.subr.mxu0 0.0
    %5244 = vmatpush1.msra.mxu0 %v2023
    %5245 = vmatprep.subr.mxu0 0.0
    %5246 = vmatpush1.msra.mxu0 %v2024
    %5247 = vmatprep.subr.mxu0 0.0
    %5248 = vmatpush1.msra.mxu0 %v2025
    %5249 = vmatprep.subr.mxu0 0.0
    %5250 = vmatpush1.msra.mxu0 0.0
    %5251 = vmatprep.subr.mxu0 0.0
    %5252 = vmatpush1.msra.mxu0 0.0
    %5253 = vmatprep.subr.mxu0 0.0
    %5254 = vmatpush1.msra.mxu0 0.0
    %5255 = vmatprep.subr.mxu0 0.0
    %5256 = vmatpush1.msra.mxu0 0.0
    %5257 = vmatprep.subr.mxu0 0.0
    %5258 = vmatpush1.msra.mxu0 0.0
    %5259 = vmatprep.subr.mxu0 0.0
    %5260 = vmatpush1.msra.mxu0 0.0
    %5261 = vmatprep.subr.mxu0 0.0
    %5262 = vmatpush1.msra.mxu0 0.0
    %5263 = vmatprep.subr.mxu0 0.0
    %5264 = vmatpush1.msra.mxu0 0.0
    %5265 = vmatprep.subr.mxu0 0.0
    %5266 = vmatpush1.msra.mxu0 0.0
    %5267 = vmatprep.subr.mxu0 0.0
    %5268 = vmatpush1.msra.mxu0 0.0
    %5269 = vmatprep.subr.mxu0 0.0
    %5270 = vmatpush1.msra.mxu0 0.0
    %5271 = vmatprep.subr.mxu0 0.0
    %5272 = vmatpush1.msra.mxu0 0.0
    %5273 = vmatprep.subr.mxu0 0.0
    %5274 = vmatpush1.msra.mxu0 0.0
    %5275 = vmatprep.subr.mxu0 0.0
    %5276 = vmatpush1.msra.mxu0 0.0
    %5277 = vmatprep.subr.mxu0 0.0
    %5278 = vmatpush1.msra.mxu0 0.0
    %5279 = vmatprep.subr.mxu0 0.0
    %5280 = vmatpush1.msra.mxu0 0.0
    %5281 = vmatprep.subr.mxu0 0.0
    %5282 = vmatpush1.msra.mxu0 0.0
    %5283 = vmatprep.subr.mxu0 0.0
    %5284 = vmatpush1.msra.mxu0 0.0
    %5285 = vmatprep.subr.mxu0 0.0
    %5286 = vmatpush1.msra.mxu0 0.0
    %5287 = vmatprep.subr.mxu0 0.0
    %5288 = vmatpush1.msra.mxu0 0.0
    %5289 = vmatprep.subr.mxu0 0.0
    %5290 = vmatpush1.msra.mxu0 0.0
    %5291 = vmatprep.subr.mxu0 0.0
    %5292 = vmatpush1.msra.mxu0 0.0
    %5293 = vmatprep.subr.mxu0 0.0
    %5294 = vmatpush1.msra.mxu0 0.0
    %5295 = vmatprep.subr.mxu0 0.0
    %5296 = vmatpush1.msra.mxu0 0.0
    %5297 = vmatprep.mubr.f32.mxu0 0.0
    %5298 = vmatmul.mubr.f32.gmra.mrb[0].mxu0 %v5186
    %v5299 = vpop.f32.mrb[0].mxu0
    %v5300 = vadd.f32 0.0, %v5299
    %v5301 = vpop.f32.mrb[0].mxu0
    %5302 = vmatprep.mubr.f32.mxu0 0.0
    %5303 = vmatmul.mubr.f32.gmra.mrb[0].mxu0 %v5189
    %v5304 = vpop.f32.mrb[0].mxu0
    %v5305 = vadd.f32 0.0, %v5304
    %v5306 = vpop.f32.mrb[0].mxu0
    %5307 = vmatprep.mubr.f32.mxu0 0.0
    %5308 = vmatmul.mubr.f32.gmra.mrb[0].mxu0 %v5192
    %v5309 = vpop.f32.mrb[0].mxu0
    %v5310 = vadd.f32 0.0, %v5309
    %v5311 = vpop.f32.mrb[0].mxu0
    %5312 = vmatprep.mubr.f32.mxu0 0.0
    %5313 = vmatmul.mubr.f32.gmra.mrb[0].mxu0 %v5195
    %v5314 = vpop.f32.mrb[0].mxu0
    %v5315 = vadd.f32 0.0, %v5314
    %v5316 = vpop.f32.mrb[0].mxu0
    %5317 = vmatprep.mubr.f32.mxu0 0.0
    %5318 = vmatmul.mubr.f32.gmra.mrb[0].mxu0 %v5198
    %v5319 = vpop.f32.mrb[0].mxu0
    %v5320 = vadd.f32 0.0, %v5319
    %v5321 = vpop.f32.mrb[0].mxu0
    %5322 = vmatprep.mubr.f32.mxu0 0.0
    %5323 = vmatmul.mubr.f32.gmra.mrb[0].mxu0 %v5201
    %v5324 = vpop.f32.mrb[0].mxu0
    %v5325 = vadd.f32 0.0, %v5324
    %v5326 = vpop.f32.mrb[0].mxu0
    %5327 = vmatprep.mubr.f32.mxu0 0.0
    %5328 = vmatmul.mubr.f32.gmra.mrb[0].mxu0 %v5204
    %v5329 = vpop.f32.mrb[0].mxu0
    %v5330 = vadd.f32 0.0, %v5329
    %v5331 = vpop.f32.mrb[0].mxu0
    %5332 = vmatprep.mubr.f32.mxu0 0.0
    %5333 = vmatmul.mubr.f32.gmra.mrb[0].mxu0 %v5207
    %v5334 = vpop.f32.mrb[0].mxu0
    %v5335 = vadd.f32 0.0, %v5334
    %v5336 = vpop.f32.mrb[0].mxu0
    %5337 = vmatprep.mubr.f32.mxu0 0.0
    %5338 = vmatmul.mubr.f32.gmra.mrb[0].mxu0 %v5210
    %v5339 = vpop.f32.mrb[0].mxu0
    %v5340 = vadd.f32 0.0, %v5339
    %v5341 = vpop.f32.mrb[0].mxu0
    %5342 = vmatprep.mubr.f32.mxu0 0.0
    %5343 = vmatmul.mubr.f32.gmra.mrb[0].mxu0 %v5213
    %v5344 = vpop.f32.mrb[0].mxu0
    %v5345 = vadd.f32 0.0, %v5344
    %v5346 = vpop.f32.mrb[0].mxu0
    %5347 = vmatprep.mubr.f32.mxu0 0.0
    %5348 = vmatmul.mubr.f32.gmra.mrb[0].mxu0 %v5216
    %v5349 = vpop.f32.mrb[0].mxu0
    %v5350 = vadd.f32 0.0, %v5349
    %v5351 = vpop.f32.mrb[0].mxu0
    %5352 = vmatprep.mubr.f32.mxu0 0.0
    %5353 = vmatmul.mubr.f32.gmra.mrb[0].mxu0 %v5219
    %v5354 = vpop.f32.mrb[0].mxu0
    %v5355 = vadd.f32 0.0, %v5354
    %v5356 = vpop.f32.mrb[0].mxu0
    %5357 = vmatprep.mubr.f32.mxu0 0.0
    %5358 = vmatmul.mubr.f32.gmra.mrb[0].mxu0 %v5222
    %v5359 = vpop.f32.mrb[0].mxu0
    %v5360 = vadd.f32 0.0, %v5359
    %v5361 = vpop.f32.mrb[0].mxu0
    %5362 = vmatprep.mubr.f32.mxu0 0.0
    %5363 = vmatmul.mubr.f32.gmra.mrb[0].mxu0 %v5225
    %v5364 = vpop.f32.mrb[0].mxu0
    %v5365 = vadd.f32 0.0, %v5364
    %v5366 = vpop.f32.mrb[0].mxu0
    %5367 = vmatprep.mubr.f32.mxu0 0.0
    %5368 = vmatmul.mubr.f32.gmra.mrb[0].mxu0 %v5228
    %v5369 = vpop.f32.mrb[0].mxu0
    %v5370 = vadd.f32 0.0, %v5369
    %v5371 = vpop.f32.mrb[0].mxu0
    %5372 = vmatprep.mubr.f32.mxu0 0.0
    %5373 = vmatmul.mubr.f32.gmra.mrb[0].mxu0 %v5231
    %v5374 = vpop.f32.mrb[0].mxu0
    %v5375 = vadd.f32 0.0, %v5374
    %v5376 = vpop.f32.mrb[0].mxu0
    %5377 = vdwg.mxu0
    %v5379 = vsel %vm375, %v5300, 0
    %v5382 = vsel %vm375, %v5305, 0
    %v5385 = vsel %vm375, %v5310, 0
    %v5388 = vsel %vm375, %v5315, 0
    %v5391 = vsel %vm375, %v5320, 0
    %v5394 = vsel %vm375, %v5325, 0
    %v5397 = vsel %vm375, %v5330, 0
    %v5400 = vsel %vm375, %v5335, 0
    %v5403 = vsel %vm375, %v5340, 0
    %v5406 = vsel %vm375, %v5345, 0
    %v5409 = vsel %vm375, %v5350, 0
    %v5412 = vsel %vm375, %v5355, 0
    %v5415 = vsel %vm375, %v5360, 0
    %v5418 = vsel %vm375, %v5365, 0
    %v5421 = vsel %vm375, %v5370, 0
    %v5424 = vsel %vm375, %v5375, 0
    %5426 = vmatprep.subr.mxu0 0.0
    %5427 = vmatpush1.xpose.msra.mxu0 %v2268
    %5428 = vmatprep.subr.mxu0 0.0
    %5429 = vmatpush1.xpose.msra.mxu0 %v2271
    %5430 = vmatprep.subr.mxu0 0.0
    %5431 = vmatpush1.xpose.msra.mxu0 0.0
    %5432 = vmatprep.subr.mxu0 0.0
    %5433 = vmatpush1.xpose.msra.mxu0 0.0
    %5434 = vmatprep.subr.mxu0 0.0
    %5435 = vmatpush1.xpose.msra.mxu0 0.0
    %5436 = vmatprep.subr.mxu0 0.0
    %5437 = vmatpush1.xpose.msra.mxu0 0.0
    %5438 = vmatprep.subr.mxu0 0.0
    %5439 = vmatpush1.xpose.msra.mxu0 0.0
    %5440 = vmatprep.subr.mxu0 0.0
    %5441 = vmatpush1.xpose.msra.mxu0 0.0
    %5442 = vmatprep.subr.mxu0 0.0
    %5443 = vmatpush1.xpose.msra.mxu0 0.0
    %5444 = vmatprep.subr.mxu0 0.0
    %5445 = vmatpush1.xpose.msra.mxu0 0.0
    %5446 = vmatprep.subr.mxu0 0.0
    %5447 = vmatpush1.xpose.msra.mxu0 0.0
    %5448 = vmatprep.subr.mxu0 0.0
    %5449 = vmatpush1.xpose.msra.mxu0 0.0
    %5450 = vmatprep.subr.mxu0 0.0
    %5451 = vmatpush1.xpose.msra.mxu0 0.0
    %5452 = vmatprep.subr.mxu0 0.0
    %5453 = vmatpush1.xpose.msra.mxu0 0.0
    %5454 = vmatprep.subr.mxu0 0.0
    %5455 = vmatpush1.xpose.msra.mxu0 0.0
    %5456 = vmatprep.subr.mxu0 0.0
    %5457 = vmatpush1.xpose.msra.mxu0 0.0
    %5458 = vmatprep.subr.mxu0 0.0
    %5459 = vmatpush1.xpose.msra.mxu0 0.0
    %5460 = vmatprep.subr.mxu0 0.0
    %5461 = vmatpush1.xpose.msra.mxu0 0.0
    %5462 = vmatprep.subr.mxu0 0.0
    %5463 = vmatpush1.xpose.msra.mxu0 0.0
    %5464 = vmatprep.subr.mxu0 0.0
    %5465 = vmatpush1.xpose.msra.mxu0 0.0
    %5466 = vmatprep.subr.mxu0 0.0
    %5467 = vmatpush1.xpose.msra.mxu0 0.0
    %5468 = vmatprep.subr.mxu0 0.0
    %5469 = vmatpush1.xpose.msra.mxu0 0.0
    %5470 = vmatprep.subr.mxu0 0.0
    %5471 = vmatpush1.xpose.msra.mxu0 0.0
    %5472 = vmatprep.subr.mxu0 0.0
    %5473 = vmatpush1.xpose.msra.mxu0 0.0
    %5474 = vmatprep.subr.mxu0 0.0
    %5475 = vmatpush1.xpose.msra.mxu0 0.0
    %5476 = vmatprep.subr.mxu0 0.0
    %5477 = vmatpush1.xpose.msra.mxu0 0.0
    %5478 = vmatprep.subr.mxu0 0.0
    %5479 = vmatpush1.xpose.msra.mxu0 0.0
    %5480 = vmatprep.subr.mxu0 0.0
    %5481 = vmatpush1.xpose.msra.mxu0 0.0
    %5482 = vmatprep.subr.mxu0 0.0
    %5483 = vmatpush1.xpose.msra.mxu0 0.0
    %5484 = vmatprep.subr.mxu0 0.0
    %5485 = vmatpush1.xpose.msra.mxu0 0.0
    %5486 = vmatprep.subr.mxu0 0.0
    %5487 = vmatpush1.xpose.msra.mxu0 0.0
    %5488 = vmatprep.subr.mxu0 0.0
    %5489 = vmatpush1.xpose.msra.mxu0 0.0
    %5490 = vmatprep.mubr.f32.mxu0 0.0
    %5491 = vmatmul.mubr.f32.gmra.mrb[0].mxu0 %v5379
    %v5492 = vpop.f32.mrb[0].mxu0
    %v5493 = vadd.f32 0.0, %v5492
    %v5494 = vpop.f32.mrb[0].mxu0
    %5495 = vmatprep.mubr.f32.mxu0 0.0
    %5496 = vmatmul.mubr.f32.gmra.mrb[0].mxu0 %v5382
    %v5497 = vpop.f32.mrb[0].mxu0
    %v5498 = vadd.f32 0.0, %v5497
    %v5499 = vpop.f32.mrb[0].mxu0
    %5500 = vmatprep.mubr.f32.mxu0 0.0
    %5501 = vmatmul.mubr.f32.gmra.mrb[0].mxu0 %v5385
    %v5502 = vpop.f32.mrb[0].mxu0
    %v5503 = vadd.f32 0.0, %v5502
    %v5504 = vpop.f32.mrb[0].mxu0
    %5505 = vmatprep.mubr.f32.mxu0 0.0
    %5506 = vmatmul.mubr.f32.gmra.mrb[0].mxu0 %v5388
    %v5507 = vpop.f32.mrb[0].mxu0
    %v5508 = vadd.f32 0.0, %v5507
    %v5509 = vpop.f32.mrb[0].mxu0
    %5510 = vmatprep.mubr.f32.mxu0 0.0
    %5511 = vmatmul.mubr.f32.gmra.mrb[0].mxu0 %v5391
    %v5512 = vpop.f32.mrb[0].mxu0
    %v5513 = vadd.f32 0.0, %v5512
    %v5514 = vpop.f32.mrb[0].mxu0
    %5515 = vmatprep.mubr.f32.mxu0 0.0
    %5516 = vmatmul.mubr.f32.gmra.mrb[0].mxu0 %v5394
    %v5517 = vpop.f32.mrb[0].mxu0
    %v5518 = vadd.f32 0.0, %v5517
    %v5519 = vpop.f32.mrb[0].mxu0
    %5520 = vmatprep.mubr.f32.mxu0 0.0
    %5521 = vmatmul.mubr.f32.gmra.mrb[0].mxu0 %v5397
    %v5522 = vpop.f32.mrb[0].mxu0
    %v5523 = vadd.f32 0.0, %v5522
    %v5524 = vpop.f32.mrb[0].mxu0
    %5525 = vmatprep.mubr.f32.mxu0 0.0
    %5526 = vmatmul.mubr.f32.gmra.mrb[0].mxu0 %v5400
    %v5527 = vpop.f32.mrb[0].mxu0
    %v5528 = vadd.f32 0.0, %v5527
    %v5529 = vpop.f32.mrb[0].mxu0
    %5530 = vmatprep.mubr.f32.mxu0 0.0
    %5531 = vmatmul.mubr.f32.gmra.mrb[0].mxu0 %v5403
    %v5532 = vpop.f32.mrb[0].mxu0
    %v5533 = vadd.f32 0.0, %v5532
    %v5534 = vpop.f32.mrb[0].mxu0
    %5535 = vmatprep.mubr.f32.mxu0 0.0
    %5536 = vmatmul.mubr.f32.gmra.mrb[0].mxu0 %v5406
    %v5537 = vpop.f32.mrb[0].mxu0
    %v5538 = vadd.f32 0.0, %v5537
    %v5539 = vpop.f32.mrb[0].mxu0
    %5540 = vmatprep.mubr.f32.mxu0 0.0
    %5541 = vmatmul.mubr.f32.gmra.mrb[0].mxu0 %v5409
    %v5542 = vpop.f32.mrb[0].mxu0
    %v5543 = vadd.f32 0.0, %v5542
    %v5544 = vpop.f32.mrb[0].mxu0
    %5545 = vmatprep.mubr.f32.mxu0 0.0
    %5546 = vmatmul.mubr.f32.gmra.mrb[0].mxu0 %v5412
    %v5547 = vpop.f32.mrb[0].mxu0
    %v5548 = vadd.f32 0.0, %v5547
    %v5549 = vpop.f32.mrb[0].mxu0
    %5550 = vmatprep.mubr.f32.mxu0 0.0
    %5551 = vmatmul.mubr.f32.gmra.mrb[0].mxu0 %v5415
    %v5552 = vpop.f32.mrb[0].mxu0
    %v5553 = vadd.f32 0.0, %v5552
    %v5554 = vpop.f32.mrb[0].mxu0
    %5555 = vmatprep.mubr.f32.mxu0 0.0
    %5556 = vmatmul.mubr.f32.gmra.mrb[0].mxu0 %v5418
    %v5557 = vpop.f32.mrb[0].mxu0
    %v5558 = vadd.f32 0.0, %v5557
    %v5559 = vpop.f32.mrb[0].mxu0
    %5560 = vmatprep.mubr.f32.mxu0 0.0
    %5561 = vmatmul.mubr.f32.gmra.mrb[0].mxu0 %v5421
    %v5562 = vpop.f32.mrb[0].mxu0
    %v5563 = vadd.f32 0.0, %v5562
    %v5564 = vpop.f32.mrb[0].mxu0
    %5565 = vmatprep.mubr.f32.mxu0 0.0
    %5566 = vmatmul.mubr.f32.gmra.mrb[0].mxu0 %v5424
    %v5567 = vpop.f32.mrb[0].mxu0
    %v5568 = vadd.f32 0.0, %v5567
    %v5569 = vpop.f32.mrb[0].mxu0
    %5570 = vdwg.mxu0
    %v5571 = vmul.f32 %v5493, 0.125
    %v5572 = vmul.f32 %v5498, 0.125
    %v5573 = vmul.f32 %v5503, 0.125
    %v5574 = vmul.f32 %v5508, 0.125
    %v5575 = vmul.f32 %v5513, 0.125
    %v5576 = vmul.f32 %v5518, 0.125
    %v5577 = vmul.f32 %v5523, 0.125
    %v5578 = vmul.f32 %v5528, 0.125
    %v5579 = vmul.f32 %v5533, 0.125
    %v5580 = vmul.f32 %v5538, 0.125
    %v5581 = vmul.f32 %v5543, 0.125
    %v5582 = vmul.f32 %v5548, 0.125
    %v5583 = vmul.f32 %v5553, 0.125
    %v5584 = vmul.f32 %v5558, 0.125
    %v5585 = vmul.f32 %v5563, 0.125
    %v5586 = vmul.f32 %v5568, 0.125
    %v5587 = vsel %vm1616, %v5571, -1e+30
    %v5588 = vsel %vm1617, %v5572, -1e+30
    %v5589 = vsel %vm1618, %v5573, -1e+30
    %v5590 = vsel %vm1619, %v5574, -1e+30
    %v5591 = vsel %vm1620, %v5575, -1e+30
    %v5592 = vsel %vm1621, %v5576, -1e+30
    %v5593 = vsel %vm1622, %v5577, -1e+30
    %v5594 = vsel %vm1623, %v5578, -1e+30
    %v5595 = vsel %vm1624, %v5579, -1e+30
    %v5596 = vsel %vm1625, %v5580, -1e+30
    %v5597 = vsel %vm1626, %v5581, -1e+30
    %v5598 = vsel %vm1627, %v5582, -1e+30
    %v5599 = vsel %vm1628, %v5583, -1e+30
    %v5600 = vsel %vm1629, %v5584, -1e+30
    %v5601 = vsel %vm1630, %v5585, -1e+30
    %v5602 = vsel %vm1631, %v5586, -1e+30
    %v5603 = vsel %vm566, %v5587, -inf
    %5604 = vmax.xlane.f32.xlu0 %v5603
    %v5605 = vpop.xlane.xlu0 %5604
    %v5606 = vsel %vm566, %v5588, -inf
    %5607 = vmax.xlane.f32.xlu0 %v5606
    %v5608 = vpop.xlane.xlu0 %5607
    %v5609 = vsel %vm566, %v5589, -inf
    %5610 = vmax.xlane.f32.xlu0 %v5609
    %v5611 = vpop.xlane.xlu0 %5610
    %v5612 = vsel %vm566, %v5590, -inf
    %5613 = vmax.xlane.f32.xlu0 %v5612
    %v5614 = vpop.xlane.xlu0 %5613
    %v5615 = vsel %vm566, %v5591, -inf
    %5616 = vmax.xlane.f32.xlu0 %v5615
    %v5617 = vpop.xlane.xlu0 %5616
    %v5618 = vsel %vm566, %v5592, -inf
    %5619 = vmax.xlane.f32.xlu0 %v5618
    %v5620 = vpop.xlane.xlu0 %5619
    %v5621 = vsel %vm566, %v5593, -inf
    %5622 = vmax.xlane.f32.xlu0 %v5621
    %v5623 = vpop.xlane.xlu0 %5622
    %v5624 = vsel %vm566, %v5594, -inf
    %5625 = vmax.xlane.f32.xlu0 %v5624
    %v5626 = vpop.xlane.xlu0 %5625
    %v5627 = vsel %vm566, %v5595, -inf
    %5628 = vmax.xlane.f32.xlu0 %v5627
    %v5629 = vpop.xlane.xlu0 %5628
    %v5630 = vsel %vm566, %v5596, -inf
    %5631 = vmax.xlane.f32.xlu0 %v5630
    %v5632 = vpop.xlane.xlu0 %5631
    %v5633 = vsel %vm566, %v5597, -inf
    %5634 = vmax.xlane.f32.xlu0 %v5633
    %v5635 = vpop.xlane.xlu0 %5634
    %v5636 = vsel %vm566, %v5598, -inf
    %5637 = vmax.xlane.f32.xlu0 %v5636
    %v5638 = vpop.xlane.xlu0 %5637
    %v5639 = vsel %vm566, %v5599, -inf
    %5640 = vmax.xlane.f32.xlu0 %v5639
    %v5641 = vpop.xlane.xlu0 %5640
    %v5642 = vsel %vm566, %v5600, -inf
    %5643 = vmax.xlane.f32.xlu0 %v5642
    %v5644 = vpop.xlane.xlu0 %5643
    %v5645 = vsel %vm566, %v5601, -inf
    %5646 = vmax.xlane.f32.xlu0 %v5645
    %v5647 = vpop.xlane.xlu0 %5646
    %v5648 = vsel %vm566, %v5602, -inf
    %5649 = vmax.xlane.f32.xlu0 %v5648
    %v5650 = vpop.xlane.xlu0 %5649
    %v5651 = vsub.f32 %v5587, %v5605
    %v5652 = vsub.f32 %v5588, %v5608
    %v5653 = vsub.f32 %v5589, %v5611
    %v5654 = vsub.f32 %v5590, %v5614
    %v5655 = vsub.f32 %v5591, %v5617
    %v5656 = vsub.f32 %v5592, %v5620
    %v5657 = vsub.f32 %v5593, %v5623
    %v5658 = vsub.f32 %v5594, %v5626
    %v5659 = vsub.f32 %v5595, %v5629
    %v5660 = vsub.f32 %v5596, %v5632
    %v5661 = vsub.f32 %v5597, %v5635
    %v5662 = vsub.f32 %v5598, %v5638
    %v5663 = vsub.f32 %v5599, %v5641
    %v5664 = vsub.f32 %v5600, %v5644
    %v5665 = vsub.f32 %v5601, %v5647
    %v5666 = vsub.f32 %v5602, %v5650
    %v5667 = vmul.f32 %v5651, 1.442695
    %v5668 = vpow.pop %v5667
    %v5669 = vmul.f32 %v5652, 1.442695
    %v5670 = vpow.pop %v5669
    %v5671 = vmul.f32 %v5653, 1.442695
    %v5672 = vpow.pop %v5671
    %v5673 = vmul.f32 %v5654, 1.442695
    %v5674 = vpow.pop %v5673
    %v5675 = vmul.f32 %v5655, 1.442695
    %v5676 = vpow.pop %v5675
    %v5677 = vmul.f32 %v5656, 1.442695
    %v5678 = vpow.pop %v5677
    %v5679 = vmul.f32 %v5657, 1.442695
    %v5680 = vpow.pop %v5679
    %v5681 = vmul.f32 %v5658, 1.442695
    %v5682 = vpow.pop %v5681
    %v5683 = vmul.f32 %v5659, 1.442695
    %v5684 = vpow.pop %v5683
    %v5685 = vmul.f32 %v5660, 1.442695
    %v5686 = vpow.pop %v5685
    %v5687 = vmul.f32 %v5661, 1.442695
    %v5688 = vpow.pop %v5687
    %v5689 = vmul.f32 %v5662, 1.442695
    %v5690 = vpow.pop %v5689
    %v5691 = vmul.f32 %v5663, 1.442695
    %v5692 = vpow.pop %v5691
    %v5693 = vmul.f32 %v5664, 1.442695
    %v5694 = vpow.pop %v5693
    %v5695 = vmul.f32 %v5665, 1.442695
    %v5696 = vpow.pop %v5695
    %v5697 = vmul.f32 %v5666, 1.442695
    %v5698 = vpow.pop %v5697
    %v5699 = vsel %vm566, %v5668, 0.0
    %5700 = vadd.xlane.f32.xlu0 %v5699
    %v5701 = vpop.xlane.xlu0 %5700
    %v5702 = vsel %vm566, %v5670, 0.0
    %5703 = vadd.xlane.f32.xlu0 %v5702
    %v5704 = vpop.xlane.xlu0 %5703
    %v5705 = vsel %vm566, %v5672, 0.0
    %5706 = vadd.xlane.f32.xlu0 %v5705
    %v5707 = vpop.xlane.xlu0 %5706
    %v5708 = vsel %vm566, %v5674, 0.0
    %5709 = vadd.xlane.f32.xlu0 %v5708
    %v5710 = vpop.xlane.xlu0 %5709
    %v5711 = vsel %vm566, %v5676, 0.0
    %5712 = vadd.xlane.f32.xlu0 %v5711
    %v5713 = vpop.xlane.xlu0 %5712
    %v5714 = vsel %vm566, %v5678, 0.0
    %5715 = vadd.xlane.f32.xlu0 %v5714
    %v5716 = vpop.xlane.xlu0 %5715
    %v5717 = vsel %vm566, %v5680, 0.0
    %5718 = vadd.xlane.f32.xlu0 %v5717
    %v5719 = vpop.xlane.xlu0 %5718
    %v5720 = vsel %vm566, %v5682, 0.0
    %5721 = vadd.xlane.f32.xlu0 %v5720
    %v5722 = vpop.xlane.xlu0 %5721
    %v5723 = vsel %vm566, %v5684, 0.0
    %5724 = vadd.xlane.f32.xlu0 %v5723
    %v5725 = vpop.xlane.xlu0 %5724
    %v5726 = vsel %vm566, %v5686, 0.0
    %5727 = vadd.xlane.f32.xlu0 %v5726
    %v5728 = vpop.xlane.xlu0 %5727
    %v5729 = vsel %vm566, %v5688, 0.0
    %5730 = vadd.xlane.f32.xlu0 %v5729
    %v5731 = vpop.xlane.xlu0 %5730
    %v5732 = vsel %vm566, %v5690, 0.0
    %5733 = vadd.xlane.f32.xlu0 %v5732
    %v5734 = vpop.xlane.xlu0 %5733
    %v5735 = vsel %vm566, %v5692, 0.0
    %5736 = vadd.xlane.f32.xlu0 %v5735
    %v5737 = vpop.xlane.xlu0 %5736
    %v5738 = vsel %vm566, %v5694, 0.0
    %5739 = vadd.xlane.f32.xlu0 %v5738
    %v5740 = vpop.xlane.xlu0 %5739
    %v5741 = vsel %vm566, %v5696, 0.0
    %5742 = vadd.xlane.f32.xlu0 %v5741
    %v5743 = vpop.xlane.xlu0 %5742
    %v5744 = vsel %vm566, %v5698, 0.0
    %5745 = vadd.xlane.f32.xlu0 %v5744
    %v5746 = vpop.xlane.xlu0 %5745
    %v5747 = vrcp.pop %v5701
    %v5748 = vrcp.pop %v5704
    %v5749 = vrcp.pop %v5707
    %v5750 = vrcp.pop %v5710
    %v5751 = vrcp.pop %v5713
    %v5752 = vrcp.pop %v5716
    %v5753 = vrcp.pop %v5719
    %v5754 = vrcp.pop %v5722
    %v5755 = vrcp.pop %v5725
    %v5756 = vrcp.pop %v5728
    %v5757 = vrcp.pop %v5731
    %v5758 = vrcp.pop %v5734
    %v5759 = vrcp.pop %v5737
    %v5760 = vrcp.pop %v5740
    %v5761 = vrcp.pop %v5743
    %v5762 = vrcp.pop %v5746
    %v5763 = vmul.f32 %v5668, %v5747
    %v5764 = vmul.f32 %v5670, %v5748
    %v5765 = vmul.f32 %v5672, %v5749
    %v5766 = vmul.f32 %v5674, %v5750
    %v5767 = vmul.f32 %v5676, %v5751
    %v5768 = vmul.f32 %v5678, %v5752
    %v5769 = vmul.f32 %v5680, %v5753
    %v5770 = vmul.f32 %v5682, %v5754
    %v5771 = vmul.f32 %v5684, %v5755
    %v5772 = vmul.f32 %v5686, %v5756
    %v5773 = vmul.f32 %v5688, %v5757
    %v5774 = vmul.f32 %v5690, %v5758
    %v5775 = vmul.f32 %v5692, %v5759
    %v5776 = vmul.f32 %v5694, %v5760
    %v5777 = vmul.f32 %v5696, %v5761
    %v5778 = vmul.f32 %v5698, %v5762
    %v5780 = vsel %vm566, %v5763, 0
    %v5783 = vsel %vm566, %v5764, 0
    %v5786 = vsel %vm566, %v5765, 0
    %v5789 = vsel %vm566, %v5766, 0
    %v5792 = vsel %vm566, %v5767, 0
    %v5795 = vsel %vm566, %v5768, 0
    %v5798 = vsel %vm566, %v5769, 0
    %v5801 = vsel %vm566, %v5770, 0
    %v5804 = vsel %vm566, %v5771, 0
    %v5807 = vsel %vm566, %v5772, 0
    %v5810 = vsel %vm566, %v5773, 0
    %v5813 = vsel %vm566, %v5774, 0
    %v5816 = vsel %vm566, %v5775, 0
    %v5819 = vsel %vm566, %v5776, 0
    %v5822 = vsel %vm566, %v5777, 0
    %v5825 = vsel %vm566, %v5778, 0
    %5827 = vmatprep.subr.mxu0 0.0
    %5828 = vmatpush1.msra.mxu0 %v2627
    %5829 = vmatprep.subr.mxu0 0.0
    %5830 = vmatpush1.msra.mxu0 %v2629
    %5831 = vmatprep.subr.mxu0 0.0
    %5832 = vmatpush1.msra.mxu0 0.0
    %5833 = vmatprep.subr.mxu0 0.0
    %5834 = vmatpush1.msra.mxu0 0.0
    %5835 = vmatprep.subr.mxu0 0.0
    %5836 = vmatpush1.msra.mxu0 0.0
    %5837 = vmatprep.subr.mxu0 0.0
    %5838 = vmatpush1.msra.mxu0 0.0
    %5839 = vmatprep.subr.mxu0 0.0
    %5840 = vmatpush1.msra.mxu0 0.0
    %5841 = vmatprep.subr.mxu0 0.0
    %5842 = vmatpush1.msra.mxu0 0.0
    %5843 = vmatprep.subr.mxu0 0.0
    %5844 = vmatpush1.msra.mxu0 0.0
    %5845 = vmatprep.subr.mxu0 0.0
    %5846 = vmatpush1.msra.mxu0 0.0
    %5847 = vmatprep.subr.mxu0 0.0
    %5848 = vmatpush1.msra.mxu0 0.0
    %5849 = vmatprep.subr.mxu0 0.0
    %5850 = vmatpush1.msra.mxu0 0.0
    %5851 = vmatprep.subr.mxu0 0.0
    %5852 = vmatpush1.msra.mxu0 0.0
    %5853 = vmatprep.subr.mxu0 0.0
    %5854 = vmatpush1.msra.mxu0 0.0
    %5855 = vmatprep.subr.mxu0 0.0
    %5856 = vmatpush1.msra.mxu0 0.0
    %5857 = vmatprep.subr.mxu0 0.0
    %5858 = vmatpush1.msra.mxu0 0.0
    %5859 = vmatprep.subr.mxu0 0.0
    %5860 = vmatpush1.msra.mxu0 0.0
    %5861 = vmatprep.subr.mxu0 0.0
    %5862 = vmatpush1.msra.mxu0 0.0
    %5863 = vmatprep.subr.mxu0 0.0
    %5864 = vmatpush1.msra.mxu0 0.0
    %5865 = vmatprep.subr.mxu0 0.0
    %5866 = vmatpush1.msra.mxu0 0.0
    %5867 = vmatprep.subr.mxu0 0.0
    %5868 = vmatpush1.msra.mxu0 0.0
    %5869 = vmatprep.subr.mxu0 0.0
    %5870 = vmatpush1.msra.mxu0 0.0
    %5871 = vmatprep.subr.mxu0 0.0
    %5872 = vmatpush1.msra.mxu0 0.0
    %5873 = vmatprep.subr.mxu0 0.0
    %5874 = vmatpush1.msra.mxu0 0.0
    %5875 = vmatprep.subr.mxu0 0.0
    %5876 = vmatpush1.msra.mxu0 0.0
    %5877 = vmatprep.subr.mxu0 0.0
    %5878 = vmatpush1.msra.mxu0 0.0
    %5879 = vmatprep.subr.mxu0 0.0
    %5880 = vmatpush1.msra.mxu0 0.0
    %5881 = vmatprep.subr.mxu0 0.0
    %5882 = vmatpush1.msra.mxu0 0.0
    %5883 = vmatprep.subr.mxu0 0.0
    %5884 = vmatpush1.msra.mxu0 0.0
    %5885 = vmatprep.subr.mxu0 0.0
    %5886 = vmatpush1.msra.mxu0 0.0
    %5887 = vmatprep.subr.mxu0 0.0
    %5888 = vmatpush1.msra.mxu0 0.0
    %5889 = vmatprep.subr.mxu0 0.0
    %5890 = vmatpush1.msra.mxu0 0.0
    %5891 = vmatprep.mubr.f32.mxu0 0.0
    %5892 = vmatmul.mubr.f32.gmra.mrb[0].mxu0 %v5780
    %v5893 = vpop.f32.mrb[0].mxu0
    %v5894 = vadd.f32 0.0, %v5893
    %v5895 = vpop.f32.mrb[0].mxu0
    %5896 = vmatprep.mubr.f32.mxu0 0.0
    %5897 = vmatmul.mubr.f32.gmra.mrb[0].mxu0 %v5783
    %v5898 = vpop.f32.mrb[0].mxu0
    %v5899 = vadd.f32 0.0, %v5898
    %v5900 = vpop.f32.mrb[0].mxu0
    %5901 = vmatprep.mubr.f32.mxu0 0.0
    %5902 = vmatmul.mubr.f32.gmra.mrb[0].mxu0 %v5786
    %v5903 = vpop.f32.mrb[0].mxu0
    %v5904 = vadd.f32 0.0, %v5903
    %v5905 = vpop.f32.mrb[0].mxu0
    %5906 = vmatprep.mubr.f32.mxu0 0.0
    %5907 = vmatmul.mubr.f32.gmra.mrb[0].mxu0 %v5789
    %v5908 = vpop.f32.mrb[0].mxu0
    %v5909 = vadd.f32 0.0, %v5908
    %v5910 = vpop.f32.mrb[0].mxu0
    %5911 = vmatprep.mubr.f32.mxu0 0.0
    %5912 = vmatmul.mubr.f32.gmra.mrb[0].mxu0 %v5792
    %v5913 = vpop.f32.mrb[0].mxu0
    %v5914 = vadd.f32 0.0, %v5913
    %v5915 = vpop.f32.mrb[0].mxu0
    %5916 = vmatprep.mubr.f32.mxu0 0.0
    %5917 = vmatmul.mubr.f32.gmra.mrb[0].mxu0 %v5795
    %v5918 = vpop.f32.mrb[0].mxu0
    %v5919 = vadd.f32 0.0, %v5918
    %v5920 = vpop.f32.mrb[0].mxu0
    %5921 = vmatprep.mubr.f32.mxu0 0.0
    %5922 = vmatmul.mubr.f32.gmra.mrb[0].mxu0 %v5798
    %v5923 = vpop.f32.mrb[0].mxu0
    %v5924 = vadd.f32 0.0, %v5923
    %v5925 = vpop.f32.mrb[0].mxu0
    %5926 = vmatprep.mubr.f32.mxu0 0.0
    %5927 = vmatmul.mubr.f32.gmra.mrb[0].mxu0 %v5801
    %v5928 = vpop.f32.mrb[0].mxu0
    %v5929 = vadd.f32 0.0, %v5928
    %v5930 = vpop.f32.mrb[0].mxu0
    %5931 = vmatprep.mubr.f32.mxu0 0.0
    %5932 = vmatmul.mubr.f32.gmra.mrb[0].mxu0 %v5804
    %v5933 = vpop.f32.mrb[0].mxu0
    %v5934 = vadd.f32 0.0, %v5933
    %v5935 = vpop.f32.mrb[0].mxu0
    %5936 = vmatprep.mubr.f32.mxu0 0.0
    %5937 = vmatmul.mubr.f32.gmra.mrb[0].mxu0 %v5807
    %v5938 = vpop.f32.mrb[0].mxu0
    %v5939 = vadd.f32 0.0, %v5938
    %v5940 = vpop.f32.mrb[0].mxu0
    %5941 = vmatprep.mubr.f32.mxu0 0.0
    %5942 = vmatmul.mubr.f32.gmra.mrb[0].mxu0 %v5810
    %v5943 = vpop.f32.mrb[0].mxu0
    %v5944 = vadd.f32 0.0, %v5943
    %v5945 = vpop.f32.mrb[0].mxu0
    %5946 = vmatprep.mubr.f32.mxu0 0.0
    %5947 = vmatmul.mubr.f32.gmra.mrb[0].mxu0 %v5813
    %v5948 = vpop.f32.mrb[0].mxu0
    %v5949 = vadd.f32 0.0, %v5948
    %v5950 = vpop.f32.mrb[0].mxu0
    %5951 = vmatprep.mubr.f32.mxu0 0.0
    %5952 = vmatmul.mubr.f32.gmra.mrb[0].mxu0 %v5816
    %v5953 = vpop.f32.mrb[0].mxu0
    %v5954 = vadd.f32 0.0, %v5953
    %v5955 = vpop.f32.mrb[0].mxu0
    %5956 = vmatprep.mubr.f32.mxu0 0.0
    %5957 = vmatmul.mubr.f32.gmra.mrb[0].mxu0 %v5819
    %v5958 = vpop.f32.mrb[0].mxu0
    %v5959 = vadd.f32 0.0, %v5958
    %v5960 = vpop.f32.mrb[0].mxu0
    %5961 = vmatprep.mubr.f32.mxu0 0.0
    %5962 = vmatmul.mubr.f32.gmra.mrb[0].mxu0 %v5822
    %v5963 = vpop.f32.mrb[0].mxu0
    %v5964 = vadd.f32 0.0, %v5963
    %v5965 = vpop.f32.mrb[0].mxu0
    %5966 = vmatprep.mubr.f32.mxu0 0.0
    %5967 = vmatmul.mubr.f32.gmra.mrb[0].mxu0 %v5825
    %v5968 = vpop.f32.mrb[0].mxu0
    %v5969 = vadd.f32 0.0, %v5968
    %v5970 = vpop.f32.mrb[0].mxu0
    %5971 = vdwg.mxu0
    %v5973 = vsel %vm375, %v5894, 0
    %v5976 = vsel %vm375, %v5899, 0
    %v5979 = vsel %vm375, %v5904, 0
    %v5982 = vsel %vm375, %v5909, 0
    %v5985 = vsel %vm375, %v5914, 0
    %v5988 = vsel %vm375, %v5919, 0
    %v5991 = vsel %vm375, %v5924, 0
    %v5994 = vsel %vm375, %v5929, 0
    %v5997 = vsel %vm375, %v5934, 0
    %v6000 = vsel %vm375, %v5939, 0
    %v6003 = vsel %vm375, %v5944, 0
    %v6006 = vsel %vm375, %v5949, 0
    %v6009 = vsel %vm375, %v5954, 0
    %v6012 = vsel %vm375, %v5959, 0
    %v6015 = vsel %vm375, %v5964, 0
    %v6018 = vsel %vm375, %v5969, 0
    %6020 = vmatprep.subr.mxu0 0.0
    %6021 = vmatpush1.msra.mxu0 %v2825
    %6022 = vmatprep.subr.mxu0 0.0
    %6023 = vmatpush1.msra.mxu0 %v2826
    %6024 = vmatprep.subr.mxu0 0.0
    %6025 = vmatpush1.msra.mxu0 %v2827
    %6026 = vmatprep.subr.mxu0 0.0
    %6027 = vmatpush1.msra.mxu0 %v2828
    %6028 = vmatprep.subr.mxu0 0.0
    %6029 = vmatpush1.msra.mxu0 %v2829
    %6030 = vmatprep.subr.mxu0 0.0
    %6031 = vmatpush1.msra.mxu0 %v2830
    %6032 = vmatprep.subr.mxu0 0.0
    %6033 = vmatpush1.msra.mxu0 %v2831
    %6034 = vmatprep.subr.mxu0 0.0
    %6035 = vmatpush1.msra.mxu0 %v2832
    %6036 = vmatprep.subr.mxu0 0.0
    %6037 = vmatpush1.msra.mxu0 0.0
    %6038 = vmatprep.subr.mxu0 0.0
    %6039 = vmatpush1.msra.mxu0 0.0
    %6040 = vmatprep.subr.mxu0 0.0
    %6041 = vmatpush1.msra.mxu0 0.0
    %6042 = vmatprep.subr.mxu0 0.0
    %6043 = vmatpush1.msra.mxu0 0.0
    %6044 = vmatprep.subr.mxu0 0.0
    %6045 = vmatpush1.msra.mxu0 0.0
    %6046 = vmatprep.subr.mxu0 0.0
    %6047 = vmatpush1.msra.mxu0 0.0
    %6048 = vmatprep.subr.mxu0 0.0
    %6049 = vmatpush1.msra.mxu0 0.0
    %6050 = vmatprep.subr.mxu0 0.0
    %6051 = vmatpush1.msra.mxu0 0.0
    %6052 = vmatprep.subr.mxu0 0.0
    %6053 = vmatpush1.msra.mxu0 0.0
    %6054 = vmatprep.subr.mxu0 0.0
    %6055 = vmatpush1.msra.mxu0 0.0
    %6056 = vmatprep.subr.mxu0 0.0
    %6057 = vmatpush1.msra.mxu0 0.0
    %6058 = vmatprep.subr.mxu0 0.0
    %6059 = vmatpush1.msra.mxu0 0.0
    %6060 = vmatprep.subr.mxu0 0.0
    %6061 = vmatpush1.msra.mxu0 0.0
    %6062 = vmatprep.subr.mxu0 0.0
    %6063 = vmatpush1.msra.mxu0 0.0
    %6064 = vmatprep.subr.mxu0 0.0
    %6065 = vmatpush1.msra.mxu0 0.0
    %6066 = vmatprep.subr.mxu0 0.0
    %6067 = vmatpush1.msra.mxu0 0.0
    %6068 = vmatprep.subr.mxu0 0.0
    %6069 = vmatpush1.msra.mxu0 0.0
    %6070 = vmatprep.subr.mxu0 0.0
    %6071 = vmatpush1.msra.mxu0 0.0
    %6072 = vmatprep.subr.mxu0 0.0
    %6073 = vmatpush1.msra.mxu0 0.0
    %6074 = vmatprep.subr.mxu0 0.0
    %6075 = vmatpush1.msra.mxu0 0.0
    %6076 = vmatprep.subr.mxu0 0.0
    %6077 = vmatpush1.msra.mxu0 0.0
    %6078 = vmatprep.subr.mxu0 0.0
    %6079 = vmatpush1.msra.mxu0 0.0
    %6080 = vmatprep.subr.mxu0 0.0
    %6081 = vmatpush1.msra.mxu0 0.0
    %6082 = vmatprep.subr.mxu0 0.0
    %6083 = vmatpush1.msra.mxu0 0.0
    %6084 = vmatprep.mubr.f32.mxu0 0.0
    %6085 = vmatmul.mubr.f32.gmra.mrb[0].mxu0 %v5973
    %v6086 = vpop.f32.mrb[0].mxu0
    %v6087 = vadd.f32 0.0, %v6086
    %v6088 = vpop.f32.mrb[0].mxu0
    %6089 = vmatprep.mubr.f32.mxu0 0.0
    %6090 = vmatmul.mubr.f32.gmra.mrb[0].mxu0 %v5976
    %v6091 = vpop.f32.mrb[0].mxu0
    %v6092 = vadd.f32 0.0, %v6091
    %v6093 = vpop.f32.mrb[0].mxu0
    %6094 = vmatprep.mubr.f32.mxu0 0.0
    %6095 = vmatmul.mubr.f32.gmra.mrb[0].mxu0 %v5979
    %v6096 = vpop.f32.mrb[0].mxu0
    %v6097 = vadd.f32 0.0, %v6096
    %v6098 = vpop.f32.mrb[0].mxu0
    %6099 = vmatprep.mubr.f32.mxu0 0.0
    %6100 = vmatmul.mubr.f32.gmra.mrb[0].mxu0 %v5982
    %v6101 = vpop.f32.mrb[0].mxu0
    %v6102 = vadd.f32 0.0, %v6101
    %v6103 = vpop.f32.mrb[0].mxu0
    %6104 = vmatprep.mubr.f32.mxu0 0.0
    %6105 = vmatmul.mubr.f32.gmra.mrb[0].mxu0 %v5985
    %v6106 = vpop.f32.mrb[0].mxu0
    %v6107 = vadd.f32 0.0, %v6106
    %v6108 = vpop.f32.mrb[0].mxu0
    %6109 = vmatprep.mubr.f32.mxu0 0.0
    %6110 = vmatmul.mubr.f32.gmra.mrb[0].mxu0 %v5988
    %v6111 = vpop.f32.mrb[0].mxu0
    %v6112 = vadd.f32 0.0, %v6111
    %v6113 = vpop.f32.mrb[0].mxu0
    %6114 = vmatprep.mubr.f32.mxu0 0.0
    %6115 = vmatmul.mubr.f32.gmra.mrb[0].mxu0 %v5991
    %v6116 = vpop.f32.mrb[0].mxu0
    %v6117 = vadd.f32 0.0, %v6116
    %v6118 = vpop.f32.mrb[0].mxu0
    %6119 = vmatprep.mubr.f32.mxu0 0.0
    %6120 = vmatmul.mubr.f32.gmra.mrb[0].mxu0 %v5994
    %v6121 = vpop.f32.mrb[0].mxu0
    %v6122 = vadd.f32 0.0, %v6121
    %v6123 = vpop.f32.mrb[0].mxu0
    %6124 = vmatprep.mubr.f32.mxu0 0.0
    %6125 = vmatmul.mubr.f32.gmra.mrb[0].mxu0 %v5997
    %v6126 = vpop.f32.mrb[0].mxu0
    %v6127 = vadd.f32 0.0, %v6126
    %v6128 = vpop.f32.mrb[0].mxu0
    %6129 = vmatprep.mubr.f32.mxu0 0.0
    %6130 = vmatmul.mubr.f32.gmra.mrb[0].mxu0 %v6000
    %v6131 = vpop.f32.mrb[0].mxu0
    %v6132 = vadd.f32 0.0, %v6131
    %v6133 = vpop.f32.mrb[0].mxu0
    %6134 = vmatprep.mubr.f32.mxu0 0.0
    %6135 = vmatmul.mubr.f32.gmra.mrb[0].mxu0 %v6003
    %v6136 = vpop.f32.mrb[0].mxu0
    %v6137 = vadd.f32 0.0, %v6136
    %v6138 = vpop.f32.mrb[0].mxu0
    %6139 = vmatprep.mubr.f32.mxu0 0.0
    %6140 = vmatmul.mubr.f32.gmra.mrb[0].mxu0 %v6006
    %v6141 = vpop.f32.mrb[0].mxu0
    %v6142 = vadd.f32 0.0, %v6141
    %v6143 = vpop.f32.mrb[0].mxu0
    %6144 = vmatprep.mubr.f32.mxu0 0.0
    %6145 = vmatmul.mubr.f32.gmra.mrb[0].mxu0 %v6009
    %v6146 = vpop.f32.mrb[0].mxu0
    %v6147 = vadd.f32 0.0, %v6146
    %v6148 = vpop.f32.mrb[0].mxu0
    %6149 = vmatprep.mubr.f32.mxu0 0.0
    %6150 = vmatmul.mubr.f32.gmra.mrb[0].mxu0 %v6012
    %v6151 = vpop.f32.mrb[0].mxu0
    %v6152 = vadd.f32 0.0, %v6151
    %v6153 = vpop.f32.mrb[0].mxu0
    %6154 = vmatprep.mubr.f32.mxu0 0.0
    %6155 = vmatmul.mubr.f32.gmra.mrb[0].mxu0 %v6015
    %v6156 = vpop.f32.mrb[0].mxu0
    %v6157 = vadd.f32 0.0, %v6156
    %v6158 = vpop.f32.mrb[0].mxu0
    %6159 = vmatprep.mubr.f32.mxu0 0.0
    %6160 = vmatmul.mubr.f32.gmra.mrb[0].mxu0 %v6018
    %v6161 = vpop.f32.mrb[0].mxu0
    %v6162 = vadd.f32 0.0, %v6161
    %v6163 = vpop.f32.mrb[0].mxu0
    %6164 = vdwg.mxu0
    %v6165 = vadd.f32 %v5169, %v6087
    %v6166 = vadd.f32 %v5170, %v6092
    %v6167 = vadd.f32 %v5171, %v6097
    %v6168 = vadd.f32 %v5172, %v6102
    %v6169 = vadd.f32 %v5173, %v6107
    %v6170 = vadd.f32 %v5174, %v6112
    %v6171 = vadd.f32 %v5175, %v6117
    %v6172 = vadd.f32 %v5176, %v6122
    %v6173 = vadd.f32 %v5177, %v6127
    %v6174 = vadd.f32 %v5178, %v6132
    %v6175 = vadd.f32 %v5179, %v6137
    %v6176 = vadd.f32 %v5180, %v6142
    %v6177 = vadd.f32 %v5181, %v6147
    %v6178 = vadd.f32 %v5182, %v6152
    %v6179 = vadd.f32 %v5183, %v6157
    %v6180 = vadd.f32 %v5184, %v6162
    %v6182 = vsel %vm375, %v6165, 0
    %v6185 = vsel %vm375, %v6166, 0
    %v6188 = vsel %vm375, %v6167, 0
    %v6191 = vsel %vm375, %v6168, 0
    %v6194 = vsel %vm375, %v6169, 0
    %v6197 = vsel %vm375, %v6170, 0
    %v6200 = vsel %vm375, %v6171, 0
    %v6203 = vsel %vm375, %v6172, 0
    %v6206 = vsel %vm375, %v6173, 0
    %v6209 = vsel %vm375, %v6174, 0
    %v6212 = vsel %vm375, %v6175, 0
    %v6215 = vsel %vm375, %v6176, 0
    %v6218 = vsel %vm375, %v6177, 0
    %v6221 = vsel %vm375, %v6178, 0
    %v6224 = vsel %vm375, %v6179, 0
    %v6227 = vsel %vm375, %v6180, 0
    %6229 = vmatprep.subr.mxu0 0.0
    %6230 = vmatpush1.msra.mxu0 %v3042
    %6231 = vmatprep.subr.mxu0 0.0
    %6232 = vmatpush1.msra.mxu0 %v3043
    %6233 = vmatprep.subr.mxu0 0.0
    %6234 = vmatpush1.msra.mxu0 %v3044
    %6235 = vmatprep.subr.mxu0 0.0
    %6236 = vmatpush1.msra.mxu0 %v3045
    %6237 = vmatprep.subr.mxu0 0.0
    %6238 = vmatpush1.msra.mxu0 %v3046
    %6239 = vmatprep.subr.mxu0 0.0
    %6240 = vmatpush1.msra.mxu0 %v3047
    %6241 = vmatprep.subr.mxu0 0.0
    %6242 = vmatpush1.msra.mxu0 %v3048
    %6243 = vmatprep.subr.mxu0 0.0
    %6244 = vmatpush1.msra.mxu0 %v3049
    %6245 = vmatprep.subr.mxu0 0.0
    %6246 = vmatpush1.msra.mxu0 0.0
    %6247 = vmatprep.subr.mxu0 0.0
    %6248 = vmatpush1.msra.mxu0 0.0
    %6249 = vmatprep.subr.mxu0 0.0
    %6250 = vmatpush1.msra.mxu0 0.0
    %6251 = vmatprep.subr.mxu0 0.0
    %6252 = vmatpush1.msra.mxu0 0.0
    %6253 = vmatprep.subr.mxu0 0.0
    %6254 = vmatpush1.msra.mxu0 0.0
    %6255 = vmatprep.subr.mxu0 0.0
    %6256 = vmatpush1.msra.mxu0 0.0
    %6257 = vmatprep.subr.mxu0 0.0
    %6258 = vmatpush1.msra.mxu0 0.0
    %6259 = vmatprep.subr.mxu0 0.0
    %6260 = vmatpush1.msra.mxu0 0.0
    %6261 = vmatprep.subr.mxu0 0.0
    %6262 = vmatpush1.msra.mxu0 0.0
    %6263 = vmatprep.subr.mxu0 0.0
    %6264 = vmatpush1.msra.mxu0 0.0
    %6265 = vmatprep.subr.mxu0 0.0
    %6266 = vmatpush1.msra.mxu0 0.0
    %6267 = vmatprep.subr.mxu0 0.0
    %6268 = vmatpush1.msra.mxu0 0.0
    %6269 = vmatprep.subr.mxu0 0.0
    %6270 = vmatpush1.msra.mxu0 0.0
    %6271 = vmatprep.subr.mxu0 0.0
    %6272 = vmatpush1.msra.mxu0 0.0
    %6273 = vmatprep.subr.mxu0 0.0
    %6274 = vmatpush1.msra.mxu0 0.0
    %6275 = vmatprep.subr.mxu0 0.0
    %6276 = vmatpush1.msra.mxu0 0.0
    %6277 = vmatprep.subr.mxu0 0.0
    %6278 = vmatpush1.msra.mxu0 0.0
    %6279 = vmatprep.subr.mxu0 0.0
    %6280 = vmatpush1.msra.mxu0 0.0
    %6281 = vmatprep.subr.mxu0 0.0
    %6282 = vmatpush1.msra.mxu0 0.0
    %6283 = vmatprep.subr.mxu0 0.0
    %6284 = vmatpush1.msra.mxu0 0.0
    %6285 = vmatprep.subr.mxu0 0.0
    %6286 = vmatpush1.msra.mxu0 0.0
    %6287 = vmatprep.subr.mxu0 0.0
    %6288 = vmatpush1.msra.mxu0 0.0
    %6289 = vmatprep.subr.mxu0 0.0
    %6290 = vmatpush1.msra.mxu0 0.0
    %6291 = vmatprep.subr.mxu0 0.0
    %6292 = vmatpush1.msra.mxu0 0.0
    %6293 = vmatprep.mubr.f32.mxu0 0.0
    %6294 = vmatmul.mubr.f32.gmra.mrb[0].mxu0 %v6182
    %v6295 = vpop.f32.mrb[0].mxu0
    %v6296 = vadd.f32 %v3055, %v6295
    %v6297 = vpop.f32.mrb[0].mxu0
    %6298 = vmatprep.mubr.f32.mxu0 0.0
    %6299 = vmatmul.mubr.f32.gmra.mrb[0].mxu0 %v6185
    %v6300 = vpop.f32.mrb[0].mxu0
    %v6301 = vadd.f32 %v3055, %v6300
    %v6302 = vpop.f32.mrb[0].mxu0
    %6303 = vmatprep.mubr.f32.mxu0 0.0
    %6304 = vmatmul.mubr.f32.gmra.mrb[0].mxu0 %v6188
    %v6305 = vpop.f32.mrb[0].mxu0
    %v6306 = vadd.f32 %v3055, %v6305
    %v6307 = vpop.f32.mrb[0].mxu0
    %6308 = vmatprep.mubr.f32.mxu0 0.0
    %6309 = vmatmul.mubr.f32.gmra.mrb[0].mxu0 %v6191
    %v6310 = vpop.f32.mrb[0].mxu0
    %v6311 = vadd.f32 %v3055, %v6310
    %v6312 = vpop.f32.mrb[0].mxu0
    %6313 = vmatprep.mubr.f32.mxu0 0.0
    %6314 = vmatmul.mubr.f32.gmra.mrb[0].mxu0 %v6194
    %v6315 = vpop.f32.mrb[0].mxu0
    %v6316 = vadd.f32 %v3055, %v6315
    %v6317 = vpop.f32.mrb[0].mxu0
    %6318 = vmatprep.mubr.f32.mxu0 0.0
    %6319 = vmatmul.mubr.f32.gmra.mrb[0].mxu0 %v6197
    %v6320 = vpop.f32.mrb[0].mxu0
    %v6321 = vadd.f32 %v3055, %v6320
    %v6322 = vpop.f32.mrb[0].mxu0
    %6323 = vmatprep.mubr.f32.mxu0 0.0
    %6324 = vmatmul.mubr.f32.gmra.mrb[0].mxu0 %v6200
    %v6325 = vpop.f32.mrb[0].mxu0
    %v6326 = vadd.f32 %v3055, %v6325
    %v6327 = vpop.f32.mrb[0].mxu0
    %6328 = vmatprep.mubr.f32.mxu0 0.0
    %6329 = vmatmul.mubr.f32.gmra.mrb[0].mxu0 %v6203
    %v6330 = vpop.f32.mrb[0].mxu0
    %v6331 = vadd.f32 %v3055, %v6330
    %v6332 = vpop.f32.mrb[0].mxu0
    %6333 = vmatprep.mubr.f32.mxu0 0.0
    %6334 = vmatmul.mubr.f32.gmra.mrb[0].mxu0 %v6206
    %v6335 = vpop.f32.mrb[0].mxu0
    %v6336 = vadd.f32 %v3055, %v6335
    %v6337 = vpop.f32.mrb[0].mxu0
    %6338 = vmatprep.mubr.f32.mxu0 0.0
    %6339 = vmatmul.mubr.f32.gmra.mrb[0].mxu0 %v6209
    %v6340 = vpop.f32.mrb[0].mxu0
    %v6341 = vadd.f32 %v3055, %v6340
    %v6342 = vpop.f32.mrb[0].mxu0
    %6343 = vmatprep.mubr.f32.mxu0 0.0
    %6344 = vmatmul.mubr.f32.gmra.mrb[0].mxu0 %v6212
    %v6345 = vpop.f32.mrb[0].mxu0
    %v6346 = vadd.f32 %v3055, %v6345
    %v6347 = vpop.f32.mrb[0].mxu0
    %6348 = vmatprep.mubr.f32.mxu0 0.0
    %6349 = vmatmul.mubr.f32.gmra.mrb[0].mxu0 %v6215
    %v6350 = vpop.f32.mrb[0].mxu0
    %v6351 = vadd.f32 %v3055, %v6350
    %v6352 = vpop.f32.mrb[0].mxu0
    %6353 = vmatprep.mubr.f32.mxu0 0.0
    %6354 = vmatmul.mubr.f32.gmra.mrb[0].mxu0 %v6218
    %v6355 = vpop.f32.mrb[0].mxu0
    %v6356 = vadd.f32 %v3055, %v6355
    %v6357 = vpop.f32.mrb[0].mxu0
    %6358 = vmatprep.mubr.f32.mxu0 0.0
    %6359 = vmatmul.mubr.f32.gmra.mrb[0].mxu0 %v6221
    %v6360 = vpop.f32.mrb[0].mxu0
    %v6361 = vadd.f32 %v3055, %v6360
    %v6362 = vpop.f32.mrb[0].mxu0
    %6363 = vmatprep.mubr.f32.mxu0 0.0
    %6364 = vmatmul.mubr.f32.gmra.mrb[0].mxu0 %v6224
    %v6365 = vpop.f32.mrb[0].mxu0
    %v6366 = vadd.f32 %v3055, %v6365
    %v6367 = vpop.f32.mrb[0].mxu0
    %6368 = vmatprep.mubr.f32.mxu0 0.0
    %6369 = vmatmul.mubr.f32.gmra.mrb[0].mxu0 %v6227
    %v6370 = vpop.f32.mrb[0].mxu0
    %v6371 = vadd.f32 %v3055, %v6370
    %v6372 = vpop.f32.mrb[0].mxu0
    %6373 = vdwg.mxu0
    %v6374 = vmul.f32 %v6296, -4.8617997
    %v6375 = vmul.f32 %v6301, -4.8617997
    %v6376 = vmul.f32 %v6306, -4.8617997
    %v6377 = vmul.f32 %v6311, -4.8617997
    %v6378 = vmul.f32 %v6316, -4.8617997
    %v6379 = vmul.f32 %v6321, -4.8617997
    %v6380 = vmul.f32 %v6326, -4.8617997
    %v6381 = vmul.f32 %v6331, -4.8617997
    %v6382 = vmul.f32 %v6336, -4.8617997
    %v6383 = vmul.f32 %v6341, -4.8617997
    %v6384 = vmul.f32 %v6346, -4.8617997
    %v6385 = vmul.f32 %v6351, -4.8617997
    %v6386 = vmul.f32 %v6356, -4.8617997
    %v6387 = vmul.f32 %v6361, -4.8617997
    %v6388 = vmul.f32 %v6366, -4.8617997
    %v6389 = vmul.f32 %v6371, -4.8617997
    %v6390 = vadd.f32 %v4828, %v6374
    %v6391 = vadd.f32 %v4829, %v6375
    %v6392 = vadd.f32 %v4830, %v6376
    %v6393 = vadd.f32 %v4831, %v6377
    %v6394 = vadd.f32 %v4832, %v6378
    %v6395 = vadd.f32 %v4833, %v6379
    %v6396 = vadd.f32 %v4834, %v6380
    %v6397 = vadd.f32 %v4835, %v6381
    %v6398 = vadd.f32 %v4836, %v6382
    %v6399 = vadd.f32 %v4837, %v6383
    %v6400 = vadd.f32 %v4838, %v6384
    %v6401 = vadd.f32 %v4839, %v6385
    %v6402 = vadd.f32 %v4840, %v6386
    %v6403 = vadd.f32 %v4841, %v6387
    %v6404 = vadd.f32 %v4842, %v6388
    %v6405 = vadd.f32 %v4843, %v6389
    %v6406 = vmul.f32 %v6390, 0.99957395
    %v6407 = vmul.f32 %v6391, 0.99957395
    %v6408 = vmul.f32 %v6392, 0.99957395
    %v6409 = vmul.f32 %v6393, 0.99957395
    %v6410 = vmul.f32 %v6394, 0.99957395
    %v6411 = vmul.f32 %v6395, 0.99957395
    %v6412 = vmul.f32 %v6396, 0.99957395
    %v6413 = vmul.f32 %v6397, 0.99957395
    %v6414 = vmul.f32 %v6398, 0.99957395
    %v6415 = vmul.f32 %v6399, 0.99957395
    %v6416 = vmul.f32 %v6400, 0.99957395
    %v6417 = vmul.f32 %v6401, 0.99957395
    %v6418 = vmul.f32 %v6402, 0.99957395
    %v6419 = vmul.f32 %v6403, 0.99957395
    %v6420 = vmul.f32 %v6404, 0.99957395
    %v6421 = vmul.f32 %v6405, 0.99957395
    %v6423 = vsel %vm1688, %v6406, 0
    %v6426 = vsel %vm1688, %v6407, 0
    %v6429 = vsel %vm1688, %v6408, 0
    %v6432 = vsel %vm1688, %v6409, 0
    %v6435 = vsel %vm1688, %v6410, 0
    %v6438 = vsel %vm1688, %v6411, 0
    %v6441 = vsel %vm1688, %v6412, 0
    %v6444 = vsel %vm1688, %v6413, 0
    %v6447 = vsel %vm1688, %v6414, 0
    %v6450 = vsel %vm1688, %v6415, 0
    %v6453 = vsel %vm1688, %v6416, 0
    %v6456 = vsel %vm1688, %v6417, 0
    %v6459 = vsel %vm1688, %v6418, 0
    %v6462 = vsel %vm1688, %v6419, 0
    %v6465 = vsel %vm1688, %v6420, 0
    %v6468 = vsel %vm1688, %v6421, 0
    %6470 = vmatprep.subr.mxu0 0.0
    %6471 = vmatpush1.msra.mxu0 %v1739
    %6472 = vmatprep.subr.mxu0 0.0
    %6473 = vmatpush1.msra.mxu0 0.0
    %6474 = vmatprep.subr.mxu0 0.0
    %6475 = vmatpush1.msra.mxu0 0.0
    %6476 = vmatprep.subr.mxu0 0.0
    %6477 = vmatpush1.msra.mxu0 0.0
    %6478 = vmatprep.subr.mxu0 0.0
    %6479 = vmatpush1.msra.mxu0 0.0
    %6480 = vmatprep.subr.mxu0 0.0
    %6481 = vmatpush1.msra.mxu0 0.0
    %6482 = vmatprep.subr.mxu0 0.0
    %6483 = vmatpush1.msra.mxu0 0.0
    %6484 = vmatprep.subr.mxu0 0.0
    %6485 = vmatpush1.msra.mxu0 0.0
    %6486 = vmatprep.subr.mxu0 0.0
    %6487 = vmatpush1.msra.mxu0 0.0
    %6488 = vmatprep.subr.mxu0 0.0
    %6489 = vmatpush1.msra.mxu0 0.0
    %6490 = vmatprep.subr.mxu0 0.0
    %6491 = vmatpush1.msra.mxu0 0.0
    %6492 = vmatprep.subr.mxu0 0.0
    %6493 = vmatpush1.msra.mxu0 0.0
    %6494 = vmatprep.subr.mxu0 0.0
    %6495 = vmatpush1.msra.mxu0 0.0
    %6496 = vmatprep.subr.mxu0 0.0
    %6497 = vmatpush1.msra.mxu0 0.0
    %6498 = vmatprep.subr.mxu0 0.0
    %6499 = vmatpush1.msra.mxu0 0.0
    %6500 = vmatprep.subr.mxu0 0.0
    %6501 = vmatpush1.msra.mxu0 0.0
    %6502 = vmatprep.subr.mxu0 0.0
    %6503 = vmatpush1.msra.mxu0 0.0
    %6504 = vmatprep.subr.mxu0 0.0
    %6505 = vmatpush1.msra.mxu0 0.0
    %6506 = vmatprep.subr.mxu0 0.0
    %6507 = vmatpush1.msra.mxu0 0.0
    %6508 = vmatprep.subr.mxu0 0.0
    %6509 = vmatpush1.msra.mxu0 0.0
    %6510 = vmatprep.subr.mxu0 0.0
    %6511 = vmatpush1.msra.mxu0 0.0
    %6512 = vmatprep.subr.mxu0 0.0
    %6513 = vmatpush1.msra.mxu0 0.0
    %6514 = vmatprep.subr.mxu0 0.0
    %6515 = vmatpush1.msra.mxu0 0.0
    %6516 = vmatprep.subr.mxu0 0.0
    %6517 = vmatpush1.msra.mxu0 0.0
    %6518 = vmatprep.subr.mxu0 0.0
    %6519 = vmatpush1.msra.mxu0 0.0
    %6520 = vmatprep.subr.mxu0 0.0
    %6521 = vmatpush1.msra.mxu0 0.0
    %6522 = vmatprep.subr.mxu0 0.0
    %6523 = vmatpush1.msra.mxu0 0.0
    %6524 = vmatprep.subr.mxu0 0.0
    %6525 = vmatpush1.msra.mxu0 0.0
    %6526 = vmatprep.subr.mxu0 0.0
    %6527 = vmatpush1.msra.mxu0 0.0
    %6528 = vmatprep.subr.mxu0 0.0
    %6529 = vmatpush1.msra.mxu0 0.0
    %6530 = vmatprep.subr.mxu0 0.0
    %6531 = vmatpush1.msra.mxu0 0.0
    %6532 = vmatprep.subr.mxu0 0.0
    %6533 = vmatpush1.msra.mxu0 0.0
    %6534 = vmatprep.mubr.f32.mxu0 0.0
    %6535 = vmatmul.mubr.f32.gmra.mrb[0].mxu0 %v6423
    %v6536 = vpop.f32.mrb[0].mxu0
    %v6537 = vadd.f32 %v1686, %v6536
    %v6538 = vpop.f32.mrb[0].mxu0
    %6539 = vmatprep.mubr.f32.mxu0 0.0
    %6540 = vmatmul.mubr.f32.gmra.mrb[0].mxu0 %v6426
    %v6541 = vpop.f32.mrb[0].mxu0
    %v6542 = vadd.f32 %v1686, %v6541
    %v6543 = vpop.f32.mrb[0].mxu0
    %6544 = vmatprep.mubr.f32.mxu0 0.0
    %6545 = vmatmul.mubr.f32.gmra.mrb[0].mxu0 %v6429
    %v6546 = vpop.f32.mrb[0].mxu0
    %v6547 = vadd.f32 %v1686, %v6546
    %v6548 = vpop.f32.mrb[0].mxu0
    %6549 = vmatprep.mubr.f32.mxu0 0.0
    %6550 = vmatmul.mubr.f32.gmra.mrb[0].mxu0 %v6432
    %v6551 = vpop.f32.mrb[0].mxu0
    %v6552 = vadd.f32 %v1686, %v6551
    %v6553 = vpop.f32.mrb[0].mxu0
    %6554 = vmatprep.mubr.f32.mxu0 0.0
    %6555 = vmatmul.mubr.f32.gmra.mrb[0].mxu0 %v6435
    %v6556 = vpop.f32.mrb[0].mxu0
    %v6557 = vadd.f32 %v1686, %v6556
    %v6558 = vpop.f32.mrb[0].mxu0
    %6559 = vmatprep.mubr.f32.mxu0 0.0
    %6560 = vmatmul.mubr.f32.gmra.mrb[0].mxu0 %v6438
    %v6561 = vpop.f32.mrb[0].mxu0
    %v6562 = vadd.f32 %v1686, %v6561
    %v6563 = vpop.f32.mrb[0].mxu0
    %6564 = vmatprep.mubr.f32.mxu0 0.0
    %6565 = vmatmul.mubr.f32.gmra.mrb[0].mxu0 %v6441
    %v6566 = vpop.f32.mrb[0].mxu0
    %v6567 = vadd.f32 %v1686, %v6566
    %v6568 = vpop.f32.mrb[0].mxu0
    %6569 = vmatprep.mubr.f32.mxu0 0.0
    %6570 = vmatmul.mubr.f32.gmra.mrb[0].mxu0 %v6444
    %v6571 = vpop.f32.mrb[0].mxu0
    %v6572 = vadd.f32 %v1686, %v6571
    %v6573 = vpop.f32.mrb[0].mxu0
    %6574 = vmatprep.mubr.f32.mxu0 0.0
    %6575 = vmatmul.mubr.f32.gmra.mrb[0].mxu0 %v6447
    %v6576 = vpop.f32.mrb[0].mxu0
    %v6577 = vadd.f32 %v1686, %v6576
    %v6578 = vpop.f32.mrb[0].mxu0
    %6579 = vmatprep.mubr.f32.mxu0 0.0
    %6580 = vmatmul.mubr.f32.gmra.mrb[0].mxu0 %v6450
    %v6581 = vpop.f32.mrb[0].mxu0
    %v6582 = vadd.f32 %v1686, %v6581
    %v6583 = vpop.f32.mrb[0].mxu0
    %6584 = vmatprep.mubr.f32.mxu0 0.0
    %6585 = vmatmul.mubr.f32.gmra.mrb[0].mxu0 %v6453
    %v6586 = vpop.f32.mrb[0].mxu0
    %v6587 = vadd.f32 %v1686, %v6586
    %v6588 = vpop.f32.mrb[0].mxu0
    %6589 = vmatprep.mubr.f32.mxu0 0.0
    %6590 = vmatmul.mubr.f32.gmra.mrb[0].mxu0 %v6456
    %v6591 = vpop.f32.mrb[0].mxu0
    %v6592 = vadd.f32 %v1686, %v6591
    %v6593 = vpop.f32.mrb[0].mxu0
    %6594 = vmatprep.mubr.f32.mxu0 0.0
    %6595 = vmatmul.mubr.f32.gmra.mrb[0].mxu0 %v6459
    %v6596 = vpop.f32.mrb[0].mxu0
    %v6597 = vadd.f32 %v1686, %v6596
    %v6598 = vpop.f32.mrb[0].mxu0
    %6599 = vmatprep.mubr.f32.mxu0 0.0
    %6600 = vmatmul.mubr.f32.gmra.mrb[0].mxu0 %v6462
    %v6601 = vpop.f32.mrb[0].mxu0
    %v6602 = vadd.f32 %v1686, %v6601
    %v6603 = vpop.f32.mrb[0].mxu0
    %6604 = vmatprep.mubr.f32.mxu0 0.0
    %6605 = vmatmul.mubr.f32.gmra.mrb[0].mxu0 %v6465
    %v6606 = vpop.f32.mrb[0].mxu0
    %v6607 = vadd.f32 %v1686, %v6606
    %v6608 = vpop.f32.mrb[0].mxu0
    %6609 = vmatprep.mubr.f32.mxu0 0.0
    %6610 = vmatmul.mubr.f32.gmra.mrb[0].mxu0 %v6468
    %v6611 = vpop.f32.mrb[0].mxu0
    %v6612 = vadd.f32 %v1686, %v6611
    %v6613 = vpop.f32.mrb[0].mxu0
    %6614 = vdwg.mxu0
    %v6615 = vsub.f32 0.0, %v6537
    %v6616 = vsub.f32 0.0, %v6542
    %v6617 = vsub.f32 0.0, %v6547
    %v6618 = vsub.f32 0.0, %v6552
    %v6619 = vsub.f32 0.0, %v6557
    %v6620 = vsub.f32 0.0, %v6562
    %v6621 = vsub.f32 0.0, %v6567
    %v6622 = vsub.f32 0.0, %v6572
    %v6623 = vsub.f32 0.0, %v6577
    %v6624 = vsub.f32 0.0, %v6582
    %v6625 = vsub.f32 0.0, %v6587
    %v6626 = vsub.f32 0.0, %v6592
    %v6627 = vsub.f32 0.0, %v6597
    %v6628 = vsub.f32 0.0, %v6602
    %v6629 = vsub.f32 0.0, %v6607
    %v6630 = vsub.f32 0.0, %v6612
    %v6631 = vmul.f32 %v6615, 1.442695
    %v6632 = vpow.pop %v6631
    %v6633 = vmul.f32 %v6616, 1.442695
    %v6634 = vpow.pop %v6633
    %v6635 = vmul.f32 %v6617, 1.442695
    %v6636 = vpow.pop %v6635
    %v6637 = vmul.f32 %v6618, 1.442695
    %v6638 = vpow.pop %v6637
    %v6639 = vmul.f32 %v6619, 1.442695
    %v6640 = vpow.pop %v6639
    %v6641 = vmul.f32 %v6620, 1.442695
    %v6642 = vpow.pop %v6641
    %v6643 = vmul.f32 %v6621, 1.442695
    %v6644 = vpow.pop %v6643
    %v6645 = vmul.f32 %v6622, 1.442695
    %v6646 = vpow.pop %v6645
    %v6647 = vmul.f32 %v6623, 1.442695
    %v6648 = vpow.pop %v6647
    %v6649 = vmul.f32 %v6624, 1.442695
    %v6650 = vpow.pop %v6649
    %v6651 = vmul.f32 %v6625, 1.442695
    %v6652 = vpow.pop %v6651
    %v6653 = vmul.f32 %v6626, 1.442695
    %v6654 = vpow.pop %v6653
    %v6655 = vmul.f32 %v6627, 1.442695
    %v6656 = vpow.pop %v6655
    %v6657 = vmul.f32 %v6628, 1.442695
    %v6658 = vpow.pop %v6657
    %v6659 = vmul.f32 %v6629, 1.442695
    %v6660 = vpow.pop %v6659
    %v6661 = vmul.f32 %v6630, 1.442695
    %v6662 = vpow.pop %v6661
    %v6663 = vadd.f32 %v6632, 1.0
    %v6664 = vadd.f32 %v6634, 1.0
    %v6665 = vadd.f32 %v6636, 1.0
    %v6666 = vadd.f32 %v6638, 1.0
    %v6667 = vadd.f32 %v6640, 1.0
    %v6668 = vadd.f32 %v6642, 1.0
    %v6669 = vadd.f32 %v6644, 1.0
    %v6670 = vadd.f32 %v6646, 1.0
    %v6671 = vadd.f32 %v6648, 1.0
    %v6672 = vadd.f32 %v6650, 1.0
    %v6673 = vadd.f32 %v6652, 1.0
    %v6674 = vadd.f32 %v6654, 1.0
    %v6675 = vadd.f32 %v6656, 1.0
    %v6676 = vadd.f32 %v6658, 1.0
    %v6677 = vadd.f32 %v6660, 1.0
    %v6678 = vadd.f32 %v6662, 1.0
    %v6679 = vrcp.pop %v6663
    %v6680 = vrcp.pop %v6664
    %v6681 = vrcp.pop %v6665
    %v6682 = vrcp.pop %v6666
    %v6683 = vrcp.pop %v6667
    %v6684 = vrcp.pop %v6668
    %v6685 = vrcp.pop %v6669
    %v6686 = vrcp.pop %v6670
    %v6687 = vrcp.pop %v6671
    %v6688 = vrcp.pop %v6672
    %v6689 = vrcp.pop %v6673
    %v6690 = vrcp.pop %v6674
    %v6691 = vrcp.pop %v6675
    %v6692 = vrcp.pop %v6676
    %v6693 = vrcp.pop %v6677
    %v6694 = vrcp.pop %v6678
    %v6695 = vmul.f32 %v6537, %v6679
    %v6696 = vmul.f32 %v6542, %v6680
    %v6697 = vmul.f32 %v6547, %v6681
    %v6698 = vmul.f32 %v6552, %v6682
    %v6699 = vmul.f32 %v6557, %v6683
    %v6700 = vmul.f32 %v6562, %v6684
    %v6701 = vmul.f32 %v6567, %v6685
    %v6702 = vmul.f32 %v6572, %v6686
    %v6703 = vmul.f32 %v6577, %v6687
    %v6704 = vmul.f32 %v6582, %v6688
    %v6705 = vmul.f32 %v6587, %v6689
    %v6706 = vmul.f32 %v6592, %v6690
    %v6707 = vmul.f32 %v6597, %v6691
    %v6708 = vmul.f32 %v6602, %v6692
    %v6709 = vmul.f32 %v6607, %v6693
    %v6710 = vmul.f32 %v6612, %v6694
    %v6711 = vadd.f32 %v6695, %v1374
    %v6712 = vadd.f32 %v6696, %v1379
    %v6713 = vadd.f32 %v6697, %v1384
    %v6714 = vadd.f32 %v6698, %v1389
    %v6715 = vadd.f32 %v6699, %v1394
    %v6716 = vadd.f32 %v6700, %v1399
    %v6717 = vadd.f32 %v6701, %v1404
    %v6718 = vadd.f32 %v6702, %v1409
    %v6719 = vadd.f32 %v6703, %v1414
    %v6720 = vadd.f32 %v6704, %v1419
    %v6721 = vadd.f32 %v6705, %v1424
    %v6722 = vadd.f32 %v6706, %v1429
    %v6723 = vadd.f32 %v6707, %v1434
    %v6724 = vadd.f32 %v6708, %v1439
    %v6725 = vadd.f32 %v6709, %v1444
    %v6726 = vadd.f32 %v6710, %v1449
    %v6727 = vlaneseq
    %v6728 = vshrl.u32 %v6727, 7
    %v6729 = vsub.s32 3, %v6728
    %v6730 = vrot.slane %v1155, %v6729
    %v6731 = vadd.f32 %v6711, %v6730
    %v6732 = vadd.f32 %v6712, %v6730
    %v6733 = vadd.f32 %v6713, %v6730
    %v6734 = vadd.f32 %v6714, %v6730
    %v6735 = vadd.f32 %v6715, %v6730
    %v6736 = vadd.f32 %v6716, %v6730
    %v6737 = vadd.f32 %v6717, %v6730
    %v6738 = vadd.f32 %v6718, %v6730
    %v6739 = vadd.f32 %v6719, %v6730
    %v6740 = vadd.f32 %v6720, %v6730
    %v6741 = vadd.f32 %v6721, %v6730
    %v6742 = vadd.f32 %v6722, %v6730
    %v6743 = vadd.f32 %v6723, %v6730
    %v6744 = vadd.f32 %v6724, %v6730
    %v6745 = vadd.f32 %v6725, %v6730
    %v6746 = vadd.f32 %v6726, %v6730
    %v6748 = vsel %vm375, %v6731, 0
    %v6751 = vsel %vm375, %v6732, 0
    %v6754 = vsel %vm375, %v6733, 0
    %v6757 = vsel %vm375, %v6734, 0
    %v6760 = vsel %vm375, %v6735, 0
    %v6763 = vsel %vm375, %v6736, 0
    %v6766 = vsel %vm375, %v6737, 0
    %v6769 = vsel %vm375, %v6738, 0
    %v6772 = vsel %vm375, %v6739, 0
    %v6775 = vsel %vm375, %v6740, 0
    %v6778 = vsel %vm375, %v6741, 0
    %v6781 = vsel %vm375, %v6742, 0
    %v6784 = vsel %vm375, %v6743, 0
    %v6787 = vsel %vm375, %v6744, 0
    %v6790 = vsel %vm375, %v6745, 0
    %v6793 = vsel %vm375, %v6746, 0
    %6795 = vmatprep.subr.mxu0 0.0
    %6796 = vmatpush1.msra.mxu0 %v2018
    %6797 = vmatprep.subr.mxu0 0.0
    %6798 = vmatpush1.msra.mxu0 %v2019
    %6799 = vmatprep.subr.mxu0 0.0
    %6800 = vmatpush1.msra.mxu0 %v2020
    %6801 = vmatprep.subr.mxu0 0.0
    %6802 = vmatpush1.msra.mxu0 %v2021
    %6803 = vmatprep.subr.mxu0 0.0
    %6804 = vmatpush1.msra.mxu0 %v2022
    %6805 = vmatprep.subr.mxu0 0.0
    %6806 = vmatpush1.msra.mxu0 %v2023
    %6807 = vmatprep.subr.mxu0 0.0
    %6808 = vmatpush1.msra.mxu0 %v2024
    %6809 = vmatprep.subr.mxu0 0.0
    %6810 = vmatpush1.msra.mxu0 %v2025
    %6811 = vmatprep.subr.mxu0 0.0
    %6812 = vmatpush1.msra.mxu0 0.0
    %6813 = vmatprep.subr.mxu0 0.0
    %6814 = vmatpush1.msra.mxu0 0.0
    %6815 = vmatprep.subr.mxu0 0.0
    %6816 = vmatpush1.msra.mxu0 0.0
    %6817 = vmatprep.subr.mxu0 0.0
    %6818 = vmatpush1.msra.mxu0 0.0
    %6819 = vmatprep.subr.mxu0 0.0
    %6820 = vmatpush1.msra.mxu0 0.0
    %6821 = vmatprep.subr.mxu0 0.0
    %6822 = vmatpush1.msra.mxu0 0.0
    %6823 = vmatprep.subr.mxu0 0.0
    %6824 = vmatpush1.msra.mxu0 0.0
    %6825 = vmatprep.subr.mxu0 0.0
    %6826 = vmatpush1.msra.mxu0 0.0
    %6827 = vmatprep.subr.mxu0 0.0
    %6828 = vmatpush1.msra.mxu0 0.0
    %6829 = vmatprep.subr.mxu0 0.0
    %6830 = vmatpush1.msra.mxu0 0.0
    %6831 = vmatprep.subr.mxu0 0.0
    %6832 = vmatpush1.msra.mxu0 0.0
    %6833 = vmatprep.subr.mxu0 0.0
    %6834 = vmatpush1.msra.mxu0 0.0
    %6835 = vmatprep.subr.mxu0 0.0
    %6836 = vmatpush1.msra.mxu0 0.0
    %6837 = vmatprep.subr.mxu0 0.0
    %6838 = vmatpush1.msra.mxu0 0.0
    %6839 = vmatprep.subr.mxu0 0.0
    %6840 = vmatpush1.msra.mxu0 0.0
    %6841 = vmatprep.subr.mxu0 0.0
    %6842 = vmatpush1.msra.mxu0 0.0
    %6843 = vmatprep.subr.mxu0 0.0
    %6844 = vmatpush1.msra.mxu0 0.0
    %6845 = vmatprep.subr.mxu0 0.0
    %6846 = vmatpush1.msra.mxu0 0.0
    %6847 = vmatprep.subr.mxu0 0.0
    %6848 = vmatpush1.msra.mxu0 0.0
    %6849 = vmatprep.subr.mxu0 0.0
    %6850 = vmatpush1.msra.mxu0 0.0
    %6851 = vmatprep.subr.mxu0 0.0
    %6852 = vmatpush1.msra.mxu0 0.0
    %6853 = vmatprep.subr.mxu0 0.0
    %6854 = vmatpush1.msra.mxu0 0.0
    %6855 = vmatprep.subr.mxu0 0.0
    %6856 = vmatpush1.msra.mxu0 0.0
    %6857 = vmatprep.subr.mxu0 0.0
    %6858 = vmatpush1.msra.mxu0 0.0
    %6859 = vmatprep.mubr.f32.mxu0 0.0
    %6860 = vmatmul.mubr.f32.gmra.mrb[0].mxu0 %v6748
    %v6861 = vpop.f32.mrb[0].mxu0
    %v6862 = vadd.f32 0.0, %v6861
    %v6863 = vpop.f32.mrb[0].mxu0
    %6864 = vmatprep.mubr.f32.mxu0 0.0
    %6865 = vmatmul.mubr.f32.gmra.mrb[0].mxu0 %v6751
    %v6866 = vpop.f32.mrb[0].mxu0
    %v6867 = vadd.f32 0.0, %v6866
    %v6868 = vpop.f32.mrb[0].mxu0
    %6869 = vmatprep.mubr.f32.mxu0 0.0
    %6870 = vmatmul.mubr.f32.gmra.mrb[0].mxu0 %v6754
    %v6871 = vpop.f32.mrb[0].mxu0
    %v6872 = vadd.f32 0.0, %v6871
    %v6873 = vpop.f32.mrb[0].mxu0
    %6874 = vmatprep.mubr.f32.mxu0 0.0
    %6875 = vmatmul.mubr.f32.gmra.mrb[0].mxu0 %v6757
    %v6876 = vpop.f32.mrb[0].mxu0
    %v6877 = vadd.f32 0.0, %v6876
    %v6878 = vpop.f32.mrb[0].mxu0
    %6879 = vmatprep.mubr.f32.mxu0 0.0
    %6880 = vmatmul.mubr.f32.gmra.mrb[0].mxu0 %v6760
    %v6881 = vpop.f32.mrb[0].mxu0
    %v6882 = vadd.f32 0.0, %v6881
    %v6883 = vpop.f32.mrb[0].mxu0
    %6884 = vmatprep.mubr.f32.mxu0 0.0
    %6885 = vmatmul.mubr.f32.gmra.mrb[0].mxu0 %v6763
    %v6886 = vpop.f32.mrb[0].mxu0
    %v6887 = vadd.f32 0.0, %v6886
    %v6888 = vpop.f32.mrb[0].mxu0
    %6889 = vmatprep.mubr.f32.mxu0 0.0
    %6890 = vmatmul.mubr.f32.gmra.mrb[0].mxu0 %v6766
    %v6891 = vpop.f32.mrb[0].mxu0
    %v6892 = vadd.f32 0.0, %v6891
    %v6893 = vpop.f32.mrb[0].mxu0
    %6894 = vmatprep.mubr.f32.mxu0 0.0
    %6895 = vmatmul.mubr.f32.gmra.mrb[0].mxu0 %v6769
    %v6896 = vpop.f32.mrb[0].mxu0
    %v6897 = vadd.f32 0.0, %v6896
    %v6898 = vpop.f32.mrb[0].mxu0
    %6899 = vmatprep.mubr.f32.mxu0 0.0
    %6900 = vmatmul.mubr.f32.gmra.mrb[0].mxu0 %v6772
    %v6901 = vpop.f32.mrb[0].mxu0
    %v6902 = vadd.f32 0.0, %v6901
    %v6903 = vpop.f32.mrb[0].mxu0
    %6904 = vmatprep.mubr.f32.mxu0 0.0
    %6905 = vmatmul.mubr.f32.gmra.mrb[0].mxu0 %v6775
    %v6906 = vpop.f32.mrb[0].mxu0
    %v6907 = vadd.f32 0.0, %v6906
    %v6908 = vpop.f32.mrb[0].mxu0
    %6909 = vmatprep.mubr.f32.mxu0 0.0
    %6910 = vmatmul.mubr.f32.gmra.mrb[0].mxu0 %v6778
    %v6911 = vpop.f32.mrb[0].mxu0
    %v6912 = vadd.f32 0.0, %v6911
    %v6913 = vpop.f32.mrb[0].mxu0
    %6914 = vmatprep.mubr.f32.mxu0 0.0
    %6915 = vmatmul.mubr.f32.gmra.mrb[0].mxu0 %v6781
    %v6916 = vpop.f32.mrb[0].mxu0
    %v6917 = vadd.f32 0.0, %v6916
    %v6918 = vpop.f32.mrb[0].mxu0
    %6919 = vmatprep.mubr.f32.mxu0 0.0
    %6920 = vmatmul.mubr.f32.gmra.mrb[0].mxu0 %v6784
    %v6921 = vpop.f32.mrb[0].mxu0
    %v6922 = vadd.f32 0.0, %v6921
    %v6923 = vpop.f32.mrb[0].mxu0
    %6924 = vmatprep.mubr.f32.mxu0 0.0
    %6925 = vmatmul.mubr.f32.gmra.mrb[0].mxu0 %v6787
    %v6926 = vpop.f32.mrb[0].mxu0
    %v6927 = vadd.f32 0.0, %v6926
    %v6928 = vpop.f32.mrb[0].mxu0
    %6929 = vmatprep.mubr.f32.mxu0 0.0
    %6930 = vmatmul.mubr.f32.gmra.mrb[0].mxu0 %v6790
    %v6931 = vpop.f32.mrb[0].mxu0
    %v6932 = vadd.f32 0.0, %v6931
    %v6933 = vpop.f32.mrb[0].mxu0
    %6934 = vmatprep.mubr.f32.mxu0 0.0
    %6935 = vmatmul.mubr.f32.gmra.mrb[0].mxu0 %v6793
    %v6936 = vpop.f32.mrb[0].mxu0
    %v6937 = vadd.f32 0.0, %v6936
    %v6938 = vpop.f32.mrb[0].mxu0
    %6939 = vdwg.mxu0
    %v6941 = vsel %vm375, %v6862, 0
    %v6944 = vsel %vm375, %v6867, 0
    %v6947 = vsel %vm375, %v6872, 0
    %v6950 = vsel %vm375, %v6877, 0
    %v6953 = vsel %vm375, %v6882, 0
    %v6956 = vsel %vm375, %v6887, 0
    %v6959 = vsel %vm375, %v6892, 0
    %v6962 = vsel %vm375, %v6897, 0
    %v6965 = vsel %vm375, %v6902, 0
    %v6968 = vsel %vm375, %v6907, 0
    %v6971 = vsel %vm375, %v6912, 0
    %v6974 = vsel %vm375, %v6917, 0
    %v6977 = vsel %vm375, %v6922, 0
    %v6980 = vsel %vm375, %v6927, 0
    %v6983 = vsel %vm375, %v6932, 0
    %v6986 = vsel %vm375, %v6937, 0
    %6988 = vmatprep.subr.mxu0 0.0
    %6989 = vmatpush1.xpose.msra.mxu0 %v2268
    %6990 = vmatprep.subr.mxu0 0.0
    %6991 = vmatpush1.xpose.msra.mxu0 %v2271
    %6992 = vmatprep.subr.mxu0 0.0
    %6993 = vmatpush1.xpose.msra.mxu0 0.0
    %6994 = vmatprep.subr.mxu0 0.0
    %6995 = vmatpush1.xpose.msra.mxu0 0.0
    %6996 = vmatprep.subr.mxu0 0.0
    %6997 = vmatpush1.xpose.msra.mxu0 0.0
    %6998 = vmatprep.subr.mxu0 0.0
    %6999 = vmatpush1.xpose.msra.mxu0 0.0
    %7000 = vmatprep.subr.mxu0 0.0
    %7001 = vmatpush1.xpose.msra.mxu0 0.0
    %7002 = vmatprep.subr.mxu0 0.0
    %7003 = vmatpush1.xpose.msra.mxu0 0.0
    %7004 = vmatprep.subr.mxu0 0.0
    %7005 = vmatpush1.xpose.msra.mxu0 0.0
    %7006 = vmatprep.subr.mxu0 0.0
    %7007 = vmatpush1.xpose.msra.mxu0 0.0
    %7008 = vmatprep.subr.mxu0 0.0
    %7009 = vmatpush1.xpose.msra.mxu0 0.0
    %7010 = vmatprep.subr.mxu0 0.0
    %7011 = vmatpush1.xpose.msra.mxu0 0.0
    %7012 = vmatprep.subr.mxu0 0.0
    %7013 = vmatpush1.xpose.msra.mxu0 0.0
    %7014 = vmatprep.subr.mxu0 0.0
    %7015 = vmatpush1.xpose.msra.mxu0 0.0
    %7016 = vmatprep.subr.mxu0 0.0
    %7017 = vmatpush1.xpose.msra.mxu0 0.0
    %7018 = vmatprep.subr.mxu0 0.0
    %7019 = vmatpush1.xpose.msra.mxu0 0.0
    %7020 = vmatprep.subr.mxu0 0.0
    %7021 = vmatpush1.xpose.msra.mxu0 0.0
    %7022 = vmatprep.subr.mxu0 0.0
    %7023 = vmatpush1.xpose.msra.mxu0 0.0
    %7024 = vmatprep.subr.mxu0 0.0
    %7025 = vmatpush1.xpose.msra.mxu0 0.0
    %7026 = vmatprep.subr.mxu0 0.0
    %7027 = vmatpush1.xpose.msra.mxu0 0.0
    %7028 = vmatprep.subr.mxu0 0.0
    %7029 = vmatpush1.xpose.msra.mxu0 0.0
    %7030 = vmatprep.subr.mxu0 0.0
    %7031 = vmatpush1.xpose.msra.mxu0 0.0
    %7032 = vmatprep.subr.mxu0 0.0
    %7033 = vmatpush1.xpose.msra.mxu0 0.0
    %7034 = vmatprep.subr.mxu0 0.0
    %7035 = vmatpush1.xpose.msra.mxu0 0.0
    %7036 = vmatprep.subr.mxu0 0.0
    %7037 = vmatpush1.xpose.msra.mxu0 0.0
    %7038 = vmatprep.subr.mxu0 0.0
    %7039 = vmatpush1.xpose.msra.mxu0 0.0
    %7040 = vmatprep.subr.mxu0 0.0
    %7041 = vmatpush1.xpose.msra.mxu0 0.0
    %7042 = vmatprep.subr.mxu0 0.0
    %7043 = vmatpush1.xpose.msra.mxu0 0.0
    %7044 = vmatprep.subr.mxu0 0.0
    %7045 = vmatpush1.xpose.msra.mxu0 0.0
    %7046 = vmatprep.subr.mxu0 0.0
    %7047 = vmatpush1.xpose.msra.mxu0 0.0
    %7048 = vmatprep.subr.mxu0 0.0
    %7049 = vmatpush1.xpose.msra.mxu0 0.0
    %7050 = vmatprep.subr.mxu0 0.0
    %7051 = vmatpush1.xpose.msra.mxu0 0.0
    %7052 = vmatprep.mubr.f32.mxu0 0.0
    %7053 = vmatmul.mubr.f32.gmra.mrb[0].mxu0 %v6941
    %v7054 = vpop.f32.mrb[0].mxu0
    %v7055 = vadd.f32 0.0, %v7054
    %v7056 = vpop.f32.mrb[0].mxu0
    %7057 = vmatprep.mubr.f32.mxu0 0.0
    %7058 = vmatmul.mubr.f32.gmra.mrb[0].mxu0 %v6944
    %v7059 = vpop.f32.mrb[0].mxu0
    %v7060 = vadd.f32 0.0, %v7059
    %v7061 = vpop.f32.mrb[0].mxu0
    %7062 = vmatprep.mubr.f32.mxu0 0.0
    %7063 = vmatmul.mubr.f32.gmra.mrb[0].mxu0 %v6947
    %v7064 = vpop.f32.mrb[0].mxu0
    %v7065 = vadd.f32 0.0, %v7064
    %v7066 = vpop.f32.mrb[0].mxu0
    %7067 = vmatprep.mubr.f32.mxu0 0.0
    %7068 = vmatmul.mubr.f32.gmra.mrb[0].mxu0 %v6950
    %v7069 = vpop.f32.mrb[0].mxu0
    %v7070 = vadd.f32 0.0, %v7069
    %v7071 = vpop.f32.mrb[0].mxu0
    %7072 = vmatprep.mubr.f32.mxu0 0.0
    %7073 = vmatmul.mubr.f32.gmra.mrb[0].mxu0 %v6953
    %v7074 = vpop.f32.mrb[0].mxu0
    %v7075 = vadd.f32 0.0, %v7074
    %v7076 = vpop.f32.mrb[0].mxu0
    %7077 = vmatprep.mubr.f32.mxu0 0.0
    %7078 = vmatmul.mubr.f32.gmra.mrb[0].mxu0 %v6956
    %v7079 = vpop.f32.mrb[0].mxu0
    %v7080 = vadd.f32 0.0, %v7079
    %v7081 = vpop.f32.mrb[0].mxu0
    %7082 = vmatprep.mubr.f32.mxu0 0.0
    %7083 = vmatmul.mubr.f32.gmra.mrb[0].mxu0 %v6959
    %v7084 = vpop.f32.mrb[0].mxu0
    %v7085 = vadd.f32 0.0, %v7084
    %v7086 = vpop.f32.mrb[0].mxu0
    %7087 = vmatprep.mubr.f32.mxu0 0.0
    %7088 = vmatmul.mubr.f32.gmra.mrb[0].mxu0 %v6962
    %v7089 = vpop.f32.mrb[0].mxu0
    %v7090 = vadd.f32 0.0, %v7089
    %v7091 = vpop.f32.mrb[0].mxu0
    %7092 = vmatprep.mubr.f32.mxu0 0.0
    %7093 = vmatmul.mubr.f32.gmra.mrb[0].mxu0 %v6965
    %v7094 = vpop.f32.mrb[0].mxu0
    %v7095 = vadd.f32 0.0, %v7094
    %v7096 = vpop.f32.mrb[0].mxu0
    %7097 = vmatprep.mubr.f32.mxu0 0.0
    %7098 = vmatmul.mubr.f32.gmra.mrb[0].mxu0 %v6968
    %v7099 = vpop.f32.mrb[0].mxu0
    %v7100 = vadd.f32 0.0, %v7099
    %v7101 = vpop.f32.mrb[0].mxu0
    %7102 = vmatprep.mubr.f32.mxu0 0.0
    %7103 = vmatmul.mubr.f32.gmra.mrb[0].mxu0 %v6971
    %v7104 = vpop.f32.mrb[0].mxu0
    %v7105 = vadd.f32 0.0, %v7104
    %v7106 = vpop.f32.mrb[0].mxu0
    %7107 = vmatprep.mubr.f32.mxu0 0.0
    %7108 = vmatmul.mubr.f32.gmra.mrb[0].mxu0 %v6974
    %v7109 = vpop.f32.mrb[0].mxu0
    %v7110 = vadd.f32 0.0, %v7109
    %v7111 = vpop.f32.mrb[0].mxu0
    %7112 = vmatprep.mubr.f32.mxu0 0.0
    %7113 = vmatmul.mubr.f32.gmra.mrb[0].mxu0 %v6977
    %v7114 = vpop.f32.mrb[0].mxu0
    %v7115 = vadd.f32 0.0, %v7114
    %v7116 = vpop.f32.mrb[0].mxu0
    %7117 = vmatprep.mubr.f32.mxu0 0.0
    %7118 = vmatmul.mubr.f32.gmra.mrb[0].mxu0 %v6980
    %v7119 = vpop.f32.mrb[0].mxu0
    %v7120 = vadd.f32 0.0, %v7119
    %v7121 = vpop.f32.mrb[0].mxu0
    %7122 = vmatprep.mubr.f32.mxu0 0.0
    %7123 = vmatmul.mubr.f32.gmra.mrb[0].mxu0 %v6983
    %v7124 = vpop.f32.mrb[0].mxu0
    %v7125 = vadd.f32 0.0, %v7124
    %v7126 = vpop.f32.mrb[0].mxu0
    %7127 = vmatprep.mubr.f32.mxu0 0.0
    %7128 = vmatmul.mubr.f32.gmra.mrb[0].mxu0 %v6986
    %v7129 = vpop.f32.mrb[0].mxu0
    %v7130 = vadd.f32 0.0, %v7129
    %v7131 = vpop.f32.mrb[0].mxu0
    %7132 = vdwg.mxu0
    %v7133 = vmul.f32 %v7055, 0.125
    %v7134 = vmul.f32 %v7060, 0.125
    %v7135 = vmul.f32 %v7065, 0.125
    %v7136 = vmul.f32 %v7070, 0.125
    %v7137 = vmul.f32 %v7075, 0.125
    %v7138 = vmul.f32 %v7080, 0.125
    %v7139 = vmul.f32 %v7085, 0.125
    %v7140 = vmul.f32 %v7090, 0.125
    %v7141 = vmul.f32 %v7095, 0.125
    %v7142 = vmul.f32 %v7100, 0.125
    %v7143 = vmul.f32 %v7105, 0.125
    %v7144 = vmul.f32 %v7110, 0.125
    %v7145 = vmul.f32 %v7115, 0.125
    %v7146 = vmul.f32 %v7120, 0.125
    %v7147 = vmul.f32 %v7125, 0.125
    %v7148 = vmul.f32 %v7130, 0.125
    %v7149 = vsel %vm1616, %v7133, -1e+30
    %v7150 = vsel %vm1617, %v7134, -1e+30
    %v7151 = vsel %vm1618, %v7135, -1e+30
    %v7152 = vsel %vm1619, %v7136, -1e+30
    %v7153 = vsel %vm1620, %v7137, -1e+30
    %v7154 = vsel %vm1621, %v7138, -1e+30
    %v7155 = vsel %vm1622, %v7139, -1e+30
    %v7156 = vsel %vm1623, %v7140, -1e+30
    %v7157 = vsel %vm1624, %v7141, -1e+30
    %v7158 = vsel %vm1625, %v7142, -1e+30
    %v7159 = vsel %vm1626, %v7143, -1e+30
    %v7160 = vsel %vm1627, %v7144, -1e+30
    %v7161 = vsel %vm1628, %v7145, -1e+30
    %v7162 = vsel %vm1629, %v7146, -1e+30
    %v7163 = vsel %vm1630, %v7147, -1e+30
    %v7164 = vsel %vm1631, %v7148, -1e+30
    %v7165 = vsel %vm566, %v7149, -inf
    %7166 = vmax.xlane.f32.xlu0 %v7165
    %v7167 = vpop.xlane.xlu0 %7166
    %v7168 = vsel %vm566, %v7150, -inf
    %7169 = vmax.xlane.f32.xlu0 %v7168
    %v7170 = vpop.xlane.xlu0 %7169
    %v7171 = vsel %vm566, %v7151, -inf
    %7172 = vmax.xlane.f32.xlu0 %v7171
    %v7173 = vpop.xlane.xlu0 %7172
    %v7174 = vsel %vm566, %v7152, -inf
    %7175 = vmax.xlane.f32.xlu0 %v7174
    %v7176 = vpop.xlane.xlu0 %7175
    %v7177 = vsel %vm566, %v7153, -inf
    %7178 = vmax.xlane.f32.xlu0 %v7177
    %v7179 = vpop.xlane.xlu0 %7178
    %v7180 = vsel %vm566, %v7154, -inf
    %7181 = vmax.xlane.f32.xlu0 %v7180
    %v7182 = vpop.xlane.xlu0 %7181
    %v7183 = vsel %vm566, %v7155, -inf
    %7184 = vmax.xlane.f32.xlu0 %v7183
    %v7185 = vpop.xlane.xlu0 %7184
    %v7186 = vsel %vm566, %v7156, -inf
    %7187 = vmax.xlane.f32.xlu0 %v7186
    %v7188 = vpop.xlane.xlu0 %7187
    %v7189 = vsel %vm566, %v7157, -inf
    %7190 = vmax.xlane.f32.xlu0 %v7189
    %v7191 = vpop.xlane.xlu0 %7190
    %v7192 = vsel %vm566, %v7158, -inf
    %7193 = vmax.xlane.f32.xlu0 %v7192
    %v7194 = vpop.xlane.xlu0 %7193
    %v7195 = vsel %vm566, %v7159, -inf
    %7196 = vmax.xlane.f32.xlu0 %v7195
    %v7197 = vpop.xlane.xlu0 %7196
    %v7198 = vsel %vm566, %v7160, -inf
    %7199 = vmax.xlane.f32.xlu0 %v7198
    %v7200 = vpop.xlane.xlu0 %7199
    %v7201 = vsel %vm566, %v7161, -inf
    %7202 = vmax.xlane.f32.xlu0 %v7201
    %v7203 = vpop.xlane.xlu0 %7202
    %v7204 = vsel %vm566, %v7162, -inf
    %7205 = vmax.xlane.f32.xlu0 %v7204
    %v7206 = vpop.xlane.xlu0 %7205
    %v7207 = vsel %vm566, %v7163, -inf
    %7208 = vmax.xlane.f32.xlu0 %v7207
    %v7209 = vpop.xlane.xlu0 %7208
    %v7210 = vsel %vm566, %v7164, -inf
    %7211 = vmax.xlane.f32.xlu0 %v7210
    %v7212 = vpop.xlane.xlu0 %7211
    %v7213 = vsub.f32 %v7149, %v7167
    %v7214 = vsub.f32 %v7150, %v7170
    %v7215 = vsub.f32 %v7151, %v7173
    %v7216 = vsub.f32 %v7152, %v7176
    %v7217 = vsub.f32 %v7153, %v7179
    %v7218 = vsub.f32 %v7154, %v7182
    %v7219 = vsub.f32 %v7155, %v7185
    %v7220 = vsub.f32 %v7156, %v7188
    %v7221 = vsub.f32 %v7157, %v7191
    %v7222 = vsub.f32 %v7158, %v7194
    %v7223 = vsub.f32 %v7159, %v7197
    %v7224 = vsub.f32 %v7160, %v7200
    %v7225 = vsub.f32 %v7161, %v7203
    %v7226 = vsub.f32 %v7162, %v7206
    %v7227 = vsub.f32 %v7163, %v7209
    %v7228 = vsub.f32 %v7164, %v7212
    %v7229 = vmul.f32 %v7213, 1.442695
    %v7230 = vpow.pop %v7229
    %v7231 = vmul.f32 %v7214, 1.442695
    %v7232 = vpow.pop %v7231
    %v7233 = vmul.f32 %v7215, 1.442695
    %v7234 = vpow.pop %v7233
    %v7235 = vmul.f32 %v7216, 1.442695
    %v7236 = vpow.pop %v7235
    %v7237 = vmul.f32 %v7217, 1.442695
    %v7238 = vpow.pop %v7237
    %v7239 = vmul.f32 %v7218, 1.442695
    %v7240 = vpow.pop %v7239
    %v7241 = vmul.f32 %v7219, 1.442695
    %v7242 = vpow.pop %v7241
    %v7243 = vmul.f32 %v7220, 1.442695
    %v7244 = vpow.pop %v7243
    %v7245 = vmul.f32 %v7221, 1.442695
    %v7246 = vpow.pop %v7245
    %v7247 = vmul.f32 %v7222, 1.442695
    %v7248 = vpow.pop %v7247
    %v7249 = vmul.f32 %v7223, 1.442695
    %v7250 = vpow.pop %v7249
    %v7251 = vmul.f32 %v7224, 1.442695
    %v7252 = vpow.pop %v7251
    %v7253 = vmul.f32 %v7225, 1.442695
    %v7254 = vpow.pop %v7253
    %v7255 = vmul.f32 %v7226, 1.442695
    %v7256 = vpow.pop %v7255
    %v7257 = vmul.f32 %v7227, 1.442695
    %v7258 = vpow.pop %v7257
    %v7259 = vmul.f32 %v7228, 1.442695
    %v7260 = vpow.pop %v7259
    %v7261 = vsel %vm566, %v7230, 0.0
    %7262 = vadd.xlane.f32.xlu0 %v7261
    %v7263 = vpop.xlane.xlu0 %7262
    %v7264 = vsel %vm566, %v7232, 0.0
    %7265 = vadd.xlane.f32.xlu0 %v7264
    %v7266 = vpop.xlane.xlu0 %7265
    %v7267 = vsel %vm566, %v7234, 0.0
    %7268 = vadd.xlane.f32.xlu0 %v7267
    %v7269 = vpop.xlane.xlu0 %7268
    %v7270 = vsel %vm566, %v7236, 0.0
    %7271 = vadd.xlane.f32.xlu0 %v7270
    %v7272 = vpop.xlane.xlu0 %7271
    %v7273 = vsel %vm566, %v7238, 0.0
    %7274 = vadd.xlane.f32.xlu0 %v7273
    %v7275 = vpop.xlane.xlu0 %7274
    %v7276 = vsel %vm566, %v7240, 0.0
    %7277 = vadd.xlane.f32.xlu0 %v7276
    %v7278 = vpop.xlane.xlu0 %7277
    %v7279 = vsel %vm566, %v7242, 0.0
    %7280 = vadd.xlane.f32.xlu0 %v7279
    %v7281 = vpop.xlane.xlu0 %7280
    %v7282 = vsel %vm566, %v7244, 0.0
    %7283 = vadd.xlane.f32.xlu0 %v7282
    %v7284 = vpop.xlane.xlu0 %7283
    %v7285 = vsel %vm566, %v7246, 0.0
    %7286 = vadd.xlane.f32.xlu0 %v7285
    %v7287 = vpop.xlane.xlu0 %7286
    %v7288 = vsel %vm566, %v7248, 0.0
    %7289 = vadd.xlane.f32.xlu0 %v7288
    %v7290 = vpop.xlane.xlu0 %7289
    %v7291 = vsel %vm566, %v7250, 0.0
    %7292 = vadd.xlane.f32.xlu0 %v7291
    %v7293 = vpop.xlane.xlu0 %7292
    %v7294 = vsel %vm566, %v7252, 0.0
    %7295 = vadd.xlane.f32.xlu0 %v7294
    %v7296 = vpop.xlane.xlu0 %7295
    %v7297 = vsel %vm566, %v7254, 0.0
    %7298 = vadd.xlane.f32.xlu0 %v7297
    %v7299 = vpop.xlane.xlu0 %7298
    %v7300 = vsel %vm566, %v7256, 0.0
    %7301 = vadd.xlane.f32.xlu0 %v7300
    %v7302 = vpop.xlane.xlu0 %7301
    %v7303 = vsel %vm566, %v7258, 0.0
    %7304 = vadd.xlane.f32.xlu0 %v7303
    %v7305 = vpop.xlane.xlu0 %7304
    %v7306 = vsel %vm566, %v7260, 0.0
    %7307 = vadd.xlane.f32.xlu0 %v7306
    %v7308 = vpop.xlane.xlu0 %7307
    %v7309 = vrcp.pop %v7263
    %v7310 = vrcp.pop %v7266
    %v7311 = vrcp.pop %v7269
    %v7312 = vrcp.pop %v7272
    %v7313 = vrcp.pop %v7275
    %v7314 = vrcp.pop %v7278
    %v7315 = vrcp.pop %v7281
    %v7316 = vrcp.pop %v7284
    %v7317 = vrcp.pop %v7287
    %v7318 = vrcp.pop %v7290
    %v7319 = vrcp.pop %v7293
    %v7320 = vrcp.pop %v7296
    %v7321 = vrcp.pop %v7299
    %v7322 = vrcp.pop %v7302
    %v7323 = vrcp.pop %v7305
    %v7324 = vrcp.pop %v7308
    %v7325 = vmul.f32 %v7230, %v7309
    %v7326 = vmul.f32 %v7232, %v7310
    %v7327 = vmul.f32 %v7234, %v7311
    %v7328 = vmul.f32 %v7236, %v7312
    %v7329 = vmul.f32 %v7238, %v7313
    %v7330 = vmul.f32 %v7240, %v7314
    %v7331 = vmul.f32 %v7242, %v7315
    %v7332 = vmul.f32 %v7244, %v7316
    %v7333 = vmul.f32 %v7246, %v7317
    %v7334 = vmul.f32 %v7248, %v7318
    %v7335 = vmul.f32 %v7250, %v7319
    %v7336 = vmul.f32 %v7252, %v7320
    %v7337 = vmul.f32 %v7254, %v7321
    %v7338 = vmul.f32 %v7256, %v7322
    %v7339 = vmul.f32 %v7258, %v7323
    %v7340 = vmul.f32 %v7260, %v7324
    %v7342 = vsel %vm566, %v7325, 0
    %v7345 = vsel %vm566, %v7326, 0
    %v7348 = vsel %vm566, %v7327, 0
    %v7351 = vsel %vm566, %v7328, 0
    %v7354 = vsel %vm566, %v7329, 0
    %v7357 = vsel %vm566, %v7330, 0
    %v7360 = vsel %vm566, %v7331, 0
    %v7363 = vsel %vm566, %v7332, 0
    %v7366 = vsel %vm566, %v7333, 0
    %v7369 = vsel %vm566, %v7334, 0
    %v7372 = vsel %vm566, %v7335, 0
    %v7375 = vsel %vm566, %v7336, 0
    %v7378 = vsel %vm566, %v7337, 0
    %v7381 = vsel %vm566, %v7338, 0
    %v7384 = vsel %vm566, %v7339, 0
    %v7387 = vsel %vm566, %v7340, 0
    %7389 = vmatprep.subr.mxu0 0.0
    %7390 = vmatpush1.msra.mxu0 %v2627
    %7391 = vmatprep.subr.mxu0 0.0
    %7392 = vmatpush1.msra.mxu0 %v2629
    %7393 = vmatprep.subr.mxu0 0.0
    %7394 = vmatpush1.msra.mxu0 0.0
    %7395 = vmatprep.subr.mxu0 0.0
    %7396 = vmatpush1.msra.mxu0 0.0
    %7397 = vmatprep.subr.mxu0 0.0
    %7398 = vmatpush1.msra.mxu0 0.0
    %7399 = vmatprep.subr.mxu0 0.0
    %7400 = vmatpush1.msra.mxu0 0.0
    %7401 = vmatprep.subr.mxu0 0.0
    %7402 = vmatpush1.msra.mxu0 0.0
    %7403 = vmatprep.subr.mxu0 0.0
    %7404 = vmatpush1.msra.mxu0 0.0
    %7405 = vmatprep.subr.mxu0 0.0
    %7406 = vmatpush1.msra.mxu0 0.0
    %7407 = vmatprep.subr.mxu0 0.0
    %7408 = vmatpush1.msra.mxu0 0.0
    %7409 = vmatprep.subr.mxu0 0.0
    %7410 = vmatpush1.msra.mxu0 0.0
    %7411 = vmatprep.subr.mxu0 0.0
    %7412 = vmatpush1.msra.mxu0 0.0
    %7413 = vmatprep.subr.mxu0 0.0
    %7414 = vmatpush1.msra.mxu0 0.0
    %7415 = vmatprep.subr.mxu0 0.0
    %7416 = vmatpush1.msra.mxu0 0.0
    %7417 = vmatprep.subr.mxu0 0.0
    %7418 = vmatpush1.msra.mxu0 0.0
    %7419 = vmatprep.subr.mxu0 0.0
    %7420 = vmatpush1.msra.mxu0 0.0
    %7421 = vmatprep.subr.mxu0 0.0
    %7422 = vmatpush1.msra.mxu0 0.0
    %7423 = vmatprep.subr.mxu0 0.0
    %7424 = vmatpush1.msra.mxu0 0.0
    %7425 = vmatprep.subr.mxu0 0.0
    %7426 = vmatpush1.msra.mxu0 0.0
    %7427 = vmatprep.subr.mxu0 0.0
    %7428 = vmatpush1.msra.mxu0 0.0
    %7429 = vmatprep.subr.mxu0 0.0
    %7430 = vmatpush1.msra.mxu0 0.0
    %7431 = vmatprep.subr.mxu0 0.0
    %7432 = vmatpush1.msra.mxu0 0.0
    %7433 = vmatprep.subr.mxu0 0.0
    %7434 = vmatpush1.msra.mxu0 0.0
    %7435 = vmatprep.subr.mxu0 0.0
    %7436 = vmatpush1.msra.mxu0 0.0
    %7437 = vmatprep.subr.mxu0 0.0
    %7438 = vmatpush1.msra.mxu0 0.0
    %7439 = vmatprep.subr.mxu0 0.0
    %7440 = vmatpush1.msra.mxu0 0.0
    %7441 = vmatprep.subr.mxu0 0.0
    %7442 = vmatpush1.msra.mxu0 0.0
    %7443 = vmatprep.subr.mxu0 0.0
    %7444 = vmatpush1.msra.mxu0 0.0
    %7445 = vmatprep.subr.mxu0 0.0
    %7446 = vmatpush1.msra.mxu0 0.0
    %7447 = vmatprep.subr.mxu0 0.0
    %7448 = vmatpush1.msra.mxu0 0.0
    %7449 = vmatprep.subr.mxu0 0.0
    %7450 = vmatpush1.msra.mxu0 0.0
    %7451 = vmatprep.subr.mxu0 0.0
    %7452 = vmatpush1.msra.mxu0 0.0
    %7453 = vmatprep.mubr.f32.mxu0 0.0
    %7454 = vmatmul.mubr.f32.gmra.mrb[0].mxu0 %v7342
    %v7455 = vpop.f32.mrb[0].mxu0
    %v7456 = vadd.f32 0.0, %v7455
    %v7457 = vpop.f32.mrb[0].mxu0
    %7458 = vmatprep.mubr.f32.mxu0 0.0
    %7459 = vmatmul.mubr.f32.gmra.mrb[0].mxu0 %v7345
    %v7460 = vpop.f32.mrb[0].mxu0
    %v7461 = vadd.f32 0.0, %v7460
    %v7462 = vpop.f32.mrb[0].mxu0
    %7463 = vmatprep.mubr.f32.mxu0 0.0
    %7464 = vmatmul.mubr.f32.gmra.mrb[0].mxu0 %v7348
    %v7465 = vpop.f32.mrb[0].mxu0
    %v7466 = vadd.f32 0.0, %v7465
    %v7467 = vpop.f32.mrb[0].mxu0
    %7468 = vmatprep.mubr.f32.mxu0 0.0
    %7469 = vmatmul.mubr.f32.gmra.mrb[0].mxu0 %v7351
    %v7470 = vpop.f32.mrb[0].mxu0
    %v7471 = vadd.f32 0.0, %v7470
    %v7472 = vpop.f32.mrb[0].mxu0
    %7473 = vmatprep.mubr.f32.mxu0 0.0
    %7474 = vmatmul.mubr.f32.gmra.mrb[0].mxu0 %v7354
    %v7475 = vpop.f32.mrb[0].mxu0
    %v7476 = vadd.f32 0.0, %v7475
    %v7477 = vpop.f32.mrb[0].mxu0
    %7478 = vmatprep.mubr.f32.mxu0 0.0
    %7479 = vmatmul.mubr.f32.gmra.mrb[0].mxu0 %v7357
    %v7480 = vpop.f32.mrb[0].mxu0
    %v7481 = vadd.f32 0.0, %v7480
    %v7482 = vpop.f32.mrb[0].mxu0
    %7483 = vmatprep.mubr.f32.mxu0 0.0
    %7484 = vmatmul.mubr.f32.gmra.mrb[0].mxu0 %v7360
    %v7485 = vpop.f32.mrb[0].mxu0
    %v7486 = vadd.f32 0.0, %v7485
    %v7487 = vpop.f32.mrb[0].mxu0
    %7488 = vmatprep.mubr.f32.mxu0 0.0
    %7489 = vmatmul.mubr.f32.gmra.mrb[0].mxu0 %v7363
    %v7490 = vpop.f32.mrb[0].mxu0
    %v7491 = vadd.f32 0.0, %v7490
    %v7492 = vpop.f32.mrb[0].mxu0
    %7493 = vmatprep.mubr.f32.mxu0 0.0
    %7494 = vmatmul.mubr.f32.gmra.mrb[0].mxu0 %v7366
    %v7495 = vpop.f32.mrb[0].mxu0
    %v7496 = vadd.f32 0.0, %v7495
    %v7497 = vpop.f32.mrb[0].mxu0
    %7498 = vmatprep.mubr.f32.mxu0 0.0
    %7499 = vmatmul.mubr.f32.gmra.mrb[0].mxu0 %v7369
    %v7500 = vpop.f32.mrb[0].mxu0
    %v7501 = vadd.f32 0.0, %v7500
    %v7502 = vpop.f32.mrb[0].mxu0
    %7503 = vmatprep.mubr.f32.mxu0 0.0
    %7504 = vmatmul.mubr.f32.gmra.mrb[0].mxu0 %v7372
    %v7505 = vpop.f32.mrb[0].mxu0
    %v7506 = vadd.f32 0.0, %v7505
    %v7507 = vpop.f32.mrb[0].mxu0
    %7508 = vmatprep.mubr.f32.mxu0 0.0
    %7509 = vmatmul.mubr.f32.gmra.mrb[0].mxu0 %v7375
    %v7510 = vpop.f32.mrb[0].mxu0
    %v7511 = vadd.f32 0.0, %v7510
    %v7512 = vpop.f32.mrb[0].mxu0
    %7513 = vmatprep.mubr.f32.mxu0 0.0
    %7514 = vmatmul.mubr.f32.gmra.mrb[0].mxu0 %v7378
    %v7515 = vpop.f32.mrb[0].mxu0
    %v7516 = vadd.f32 0.0, %v7515
    %v7517 = vpop.f32.mrb[0].mxu0
    %7518 = vmatprep.mubr.f32.mxu0 0.0
    %7519 = vmatmul.mubr.f32.gmra.mrb[0].mxu0 %v7381
    %v7520 = vpop.f32.mrb[0].mxu0
    %v7521 = vadd.f32 0.0, %v7520
    %v7522 = vpop.f32.mrb[0].mxu0
    %7523 = vmatprep.mubr.f32.mxu0 0.0
    %7524 = vmatmul.mubr.f32.gmra.mrb[0].mxu0 %v7384
    %v7525 = vpop.f32.mrb[0].mxu0
    %v7526 = vadd.f32 0.0, %v7525
    %v7527 = vpop.f32.mrb[0].mxu0
    %7528 = vmatprep.mubr.f32.mxu0 0.0
    %7529 = vmatmul.mubr.f32.gmra.mrb[0].mxu0 %v7387
    %v7530 = vpop.f32.mrb[0].mxu0
    %v7531 = vadd.f32 0.0, %v7530
    %v7532 = vpop.f32.mrb[0].mxu0
    %7533 = vdwg.mxu0
    %v7535 = vsel %vm375, %v7456, 0
    %v7538 = vsel %vm375, %v7461, 0
    %v7541 = vsel %vm375, %v7466, 0
    %v7544 = vsel %vm375, %v7471, 0
    %v7547 = vsel %vm375, %v7476, 0
    %v7550 = vsel %vm375, %v7481, 0
    %v7553 = vsel %vm375, %v7486, 0
    %v7556 = vsel %vm375, %v7491, 0
    %v7559 = vsel %vm375, %v7496, 0
    %v7562 = vsel %vm375, %v7501, 0
    %v7565 = vsel %vm375, %v7506, 0
    %v7568 = vsel %vm375, %v7511, 0
    %v7571 = vsel %vm375, %v7516, 0
    %v7574 = vsel %vm375, %v7521, 0
    %v7577 = vsel %vm375, %v7526, 0
    %v7580 = vsel %vm375, %v7531, 0
    %7582 = vmatprep.subr.mxu0 0.0
    %7583 = vmatpush1.msra.mxu0 %v2825
    %7584 = vmatprep.subr.mxu0 0.0
    %7585 = vmatpush1.msra.mxu0 %v2826
    %7586 = vmatprep.subr.mxu0 0.0
    %7587 = vmatpush1.msra.mxu0 %v2827
    %7588 = vmatprep.subr.mxu0 0.0
    %7589 = vmatpush1.msra.mxu0 %v2828
    %7590 = vmatprep.subr.mxu0 0.0
    %7591 = vmatpush1.msra.mxu0 %v2829
    %7592 = vmatprep.subr.mxu0 0.0
    %7593 = vmatpush1.msra.mxu0 %v2830
    %7594 = vmatprep.subr.mxu0 0.0
    %7595 = vmatpush1.msra.mxu0 %v2831
    %7596 = vmatprep.subr.mxu0 0.0
    %7597 = vmatpush1.msra.mxu0 %v2832
    %7598 = vmatprep.subr.mxu0 0.0
    %7599 = vmatpush1.msra.mxu0 0.0
    %7600 = vmatprep.subr.mxu0 0.0
    %7601 = vmatpush1.msra.mxu0 0.0
    %7602 = vmatprep.subr.mxu0 0.0
    %7603 = vmatpush1.msra.mxu0 0.0
    %7604 = vmatprep.subr.mxu0 0.0
    %7605 = vmatpush1.msra.mxu0 0.0
    %7606 = vmatprep.subr.mxu0 0.0
    %7607 = vmatpush1.msra.mxu0 0.0
    %7608 = vmatprep.subr.mxu0 0.0
    %7609 = vmatpush1.msra.mxu0 0.0
    %7610 = vmatprep.subr.mxu0 0.0
    %7611 = vmatpush1.msra.mxu0 0.0
    %7612 = vmatprep.subr.mxu0 0.0
    %7613 = vmatpush1.msra.mxu0 0.0
    %7614 = vmatprep.subr.mxu0 0.0
    %7615 = vmatpush1.msra.mxu0 0.0
    %7616 = vmatprep.subr.mxu0 0.0
    %7617 = vmatpush1.msra.mxu0 0.0
    %7618 = vmatprep.subr.mxu0 0.0
    %7619 = vmatpush1.msra.mxu0 0.0
    %7620 = vmatprep.subr.mxu0 0.0
    %7621 = vmatpush1.msra.mxu0 0.0
    %7622 = vmatprep.subr.mxu0 0.0
    %7623 = vmatpush1.msra.mxu0 0.0
    %7624 = vmatprep.subr.mxu0 0.0
    %7625 = vmatpush1.msra.mxu0 0.0
    %7626 = vmatprep.subr.mxu0 0.0
    %7627 = vmatpush1.msra.mxu0 0.0
    %7628 = vmatprep.subr.mxu0 0.0
    %7629 = vmatpush1.msra.mxu0 0.0
    %7630 = vmatprep.subr.mxu0 0.0
    %7631 = vmatpush1.msra.mxu0 0.0
    %7632 = vmatprep.subr.mxu0 0.0
    %7633 = vmatpush1.msra.mxu0 0.0
    %7634 = vmatprep.subr.mxu0 0.0
    %7635 = vmatpush1.msra.mxu0 0.0
    %7636 = vmatprep.subr.mxu0 0.0
    %7637 = vmatpush1.msra.mxu0 0.0
    %7638 = vmatprep.subr.mxu0 0.0
    %7639 = vmatpush1.msra.mxu0 0.0
    %7640 = vmatprep.subr.mxu0 0.0
    %7641 = vmatpush1.msra.mxu0 0.0
    %7642 = vmatprep.subr.mxu0 0.0
    %7643 = vmatpush1.msra.mxu0 0.0
    %7644 = vmatprep.subr.mxu0 0.0
    %7645 = vmatpush1.msra.mxu0 0.0
    %7646 = vmatprep.mubr.f32.mxu0 0.0
    %7647 = vmatmul.mubr.f32.gmra.mrb[0].mxu0 %v7535
    %v7648 = vpop.f32.mrb[0].mxu0
    %v7649 = vadd.f32 0.0, %v7648
    %v7650 = vpop.f32.mrb[0].mxu0
    %7651 = vmatprep.mubr.f32.mxu0 0.0
    %7652 = vmatmul.mubr.f32.gmra.mrb[0].mxu0 %v7538
    %v7653 = vpop.f32.mrb[0].mxu0
    %v7654 = vadd.f32 0.0, %v7653
    %v7655 = vpop.f32.mrb[0].mxu0
    %7656 = vmatprep.mubr.f32.mxu0 0.0
    %7657 = vmatmul.mubr.f32.gmra.mrb[0].mxu0 %v7541
    %v7658 = vpop.f32.mrb[0].mxu0
    %v7659 = vadd.f32 0.0, %v7658
    %v7660 = vpop.f32.mrb[0].mxu0
    %7661 = vmatprep.mubr.f32.mxu0 0.0
    %7662 = vmatmul.mubr.f32.gmra.mrb[0].mxu0 %v7544
    %v7663 = vpop.f32.mrb[0].mxu0
    %v7664 = vadd.f32 0.0, %v7663
    %v7665 = vpop.f32.mrb[0].mxu0
    %7666 = vmatprep.mubr.f32.mxu0 0.0
    %7667 = vmatmul.mubr.f32.gmra.mrb[0].mxu0 %v7547
    %v7668 = vpop.f32.mrb[0].mxu0
    %v7669 = vadd.f32 0.0, %v7668
    %v7670 = vpop.f32.mrb[0].mxu0
    %7671 = vmatprep.mubr.f32.mxu0 0.0
    %7672 = vmatmul.mubr.f32.gmra.mrb[0].mxu0 %v7550
    %v7673 = vpop.f32.mrb[0].mxu0
    %v7674 = vadd.f32 0.0, %v7673
    %v7675 = vpop.f32.mrb[0].mxu0
    %7676 = vmatprep.mubr.f32.mxu0 0.0
    %7677 = vmatmul.mubr.f32.gmra.mrb[0].mxu0 %v7553
    %v7678 = vpop.f32.mrb[0].mxu0
    %v7679 = vadd.f32 0.0, %v7678
    %v7680 = vpop.f32.mrb[0].mxu0
    %7681 = vmatprep.mubr.f32.mxu0 0.0
    %7682 = vmatmul.mubr.f32.gmra.mrb[0].mxu0 %v7556
    %v7683 = vpop.f32.mrb[0].mxu0
    %v7684 = vadd.f32 0.0, %v7683
    %v7685 = vpop.f32.mrb[0].mxu0
    %7686 = vmatprep.mubr.f32.mxu0 0.0
    %7687 = vmatmul.mubr.f32.gmra.mrb[0].mxu0 %v7559
    %v7688 = vpop.f32.mrb[0].mxu0
    %v7689 = vadd.f32 0.0, %v7688
    %v7690 = vpop.f32.mrb[0].mxu0
    %7691 = vmatprep.mubr.f32.mxu0 0.0
    %7692 = vmatmul.mubr.f32.gmra.mrb[0].mxu0 %v7562
    %v7693 = vpop.f32.mrb[0].mxu0
    %v7694 = vadd.f32 0.0, %v7693
    %v7695 = vpop.f32.mrb[0].mxu0
    %7696 = vmatprep.mubr.f32.mxu0 0.0
    %7697 = vmatmul.mubr.f32.gmra.mrb[0].mxu0 %v7565
    %v7698 = vpop.f32.mrb[0].mxu0
    %v7699 = vadd.f32 0.0, %v7698
    %v7700 = vpop.f32.mrb[0].mxu0
    %7701 = vmatprep.mubr.f32.mxu0 0.0
    %7702 = vmatmul.mubr.f32.gmra.mrb[0].mxu0 %v7568
    %v7703 = vpop.f32.mrb[0].mxu0
    %v7704 = vadd.f32 0.0, %v7703
    %v7705 = vpop.f32.mrb[0].mxu0
    %7706 = vmatprep.mubr.f32.mxu0 0.0
    %7707 = vmatmul.mubr.f32.gmra.mrb[0].mxu0 %v7571
    %v7708 = vpop.f32.mrb[0].mxu0
    %v7709 = vadd.f32 0.0, %v7708
    %v7710 = vpop.f32.mrb[0].mxu0
    %7711 = vmatprep.mubr.f32.mxu0 0.0
    %7712 = vmatmul.mubr.f32.gmra.mrb[0].mxu0 %v7574
    %v7713 = vpop.f32.mrb[0].mxu0
    %v7714 = vadd.f32 0.0, %v7713
    %v7715 = vpop.f32.mrb[0].mxu0
    %7716 = vmatprep.mubr.f32.mxu0 0.0
    %7717 = vmatmul.mubr.f32.gmra.mrb[0].mxu0 %v7577
    %v7718 = vpop.f32.mrb[0].mxu0
    %v7719 = vadd.f32 0.0, %v7718
    %v7720 = vpop.f32.mrb[0].mxu0
    %7721 = vmatprep.mubr.f32.mxu0 0.0
    %7722 = vmatmul.mubr.f32.gmra.mrb[0].mxu0 %v7580
    %v7723 = vpop.f32.mrb[0].mxu0
    %v7724 = vadd.f32 0.0, %v7723
    %v7725 = vpop.f32.mrb[0].mxu0
    %7726 = vdwg.mxu0
    %v7727 = vadd.f32 %v6731, %v7649
    %v7728 = vadd.f32 %v6732, %v7654
    %v7729 = vadd.f32 %v6733, %v7659
    %v7730 = vadd.f32 %v6734, %v7664
    %v7731 = vadd.f32 %v6735, %v7669
    %v7732 = vadd.f32 %v6736, %v7674
    %v7733 = vadd.f32 %v6737, %v7679
    %v7734 = vadd.f32 %v6738, %v7684
    %v7735 = vadd.f32 %v6739, %v7689
    %v7736 = vadd.f32 %v6740, %v7694
    %v7737 = vadd.f32 %v6741, %v7699
    %v7738 = vadd.f32 %v6742, %v7704
    %v7739 = vadd.f32 %v6743, %v7709
    %v7740 = vadd.f32 %v6744, %v7714
    %v7741 = vadd.f32 %v6745, %v7719
    %v7742 = vadd.f32 %v6746, %v7724
    %v7744 = vsel %vm375, %v7727, 0
    %v7747 = vsel %vm375, %v7728, 0
    %v7750 = vsel %vm375, %v7729, 0
    %v7753 = vsel %vm375, %v7730, 0
    %v7756 = vsel %vm375, %v7731, 0
    %v7759 = vsel %vm375, %v7732, 0
    %v7762 = vsel %vm375, %v7733, 0
    %v7765 = vsel %vm375, %v7734, 0
    %v7768 = vsel %vm375, %v7735, 0
    %v7771 = vsel %vm375, %v7736, 0
    %v7774 = vsel %vm375, %v7737, 0
    %v7777 = vsel %vm375, %v7738, 0
    %v7780 = vsel %vm375, %v7739, 0
    %v7783 = vsel %vm375, %v7740, 0
    %v7786 = vsel %vm375, %v7741, 0
    %v7789 = vsel %vm375, %v7742, 0
    %7791 = vmatprep.subr.mxu0 0.0
    %7792 = vmatpush1.msra.mxu0 %v3042
    %7793 = vmatprep.subr.mxu0 0.0
    %7794 = vmatpush1.msra.mxu0 %v3043
    %7795 = vmatprep.subr.mxu0 0.0
    %7796 = vmatpush1.msra.mxu0 %v3044
    %7797 = vmatprep.subr.mxu0 0.0
    %7798 = vmatpush1.msra.mxu0 %v3045
    %7799 = vmatprep.subr.mxu0 0.0
    %7800 = vmatpush1.msra.mxu0 %v3046
    %7801 = vmatprep.subr.mxu0 0.0
    %7802 = vmatpush1.msra.mxu0 %v3047
    %7803 = vmatprep.subr.mxu0 0.0
    %7804 = vmatpush1.msra.mxu0 %v3048
    %7805 = vmatprep.subr.mxu0 0.0
    %7806 = vmatpush1.msra.mxu0 %v3049
    %7807 = vmatprep.subr.mxu0 0.0
    %7808 = vmatpush1.msra.mxu0 0.0
    %7809 = vmatprep.subr.mxu0 0.0
    %7810 = vmatpush1.msra.mxu0 0.0
    %7811 = vmatprep.subr.mxu0 0.0
    %7812 = vmatpush1.msra.mxu0 0.0
    %7813 = vmatprep.subr.mxu0 0.0
    %7814 = vmatpush1.msra.mxu0 0.0
    %7815 = vmatprep.subr.mxu0 0.0
    %7816 = vmatpush1.msra.mxu0 0.0
    %7817 = vmatprep.subr.mxu0 0.0
    %7818 = vmatpush1.msra.mxu0 0.0
    %7819 = vmatprep.subr.mxu0 0.0
    %7820 = vmatpush1.msra.mxu0 0.0
    %7821 = vmatprep.subr.mxu0 0.0
    %7822 = vmatpush1.msra.mxu0 0.0
    %7823 = vmatprep.subr.mxu0 0.0
    %7824 = vmatpush1.msra.mxu0 0.0
    %7825 = vmatprep.subr.mxu0 0.0
    %7826 = vmatpush1.msra.mxu0 0.0
    %7827 = vmatprep.subr.mxu0 0.0
    %7828 = vmatpush1.msra.mxu0 0.0
    %7829 = vmatprep.subr.mxu0 0.0
    %7830 = vmatpush1.msra.mxu0 0.0
    %7831 = vmatprep.subr.mxu0 0.0
    %7832 = vmatpush1.msra.mxu0 0.0
    %7833 = vmatprep.subr.mxu0 0.0
    %7834 = vmatpush1.msra.mxu0 0.0
    %7835 = vmatprep.subr.mxu0 0.0
    %7836 = vmatpush1.msra.mxu0 0.0
    %7837 = vmatprep.subr.mxu0 0.0
    %7838 = vmatpush1.msra.mxu0 0.0
    %7839 = vmatprep.subr.mxu0 0.0
    %7840 = vmatpush1.msra.mxu0 0.0
    %7841 = vmatprep.subr.mxu0 0.0
    %7842 = vmatpush1.msra.mxu0 0.0
    %7843 = vmatprep.subr.mxu0 0.0
    %7844 = vmatpush1.msra.mxu0 0.0
    %7845 = vmatprep.subr.mxu0 0.0
    %7846 = vmatpush1.msra.mxu0 0.0
    %7847 = vmatprep.subr.mxu0 0.0
    %7848 = vmatpush1.msra.mxu0 0.0
    %7849 = vmatprep.subr.mxu0 0.0
    %7850 = vmatpush1.msra.mxu0 0.0
    %7851 = vmatprep.subr.mxu0 0.0
    %7852 = vmatpush1.msra.mxu0 0.0
    %7853 = vmatprep.subr.mxu0 0.0
    %7854 = vmatpush1.msra.mxu0 0.0
    %7855 = vmatprep.mubr.f32.mxu0 0.0
    %7856 = vmatmul.mubr.f32.gmra.mrb[0].mxu0 %v7744
    %v7857 = vpop.f32.mrb[0].mxu0
    %v7858 = vadd.f32 %v3055, %v7857
    %v7859 = vpop.f32.mrb[0].mxu0
    %7860 = vmatprep.mubr.f32.mxu0 0.0
    %7861 = vmatmul.mubr.f32.gmra.mrb[0].mxu0 %v7747
    %v7862 = vpop.f32.mrb[0].mxu0
    %v7863 = vadd.f32 %v3055, %v7862
    %v7864 = vpop.f32.mrb[0].mxu0
    %7865 = vmatprep.mubr.f32.mxu0 0.0
    %7866 = vmatmul.mubr.f32.gmra.mrb[0].mxu0 %v7750
    %v7867 = vpop.f32.mrb[0].mxu0
    %v7868 = vadd.f32 %v3055, %v7867
    %v7869 = vpop.f32.mrb[0].mxu0
    %7870 = vmatprep.mubr.f32.mxu0 0.0
    %7871 = vmatmul.mubr.f32.gmra.mrb[0].mxu0 %v7753
    %v7872 = vpop.f32.mrb[0].mxu0
    %v7873 = vadd.f32 %v3055, %v7872
    %v7874 = vpop.f32.mrb[0].mxu0
    %7875 = vmatprep.mubr.f32.mxu0 0.0
    %7876 = vmatmul.mubr.f32.gmra.mrb[0].mxu0 %v7756
    %v7877 = vpop.f32.mrb[0].mxu0
    %v7878 = vadd.f32 %v3055, %v7877
    %v7879 = vpop.f32.mrb[0].mxu0
    %7880 = vmatprep.mubr.f32.mxu0 0.0
    %7881 = vmatmul.mubr.f32.gmra.mrb[0].mxu0 %v7759
    %v7882 = vpop.f32.mrb[0].mxu0
    %v7883 = vadd.f32 %v3055, %v7882
    %v7884 = vpop.f32.mrb[0].mxu0
    %7885 = vmatprep.mubr.f32.mxu0 0.0
    %7886 = vmatmul.mubr.f32.gmra.mrb[0].mxu0 %v7762
    %v7887 = vpop.f32.mrb[0].mxu0
    %v7888 = vadd.f32 %v3055, %v7887
    %v7889 = vpop.f32.mrb[0].mxu0
    %7890 = vmatprep.mubr.f32.mxu0 0.0
    %7891 = vmatmul.mubr.f32.gmra.mrb[0].mxu0 %v7765
    %v7892 = vpop.f32.mrb[0].mxu0
    %v7893 = vadd.f32 %v3055, %v7892
    %v7894 = vpop.f32.mrb[0].mxu0
    %7895 = vmatprep.mubr.f32.mxu0 0.0
    %7896 = vmatmul.mubr.f32.gmra.mrb[0].mxu0 %v7768
    %v7897 = vpop.f32.mrb[0].mxu0
    %v7898 = vadd.f32 %v3055, %v7897
    %v7899 = vpop.f32.mrb[0].mxu0
    %7900 = vmatprep.mubr.f32.mxu0 0.0
    %7901 = vmatmul.mubr.f32.gmra.mrb[0].mxu0 %v7771
    %v7902 = vpop.f32.mrb[0].mxu0
    %v7903 = vadd.f32 %v3055, %v7902
    %v7904 = vpop.f32.mrb[0].mxu0
    %7905 = vmatprep.mubr.f32.mxu0 0.0
    %7906 = vmatmul.mubr.f32.gmra.mrb[0].mxu0 %v7774
    %v7907 = vpop.f32.mrb[0].mxu0
    %v7908 = vadd.f32 %v3055, %v7907
    %v7909 = vpop.f32.mrb[0].mxu0
    %7910 = vmatprep.mubr.f32.mxu0 0.0
    %7911 = vmatmul.mubr.f32.gmra.mrb[0].mxu0 %v7777
    %v7912 = vpop.f32.mrb[0].mxu0
    %v7913 = vadd.f32 %v3055, %v7912
    %v7914 = vpop.f32.mrb[0].mxu0
    %7915 = vmatprep.mubr.f32.mxu0 0.0
    %7916 = vmatmul.mubr.f32.gmra.mrb[0].mxu0 %v7780
    %v7917 = vpop.f32.mrb[0].mxu0
    %v7918 = vadd.f32 %v3055, %v7917
    %v7919 = vpop.f32.mrb[0].mxu0
    %7920 = vmatprep.mubr.f32.mxu0 0.0
    %7921 = vmatmul.mubr.f32.gmra.mrb[0].mxu0 %v7783
    %v7922 = vpop.f32.mrb[0].mxu0
    %v7923 = vadd.f32 %v3055, %v7922
    %v7924 = vpop.f32.mrb[0].mxu0
    %7925 = vmatprep.mubr.f32.mxu0 0.0
    %7926 = vmatmul.mubr.f32.gmra.mrb[0].mxu0 %v7786
    %v7927 = vpop.f32.mrb[0].mxu0
    %v7928 = vadd.f32 %v3055, %v7927
    %v7929 = vpop.f32.mrb[0].mxu0
    %7930 = vmatprep.mubr.f32.mxu0 0.0
    %7931 = vmatmul.mubr.f32.gmra.mrb[0].mxu0 %v7789
    %v7932 = vpop.f32.mrb[0].mxu0
    %v7933 = vadd.f32 %v3055, %v7932
    %v7934 = vpop.f32.mrb[0].mxu0
    %7935 = vdwg.mxu0
    %v7936 = vmul.f32 %v7858, -0.0292
    %v7937 = vmul.f32 %v7863, -0.0292
    %v7938 = vmul.f32 %v7868, -0.0292
    %v7939 = vmul.f32 %v7873, -0.0292
    %v7940 = vmul.f32 %v7878, -0.0292
    %v7941 = vmul.f32 %v7883, -0.0292
    %v7942 = vmul.f32 %v7888, -0.0292
    %v7943 = vmul.f32 %v7893, -0.0292
    %v7944 = vmul.f32 %v7898, -0.0292
    %v7945 = vmul.f32 %v7903, -0.0292
    %v7946 = vmul.f32 %v7908, -0.0292
    %v7947 = vmul.f32 %v7913, -0.0292
    %v7948 = vmul.f32 %v7918, -0.0292
    %v7949 = vmul.f32 %v7923, -0.0292
    %v7950 = vmul.f32 %v7928, -0.0292
    %v7951 = vmul.f32 %v7933, -0.0292
    %v7952 = vadd.f32 %v6390, %v7936
    %v7953 = vadd.f32 %v6391, %v7937
    %v7954 = vadd.f32 %v6392, %v7938
    %v7955 = vadd.f32 %v6393, %v7939
    %v7956 = vadd.f32 %v6394, %v7940
    %v7957 = vadd.f32 %v6395, %v7941
    %v7958 = vadd.f32 %v6396, %v7942
    %v7959 = vadd.f32 %v6397, %v7943
    %v7960 = vadd.f32 %v6398, %v7944
    %v7961 = vadd.f32 %v6399, %v7945
    %v7962 = vadd.f32 %v6400, %v7946
    %v7963 = vadd.f32 %v6401, %v7947
    %v7964 = vadd.f32 %v6402, %v7948
    %v7965 = vadd.f32 %v6403, %v7949
    %v7966 = vadd.f32 %v6404, %v7950
    %v7967 = vadd.f32 %v6405, %v7951
    %v7968 = vld [vmem:[%s26] sm:$0xf]
    %v7969 = vld [vmem:[%s27] sm:$0x1]
    %v7971 = vlaneseq
    %v7972 = vshrl.u32 %v7971, 7
    %v7973 = vsub.s32 0, %v7972
    %v7974 = vrot.slane %v7969, %v7973
    %v7977 = vsel %vm1688, %v7952, 0
    %v7980 = vsel %vm1688, %v7953, 0
    %v7983 = vsel %vm1688, %v7954, 0
    %v7986 = vsel %vm1688, %v7955, 0
    %v7989 = vsel %vm1688, %v7956, 0
    %v7992 = vsel %vm1688, %v7957, 0
    %v7995 = vsel %vm1688, %v7958, 0
    %v7998 = vsel %vm1688, %v7959, 0
    %v8001 = vsel %vm1688, %v7960, 0
    %v8004 = vsel %vm1688, %v7961, 0
    %v8007 = vsel %vm1688, %v7962, 0
    %v8010 = vsel %vm1688, %v7963, 0
    %v8013 = vsel %vm1688, %v7964, 0
    %v8016 = vsel %vm1688, %v7965, 0
    %v8019 = vsel %vm1688, %v7966, 0
    %v8022 = vsel %vm1688, %v7967, 0
    %v8025 = vsel %vm1737, %v7968, 0
    %8027 = vmatprep.subr.mxu0 0.0
    %8028 = vmatpush1.msra.mxu0 %v8025
    %8029 = vmatprep.subr.mxu0 0.0
    %8030 = vmatpush1.msra.mxu0 0.0
    %8031 = vmatprep.subr.mxu0 0.0
    %8032 = vmatpush1.msra.mxu0 0.0
    %8033 = vmatprep.subr.mxu0 0.0
    %8034 = vmatpush1.msra.mxu0 0.0
    %8035 = vmatprep.subr.mxu0 0.0
    %8036 = vmatpush1.msra.mxu0 0.0
    %8037 = vmatprep.subr.mxu0 0.0
    %8038 = vmatpush1.msra.mxu0 0.0
    %8039 = vmatprep.subr.mxu0 0.0
    %8040 = vmatpush1.msra.mxu0 0.0
    %8041 = vmatprep.subr.mxu0 0.0
    %8042 = vmatpush1.msra.mxu0 0.0
    %8043 = vmatprep.subr.mxu0 0.0
    %8044 = vmatpush1.msra.mxu0 0.0
    %8045 = vmatprep.subr.mxu0 0.0
    %8046 = vmatpush1.msra.mxu0 0.0
    %8047 = vmatprep.subr.mxu0 0.0
    %8048 = vmatpush1.msra.mxu0 0.0
    %8049 = vmatprep.subr.mxu0 0.0
    %8050 = vmatpush1.msra.mxu0 0.0
    %8051 = vmatprep.subr.mxu0 0.0
    %8052 = vmatpush1.msra.mxu0 0.0
    %8053 = vmatprep.subr.mxu0 0.0
    %8054 = vmatpush1.msra.mxu0 0.0
    %8055 = vmatprep.subr.mxu0 0.0
    %8056 = vmatpush1.msra.mxu0 0.0
    %8057 = vmatprep.subr.mxu0 0.0
    %8058 = vmatpush1.msra.mxu0 0.0
    %8059 = vmatprep.subr.mxu0 0.0
    %8060 = vmatpush1.msra.mxu0 0.0
    %8061 = vmatprep.subr.mxu0 0.0
    %8062 = vmatpush1.msra.mxu0 0.0
    %8063 = vmatprep.subr.mxu0 0.0
    %8064 = vmatpush1.msra.mxu0 0.0
    %8065 = vmatprep.subr.mxu0 0.0
    %8066 = vmatpush1.msra.mxu0 0.0
    %8067 = vmatprep.subr.mxu0 0.0
    %8068 = vmatpush1.msra.mxu0 0.0
    %8069 = vmatprep.subr.mxu0 0.0
    %8070 = vmatpush1.msra.mxu0 0.0
    %8071 = vmatprep.subr.mxu0 0.0
    %8072 = vmatpush1.msra.mxu0 0.0
    %8073 = vmatprep.subr.mxu0 0.0
    %8074 = vmatpush1.msra.mxu0 0.0
    %8075 = vmatprep.subr.mxu0 0.0
    %8076 = vmatpush1.msra.mxu0 0.0
    %8077 = vmatprep.subr.mxu0 0.0
    %8078 = vmatpush1.msra.mxu0 0.0
    %8079 = vmatprep.subr.mxu0 0.0
    %8080 = vmatpush1.msra.mxu0 0.0
    %8081 = vmatprep.subr.mxu0 0.0
    %8082 = vmatpush1.msra.mxu0 0.0
    %8083 = vmatprep.subr.mxu0 0.0
    %8084 = vmatpush1.msra.mxu0 0.0
    %8085 = vmatprep.subr.mxu0 0.0
    %8086 = vmatpush1.msra.mxu0 0.0
    %8087 = vmatprep.subr.mxu0 0.0
    %8088 = vmatpush1.msra.mxu0 0.0
    %8089 = vmatprep.subr.mxu0 0.0
    %8090 = vmatpush1.msra.mxu0 0.0
    %8091 = vmatprep.mubr.f32.mxu0 0.0
    %8092 = vmatmul.mubr.f32.gmra.mrb[0].mxu0 %v7977
    %v8093 = vpop.f32.mrb[0].mxu0
    %v8094 = vadd.f32 %v7974, %v8093
    %v8095 = vpop.f32.mrb[0].mxu0
    %8096 = vmatprep.mubr.f32.mxu0 0.0
    %8097 = vmatmul.mubr.f32.gmra.mrb[0].mxu0 %v7980
    %v8098 = vpop.f32.mrb[0].mxu0
    %v8099 = vadd.f32 %v7974, %v8098
    %v8100 = vpop.f32.mrb[0].mxu0
    %8101 = vmatprep.mubr.f32.mxu0 0.0
    %8102 = vmatmul.mubr.f32.gmra.mrb[0].mxu0 %v7983
    %v8103 = vpop.f32.mrb[0].mxu0
    %v8104 = vadd.f32 %v7974, %v8103
    %v8105 = vpop.f32.mrb[0].mxu0
    %8106 = vmatprep.mubr.f32.mxu0 0.0
    %8107 = vmatmul.mubr.f32.gmra.mrb[0].mxu0 %v7986
    %v8108 = vpop.f32.mrb[0].mxu0
    %v8109 = vadd.f32 %v7974, %v8108
    %v8110 = vpop.f32.mrb[0].mxu0
    %8111 = vmatprep.mubr.f32.mxu0 0.0
    %8112 = vmatmul.mubr.f32.gmra.mrb[0].mxu0 %v7989
    %v8113 = vpop.f32.mrb[0].mxu0
    %v8114 = vadd.f32 %v7974, %v8113
    %v8115 = vpop.f32.mrb[0].mxu0
    %8116 = vmatprep.mubr.f32.mxu0 0.0
    %8117 = vmatmul.mubr.f32.gmra.mrb[0].mxu0 %v7992
    %v8118 = vpop.f32.mrb[0].mxu0
    %v8119 = vadd.f32 %v7974, %v8118
    %v8120 = vpop.f32.mrb[0].mxu0
    %8121 = vmatprep.mubr.f32.mxu0 0.0
    %8122 = vmatmul.mubr.f32.gmra.mrb[0].mxu0 %v7995
    %v8123 = vpop.f32.mrb[0].mxu0
    %v8124 = vadd.f32 %v7974, %v8123
    %v8125 = vpop.f32.mrb[0].mxu0
    %8126 = vmatprep.mubr.f32.mxu0 0.0
    %8127 = vmatmul.mubr.f32.gmra.mrb[0].mxu0 %v7998
    %v8128 = vpop.f32.mrb[0].mxu0
    %v8129 = vadd.f32 %v7974, %v8128
    %v8130 = vpop.f32.mrb[0].mxu0
    %8131 = vmatprep.mubr.f32.mxu0 0.0
    %8132 = vmatmul.mubr.f32.gmra.mrb[0].mxu0 %v8001
    %v8133 = vpop.f32.mrb[0].mxu0
    %v8134 = vadd.f32 %v7974, %v8133
    %v8135 = vpop.f32.mrb[0].mxu0
    %8136 = vmatprep.mubr.f32.mxu0 0.0
    %8137 = vmatmul.mubr.f32.gmra.mrb[0].mxu0 %v8004
    %v8138 = vpop.f32.mrb[0].mxu0
    %v8139 = vadd.f32 %v7974, %v8138
    %v8140 = vpop.f32.mrb[0].mxu0
    %8141 = vmatprep.mubr.f32.mxu0 0.0
    %8142 = vmatmul.mubr.f32.gmra.mrb[0].mxu0 %v8007
    %v8143 = vpop.f32.mrb[0].mxu0
    %v8144 = vadd.f32 %v7974, %v8143
    %v8145 = vpop.f32.mrb[0].mxu0
    %8146 = vmatprep.mubr.f32.mxu0 0.0
    %8147 = vmatmul.mubr.f32.gmra.mrb[0].mxu0 %v8010
    %v8148 = vpop.f32.mrb[0].mxu0
    %v8149 = vadd.f32 %v7974, %v8148
    %v8150 = vpop.f32.mrb[0].mxu0
    %8151 = vmatprep.mubr.f32.mxu0 0.0
    %8152 = vmatmul.mubr.f32.gmra.mrb[0].mxu0 %v8013
    %v8153 = vpop.f32.mrb[0].mxu0
    %v8154 = vadd.f32 %v7974, %v8153
    %v8155 = vpop.f32.mrb[0].mxu0
    %8156 = vmatprep.mubr.f32.mxu0 0.0
    %8157 = vmatmul.mubr.f32.gmra.mrb[0].mxu0 %v8016
    %v8158 = vpop.f32.mrb[0].mxu0
    %v8159 = vadd.f32 %v7974, %v8158
    %v8160 = vpop.f32.mrb[0].mxu0
    %8161 = vmatprep.mubr.f32.mxu0 0.0
    %8162 = vmatmul.mubr.f32.gmra.mrb[0].mxu0 %v8019
    %v8163 = vpop.f32.mrb[0].mxu0
    %v8164 = vadd.f32 %v7974, %v8163
    %v8165 = vpop.f32.mrb[0].mxu0
    %8166 = vmatprep.mubr.f32.mxu0 0.0
    %8167 = vmatmul.mubr.f32.gmra.mrb[0].mxu0 %v8022
    %v8168 = vpop.f32.mrb[0].mxu0
    %v8169 = vadd.f32 %v7974, %v8168
    %v8170 = vpop.f32.mrb[0].mxu0
    %8171 = vdwg.mxu0
    %v8172 = vmax.f32 %v8094, 0.0
    %v8173 = vmax.f32 %v8099, 0.0
    %v8174 = vmax.f32 %v8104, 0.0
    %v8175 = vmax.f32 %v8109, 0.0
    %v8176 = vmax.f32 %v8114, 0.0
    %v8177 = vmax.f32 %v8119, 0.0
    %v8178 = vmax.f32 %v8124, 0.0
    %v8179 = vmax.f32 %v8129, 0.0
    %v8180 = vmax.f32 %v8134, 0.0
    %v8181 = vmax.f32 %v8139, 0.0
    %v8182 = vmax.f32 %v8144, 0.0
    %v8183 = vmax.f32 %v8149, 0.0
    %v8184 = vmax.f32 %v8154, 0.0
    %v8185 = vmax.f32 %v8159, 0.0
    %v8186 = vmax.f32 %v8164, 0.0
    %v8187 = vmax.f32 %v8169, 0.0
    %v8188 = vmin.f32 %v8172, 255.0
    %v8189 = vmin.f32 %v8173, 255.0
    %v8190 = vmin.f32 %v8174, 255.0
    %v8191 = vmin.f32 %v8175, 255.0
    %v8192 = vmin.f32 %v8176, 255.0
    %v8193 = vmin.f32 %v8177, 255.0
    %v8194 = vmin.f32 %v8178, 255.0
    %v8195 = vmin.f32 %v8179, 255.0
    %v8196 = vmin.f32 %v8180, 255.0
    %v8197 = vmin.f32 %v8181, 255.0
    %v8198 = vmin.f32 %v8182, 255.0
    %v8199 = vmin.f32 %v8183, 255.0
    %v8200 = vmin.f32 %v8184, 255.0
    %v8201 = vmin.f32 %v8185, 255.0
    %v8202 = vmin.f32 %v8186, 255.0
    %v8203 = vmin.f32 %v8187, 255.0
    %v8204 = vround.ne.pseudo %v8188
    %v8205 = vround.ne.pseudo %v8189
    %v8206 = vround.ne.pseudo %v8190
    %v8207 = vround.ne.pseudo %v8191
    %v8208 = vround.ne.pseudo %v8192
    %v8209 = vround.ne.pseudo %v8193
    %v8210 = vround.ne.pseudo %v8194
    %v8211 = vround.ne.pseudo %v8195
    %v8212 = vround.ne.pseudo %v8196
    %v8213 = vround.ne.pseudo %v8197
    %v8214 = vround.ne.pseudo %v8198
    %v8215 = vround.ne.pseudo %v8199
    %v8216 = vround.ne.pseudo %v8200
    %v8217 = vround.ne.pseudo %v8201
    %v8218 = vround.ne.pseudo %v8202
    %v8219 = vround.ne.pseudo %v8203
    %vm8220 = vcmask 23552
    %8221 = vst.msk [vmem:[%s28] sm:$0xff] %vm8220, %v8204
    %8222 = vst.msk [vmem:[%s28 + $0x8] sm:$0xff] %vm8220, %v8205
    %8223 = vst.msk [vmem:[%s28 + $0x10] sm:$0xff] %vm8220, %v8206
    %8224 = vst.msk [vmem:[%s28 + $0x18] sm:$0xff] %vm8220, %v8207
    %8225 = vst.msk [vmem:[%s28 + $0x20] sm:$0xff] %vm8220, %v8208
    %8226 = vst.msk [vmem:[%s28 + $0x28] sm:$0xff] %vm8220, %v8209
    %8227 = vst.msk [vmem:[%s28 + $0x30] sm:$0xff] %vm8220, %v8210
    %8228 = vst.msk [vmem:[%s28 + $0x38] sm:$0xff] %vm8220, %v8211
    %8229 = vst.msk [vmem:[%s28 + $0x40] sm:$0xff] %vm8220, %v8212
    %8230 = vst.msk [vmem:[%s28 + $0x48] sm:$0xff] %vm8220, %v8213
    %8231 = vst.msk [vmem:[%s28 + $0x50] sm:$0xff] %vm8220, %v8214
    %8232 = vst.msk [vmem:[%s28 + $0x58] sm:$0xff] %vm8220, %v8215
    %8233 = vst.msk [vmem:[%s28 + $0x60] sm:$0xff] %vm8220, %v8216
    %8234 = vst.msk [vmem:[%s28 + $0x68] sm:$0xff] %vm8220, %v8217
    %8235 = vst.msk [vmem:[%s28 + $0x70] sm:$0xff] %vm8220, %v8218
    %8236 = vst.msk [vmem:[%s28 + $0x78] sm:$0xff] %vm8220, %v8219
    // Predicated region
    $region170: #{tpu_custom_call.1} parent=1 // pred_check
      _
    $region171: #{tpu_custom_call.1} parent=1 // pred_check_branch
      %8238 = sbr.rel (0) target = $region173
    $region172: #{tpu_custom_call.1} parent=1 // pred_region
      _
    $region173: #{tpu_custom_call.1} parent=1 // pred_fallthru
      _
    // Predicated region
    $region174: #{tpu_custom_call.1} parent=1 // pred_check
      _
    $region175: #{tpu_custom_call.1} parent=1 // pred_check_branch
      %8240 = sbr.rel (0) target = $region177
    $region176: #{tpu_custom_call.1} parent=1 // pred_region
      _
    $region177: #{tpu_custom_call.1} parent=1 // pred_fallthru
      _
    %8241 = vsyncpa [#allocation3], 1
    %8242 = vsyncpa [#allocation5], 1
    %8243 = vsyncpa [#allocation8], 1
    %8244 = vsyncpa [#allocation11], 1
    %8245 = vsyncpa [#allocation14], 1
    %8246 = vsyncpa [#allocation17], 1
    %8247 = vsyncpa [#allocation20], 1
    %8248 = vsyncpa [#allocation23], 1

</llo_original>
